<compile_context>
chip_gen: v5e
topology: v5e:2x2
jax: 0.10.0
libtpu: 0.0.40
codegen_flags: <defaults>
</compile_context>

<pallas_src>
import functools

import numpy as np
import jax
import jax.numpy as jnp
from jax.experimental import pallas as pl
from jax.experimental.pallas import tpu as pltpu

BN_EPS = 1e-5
ENC_CHANNELS = [(3, 16), (16, 32), (32, 64), (64, 128)]
DEC_CHANNELS = [(128, 64), (64, 32), (32, 16), (16, 3)]


# -----------------------------------------------------------------------------
# The single fused Pallas kernel.
# -----------------------------------------------------------------------------
def _ae_kernel(*refs, stages):
    in_refs = refs[:-1]
    out_ref = refs[-1]
    h = in_refs[0][...]                                    # (B*H0, W0*C0) f32

    for st in stages:
        if st["kind"] == "conv":                           # conv or conv-transpose
            S3 = in_refs[st["S"]]                          # (3, Mo, Mi)  bf16
            G = in_refs[st["G"]][...]                      # (3*K, N)     bf16
            hb = h.astype(jnp.bfloat16)
            parts = [
                jnp.dot(S3[k], hb, preferred_element_type=jnp.float32)
                for k in range(3)
            ]
            a = jnp.concatenate(parts, axis=1).astype(jnp.bfloat16)   # (Mo, 3K)
            y = jnp.dot(a, G, preferred_element_type=jnp.float32)     # (Mo, N)
            y = y + in_refs[st["bias"]][...]               # (1, N) broadcast

            if st["act"] == "relu":
                y = jnp.maximum(y, 0.0)
            else:                                          # "tanh" (last layer)
                y = jnp.tanh(y)

            if st["bn"]:
                # Training-mode BatchNorm2d: biased per-channel batch stats over
                # (B, H, W).  P / PT fold the lane-merged (w, c) axis to per-
                # channel vectors and back, on the MXU (tiny f32 matmuls).
                inv_m = 1.0 / st["m_cnt"]
                P = in_refs[st["P"]][...]                  # (N, C) f32
                PT = in_refs[st["PT"]][...]                # (C, N) f32
                gamma = in_refs[st["gamma"]][...]          # (1, C) f32
                beta = in_refs[st["beta"]][...]            # (1, C) f32
                mean_c = jnp.dot(jnp.sum(y, axis=0, keepdims=True), P,
                                 preferred_element_type=jnp.float32) * inv_m
                cen = y - jnp.dot(mean_c, PT,
                                  preferred_element_type=jnp.float32)
                var_c = jnp.dot(jnp.sum(cen * cen, axis=0, keepdims=True), P,
                                preferred_element_type=jnp.float32) * inv_m
                scale_c = gamma * jax.lax.rsqrt(var_c + BN_EPS)
                y = (cen * jnp.dot(scale_c, PT,
                                   preferred_element_type=jnp.float32)
                     + jnp.dot(beta, PT, preferred_element_type=jnp.float32))
            h = y

        else:                                              # "fc" bottleneck
            Se = in_refs[st["Se"]]                         # (2, B, 2B) bf16
            We = in_refs[st["We"]][...]                    # (512, L)   bf16
            Wd = in_refs[st["Wd"]][...]                    # (L, 512)   bf16
            hb = h.astype(jnp.bfloat16)
            flat = jnp.concatenate(
                [jnp.dot(Se[k], hb, preferred_element_type=jnp.float32)
                 for k in range(2)], axis=1)               # (B, 512) f32
            z = jnp.dot(flat.astype(jnp.bfloat16), We,
                        preferred_element_type=jnp.float32) \
                + in_refs[st["be"]][...]                   # (B, L)
            d = jnp.dot(z.astype(jnp.bfloat16), Wd,
                        preferred_element_type=jnp.float32) \
                + in_refs[st["bd"]][...]                   # (B, 512)
            half = st["half"]
            # Decoder input rows ordered (h, b); the first decoder layer's row
            # selectors are built for exactly this ordering.
            h = jnp.concatenate([d[:, :half], d[:, half:]], axis=0)

    out_ref[...] = h


# -----------------------------------------------------------------------------
# Host-side constant builders (run once, outside the kernel).
# -----------------------------------------------------------------------------
def _build_enc_S(batch, h_in):
    """(3, B*Ho, B*H) 0/1 selectors: output row (b,ho) of S_kh picks input row
    2*ho + kh - 1 of image b; an all-zero row realises the zero padding."""
    ho_n = h_in // 2
    s = np.zeros((3, batch * ho_n, batch * h_in), np.float32)
    for kh in range(3):
        for b in range(batch):
            for ho in range(ho_n):
                j = 2 * ho + kh - 1
                if 0 <= j < h_in:
                    s[kh, b * ho_n + ho, b * h_in + j] = 1.0
    return s


def _build_enc_G(w_oihw, w_in):
    """Block-banded (3*W*Cin, Wo*Cout) weights for Conv2d(k3, s2, p1)."""
    c_out, c_in, _, _ = w_oihw.shape
    wo_n = w_in // 2
    g = np.zeros((3, w_in * c_in, wo_n * c_out), np.float32)
    for kh in range(3):
        for wo in range(wo_n):
            for kw in range(3):
                w = 2 * wo + kw - 1
                if 0 <= w < w_in:
                    g[kh, w * c_in:(w + 1) * c_in,
                      wo * c_out:(wo + 1) * c_out] = w_oihw[:, :, kh, kw].T
    return g.reshape(3 * w_in * c_in, wo_n * c_out)


def _build_dec_R(batch, h_in, in_order_hb):
    """(3, B*Hout, B*Hin) selectors for ConvTranspose2d(k3,s2,p1,op1):
    output row i of image b receives input row a through kernel row kh iff
    i == 2a - 1 + kh (polyphase form, no zero-dilated buffer)."""
    h_out = 2 * h_in
    r = np.zeros((3, batch * h_out, batch * h_in), np.float32)
    for kh in range(3):
        for b in range(batch):
            for a in range(h_in):
                i = 2 * a - 1 + kh
                if 0 <= i < h_out:
                    col = a * batch + b if in_order_hb else b * h_in + a
                    r[kh, b * h_out + i, col] = 1.0
    return r


def _build_dec_G(w_iohw, w_in):
    """Block-banded (3*W*Cin, Wout*Cout) weights for ConvTranspose2d."""
    c_in, c_out, _, _ = w_iohw.shape
    w_out = 2 * w_in
    g = np.zeros((3, w_in * c_in, w_out * c_out), np.float32)
    for kh in range(3):
        for w in range(w_in):
            for kw in range(3):
                j = 2 * w - 1 + kw
                if 0 <= j < w_out:
                    g[kh, w * c_in:(w + 1) * c_in,
                      j * c_out:(j + 1) * c_out] = w_iohw[:, :, kh, kw]
    return g.reshape(3 * w_in * c_in, w_out * c_out)


def _build_P(w_n, c_n):
    """(W*C, C) summing matrix: folds the lane-merged (w, c) axis to channels."""
    return np.tile(np.eye(c_n, dtype=np.float32), (w_n, 1))


def build_forward(params, batch, h0, w0):
    """Precompute all constant operands and return a jittable forward fn."""
    consts = []

    def add(arr, dtype):
        consts.append(jnp.asarray(np.asarray(arr), dtype=dtype))
        return len(consts)                     # refs[0] is the input slab

    stages = []
    f32, bf16 = jnp.float32, jnp.bfloat16

    # ---- encoder: 4 x [Conv(k3,s2,p1) -> ReLU -> BatchNorm2d] -------------
    h, w = h0, w0
    for idx, (_c_in, c_out) in enumerate(ENC_CHANNELS):
        cw, cb, g, be = (np.asarray(t) for t in params[f"enc{idx}"])
        ho, wo = h // 2, w // 2
        stages.append(dict(
            kind="conv", act="relu", bn=True, m_cnt=float(batch * ho * wo),
            S=add(_build_enc_S(batch, h), bf16),
            G=add(_build_enc_G(cw, w), bf16),
            bias=add(np.tile(cb, wo)[None, :], f32),
            gamma=add(g[None, :], f32),
            beta=add(be[None, :], f32),
            P=add(_build_P(wo, c_out), f32),
            PT=add(_build_P(wo, c_out).T, f32),
        ))
        h, w = ho, wo

    # ---- fc bottleneck (PyTorch flattens NCHW; permute weights on host) ----
    c_lat = ENC_CHANNELS[-1][1]                       # 128, spatial now h=w=2
    we = np.asarray(params["fc_enc_w"])               # (L, C*h*w) cols (c,h,w)
    be_ = np.asarray(params["fc_enc_b"])
    wd = np.asarray(params["fc_dec_w"])               # (C*h*w, L)
    bd = np.asarray(params["fc_dec_b"])
    l_dim = we.shape[0]
    we_k = we.reshape(l_dim, c_lat, h, w).transpose(2, 3, 1, 0) \
             .reshape(h * w * c_lat, l_dim)
    wd_k = wd.reshape(c_lat, h, w, l_dim).transpose(3, 1, 2, 0) \
             .reshape(l_dim, h * w * c_lat)
    bd_k = bd.reshape(c_lat, h, w).transpose(1, 2, 0).reshape(1, -1)
    se = np.zeros((h, batch, batch * h), np.float32)
    for r in range(h):
        for b in range(batch):
            se[r, b, b * h + r] = 1.0
    stages.append(dict(
        kind="fc", half=w * c_lat,
        Se=add(se, bf16), We=add(we_k, bf16), be=add(be_[None, :], f32),
        Wd=add(wd_k, bf16), bd=add(bd_k, f32),
    ))

    # ---- decoder: 4 x [ConvT(k3,s2,p1,op1) -> ReLU+BN | Tanh] --------------
    for idx, (_c_in, c_out) in enumerate(DEC_CHANNELS):
        tw, tb, g, be = (np.asarray(t) for t in params[f"dec{idx}"])
        h_out, w_out = 2 * h, 2 * w
        last = idx == len(DEC_CHANNELS) - 1
        st = dict(
            kind="conv", act="tanh" if last else "relu", bn=not last,
            m_cnt=float(batch * h_out * w_out),
            S=add(_build_dec_R(batch, h, in_order_hb=(idx == 0)), bf16),
            G=add(_build_dec_G(tw, w), bf16),
            bias=add(np.tile(tb, w_out)[None, :], f32),
        )
        if not last:
            st.update(
                gamma=add(g[None, :], f32), beta=add(be[None, :], f32),
                P=add(_build_P(w_out, c_out), f32),
                PT=add(_build_P(w_out, c_out).T, f32),
            )
        stages.append(st)
        h, w = h_out, w_out

    c_final = DEC_CHANNELS[-1][1]
    out_shape = jax.ShapeDtypeStruct((batch * h, w * c_final), jnp.float32)

    vmem = pl.BlockSpec(memory_space=pltpu.MemorySpace.VMEM)
    call = pl.pallas_call(
        functools.partial(_ae_kernel, stages=stages),
        out_shape=out_shape,
        in_specs=[vmem] * (1 + len(consts)),
        out_specs=vmem,
    )
    # Note: for large batches, tile the (B*H) row dim with a ("parallel",) grid
    # so v7x's two TensorCores split the work; at batch=2 there is nothing to
    # split and a grid would only add per-step overhead.

    def forward(x_nchw):
        b_, c_, hh, ww = x_nchw.shape
        x2d = jnp.transpose(x_nchw, (0, 2, 3, 1)).reshape(b_ * hh, ww * c_)
        y2d = call(x2d, *consts)
        return y2d.reshape(b_, h, w, c_final).transpose(0, 3, 1, 2)

    return forward


# -----------------------------------------------------------------------------
# Deterministic parameters (shapes from the nn.Module __init__).
# -----------------------------------------------------------------------------
def init_params(key, latent_dim=128):
    params = {}
    keys = iter(jax.random.split(key, 32))
    for idx, (cin, cout) in enumerate(ENC_CHANNELS):
        w = 0.1 * jax.random.normal(next(keys), (cout, cin, 3, 3), jnp.float32)
        b = 0.05 * jax.random.normal(next(keys), (cout,), jnp.float32)
        params[f"enc{idx}"] = (w, b, jnp.ones((cout,), jnp.float32),
                               jnp.zeros((cout,), jnp.float32))
    params["fc_enc_w"] = 0.05 * jax.random.normal(
        next(keys), (latent_dim, 128 * 2 * 2), jnp.float32)
    params["fc_enc_b"] = 0.05 * jax.random.normal(
        next(keys), (latent_dim,), jnp.float32)
    params["fc_dec_w"] = 0.05 * jax.random.normal(
        next(keys), (128 * 2 * 2, latent_dim), jnp.float32)
    params["fc_dec_b"] = 0.05 * jax.random.normal(
        next(keys), (128 * 2 * 2,), jnp.float32)
    for idx, (cin, cout) in enumerate(DEC_CHANNELS):
        w = 0.1 * jax.random.normal(next(keys), (cin, cout, 3, 3), jnp.float32)
        b = 0.05 * jax.random.normal(next(keys), (cout,), jnp.float32)
        params[f"dec{idx}"] = (w, b, jnp.ones((cout,), jnp.float32),
                               jnp.zeros((cout,), jnp.float32))
    return params


# -----------------------------------------------------------------------------
# Pure-JAX reference (same math, MXU-matching bf16 rounding of matmul inputs).
# -----------------------------------------------------------------------------
def _bf(x):
    return x.astype(jnp.bfloat16).astype(jnp.float32)


def reference_forward(x_nchw, params):
    f32 = jnp.float32
    h = jnp.transpose(x_nchw, (0, 2, 3, 1)).astype(f32)            # NHWC
    bsz = h.shape[0]

    for i in range(len(ENC_CHANNELS)):
        w, b, g, be = params[f"enc{i}"]
        B_, H, W, _ = h.shape
        ho, wo = H // 2, W // 2
        hp = _bf(jnp.pad(h, ((0, 0), (1, 1), (1, 1), (0, 0))))
        wb = _bf(w)
        y = jnp.zeros((B_, ho, wo, w.shape[0]), f32)
        for kh in range(3):
            for kw in range(3):
                patch = hp[:, kh:kh + 2 * ho:2, kw:kw + 2 * wo:2, :]
                y = y + jnp.einsum("bhwc,oc->bhwo", patch, wb[:, :, kh, kw])
        y = jnp.maximum(y + b, 0.0)
        mean = jnp.mean(y, axis=(0, 1, 2), keepdims=True)
        var = jnp.mean((y - mean) ** 2, axis=(0, 1, 2), keepdims=True)
        h = g * (y - mean) * jax.lax.rsqrt(var + BN_EPS) + be

    flat = h.transpose(0, 3, 1, 2).reshape(bsz, -1)                # NCHW flatten
    z = _bf(flat) @ _bf(params["fc_enc_w"]).T + params["fc_enc_b"]
    d = _bf(z) @ _bf(params["fc_dec_w"]).T + params["fc_dec_b"]
    h = d.reshape(bsz, 128, 2, 2).transpose(0, 2, 3, 1)            # NHWC

    for i in range(len(DEC_CHANNELS)):
        wt, b, g, be = params[f"dec{i}"]
        B_, H, W, C = h.shape
        ho, wo = 2 * H, 2 * W
        hd = jnp.zeros((B_, 2 * H - 1, 2 * W - 1, C), f32)
        hd = hd.at[:, ::2, ::2, :].set(h)
        hp = _bf(jnp.pad(hd, ((0, 0), (1, 2), (1, 2), (0, 0))))
        wb = _bf(jnp.flip(wt, axis=(2, 3)))
        y = jnp.zeros((B_, ho, wo, wt.shape[1]), f32)
        for kh in range(3):
            for kw in range(3):
                patch = hp[:, kh:kh + ho, kw:kw + wo, :]
                y = y + jnp.einsum("bhwc,co->bhwo", patch, wb[:, :, kh, kw])
        y = y + b
        if i < len(DEC_CHANNELS) - 1:
            y = jnp.maximum(y, 0.0)
            mean = jnp.mean(y, axis=(0, 1, 2), keepdims=True)
            var = jnp.mean((y - mean) ** 2, axis=(0, 1, 2), keepdims=True)
            h = g * (y - mean) * jax.lax.rsqrt(var + BN_EPS) + be
        else:
            h = jnp.tanh(y)

    return h.transpose(0, 3, 1, 2)                                 # NCHW


# -----------------------------------------------------------------------------
if __name__ == "__main__":
    key = jax.random.PRNGKey(0)
    pkey, xkey = jax.random.split(key)
    params = init_params(pkey, latent_dim=128)

    # 4 stride-2 convs need 32x32 input to reach the 128*2*2 fc bottleneck.
    x = jax.random.normal(xkey, (2, 3, 32, 32), jnp.float32)

    forward = jax.jit(build_forward(params, batch=2, h0=32, w0=32))
    out = forward(x)
    jax.block_until_ready(out)

    assert out.shape == (2, 3, 32, 32), out.shape
    assert bool(jnp.all(jnp.isfinite(out)))

    # Numerical check against the pure-JAX reference (same bf16 MXU rounding).
    ref = jax.jit(reference_forward)(x, params)
    max_err = float(jnp.max(jnp.abs(out - ref)))
    assert max_err < 3e-2, max_err

    print("KERNEL_OK")
</pallas_src>

<mosaic_0001>
module attributes {stable_mosaic.version = 11 : i64} {
  func.func @_ae_kernel(%arg0: memref<64x96xf32, #tpu.memory_space<vmem>>, %arg1: memref<3x32x64xbf16, #tpu.memory_space<vmem>>, %arg2: memref<288x256xbf16, #tpu.memory_space<vmem>>, %arg3: memref<1x256xf32, #tpu.memory_space<vmem>>, %arg4: memref<1x16xf32, #tpu.memory_space<vmem>>, %arg5: memref<1x16xf32, #tpu.memory_space<vmem>>, %arg6: memref<256x16xf32, #tpu.memory_space<vmem>>, %arg7: memref<16x256xf32, #tpu.memory_space<vmem>>, %arg8: memref<3x16x32xbf16, #tpu.memory_space<vmem>>, %arg9: memref<768x256xbf16, #tpu.memory_space<vmem>>, %arg10: memref<1x256xf32, #tpu.memory_space<vmem>>, %arg11: memref<1x32xf32, #tpu.memory_space<vmem>>, %arg12: memref<1x32xf32, #tpu.memory_space<vmem>>, %arg13: memref<256x32xf32, #tpu.memory_space<vmem>>, %arg14: memref<32x256xf32, #tpu.memory_space<vmem>>, %arg15: memref<3x8x16xbf16, #tpu.memory_space<vmem>>, %arg16: memref<768x256xbf16, #tpu.memory_space<vmem>>, %arg17: memref<1x256xf32, #tpu.memory_space<vmem>>, %arg18: memref<1x64xf32, #tpu.memory_space<vmem>>, %arg19: memref<1x64xf32, #tpu.memory_space<vmem>>, %arg20: memref<256x64xf32, #tpu.memory_space<vmem>>, %arg21: memref<64x256xf32, #tpu.memory_space<vmem>>, %arg22: memref<3x4x8xbf16, #tpu.memory_space<vmem>>, %arg23: memref<768x256xbf16, #tpu.memory_space<vmem>>, %arg24: memref<1x256xf32, #tpu.memory_space<vmem>>, %arg25: memref<1x128xf32, #tpu.memory_space<vmem>>, %arg26: memref<1x128xf32, #tpu.memory_space<vmem>>, %arg27: memref<256x128xf32, #tpu.memory_space<vmem>>, %arg28: memref<128x256xf32, #tpu.memory_space<vmem>>, %arg29: memref<2x2x4xbf16, #tpu.memory_space<vmem>>, %arg30: memref<512x128xbf16, #tpu.memory_space<vmem>>, %arg31: memref<1x128xf32, #tpu.memory_space<vmem>>, %arg32: memref<128x512xbf16, #tpu.memory_space<vmem>>, %arg33: memref<1x512xf32, #tpu.memory_space<vmem>>, %arg34: memref<3x8x4xbf16, #tpu.memory_space<vmem>>, %arg35: memref<768x256xbf16, #tpu.memory_space<vmem>>, %arg36: memref<1x256xf32, #tpu.memory_space<vmem>>, %arg37: memref<1x64xf32, #tpu.memory_space<vmem>>, %arg38: memref<1x64xf32, #tpu.memory_space<vmem>>, %arg39: memref<256x64xf32, #tpu.memory_space<vmem>>, %arg40: memref<64x256xf32, #tpu.memory_space<vmem>>, %arg41: memref<3x16x8xbf16, #tpu.memory_space<vmem>>, %arg42: memref<768x256xbf16, #tpu.memory_space<vmem>>, %arg43: memref<1x256xf32, #tpu.memory_space<vmem>>, %arg44: memref<1x32xf32, #tpu.memory_space<vmem>>, %arg45: memref<1x32xf32, #tpu.memory_space<vmem>>, %arg46: memref<256x32xf32, #tpu.memory_space<vmem>>, %arg47: memref<32x256xf32, #tpu.memory_space<vmem>>, %arg48: memref<3x32x16xbf16, #tpu.memory_space<vmem>>, %arg49: memref<768x256xbf16, #tpu.memory_space<vmem>>, %arg50: memref<1x256xf32, #tpu.memory_space<vmem>>, %arg51: memref<1x16xf32, #tpu.memory_space<vmem>>, %arg52: memref<1x16xf32, #tpu.memory_space<vmem>>, %arg53: memref<256x16xf32, #tpu.memory_space<vmem>>, %arg54: memref<16x256xf32, #tpu.memory_space<vmem>>, %arg55: memref<3x64x32xbf16, #tpu.memory_space<vmem>>, %arg56: memref<768x96xbf16, #tpu.memory_space<vmem>>, %arg57: memref<1x96xf32, #tpu.memory_space<vmem>>, %arg58: memref<64x96xf32, #tpu.memory_space<vmem>>) attributes {dimension_semantics = [], scalar_prefetch = 0 : i64, scratch_operands = 0 : i64, tpu.core_type = #tpu.core_type<tc>} {
    %c0 = arith.constant 0 : index
    %c0_0 = arith.constant 0 : index
    %0 = vector.load %arg0[%c0, %c0_0] : memref<64x96xf32, #tpu.memory_space<vmem>>, vector<64x96xf32>
    %c0_1 = arith.constant 0 : index
    %c0_2 = arith.constant 0 : index
    %1 = vector.load %arg2[%c0_1, %c0_2] : memref<288x256xbf16, #tpu.memory_space<vmem>>, vector<288x256xbf16>
    %2 = arith.truncf %0 : vector<64x96xf32> to vector<64x96xbf16>
    %c0_3 = arith.constant 0 : index
    %c0_4 = arith.constant 0 : index
    %c0_5 = arith.constant 0 : index
    %3 = vector.load %arg1[%c0_3, %c0_4, %c0_5] : memref<3x32x64xbf16, #tpu.memory_space<vmem>>, vector<1x32x64xbf16>
    %4 = vector.shape_cast %3 : vector<1x32x64xbf16> to vector<32x64xbf16>
    %cst = arith.constant dense<0.000000e+00> : vector<32x96xf32>
    %5 = tpu.matmul %4, %2, %cst {dimension_numbers = #tpu.dot_dimension_numbers<[1], [0], [0], [1], [0, 0, 1, 1], [], []>} : vector<32x64xbf16>, vector<64x96xbf16>, vector<32x96xf32> -> vector<32x96xf32>
    %c1 = arith.constant 1 : index
    %c0_6 = arith.constant 0 : index
    %c0_7 = arith.constant 0 : index
    %6 = vector.load %arg1[%c1, %c0_6, %c0_7] : memref<3x32x64xbf16, #tpu.memory_space<vmem>>, vector<1x32x64xbf16>
    %7 = vector.shape_cast %6 : vector<1x32x64xbf16> to vector<32x64xbf16>
    %cst_8 = arith.constant dense<0.000000e+00> : vector<32x96xf32>
    %8 = tpu.matmul %7, %2, %cst_8 {dimension_numbers = #tpu.dot_dimension_numbers<[1], [0], [0], [1], [0, 0, 1, 1], [], []>} : vector<32x64xbf16>, vector<64x96xbf16>, vector<32x96xf32> -> vector<32x96xf32>
    %c2 = arith.constant 2 : index
    %c0_9 = arith.constant 0 : index
    %c0_10 = arith.constant 0 : index
    %9 = vector.load %arg1[%c2, %c0_9, %c0_10] : memref<3x32x64xbf16, #tpu.memory_space<vmem>>, vector<1x32x64xbf16>
    %10 = vector.shape_cast %9 : vector<1x32x64xbf16> to vector<32x64xbf16>
    %cst_11 = arith.constant dense<0.000000e+00> : vector<32x96xf32>
    %11 = tpu.matmul %10, %2, %cst_11 {dimension_numbers = #tpu.dot_dimension_numbers<[1], [0], [0], [1], [0, 0, 1, 1], [], []>} : vector<32x64xbf16>, vector<64x96xbf16>, vector<32x96xf32> -> vector<32x96xf32>
    %12 = tpu.concatenate %5, %8, %11 in 1 : vector<32x96xf32>, vector<32x96xf32>, vector<32x96xf32> -> vector<32x288xf32>
    %13 = arith.truncf %12 : vector<32x288xf32> to vector<32x288xbf16>
    %cst_12 = arith.constant dense<0.000000e+00> : vector<32x256xf32>
    %14 = tpu.matmul %13, %1, %cst_12 {dimension_numbers = #tpu.dot_dimension_numbers<[1], [0], [0], [1], [0, 0, 1, 1], [], []>} : vector<32x288xbf16>, vector<288x256xbf16>, vector<32x256xf32> -> vector<32x256xf32>
    %c0_13 = arith.constant 0 : index
    %c0_14 = arith.constant 0 : index
    %15 = vector.load %arg3[%c0_13, %c0_14] : memref<1x256xf32, #tpu.memory_space<vmem>>, vector<1x256xf32>
    %16 = vector.broadcast %15 : vector<1x256xf32> to vector<32x256xf32>
    %17 = arith.addf %14, %16 : vector<32x256xf32>
    %cst_15 = arith.constant 0.000000e+00 : f32
    %18 = vector.broadcast %cst_15 : f32 to vector<32x256xf32>
    %19 = arith.maximumf %17, %18 : vector<32x256xf32>
    %c0_16 = arith.constant 0 : index
    %c0_17 = arith.constant 0 : index
    %20 = vector.load %arg6[%c0_16, %c0_17] : memref<256x16xf32, #tpu.memory_space<vmem>>, vector<256x16xf32>
    %c0_18 = arith.constant 0 : index
    %c0_19 = arith.constant 0 : index
    %21 = vector.load %arg7[%c0_18, %c0_19] : memref<16x256xf32, #tpu.memory_space<vmem>>, vector<16x256xf32>
    %c0_20 = arith.constant 0 : index
    %c0_21 = arith.constant 0 : index
    %22 = vector.load %arg4[%c0_20, %c0_21] : memref<1x16xf32, #tpu.memory_space<vmem>>, vector<1x16xf32>
    %c0_22 = arith.constant 0 : index
    %c0_23 = arith.constant 0 : index
    %23 = vector.load %arg5[%c0_22, %c0_23] : memref<1x16xf32, #tpu.memory_space<vmem>>, vector<1x16xf32>
    %cst_24 = arith.constant dense<0.000000e+00> : vector<256xf32>
    %24 = vector.multi_reduction <add>, %19, %cst_24 [0] : vector<32x256xf32> to vector<256xf32>
    %25 = vector.shape_cast %24 : vector<256xf32> to vector<1x256xf32>
    %cst_25 = arith.constant dense<0.000000e+00> : vector<1x16xf32>
    %26 = tpu.matmul %25, %20, %cst_25 {dimension_numbers = #tpu.dot_dimension_numbers<[1], [0], [0], [1], [0, 0, 1, 1], [], []>} : vector<1x256xf32>, vector<256x16xf32>, vector<1x16xf32> -> vector<1x16xf32>
    %cst_26 = arith.constant 0.001953125 : f32
    %27 = vector.broadcast %cst_26 : f32 to vector<1x16xf32>
    %28 = arith.mulf %26, %27 : vector<1x16xf32>
    %cst_27 = arith.constant dense<0.000000e+00> : vector<1x256xf32>
    %29 = tpu.matmul %28, %21, %cst_27 {dimension_numbers = #tpu.dot_dimension_numbers<[1], [0], [0], [1], [0, 0, 1, 1], [], []>} : vector<1x16xf32>, vector<16x256xf32>, vector<1x256xf32> -> vector<1x256xf32>
    %30 = vector.broadcast %29 : vector<1x256xf32> to vector<32x256xf32>
    %31 = arith.subf %19, %30 : vector<32x256xf32>
    %32 = arith.mulf %31, %31 : vector<32x256xf32>
    %cst_28 = arith.constant dense<0.000000e+00> : vector<256xf32>
    %33 = vector.multi_reduction <add>, %32, %cst_28 [0] : vector<32x256xf32> to vector<256xf32>
    %34 = vector.shape_cast %33 : vector<256xf32> to vector<1x256xf32>
    %cst_29 = arith.constant dense<0.000000e+00> : vector<1x16xf32>
    %35 = tpu.matmul %34, %20, %cst_29 {dimension_numbers = #tpu.dot_dimension_numbers<[1], [0], [0], [1], [0, 0, 1, 1], [], []>} : vector<1x256xf32>, vector<256x16xf32>, vector<1x16xf32> -> vector<1x16xf32>
    %cst_30 = arith.constant 0.001953125 : f32
    %36 = vector.broadcast %cst_30 : f32 to vector<1x16xf32>
    %37 = arith.mulf %35, %36 : vector<1x16xf32>
    %cst_31 = arith.constant 9.99999974E-6 : f32
    %38 = vector.broadcast %cst_31 : f32 to vector<1x16xf32>
    %39 = arith.addf %37, %38 : vector<1x16xf32>
    %40 = math.rsqrt %39 : vector<1x16xf32>
    %41 = arith.mulf %22, %40 : vector<1x16xf32>
    %cst_32 = arith.constant dense<0.000000e+00> : vector<1x256xf32>
    %42 = tpu.matmul %41, %21, %cst_32 {dimension_numbers = #tpu.dot_dimension_numbers<[1], [0], [0], [1], [0, 0, 1, 1], [], []>} : vector<1x16xf32>, vector<16x256xf32>, vector<1x256xf32> -> vector<1x256xf32>
    %43 = vector.broadcast %42 : vector<1x256xf32> to vector<32x256xf32>
    %44 = arith.mulf %31, %43 : vector<32x256xf32>
    %cst_33 = arith.constant dense<0.000000e+00> : vector<1x256xf32>
    %45 = tpu.matmul %23, %21, %cst_33 {dimension_numbers = #tpu.dot_dimension_numbers<[1], [0], [0], [1], [0, 0, 1, 1], [], []>} : vector<1x16xf32>, vector<16x256xf32>, vector<1x256xf32> -> vector<1x256xf32>
    %46 = vector.broadcast %45 : vector<1x256xf32> to vector<32x256xf32>
    %47 = arith.addf %44, %46 : vector<32x256xf32>
    %c0_34 = arith.constant 0 : index
    %c0_35 = arith.constant 0 : index
    %48 = vector.load %arg9[%c0_34, %c0_35] : memref<768x256xbf16, #tpu.memory_space<vmem>>, vector<768x256xbf16>
    %49 = arith.truncf %47 : vector<32x256xf32> to vector<32x256xbf16>
    %c0_36 = arith.constant 0 : index
    %c0_37 = arith.constant 0 : index
    %c0_38 = arith.constant 0 : index
    %50 = vector.load %arg8[%c0_36, %c0_37, %c0_38] : memref<3x16x32xbf16, #tpu.memory_space<vmem>>, vector<1x16x32xbf16>
    %51 = vector.shape_cast %50 : vector<1x16x32xbf16> to vector<16x32xbf16>
    %cst_39 = arith.constant dense<0.000000e+00> : vector<16x256xf32>
    %52 = tpu.matmul %51, %49, %cst_39 {dimension_numbers = #tpu.dot_dimension_numbers<[1], [0], [0], [1], [0, 0, 1, 1], [], []>} : vector<16x32xbf16>, vector<32x256xbf16>, vector<16x256xf32> -> vector<16x256xf32>
    %c1_40 = arith.constant 1 : index
    %c0_41 = arith.constant 0 : index
    %c0_42 = arith.constant 0 : index
    %53 = vector.load %arg8[%c1_40, %c0_41, %c0_42] : memref<3x16x32xbf16, #tpu.memory_space<vmem>>, vector<1x16x32xbf16>
    %54 = vector.shape_cast %53 : vector<1x16x32xbf16> to vector<16x32xbf16>
    %cst_43 = arith.constant dense<0.000000e+00> : vector<16x256xf32>
    %55 = tpu.matmul %54, %49, %cst_43 {dimension_numbers = #tpu.dot_dimension_numbers<[1], [0], [0], [1], [0, 0, 1, 1], [], []>} : vector<16x32xbf16>, vector<32x256xbf16>, vector<16x256xf32> -> vector<16x256xf32>
    %c2_44 = arith.constant 2 : index
    %c0_45 = arith.constant 0 : index
    %c0_46 = arith.constant 0 : index
    %56 = vector.load %arg8[%c2_44, %c0_45, %c0_46] : memref<3x16x32xbf16, #tpu.memory_space<vmem>>, vector<1x16x32xbf16>
    %57 = vector.shape_cast %56 : vector<1x16x32xbf16> to vector<16x32xbf16>
    %cst_47 = arith.constant dense<0.000000e+00> : vector<16x256xf32>
    %58 = tpu.matmul %57, %49, %cst_47 {dimension_numbers = #tpu.dot_dimension_numbers<[1], [0], [0], [1], [0, 0, 1, 1], [], []>} : vector<16x32xbf16>, vector<32x256xbf16>, vector<16x256xf32> -> vector<16x256xf32>
    %59 = tpu.concatenate %52, %55, %58 in 1 : vector<16x256xf32>, vector<16x256xf32>, vector<16x256xf32> -> vector<16x768xf32>
    %60 = arith.truncf %59 : vector<16x768xf32> to vector<16x768xbf16>
    %cst_48 = arith.constant dense<0.000000e+00> : vector<16x256xf32>
    %61 = tpu.matmul %60, %48, %cst_48 {dimension_numbers = #tpu.dot_dimension_numbers<[1], [0], [0], [1], [0, 0, 1, 1], [], []>} : vector<16x768xbf16>, vector<768x256xbf16>, vector<16x256xf32> -> vector<16x256xf32>
    %c0_49 = arith.constant 0 : index
    %c0_50 = arith.constant 0 : index
    %62 = vector.load %arg10[%c0_49, %c0_50] : memref<1x256xf32, #tpu.memory_space<vmem>>, vector<1x256xf32>
    %63 = vector.broadcast %62 : vector<1x256xf32> to vector<16x256xf32>
    %64 = arith.addf %61, %63 : vector<16x256xf32>
    %cst_51 = arith.constant 0.000000e+00 : f32
    %65 = vector.broadcast %cst_51 : f32 to vector<16x256xf32>
    %66 = arith.maximumf %64, %65 : vector<16x256xf32>
    %c0_52 = arith.constant 0 : index
    %c0_53 = arith.constant 0 : index
    %67 = vector.load %arg13[%c0_52, %c0_53] : memref<256x32xf32, #tpu.memory_space<vmem>>, vector<256x32xf32>
    %c0_54 = arith.constant 0 : index
    %c0_55 = arith.constant 0 : index
    %68 = vector.load %arg14[%c0_54, %c0_55] : memref<32x256xf32, #tpu.memory_space<vmem>>, vector<32x256xf32>
    %c0_56 = arith.constant 0 : index
    %c0_57 = arith.constant 0 : index
    %69 = vector.load %arg11[%c0_56, %c0_57] : memref<1x32xf32, #tpu.memory_space<vmem>>, vector<1x32xf32>
    %c0_58 = arith.constant 0 : index
    %c0_59 = arith.constant 0 : index
    %70 = vector.load %arg12[%c0_58, %c0_59] : memref<1x32xf32, #tpu.memory_space<vmem>>, vector<1x32xf32>
    %cst_60 = arith.constant dense<0.000000e+00> : vector<256xf32>
    %71 = vector.multi_reduction <add>, %66, %cst_60 [0] : vector<16x256xf32> to vector<256xf32>
    %72 = vector.shape_cast %71 : vector<256xf32> to vector<1x256xf32>
    %cst_61 = arith.constant dense<0.000000e+00> : vector<1x32xf32>
    %73 = tpu.matmul %72, %67, %cst_61 {dimension_numbers = #tpu.dot_dimension_numbers<[1], [0], [0], [1], [0, 0, 1, 1], [], []>} : vector<1x256xf32>, vector<256x32xf32>, vector<1x32xf32> -> vector<1x32xf32>
    %cst_62 = arith.constant 7.812500e-03 : f32
    %74 = vector.broadcast %cst_62 : f32 to vector<1x32xf32>
    %75 = arith.mulf %73, %74 : vector<1x32xf32>
    %cst_63 = arith.constant dense<0.000000e+00> : vector<1x256xf32>
    %76 = tpu.matmul %75, %68, %cst_63 {dimension_numbers = #tpu.dot_dimension_numbers<[1], [0], [0], [1], [0, 0, 1, 1], [], []>} : vector<1x32xf32>, vector<32x256xf32>, vector<1x256xf32> -> vector<1x256xf32>
    %77 = vector.broadcast %76 : vector<1x256xf32> to vector<16x256xf32>
    %78 = arith.subf %66, %77 : vector<16x256xf32>
    %79 = arith.mulf %78, %78 : vector<16x256xf32>
    %cst_64 = arith.constant dense<0.000000e+00> : vector<256xf32>
    %80 = vector.multi_reduction <add>, %79, %cst_64 [0] : vector<16x256xf32> to vector<256xf32>
    %81 = vector.shape_cast %80 : vector<256xf32> to vector<1x256xf32>
    %cst_65 = arith.constant dense<0.000000e+00> : vector<1x32xf32>
    %82 = tpu.matmul %81, %67, %cst_65 {dimension_numbers = #tpu.dot_dimension_numbers<[1], [0], [0], [1], [0, 0, 1, 1], [], []>} : vector<1x256xf32>, vector<256x32xf32>, vector<1x32xf32> -> vector<1x32xf32>
    %cst_66 = arith.constant 7.812500e-03 : f32
    %83 = vector.broadcast %cst_66 : f32 to vector<1x32xf32>
    %84 = arith.mulf %82, %83 : vector<1x32xf32>
    %cst_67 = arith.constant 9.99999974E-6 : f32
    %85 = vector.broadcast %cst_67 : f32 to vector<1x32xf32>
    %86 = arith.addf %84, %85 : vector<1x32xf32>
    %87 = math.rsqrt %86 : vector<1x32xf32>
    %88 = arith.mulf %69, %87 : vector<1x32xf32>
    %cst_68 = arith.constant dense<0.000000e+00> : vector<1x256xf32>
    %89 = tpu.matmul %88, %68, %cst_68 {dimension_numbers = #tpu.dot_dimension_numbers<[1], [0], [0], [1], [0, 0, 1, 1], [], []>} : vector<1x32xf32>, vector<32x256xf32>, vector<1x256xf32> -> vector<1x256xf32>
    %90 = vector.broadcast %89 : vector<1x256xf32> to vector<16x256xf32>
    %91 = arith.mulf %78, %90 : vector<16x256xf32>
    %cst_69 = arith.constant dense<0.000000e+00> : vector<1x256xf32>
    %92 = tpu.matmul %70, %68, %cst_69 {dimension_numbers = #tpu.dot_dimension_numbers<[1], [0], [0], [1], [0, 0, 1, 1], [], []>} : vector<1x32xf32>, vector<32x256xf32>, vector<1x256xf32> -> vector<1x256xf32>
    %93 = vector.broadcast %92 : vector<1x256xf32> to vector<16x256xf32>
    %94 = arith.addf %91, %93 : vector<16x256xf32>
    %c0_70 = arith.constant 0 : index
    %c0_71 = arith.constant 0 : index
    %95 = vector.load %arg16[%c0_70, %c0_71] : memref<768x256xbf16, #tpu.memory_space<vmem>>, vector<768x256xbf16>
    %96 = arith.truncf %94 : vector<16x256xf32> to vector<16x256xbf16>
    %c0_72 = arith.constant 0 : index
    %c0_73 = arith.constant 0 : index
    %c0_74 = arith.constant 0 : index
    %97 = vector.load %arg15[%c0_72, %c0_73, %c0_74] : memref<3x8x16xbf16, #tpu.memory_space<vmem>>, vector<1x8x16xbf16>
    %98 = vector.shape_cast %97 : vector<1x8x16xbf16> to vector<8x16xbf16>
    %cst_75 = arith.constant dense<0.000000e+00> : vector<8x256xf32>
    %99 = tpu.matmul %98, %96, %cst_75 {dimension_numbers = #tpu.dot_dimension_numbers<[1], [0], [0], [1], [0, 0, 1, 1], [], []>} : vector<8x16xbf16>, vector<16x256xbf16>, vector<8x256xf32> -> vector<8x256xf32>
    %c1_76 = arith.constant 1 : index
    %c0_77 = arith.constant 0 : index
    %c0_78 = arith.constant 0 : index
    %100 = vector.load %arg15[%c1_76, %c0_77, %c0_78] : memref<3x8x16xbf16, #tpu.memory_space<vmem>>, vector<1x8x16xbf16>
    %101 = vector.shape_cast %100 : vector<1x8x16xbf16> to vector<8x16xbf16>
    %cst_79 = arith.constant dense<0.000000e+00> : vector<8x256xf32>
    %102 = tpu.matmul %101, %96, %cst_79 {dimension_numbers = #tpu.dot_dimension_numbers<[1], [0], [0], [1], [0, 0, 1, 1], [], []>} : vector<8x16xbf16>, vector<16x256xbf16>, vector<8x256xf32> -> vector<8x256xf32>
    %c2_80 = arith.constant 2 : index
    %c0_81 = arith.constant 0 : index
    %c0_82 = arith.constant 0 : index
    %103 = vector.load %arg15[%c2_80, %c0_81, %c0_82] : memref<3x8x16xbf16, #tpu.memory_space<vmem>>, vector<1x8x16xbf16>
    %104 = vector.shape_cast %103 : vector<1x8x16xbf16> to vector<8x16xbf16>
    %cst_83 = arith.constant dense<0.000000e+00> : vector<8x256xf32>
    %105 = tpu.matmul %104, %96, %cst_83 {dimension_numbers = #tpu.dot_dimension_numbers<[1], [0], [0], [1], [0, 0, 1, 1], [], []>} : vector<8x16xbf16>, vector<16x256xbf16>, vector<8x256xf32> -> vector<8x256xf32>
    %106 = tpu.concatenate %99, %102, %105 in 1 : vector<8x256xf32>, vector<8x256xf32>, vector<8x256xf32> -> vector<8x768xf32>
    %107 = arith.truncf %106 : vector<8x768xf32> to vector<8x768xbf16>
    %cst_84 = arith.constant dense<0.000000e+00> : vector<8x256xf32>
    %108 = tpu.matmul %107, %95, %cst_84 {dimension_numbers = #tpu.dot_dimension_numbers<[1], [0], [0], [1], [0, 0, 1, 1], [], []>} : vector<8x768xbf16>, vector<768x256xbf16>, vector<8x256xf32> -> vector<8x256xf32>
    %c0_85 = arith.constant 0 : index
    %c0_86 = arith.constant 0 : index
    %109 = vector.load %arg17[%c0_85, %c0_86] : memref<1x256xf32, #tpu.memory_space<vmem>>, vector<1x256xf32>
    %110 = vector.broadcast %109 : vector<1x256xf32> to vector<8x256xf32>
    %111 = arith.addf %108, %110 : vector<8x256xf32>
    %cst_87 = arith.constant 0.000000e+00 : f32
    %112 = vector.broadcast %cst_87 : f32 to vector<8x256xf32>
    %113 = arith.maximumf %111, %112 : vector<8x256xf32>
    %c0_88 = arith.constant 0 : index
    %c0_89 = arith.constant 0 : index
    %114 = vector.load %arg20[%c0_88, %c0_89] : memref<256x64xf32, #tpu.memory_space<vmem>>, vector<256x64xf32>
    %c0_90 = arith.constant 0 : index
    %c0_91 = arith.constant 0 : index
    %115 = vector.load %arg21[%c0_90, %c0_91] : memref<64x256xf32, #tpu.memory_space<vmem>>, vector<64x256xf32>
    %c0_92 = arith.constant 0 : index
    %c0_93 = arith.constant 0 : index
    %116 = vector.load %arg18[%c0_92, %c0_93] : memref<1x64xf32, #tpu.memory_space<vmem>>, vector<1x64xf32>
    %c0_94 = arith.constant 0 : index
    %c0_95 = arith.constant 0 : index
    %117 = vector.load %arg19[%c0_94, %c0_95] : memref<1x64xf32, #tpu.memory_space<vmem>>, vector<1x64xf32>
    %cst_96 = arith.constant dense<0.000000e+00> : vector<256xf32>
    %118 = vector.multi_reduction <add>, %113, %cst_96 [0] : vector<8x256xf32> to vector<256xf32>
    %119 = vector.shape_cast %118 : vector<256xf32> to vector<1x256xf32>
    %cst_97 = arith.constant dense<0.000000e+00> : vector<1x64xf32>
    %120 = tpu.matmul %119, %114, %cst_97 {dimension_numbers = #tpu.dot_dimension_numbers<[1], [0], [0], [1], [0, 0, 1, 1], [], []>} : vector<1x256xf32>, vector<256x64xf32>, vector<1x64xf32> -> vector<1x64xf32>
    %cst_98 = arith.constant 3.125000e-02 : f32
    %121 = vector.broadcast %cst_98 : f32 to vector<1x64xf32>
    %122 = arith.mulf %120, %121 : vector<1x64xf32>
    %cst_99 = arith.constant dense<0.000000e+00> : vector<1x256xf32>
    %123 = tpu.matmul %122, %115, %cst_99 {dimension_numbers = #tpu.dot_dimension_numbers<[1], [0], [0], [1], [0, 0, 1, 1], [], []>} : vector<1x64xf32>, vector<64x256xf32>, vector<1x256xf32> -> vector<1x256xf32>
    %124 = vector.broadcast %123 : vector<1x256xf32> to vector<8x256xf32>
    %125 = arith.subf %113, %124 : vector<8x256xf32>
    %126 = arith.mulf %125, %125 : vector<8x256xf32>
    %cst_100 = arith.constant dense<0.000000e+00> : vector<256xf32>
    %127 = vector.multi_reduction <add>, %126, %cst_100 [0] : vector<8x256xf32> to vector<256xf32>
    %128 = vector.shape_cast %127 : vector<256xf32> to vector<1x256xf32>
    %cst_101 = arith.constant dense<0.000000e+00> : vector<1x64xf32>
    %129 = tpu.matmul %128, %114, %cst_101 {dimension_numbers = #tpu.dot_dimension_numbers<[1], [0], [0], [1], [0, 0, 1, 1], [], []>} : vector<1x256xf32>, vector<256x64xf32>, vector<1x64xf32> -> vector<1x64xf32>
    %cst_102 = arith.constant 3.125000e-02 : f32
    %130 = vector.broadcast %cst_102 : f32 to vector<1x64xf32>
    %131 = arith.mulf %129, %130 : vector<1x64xf32>
    %cst_103 = arith.constant 9.99999974E-6 : f32
    %132 = vector.broadcast %cst_103 : f32 to vector<1x64xf32>
    %133 = arith.addf %131, %132 : vector<1x64xf32>
    %134 = math.rsqrt %133 : vector<1x64xf32>
    %135 = arith.mulf %116, %134 : vector<1x64xf32>
    %cst_104 = arith.constant dense<0.000000e+00> : vector<1x256xf32>
    %136 = tpu.matmul %135, %115, %cst_104 {dimension_numbers = #tpu.dot_dimension_numbers<[1], [0], [0], [1], [0, 0, 1, 1], [], []>} : vector<1x64xf32>, vector<64x256xf32>, vector<1x256xf32> -> vector<1x256xf32>
    %137 = vector.broadcast %136 : vector<1x256xf32> to vector<8x256xf32>
    %138 = arith.mulf %125, %137 : vector<8x256xf32>
    %cst_105 = arith.constant dense<0.000000e+00> : vector<1x256xf32>
    %139 = tpu.matmul %117, %115, %cst_105 {dimension_numbers = #tpu.dot_dimension_numbers<[1], [0], [0], [1], [0, 0, 1, 1], [], []>} : vector<1x64xf32>, vector<64x256xf32>, vector<1x256xf32> -> vector<1x256xf32>
    %140 = vector.broadcast %139 : vector<1x256xf32> to vector<8x256xf32>
    %141 = arith.addf %138, %140 : vector<8x256xf32>
    %c0_106 = arith.constant 0 : index
    %c0_107 = arith.constant 0 : index
    %142 = vector.load %arg23[%c0_106, %c0_107] : memref<768x256xbf16, #tpu.memory_space<vmem>>, vector<768x256xbf16>
    %143 = arith.truncf %141 : vector<8x256xf32> to vector<8x256xbf16>
    %c0_108 = arith.constant 0 : index
    %c0_109 = arith.constant 0 : index
    %c0_110 = arith.constant 0 : index
    %144 = vector.load %arg22[%c0_108, %c0_109, %c0_110] : memref<3x4x8xbf16, #tpu.memory_space<vmem>>, vector<1x4x8xbf16>
    %145 = vector.shape_cast %144 : vector<1x4x8xbf16> to vector<4x8xbf16>
    %cst_111 = arith.constant dense<0.000000e+00> : vector<4x256xf32>
    %146 = tpu.matmul %145, %143, %cst_111 {dimension_numbers = #tpu.dot_dimension_numbers<[1], [0], [0], [1], [0, 0, 1, 1], [], []>} : vector<4x8xbf16>, vector<8x256xbf16>, vector<4x256xf32> -> vector<4x256xf32>
    %c1_112 = arith.constant 1 : index
    %c0_113 = arith.constant 0 : index
    %c0_114 = arith.constant 0 : index
    %147 = vector.load %arg22[%c1_112, %c0_113, %c0_114] : memref<3x4x8xbf16, #tpu.memory_space<vmem>>, vector<1x4x8xbf16>
    %148 = vector.shape_cast %147 : vector<1x4x8xbf16> to vector<4x8xbf16>
    %cst_115 = arith.constant dense<0.000000e+00> : vector<4x256xf32>
    %149 = tpu.matmul %148, %143, %cst_115 {dimension_numbers = #tpu.dot_dimension_numbers<[1], [0], [0], [1], [0, 0, 1, 1], [], []>} : vector<4x8xbf16>, vector<8x256xbf16>, vector<4x256xf32> -> vector<4x256xf32>
    %c2_116 = arith.constant 2 : index
    %c0_117 = arith.constant 0 : index
    %c0_118 = arith.constant 0 : index
    %150 = vector.load %arg22[%c2_116, %c0_117, %c0_118] : memref<3x4x8xbf16, #tpu.memory_space<vmem>>, vector<1x4x8xbf16>
    %151 = vector.shape_cast %150 : vector<1x4x8xbf16> to vector<4x8xbf16>
    %cst_119 = arith.constant dense<0.000000e+00> : vector<4x256xf32>
    %152 = tpu.matmul %151, %143, %cst_119 {dimension_numbers = #tpu.dot_dimension_numbers<[1], [0], [0], [1], [0, 0, 1, 1], [], []>} : vector<4x8xbf16>, vector<8x256xbf16>, vector<4x256xf32> -> vector<4x256xf32>
    %153 = tpu.concatenate %146, %149, %152 in 1 : vector<4x256xf32>, vector<4x256xf32>, vector<4x256xf32> -> vector<4x768xf32>
    %154 = arith.truncf %153 : vector<4x768xf32> to vector<4x768xbf16>
    %cst_120 = arith.constant dense<0.000000e+00> : vector<4x256xf32>
    %155 = tpu.matmul %154, %142, %cst_120 {dimension_numbers = #tpu.dot_dimension_numbers<[1], [0], [0], [1], [0, 0, 1, 1], [], []>} : vector<4x768xbf16>, vector<768x256xbf16>, vector<4x256xf32> -> vector<4x256xf32>
    %c0_121 = arith.constant 0 : index
    %c0_122 = arith.constant 0 : index
    %156 = vector.load %arg24[%c0_121, %c0_122] : memref<1x256xf32, #tpu.memory_space<vmem>>, vector<1x256xf32>
    %157 = vector.broadcast %156 : vector<1x256xf32> to vector<4x256xf32>
    %158 = arith.addf %155, %157 : vector<4x256xf32>
    %cst_123 = arith.constant 0.000000e+00 : f32
    %159 = vector.broadcast %cst_123 : f32 to vector<4x256xf32>
    %160 = arith.maximumf %158, %159 : vector<4x256xf32>
    %c0_124 = arith.constant 0 : index
    %c0_125 = arith.constant 0 : index
    %161 = vector.load %arg27[%c0_124, %c0_125] : memref<256x128xf32, #tpu.memory_space<vmem>>, vector<256x128xf32>
    %c0_126 = arith.constant 0 : index
    %c0_127 = arith.constant 0 : index
    %162 = vector.load %arg28[%c0_126, %c0_127] : memref<128x256xf32, #tpu.memory_space<vmem>>, vector<128x256xf32>
    %c0_128 = arith.constant 0 : index
    %c0_129 = arith.constant 0 : index
    %163 = vector.load %arg25[%c0_128, %c0_129] : memref<1x128xf32, #tpu.memory_space<vmem>>, vector<1x128xf32>
    %c0_130 = arith.constant 0 : index
    %c0_131 = arith.constant 0 : index
    %164 = vector.load %arg26[%c0_130, %c0_131] : memref<1x128xf32, #tpu.memory_space<vmem>>, vector<1x128xf32>
    %cst_132 = arith.constant dense<0.000000e+00> : vector<256xf32>
    %165 = vector.multi_reduction <add>, %160, %cst_132 [0] : vector<4x256xf32> to vector<256xf32>
    %166 = vector.shape_cast %165 : vector<256xf32> to vector<1x256xf32>
    %cst_133 = arith.constant dense<0.000000e+00> : vector<1x128xf32>
    %167 = tpu.matmul %166, %161, %cst_133 {dimension_numbers = #tpu.dot_dimension_numbers<[1], [0], [0], [1], [0, 0, 1, 1], [], []>} : vector<1x256xf32>, vector<256x128xf32>, vector<1x128xf32> -> vector<1x128xf32>
    %cst_134 = arith.constant 1.250000e-01 : f32
    %168 = vector.broadcast %cst_134 : f32 to vector<1x128xf32>
    %169 = arith.mulf %167, %168 : vector<1x128xf32>
    %cst_135 = arith.constant dense<0.000000e+00> : vector<1x256xf32>
    %170 = tpu.matmul %169, %162, %cst_135 {dimension_numbers = #tpu.dot_dimension_numbers<[1], [0], [0], [1], [0, 0, 1, 1], [], []>} : vector<1x128xf32>, vector<128x256xf32>, vector<1x256xf32> -> vector<1x256xf32>
    %171 = vector.broadcast %170 : vector<1x256xf32> to vector<4x256xf32>
    %172 = arith.subf %160, %171 : vector<4x256xf32>
    %173 = arith.mulf %172, %172 : vector<4x256xf32>
    %cst_136 = arith.constant dense<0.000000e+00> : vector<256xf32>
    %174 = vector.multi_reduction <add>, %173, %cst_136 [0] : vector<4x256xf32> to vector<256xf32>
    %175 = vector.shape_cast %174 : vector<256xf32> to vector<1x256xf32>
    %cst_137 = arith.constant dense<0.000000e+00> : vector<1x128xf32>
    %176 = tpu.matmul %175, %161, %cst_137 {dimension_numbers = #tpu.dot_dimension_numbers<[1], [0], [0], [1], [0, 0, 1, 1], [], []>} : vector<1x256xf32>, vector<256x128xf32>, vector<1x128xf32> -> vector<1x128xf32>
    %cst_138 = arith.constant 1.250000e-01 : f32
    %177 = vector.broadcast %cst_138 : f32 to vector<1x128xf32>
    %178 = arith.mulf %176, %177 : vector<1x128xf32>
    %cst_139 = arith.constant 9.99999974E-6 : f32
    %179 = vector.broadcast %cst_139 : f32 to vector<1x128xf32>
    %180 = arith.addf %178, %179 : vector<1x128xf32>
    %181 = math.rsqrt %180 : vector<1x128xf32>
    %182 = arith.mulf %163, %181 : vector<1x128xf32>
    %cst_140 = arith.constant dense<0.000000e+00> : vector<1x256xf32>
    %183 = tpu.matmul %182, %162, %cst_140 {dimension_numbers = #tpu.dot_dimension_numbers<[1], [0], [0], [1], [0, 0, 1, 1], [], []>} : vector<1x128xf32>, vector<128x256xf32>, vector<1x256xf32> -> vector<1x256xf32>
    %184 = vector.broadcast %183 : vector<1x256xf32> to vector<4x256xf32>
    %185 = arith.mulf %172, %184 : vector<4x256xf32>
    %cst_141 = arith.constant dense<0.000000e+00> : vector<1x256xf32>
    %186 = tpu.matmul %164, %162, %cst_141 {dimension_numbers = #tpu.dot_dimension_numbers<[1], [0], [0], [1], [0, 0, 1, 1], [], []>} : vector<1x128xf32>, vector<128x256xf32>, vector<1x256xf32> -> vector<1x256xf32>
    %187 = vector.broadcast %186 : vector<1x256xf32> to vector<4x256xf32>
    %188 = arith.addf %185, %187 : vector<4x256xf32>
    %c0_142 = arith.constant 0 : index
    %c0_143 = arith.constant 0 : index
    %189 = vector.load %arg30[%c0_142, %c0_143] : memref<512x128xbf16, #tpu.memory_space<vmem>>, vector<512x128xbf16>
    %c0_144 = arith.constant 0 : index
    %c0_145 = arith.constant 0 : index
    %190 = vector.load %arg32[%c0_144, %c0_145] : memref<128x512xbf16, #tpu.memory_space<vmem>>, vector<128x512xbf16>
    %191 = arith.truncf %188 : vector<4x256xf32> to vector<4x256xbf16>
    %c0_146 = arith.constant 0 : index
    %c0_147 = arith.constant 0 : index
    %c0_148 = arith.constant 0 : index
    %192 = vector.load %arg29[%c0_146, %c0_147, %c0_148] : memref<2x2x4xbf16, #tpu.memory_space<vmem>>, vector<1x2x4xbf16>
    %193 = vector.shape_cast %192 : vector<1x2x4xbf16> to vector<2x4xbf16>
    %cst_149 = arith.constant dense<0.000000e+00> : vector<2x256xf32>
    %194 = tpu.matmul %193, %191, %cst_149 {dimension_numbers = #tpu.dot_dimension_numbers<[1], [0], [0], [1], [0, 0, 1, 1], [], []>} : vector<2x4xbf16>, vector<4x256xbf16>, vector<2x256xf32> -> vector<2x256xf32>
    %c1_150 = arith.constant 1 : index
    %c0_151 = arith.constant 0 : index
    %c0_152 = arith.constant 0 : index
    %195 = vector.load %arg29[%c1_150, %c0_151, %c0_152] : memref<2x2x4xbf16, #tpu.memory_space<vmem>>, vector<1x2x4xbf16>
    %196 = vector.shape_cast %195 : vector<1x2x4xbf16> to vector<2x4xbf16>
    %cst_153 = arith.constant dense<0.000000e+00> : vector<2x256xf32>
    %197 = tpu.matmul %196, %191, %cst_153 {dimension_numbers = #tpu.dot_dimension_numbers<[1], [0], [0], [1], [0, 0, 1, 1], [], []>} : vector<2x4xbf16>, vector<4x256xbf16>, vector<2x256xf32> -> vector<2x256xf32>
    %198 = tpu.concatenate %194, %197 in 1 : vector<2x256xf32>, vector<2x256xf32> -> vector<2x512xf32>
    %199 = arith.truncf %198 : vector<2x512xf32> to vector<2x512xbf16>
    %cst_154 = arith.constant dense<0.000000e+00> : vector<2x128xf32>
    %200 = tpu.matmul %199, %189, %cst_154 {dimension_numbers = #tpu.dot_dimension_numbers<[1], [0], [0], [1], [0, 0, 1, 1], [], []>} : vector<2x512xbf16>, vector<512x128xbf16>, vector<2x128xf32> -> vector<2x128xf32>
    %c0_155 = arith.constant 0 : index
    %c0_156 = arith.constant 0 : index
    %201 = vector.load %arg31[%c0_155, %c0_156] : memref<1x128xf32, #tpu.memory_space<vmem>>, vector<1x128xf32>
    %202 = vector.broadcast %201 : vector<1x128xf32> to vector<2x128xf32>
    %203 = arith.addf %200, %202 : vector<2x128xf32>
    %204 = arith.truncf %203 : vector<2x128xf32> to vector<2x128xbf16>
    %cst_157 = arith.constant dense<0.000000e+00> : vector<2x512xf32>
    %205 = tpu.matmul %204, %190, %cst_157 {dimension_numbers = #tpu.dot_dimension_numbers<[1], [0], [0], [1], [0, 0, 1, 1], [], []>} : vector<2x128xbf16>, vector<128x512xbf16>, vector<2x512xf32> -> vector<2x512xf32>
    %c0_158 = arith.constant 0 : index
    %c0_159 = arith.constant 0 : index
    %206 = vector.load %arg33[%c0_158, %c0_159] : memref<1x512xf32, #tpu.memory_space<vmem>>, vector<1x512xf32>
    %207 = vector.broadcast %206 : vector<1x512xf32> to vector<2x512xf32>
    %208 = arith.addf %205, %207 : vector<2x512xf32>
    %209 = vector.extract_strided_slice %208 {offsets = [0, 0], sizes = [2, 256], strides = [1, 1]} : vector<2x512xf32> to vector<2x256xf32>
    %210 = vector.extract_strided_slice %208 {offsets = [0, 256], sizes = [2, 256], strides = [1, 1]} : vector<2x512xf32> to vector<2x256xf32>
    %211 = tpu.concatenate %209, %210 in 0 : vector<2x256xf32>, vector<2x256xf32> -> vector<4x256xf32>
    %c0_160 = arith.constant 0 : index
    %c0_161 = arith.constant 0 : index
    %212 = vector.load %arg35[%c0_160, %c0_161] : memref<768x256xbf16, #tpu.memory_space<vmem>>, vector<768x256xbf16>
    %213 = arith.truncf %211 : vector<4x256xf32> to vector<4x256xbf16>
    %c0_162 = arith.constant 0 : index
    %c0_163 = arith.constant 0 : index
    %c0_164 = arith.constant 0 : index
    %214 = vector.load %arg34[%c0_162, %c0_163, %c0_164] : memref<3x8x4xbf16, #tpu.memory_space<vmem>>, vector<1x8x4xbf16>
    %215 = vector.shape_cast %214 : vector<1x8x4xbf16> to vector<8x4xbf16>
    %cst_165 = arith.constant dense<0.000000e+00> : vector<8x256xf32>
    %216 = tpu.matmul %215, %213, %cst_165 {dimension_numbers = #tpu.dot_dimension_numbers<[1], [0], [0], [1], [0, 0, 1, 1], [], []>} : vector<8x4xbf16>, vector<4x256xbf16>, vector<8x256xf32> -> vector<8x256xf32>
    %c1_166 = arith.constant 1 : index
    %c0_167 = arith.constant 0 : index
    %c0_168 = arith.constant 0 : index
    %217 = vector.load %arg34[%c1_166, %c0_167, %c0_168] : memref<3x8x4xbf16, #tpu.memory_space<vmem>>, vector<1x8x4xbf16>
    %218 = vector.shape_cast %217 : vector<1x8x4xbf16> to vector<8x4xbf16>
    %cst_169 = arith.constant dense<0.000000e+00> : vector<8x256xf32>
    %219 = tpu.matmul %218, %213, %cst_169 {dimension_numbers = #tpu.dot_dimension_numbers<[1], [0], [0], [1], [0, 0, 1, 1], [], []>} : vector<8x4xbf16>, vector<4x256xbf16>, vector<8x256xf32> -> vector<8x256xf32>
    %c2_170 = arith.constant 2 : index
    %c0_171 = arith.constant 0 : index
    %c0_172 = arith.constant 0 : index
    %220 = vector.load %arg34[%c2_170, %c0_171, %c0_172] : memref<3x8x4xbf16, #tpu.memory_space<vmem>>, vector<1x8x4xbf16>
    %221 = vector.shape_cast %220 : vector<1x8x4xbf16> to vector<8x4xbf16>
    %cst_173 = arith.constant dense<0.000000e+00> : vector<8x256xf32>
    %222 = tpu.matmul %221, %213, %cst_173 {dimension_numbers = #tpu.dot_dimension_numbers<[1], [0], [0], [1], [0, 0, 1, 1], [], []>} : vector<8x4xbf16>, vector<4x256xbf16>, vector<8x256xf32> -> vector<8x256xf32>
    %223 = tpu.concatenate %216, %219, %222 in 1 : vector<8x256xf32>, vector<8x256xf32>, vector<8x256xf32> -> vector<8x768xf32>
    %224 = arith.truncf %223 : vector<8x768xf32> to vector<8x768xbf16>
    %cst_174 = arith.constant dense<0.000000e+00> : vector<8x256xf32>
    %225 = tpu.matmul %224, %212, %cst_174 {dimension_numbers = #tpu.dot_dimension_numbers<[1], [0], [0], [1], [0, 0, 1, 1], [], []>} : vector<8x768xbf16>, vector<768x256xbf16>, vector<8x256xf32> -> vector<8x256xf32>
    %c0_175 = arith.constant 0 : index
    %c0_176 = arith.constant 0 : index
    %226 = vector.load %arg36[%c0_175, %c0_176] : memref<1x256xf32, #tpu.memory_space<vmem>>, vector<1x256xf32>
    %227 = vector.broadcast %226 : vector<1x256xf32> to vector<8x256xf32>
    %228 = arith.addf %225, %227 : vector<8x256xf32>
    %cst_177 = arith.constant 0.000000e+00 : f32
    %229 = vector.broadcast %cst_177 : f32 to vector<8x256xf32>
    %230 = arith.maximumf %228, %229 : vector<8x256xf32>
    %c0_178 = arith.constant 0 : index
    %c0_179 = arith.constant 0 : index
    %231 = vector.load %arg39[%c0_178, %c0_179] : memref<256x64xf32, #tpu.memory_space<vmem>>, vector<256x64xf32>
    %c0_180 = arith.constant 0 : index
    %c0_181 = arith.constant 0 : index
    %232 = vector.load %arg40[%c0_180, %c0_181] : memref<64x256xf32, #tpu.memory_space<vmem>>, vector<64x256xf32>
    %c0_182 = arith.constant 0 : index
    %c0_183 = arith.constant 0 : index
    %233 = vector.load %arg37[%c0_182, %c0_183] : memref<1x64xf32, #tpu.memory_space<vmem>>, vector<1x64xf32>
    %c0_184 = arith.constant 0 : index
    %c0_185 = arith.constant 0 : index
    %234 = vector.load %arg38[%c0_184, %c0_185] : memref<1x64xf32, #tpu.memory_space<vmem>>, vector<1x64xf32>
    %cst_186 = arith.constant dense<0.000000e+00> : vector<256xf32>
    %235 = vector.multi_reduction <add>, %230, %cst_186 [0] : vector<8x256xf32> to vector<256xf32>
    %236 = vector.shape_cast %235 : vector<256xf32> to vector<1x256xf32>
    %cst_187 = arith.constant dense<0.000000e+00> : vector<1x64xf32>
    %237 = tpu.matmul %236, %231, %cst_187 {dimension_numbers = #tpu.dot_dimension_numbers<[1], [0], [0], [1], [0, 0, 1, 1], [], []>} : vector<1x256xf32>, vector<256x64xf32>, vector<1x64xf32> -> vector<1x64xf32>
    %cst_188 = arith.constant 3.125000e-02 : f32
    %238 = vector.broadcast %cst_188 : f32 to vector<1x64xf32>
    %239 = arith.mulf %237, %238 : vector<1x64xf32>
    %cst_189 = arith.constant dense<0.000000e+00> : vector<1x256xf32>
    %240 = tpu.matmul %239, %232, %cst_189 {dimension_numbers = #tpu.dot_dimension_numbers<[1], [0], [0], [1], [0, 0, 1, 1], [], []>} : vector<1x64xf32>, vector<64x256xf32>, vector<1x256xf32> -> vector<1x256xf32>
    %241 = vector.broadcast %240 : vector<1x256xf32> to vector<8x256xf32>
    %242 = arith.subf %230, %241 : vector<8x256xf32>
    %243 = arith.mulf %242, %242 : vector<8x256xf32>
    %cst_190 = arith.constant dense<0.000000e+00> : vector<256xf32>
    %244 = vector.multi_reduction <add>, %243, %cst_190 [0] : vector<8x256xf32> to vector<256xf32>
    %245 = vector.shape_cast %244 : vector<256xf32> to vector<1x256xf32>
    %cst_191 = arith.constant dense<0.000000e+00> : vector<1x64xf32>
    %246 = tpu.matmul %245, %231, %cst_191 {dimension_numbers = #tpu.dot_dimension_numbers<[1], [0], [0], [1], [0, 0, 1, 1], [], []>} : vector<1x256xf32>, vector<256x64xf32>, vector<1x64xf32> -> vector<1x64xf32>
    %cst_192 = arith.constant 3.125000e-02 : f32
    %247 = vector.broadcast %cst_192 : f32 to vector<1x64xf32>
    %248 = arith.mulf %246, %247 : vector<1x64xf32>
    %cst_193 = arith.constant 9.99999974E-6 : f32
    %249 = vector.broadcast %cst_193 : f32 to vector<1x64xf32>
    %250 = arith.addf %248, %249 : vector<1x64xf32>
    %251 = math.rsqrt %250 : vector<1x64xf32>
    %252 = arith.mulf %233, %251 : vector<1x64xf32>
    %cst_194 = arith.constant dense<0.000000e+00> : vector<1x256xf32>
    %253 = tpu.matmul %252, %232, %cst_194 {dimension_numbers = #tpu.dot_dimension_numbers<[1], [0], [0], [1], [0, 0, 1, 1], [], []>} : vector<1x64xf32>, vector<64x256xf32>, vector<1x256xf32> -> vector<1x256xf32>
    %254 = vector.broadcast %253 : vector<1x256xf32> to vector<8x256xf32>
    %255 = arith.mulf %242, %254 : vector<8x256xf32>
    %cst_195 = arith.constant dense<0.000000e+00> : vector<1x256xf32>
    %256 = tpu.matmul %234, %232, %cst_195 {dimension_numbers = #tpu.dot_dimension_numbers<[1], [0], [0], [1], [0, 0, 1, 1], [], []>} : vector<1x64xf32>, vector<64x256xf32>, vector<1x256xf32> -> vector<1x256xf32>
    %257 = vector.broadcast %256 : vector<1x256xf32> to vector<8x256xf32>
    %258 = arith.addf %255, %257 : vector<8x256xf32>
    %c0_196 = arith.constant 0 : index
    %c0_197 = arith.constant 0 : index
    %259 = vector.load %arg42[%c0_196, %c0_197] : memref<768x256xbf16, #tpu.memory_space<vmem>>, vector<768x256xbf16>
    %260 = arith.truncf %258 : vector<8x256xf32> to vector<8x256xbf16>
    %c0_198 = arith.constant 0 : index
    %c0_199 = arith.constant 0 : index
    %c0_200 = arith.constant 0 : index
    %261 = vector.load %arg41[%c0_198, %c0_199, %c0_200] : memref<3x16x8xbf16, #tpu.memory_space<vmem>>, vector<1x16x8xbf16>
    %262 = vector.shape_cast %261 : vector<1x16x8xbf16> to vector<16x8xbf16>
    %cst_201 = arith.constant dense<0.000000e+00> : vector<16x256xf32>
    %263 = tpu.matmul %262, %260, %cst_201 {dimension_numbers = #tpu.dot_dimension_numbers<[1], [0], [0], [1], [0, 0, 1, 1], [], []>} : vector<16x8xbf16>, vector<8x256xbf16>, vector<16x256xf32> -> vector<16x256xf32>
    %c1_202 = arith.constant 1 : index
    %c0_203 = arith.constant 0 : index
    %c0_204 = arith.constant 0 : index
    %264 = vector.load %arg41[%c1_202, %c0_203, %c0_204] : memref<3x16x8xbf16, #tpu.memory_space<vmem>>, vector<1x16x8xbf16>
    %265 = vector.shape_cast %264 : vector<1x16x8xbf16> to vector<16x8xbf16>
    %cst_205 = arith.constant dense<0.000000e+00> : vector<16x256xf32>
    %266 = tpu.matmul %265, %260, %cst_205 {dimension_numbers = #tpu.dot_dimension_numbers<[1], [0], [0], [1], [0, 0, 1, 1], [], []>} : vector<16x8xbf16>, vector<8x256xbf16>, vector<16x256xf32> -> vector<16x256xf32>
    %c2_206 = arith.constant 2 : index
    %c0_207 = arith.constant 0 : index
    %c0_208 = arith.constant 0 : index
    %267 = vector.load %arg41[%c2_206, %c0_207, %c0_208] : memref<3x16x8xbf16, #tpu.memory_space<vmem>>, vector<1x16x8xbf16>
    %268 = vector.shape_cast %267 : vector<1x16x8xbf16> to vector<16x8xbf16>
    %cst_209 = arith.constant dense<0.000000e+00> : vector<16x256xf32>
    %269 = tpu.matmul %268, %260, %cst_209 {dimension_numbers = #tpu.dot_dimension_numbers<[1], [0], [0], [1], [0, 0, 1, 1], [], []>} : vector<16x8xbf16>, vector<8x256xbf16>, vector<16x256xf32> -> vector<16x256xf32>
    %270 = tpu.concatenate %263, %266, %269 in 1 : vector<16x256xf32>, vector<16x256xf32>, vector<16x256xf32> -> vector<16x768xf32>
    %271 = arith.truncf %270 : vector<16x768xf32> to vector<16x768xbf16>
    %cst_210 = arith.constant dense<0.000000e+00> : vector<16x256xf32>
    %272 = tpu.matmul %271, %259, %cst_210 {dimension_numbers = #tpu.dot_dimension_numbers<[1], [0], [0], [1], [0, 0, 1, 1], [], []>} : vector<16x768xbf16>, vector<768x256xbf16>, vector<16x256xf32> -> vector<16x256xf32>
    %c0_211 = arith.constant 0 : index
    %c0_212 = arith.constant 0 : index
    %273 = vector.load %arg43[%c0_211, %c0_212] : memref<1x256xf32, #tpu.memory_space<vmem>>, vector<1x256xf32>
    %274 = vector.broadcast %273 : vector<1x256xf32> to vector<16x256xf32>
    %275 = arith.addf %272, %274 : vector<16x256xf32>
    %cst_213 = arith.constant 0.000000e+00 : f32
    %276 = vector.broadcast %cst_213 : f32 to vector<16x256xf32>
    %277 = arith.maximumf %275, %276 : vector<16x256xf32>
    %c0_214 = arith.constant 0 : index
    %c0_215 = arith.constant 0 : index
    %278 = vector.load %arg46[%c0_214, %c0_215] : memref<256x32xf32, #tpu.memory_space<vmem>>, vector<256x32xf32>
    %c0_216 = arith.constant 0 : index
    %c0_217 = arith.constant 0 : index
    %279 = vector.load %arg47[%c0_216, %c0_217] : memref<32x256xf32, #tpu.memory_space<vmem>>, vector<32x256xf32>
    %c0_218 = arith.constant 0 : index
    %c0_219 = arith.constant 0 : index
    %280 = vector.load %arg44[%c0_218, %c0_219] : memref<1x32xf32, #tpu.memory_space<vmem>>, vector<1x32xf32>
    %c0_220 = arith.constant 0 : index
    %c0_221 = arith.constant 0 : index
    %281 = vector.load %arg45[%c0_220, %c0_221] : memref<1x32xf32, #tpu.memory_space<vmem>>, vector<1x32xf32>
    %cst_222 = arith.constant dense<0.000000e+00> : vector<256xf32>
    %282 = vector.multi_reduction <add>, %277, %cst_222 [0] : vector<16x256xf32> to vector<256xf32>
    %283 = vector.shape_cast %282 : vector<256xf32> to vector<1x256xf32>
    %cst_223 = arith.constant dense<0.000000e+00> : vector<1x32xf32>
    %284 = tpu.matmul %283, %278, %cst_223 {dimension_numbers = #tpu.dot_dimension_numbers<[1], [0], [0], [1], [0, 0, 1, 1], [], []>} : vector<1x256xf32>, vector<256x32xf32>, vector<1x32xf32> -> vector<1x32xf32>
    %cst_224 = arith.constant 7.812500e-03 : f32
    %285 = vector.broadcast %cst_224 : f32 to vector<1x32xf32>
    %286 = arith.mulf %284, %285 : vector<1x32xf32>
    %cst_225 = arith.constant dense<0.000000e+00> : vector<1x256xf32>
    %287 = tpu.matmul %286, %279, %cst_225 {dimension_numbers = #tpu.dot_dimension_numbers<[1], [0], [0], [1], [0, 0, 1, 1], [], []>} : vector<1x32xf32>, vector<32x256xf32>, vector<1x256xf32> -> vector<1x256xf32>
    %288 = vector.broadcast %287 : vector<1x256xf32> to vector<16x256xf32>
    %289 = arith.subf %277, %288 : vector<16x256xf32>
    %290 = arith.mulf %289, %289 : vector<16x256xf32>
    %cst_226 = arith.constant dense<0.000000e+00> : vector<256xf32>
    %291 = vector.multi_reduction <add>, %290, %cst_226 [0] : vector<16x256xf32> to vector<256xf32>
    %292 = vector.shape_cast %291 : vector<256xf32> to vector<1x256xf32>
    %cst_227 = arith.constant dense<0.000000e+00> : vector<1x32xf32>
    %293 = tpu.matmul %292, %278, %cst_227 {dimension_numbers = #tpu.dot_dimension_numbers<[1], [0], [0], [1], [0, 0, 1, 1], [], []>} : vector<1x256xf32>, vector<256x32xf32>, vector<1x32xf32> -> vector<1x32xf32>
    %cst_228 = arith.constant 7.812500e-03 : f32
    %294 = vector.broadcast %cst_228 : f32 to vector<1x32xf32>
    %295 = arith.mulf %293, %294 : vector<1x32xf32>
    %cst_229 = arith.constant 9.99999974E-6 : f32
    %296 = vector.broadcast %cst_229 : f32 to vector<1x32xf32>
    %297 = arith.addf %295, %296 : vector<1x32xf32>
    %298 = math.rsqrt %297 : vector<1x32xf32>
    %299 = arith.mulf %280, %298 : vector<1x32xf32>
    %cst_230 = arith.constant dense<0.000000e+00> : vector<1x256xf32>
    %300 = tpu.matmul %299, %279, %cst_230 {dimension_numbers = #tpu.dot_dimension_numbers<[1], [0], [0], [1], [0, 0, 1, 1], [], []>} : vector<1x32xf32>, vector<32x256xf32>, vector<1x256xf32> -> vector<1x256xf32>
    %301 = vector.broadcast %300 : vector<1x256xf32> to vector<16x256xf32>
    %302 = arith.mulf %289, %301 : vector<16x256xf32>
    %cst_231 = arith.constant dense<0.000000e+00> : vector<1x256xf32>
    %303 = tpu.matmul %281, %279, %cst_231 {dimension_numbers = #tpu.dot_dimension_numbers<[1], [0], [0], [1], [0, 0, 1, 1], [], []>} : vector<1x32xf32>, vector<32x256xf32>, vector<1x256xf32> -> vector<1x256xf32>
    %304 = vector.broadcast %303 : vector<1x256xf32> to vector<16x256xf32>
    %305 = arith.addf %302, %304 : vector<16x256xf32>
    %c0_232 = arith.constant 0 : index
    %c0_233 = arith.constant 0 : index
    %306 = vector.load %arg49[%c0_232, %c0_233] : memref<768x256xbf16, #tpu.memory_space<vmem>>, vector<768x256xbf16>
    %307 = arith.truncf %305 : vector<16x256xf32> to vector<16x256xbf16>
    %c0_234 = arith.constant 0 : index
    %c0_235 = arith.constant 0 : index
    %c0_236 = arith.constant 0 : index
    %308 = vector.load %arg48[%c0_234, %c0_235, %c0_236] : memref<3x32x16xbf16, #tpu.memory_space<vmem>>, vector<1x32x16xbf16>
    %309 = vector.shape_cast %308 : vector<1x32x16xbf16> to vector<32x16xbf16>
    %cst_237 = arith.constant dense<0.000000e+00> : vector<32x256xf32>
    %310 = tpu.matmul %309, %307, %cst_237 {dimension_numbers = #tpu.dot_dimension_numbers<[1], [0], [0], [1], [0, 0, 1, 1], [], []>} : vector<32x16xbf16>, vector<16x256xbf16>, vector<32x256xf32> -> vector<32x256xf32>
    %c1_238 = arith.constant 1 : index
    %c0_239 = arith.constant 0 : index
    %c0_240 = arith.constant 0 : index
    %311 = vector.load %arg48[%c1_238, %c0_239, %c0_240] : memref<3x32x16xbf16, #tpu.memory_space<vmem>>, vector<1x32x16xbf16>
    %312 = vector.shape_cast %311 : vector<1x32x16xbf16> to vector<32x16xbf16>
    %cst_241 = arith.constant dense<0.000000e+00> : vector<32x256xf32>
    %313 = tpu.matmul %312, %307, %cst_241 {dimension_numbers = #tpu.dot_dimension_numbers<[1], [0], [0], [1], [0, 0, 1, 1], [], []>} : vector<32x16xbf16>, vector<16x256xbf16>, vector<32x256xf32> -> vector<32x256xf32>
    %c2_242 = arith.constant 2 : index
    %c0_243 = arith.constant 0 : index
    %c0_244 = arith.constant 0 : index
    %314 = vector.load %arg48[%c2_242, %c0_243, %c0_244] : memref<3x32x16xbf16, #tpu.memory_space<vmem>>, vector<1x32x16xbf16>
    %315 = vector.shape_cast %314 : vector<1x32x16xbf16> to vector<32x16xbf16>
    %cst_245 = arith.constant dense<0.000000e+00> : vector<32x256xf32>
    %316 = tpu.matmul %315, %307, %cst_245 {dimension_numbers = #tpu.dot_dimension_numbers<[1], [0], [0], [1], [0, 0, 1, 1], [], []>} : vector<32x16xbf16>, vector<16x256xbf16>, vector<32x256xf32> -> vector<32x256xf32>
    %317 = tpu.concatenate %310, %313, %316 in 1 : vector<32x256xf32>, vector<32x256xf32>, vector<32x256xf32> -> vector<32x768xf32>
    %318 = arith.truncf %317 : vector<32x768xf32> to vector<32x768xbf16>
    %cst_246 = arith.constant dense<0.000000e+00> : vector<32x256xf32>
    %319 = tpu.matmul %318, %306, %cst_246 {dimension_numbers = #tpu.dot_dimension_numbers<[1], [0], [0], [1], [0, 0, 1, 1], [], []>} : vector<32x768xbf16>, vector<768x256xbf16>, vector<32x256xf32> -> vector<32x256xf32>
    %c0_247 = arith.constant 0 : index
    %c0_248 = arith.constant 0 : index
    %320 = vector.load %arg50[%c0_247, %c0_248] : memref<1x256xf32, #tpu.memory_space<vmem>>, vector<1x256xf32>
    %321 = vector.broadcast %320 : vector<1x256xf32> to vector<32x256xf32>
    %322 = arith.addf %319, %321 : vector<32x256xf32>
    %cst_249 = arith.constant 0.000000e+00 : f32
    %323 = vector.broadcast %cst_249 : f32 to vector<32x256xf32>
    %324 = arith.maximumf %322, %323 : vector<32x256xf32>
    %c0_250 = arith.constant 0 : index
    %c0_251 = arith.constant 0 : index
    %325 = vector.load %arg53[%c0_250, %c0_251] : memref<256x16xf32, #tpu.memory_space<vmem>>, vector<256x16xf32>
    %c0_252 = arith.constant 0 : index
    %c0_253 = arith.constant 0 : index
    %326 = vector.load %arg54[%c0_252, %c0_253] : memref<16x256xf32, #tpu.memory_space<vmem>>, vector<16x256xf32>
    %c0_254 = arith.constant 0 : index
    %c0_255 = arith.constant 0 : index
    %327 = vector.load %arg51[%c0_254, %c0_255] : memref<1x16xf32, #tpu.memory_space<vmem>>, vector<1x16xf32>
    %c0_256 = arith.constant 0 : index
    %c0_257 = arith.constant 0 : index
    %328 = vector.load %arg52[%c0_256, %c0_257] : memref<1x16xf32, #tpu.memory_space<vmem>>, vector<1x16xf32>
    %cst_258 = arith.constant dense<0.000000e+00> : vector<256xf32>
    %329 = vector.multi_reduction <add>, %324, %cst_258 [0] : vector<32x256xf32> to vector<256xf32>
    %330 = vector.shape_cast %329 : vector<256xf32> to vector<1x256xf32>
    %cst_259 = arith.constant dense<0.000000e+00> : vector<1x16xf32>
    %331 = tpu.matmul %330, %325, %cst_259 {dimension_numbers = #tpu.dot_dimension_numbers<[1], [0], [0], [1], [0, 0, 1, 1], [], []>} : vector<1x256xf32>, vector<256x16xf32>, vector<1x16xf32> -> vector<1x16xf32>
    %cst_260 = arith.constant 0.001953125 : f32
    %332 = vector.broadcast %cst_260 : f32 to vector<1x16xf32>
    %333 = arith.mulf %331, %332 : vector<1x16xf32>
    %cst_261 = arith.constant dense<0.000000e+00> : vector<1x256xf32>
    %334 = tpu.matmul %333, %326, %cst_261 {dimension_numbers = #tpu.dot_dimension_numbers<[1], [0], [0], [1], [0, 0, 1, 1], [], []>} : vector<1x16xf32>, vector<16x256xf32>, vector<1x256xf32> -> vector<1x256xf32>
    %335 = vector.broadcast %334 : vector<1x256xf32> to vector<32x256xf32>
    %336 = arith.subf %324, %335 : vector<32x256xf32>
    %337 = arith.mulf %336, %336 : vector<32x256xf32>
    %cst_262 = arith.constant dense<0.000000e+00> : vector<256xf32>
    %338 = vector.multi_reduction <add>, %337, %cst_262 [0] : vector<32x256xf32> to vector<256xf32>
    %339 = vector.shape_cast %338 : vector<256xf32> to vector<1x256xf32>
    %cst_263 = arith.constant dense<0.000000e+00> : vector<1x16xf32>
    %340 = tpu.matmul %339, %325, %cst_263 {dimension_numbers = #tpu.dot_dimension_numbers<[1], [0], [0], [1], [0, 0, 1, 1], [], []>} : vector<1x256xf32>, vector<256x16xf32>, vector<1x16xf32> -> vector<1x16xf32>
    %cst_264 = arith.constant 0.001953125 : f32
    %341 = vector.broadcast %cst_264 : f32 to vector<1x16xf32>
    %342 = arith.mulf %340, %341 : vector<1x16xf32>
    %cst_265 = arith.constant 9.99999974E-6 : f32
    %343 = vector.broadcast %cst_265 : f32 to vector<1x16xf32>
    %344 = arith.addf %342, %343 : vector<1x16xf32>
    %345 = math.rsqrt %344 : vector<1x16xf32>
    %346 = arith.mulf %327, %345 : vector<1x16xf32>
    %cst_266 = arith.constant dense<0.000000e+00> : vector<1x256xf32>
    %347 = tpu.matmul %346, %326, %cst_266 {dimension_numbers = #tpu.dot_dimension_numbers<[1], [0], [0], [1], [0, 0, 1, 1], [], []>} : vector<1x16xf32>, vector<16x256xf32>, vector<1x256xf32> -> vector<1x256xf32>
    %348 = vector.broadcast %347 : vector<1x256xf32> to vector<32x256xf32>
    %349 = arith.mulf %336, %348 : vector<32x256xf32>
    %cst_267 = arith.constant dense<0.000000e+00> : vector<1x256xf32>
    %350 = tpu.matmul %328, %326, %cst_267 {dimension_numbers = #tpu.dot_dimension_numbers<[1], [0], [0], [1], [0, 0, 1, 1], [], []>} : vector<1x16xf32>, vector<16x256xf32>, vector<1x256xf32> -> vector<1x256xf32>
    %351 = vector.broadcast %350 : vector<1x256xf32> to vector<32x256xf32>
    %352 = arith.addf %349, %351 : vector<32x256xf32>
    %c0_268 = arith.constant 0 : index
    %c0_269 = arith.constant 0 : index
    %353 = vector.load %arg56[%c0_268, %c0_269] : memref<768x96xbf16, #tpu.memory_space<vmem>>, vector<768x96xbf16>
    %354 = arith.truncf %352 : vector<32x256xf32> to vector<32x256xbf16>
    %c0_270 = arith.constant 0 : index
    %c0_271 = arith.constant 0 : index
    %c0_272 = arith.constant 0 : index
    %355 = vector.load %arg55[%c0_270, %c0_271, %c0_272] : memref<3x64x32xbf16, #tpu.memory_space<vmem>>, vector<1x64x32xbf16>
    %356 = vector.shape_cast %355 : vector<1x64x32xbf16> to vector<64x32xbf16>
    %cst_273 = arith.constant dense<0.000000e+00> : vector<64x256xf32>
    %357 = tpu.matmul %356, %354, %cst_273 {dimension_numbers = #tpu.dot_dimension_numbers<[1], [0], [0], [1], [0, 0, 1, 1], [], []>} : vector<64x32xbf16>, vector<32x256xbf16>, vector<64x256xf32> -> vector<64x256xf32>
    %c1_274 = arith.constant 1 : index
    %c0_275 = arith.constant 0 : index
    %c0_276 = arith.constant 0 : index
    %358 = vector.load %arg55[%c1_274, %c0_275, %c0_276] : memref<3x64x32xbf16, #tpu.memory_space<vmem>>, vector<1x64x32xbf16>
    %359 = vector.shape_cast %358 : vector<1x64x32xbf16> to vector<64x32xbf16>
    %cst_277 = arith.constant dense<0.000000e+00> : vector<64x256xf32>
    %360 = tpu.matmul %359, %354, %cst_277 {dimension_numbers = #tpu.dot_dimension_numbers<[1], [0], [0], [1], [0, 0, 1, 1], [], []>} : vector<64x32xbf16>, vector<32x256xbf16>, vector<64x256xf32> -> vector<64x256xf32>
    %c2_278 = arith.constant 2 : index
    %c0_279 = arith.constant 0 : index
    %c0_280 = arith.constant 0 : index
    %361 = vector.load %arg55[%c2_278, %c0_279, %c0_280] : memref<3x64x32xbf16, #tpu.memory_space<vmem>>, vector<1x64x32xbf16>
    %362 = vector.shape_cast %361 : vector<1x64x32xbf16> to vector<64x32xbf16>
    %cst_281 = arith.constant dense<0.000000e+00> : vector<64x256xf32>
    %363 = tpu.matmul %362, %354, %cst_281 {dimension_numbers = #tpu.dot_dimension_numbers<[1], [0], [0], [1], [0, 0, 1, 1], [], []>} : vector<64x32xbf16>, vector<32x256xbf16>, vector<64x256xf32> -> vector<64x256xf32>
    %364 = tpu.concatenate %357, %360, %363 in 1 : vector<64x256xf32>, vector<64x256xf32>, vector<64x256xf32> -> vector<64x768xf32>
    %365 = arith.truncf %364 : vector<64x768xf32> to vector<64x768xbf16>
    %cst_282 = arith.constant dense<0.000000e+00> : vector<64x96xf32>
    %366 = tpu.matmul %365, %353, %cst_282 {dimension_numbers = #tpu.dot_dimension_numbers<[1], [0], [0], [1], [0, 0, 1, 1], [], []>} : vector<64x768xbf16>, vector<768x96xbf16>, vector<64x96xf32> -> vector<64x96xf32>
    %c0_283 = arith.constant 0 : index
    %c0_284 = arith.constant 0 : index
    %367 = vector.load %arg57[%c0_283, %c0_284] : memref<1x96xf32, #tpu.memory_space<vmem>>, vector<1x96xf32>
    %368 = vector.broadcast %367 : vector<1x96xf32> to vector<64x96xf32>
    %369 = arith.addf %366, %368 : vector<64x96xf32>
    %370 = math.tanh %369 : vector<64x96xf32>
    %c0_285 = arith.constant 0 : index
    %c0_286 = arith.constant 0 : index
    %371 = vector.load %arg58[%c0_285, %c0_286] : memref<64x96xf32, #tpu.memory_space<vmem>>, vector<64x96xf32>
    tpu.vector_store %arg58[%c0_285, %c0_286], %370 {strides = array<i32>} : memref<64x96xf32, #tpu.memory_space<vmem>>, vector<64x96xf32>,
    return
  }
}

</mosaic_0001>

<llo_original>
// kernel: forward.1
$region0: #{forward.1}
  #allocation0 [shape = 'u32[]', space=smem, size = 0x4, offset = 0x4, fixed_abs, tag = 'smem constant byte address 0x4 - core index']
  #allocation1 [shape = 'u32[72,128]{1,0:T(1,128)}', space=vmem, size = 0x9000, scoped, tag = 'internal scratch']
  %s0 = inlined_call_operand.smem [shape: u32[59], index: -1, kind: input, shape index: {}]
  %s1 = sld [smem:[%s0]]
  %s2 = scalar_lea.smem %s0, 1
  %s3 = sld [smem:[%s2]]
  %s4 = scalar_lea.smem %s0, 2
  %s5 = sld [smem:[%s4]]
  %s6 = scalar_lea.smem %s0, 3
  %s7 = sld [smem:[%s6]]
  %s8 = scalar_lea.smem %s0, 4
  %s9 = sld [smem:[%s8]]
  %s10 = scalar_lea.smem %s0, 5
  %s11 = sld [smem:[%s10]]
  %s12 = scalar_lea.smem %s0, 6
  %s13 = sld [smem:[%s12]]
  %s14 = scalar_lea.smem %s0, 7
  %s15 = sld [smem:[%s14]]
  %s16 = scalar_lea.smem %s0, 8
  %s17 = sld [smem:[%s16]]
  %s18 = scalar_lea.smem %s0, 9
  %s19 = sld [smem:[%s18]]
  %s20 = scalar_lea.smem %s0, 10
  %s21 = sld [smem:[%s20]]
  %s22 = scalar_lea.smem %s0, 11
  %s23 = sld [smem:[%s22]]
  %s24 = scalar_lea.smem %s0, 12
  %s25 = sld [smem:[%s24]]
  %s26 = scalar_lea.smem %s0, 13
  %s27 = sld [smem:[%s26]]
  %s28 = scalar_lea.smem %s0, 14
  %s29 = sld [smem:[%s28]]
  %s30 = scalar_lea.smem %s0, 15
  %s31 = sld [smem:[%s30]]
  %s32 = scalar_lea.smem %s0, 16
  %s33 = sld [smem:[%s32]]
  %s34 = scalar_lea.smem %s0, 17
  %s35 = sld [smem:[%s34]]
  %s36 = scalar_lea.smem %s0, 18
  %s37 = sld [smem:[%s36]]
  %s38 = scalar_lea.smem %s0, 19
  %s39 = sld [smem:[%s38]]
  %s40 = scalar_lea.smem %s0, 20
  %s41 = sld [smem:[%s40]]
  %s42 = scalar_lea.smem %s0, 21
  %s43 = sld [smem:[%s42]]
  %s44 = scalar_lea.smem %s0, 22
  %s45 = sld [smem:[%s44]]
  %s46 = scalar_lea.smem %s0, 23
  %s47 = sld [smem:[%s46]]
  %s48 = scalar_lea.smem %s0, 24
  %s49 = sld [smem:[%s48]]
  %s50 = scalar_lea.smem %s0, 25
  %s51 = sld [smem:[%s50]]
  %s52 = scalar_lea.smem %s0, 26
  %s53 = sld [smem:[%s52]]
  %s54 = scalar_lea.smem %s0, 27
  %s55 = sld [smem:[%s54]]
  %s56 = scalar_lea.smem %s0, 28
  %s57 = sld [smem:[%s56]]
  %s58 = scalar_lea.smem %s0, 29
  %s59 = sld [smem:[%s58]]
  %s60 = scalar_lea.smem %s0, 30
  %s61 = sld [smem:[%s60]]
  %s62 = scalar_lea.smem %s0, 31
  %s63 = sld [smem:[%s62]]
  %s64 = scalar_lea.smem %s0, 32
  %s65 = sld [smem:[%s64]]
  %s66 = scalar_lea.smem %s0, 33
  %s67 = sld [smem:[%s66]]
  %s68 = scalar_lea.smem %s0, 34
  %s69 = sld [smem:[%s68]]
  %s70 = scalar_lea.smem %s0, 35
  %s71 = sld [smem:[%s70]]
  %s72 = scalar_lea.smem %s0, 36
  %s73 = sld [smem:[%s72]]
  %s74 = scalar_lea.smem %s0, 37
  %s75 = sld [smem:[%s74]]
  %s76 = scalar_lea.smem %s0, 38
  %s77 = sld [smem:[%s76]]
  %s78 = scalar_lea.smem %s0, 39
  %s79 = sld [smem:[%s78]]
  %s80 = scalar_lea.smem %s0, 40
  %s81 = sld [smem:[%s80]]
  %s82 = scalar_lea.smem %s0, 41
  %s83 = sld [smem:[%s82]]
  %s84 = scalar_lea.smem %s0, 42
  %s85 = sld [smem:[%s84]]
  %s86 = scalar_lea.smem %s0, 43
  %s87 = sld [smem:[%s86]]
  %s88 = scalar_lea.smem %s0, 44
  %s89 = sld [smem:[%s88]]
  %s90 = scalar_lea.smem %s0, 45
  %s91 = sld [smem:[%s90]]
  %s92 = scalar_lea.smem %s0, 46
  %s93 = sld [smem:[%s92]]
  %s94 = scalar_lea.smem %s0, 47
  %s95 = sld [smem:[%s94]]
  %s96 = scalar_lea.smem %s0, 48
  %s97 = sld [smem:[%s96]]
  %s98 = scalar_lea.smem %s0, 49
  %s99 = sld [smem:[%s98]]
  %s100 = scalar_lea.smem %s0, 50
  %s101 = sld [smem:[%s100]]
  %s102 = scalar_lea.smem %s0, 51
  %s103 = sld [smem:[%s102]]
  %s104 = scalar_lea.smem %s0, 52
  %s105 = sld [smem:[%s104]]
  %s106 = scalar_lea.smem %s0, 53
  %s107 = sld [smem:[%s106]]
  %s108 = scalar_lea.smem %s0, 54
  %s109 = sld [smem:[%s108]]
  %s110 = scalar_lea.smem %s0, 55
  %s111 = sld [smem:[%s110]]
  %s112 = scalar_lea.smem %s0, 56
  %s113 = sld [smem:[%s112]]
  %s114 = scalar_lea.smem %s0, 57
  %s115 = sld [smem:[%s114]]
  %s116 = scalar_lea.smem %s0, 58
  %s117 = sld [smem:[%s116]]
  %s118 = sld [smem:[#allocation0]]
  $region394: #{forward.1} parent=0
    _
  %s120 = ssub.s32 1, %s118
  %s121 = scalar_select 0, %s120, %s118
  $region1: #{forward.1} parent=0
    #allocation2 [shape = 'u8[24576]{0}', space=vmem, size = 0x6000, scoped, tag = 'input window, operand 1, single buffered']
    #allocation3 [shape = 's32[1]{0}', space=sflag, size = 0x4, scoped, tag = 'scoped memory for forward.1']
    #allocation4 [shape = 'u8[147456]{0}', space=vmem, size = 0x24000, scoped, tag = 'input window, operand 2, single buffered']
    #allocation5 [shape = 's32[1]{0}', space=sflag, size = 0x4, scoped, tag = 'scoped memory for forward.1']
    #allocation6 [shape = 'u8[1024]{0}', space=vmem, size = 0x400, scoped, tag = 'input window, operand 3, single buffered']
    #allocation7 [shape = 'u8[131072]{0}', space=vmem, size = 0x20000, scoped, tag = 'input window, operand 6, single buffered']
    #allocation8 [shape = 's32[1]{0}', space=sflag, size = 0x4, scoped, tag = 'scoped memory for forward.1']
    #allocation9 [shape = 'u8[16384]{0}', space=vmem, size = 0x4000, scoped, tag = 'input window, operand 7, single buffered']
    #allocation10 [shape = 'u8[12288]{0}', space=vmem, size = 0x3000, scoped, tag = 'input window, operand 8, single buffered']
    #allocation11 [shape = 's32[1]{0}', space=sflag, size = 0x4, scoped, tag = 'scoped memory for forward.1']
    #allocation12 [shape = 'u8[393216]{0}', space=vmem, size = 0x60000, scoped, tag = 'input window, operand 9, single buffered']
    #allocation13 [shape = 'u8[1024]{0}', space=vmem, size = 0x400, scoped, tag = 'input window, operand 10, single buffered']
    #allocation14 [shape = 's32[1]{0}', space=sflag, size = 0x4, scoped, tag = 'scoped memory for forward.1']
    #allocation15 [shape = 'u8[131072]{0}', space=vmem, size = 0x20000, scoped, tag = 'input window, operand 13, single buffered']
    #allocation16 [shape = 'u8[32768]{0}', space=vmem, size = 0x8000, scoped, tag = 'input window, operand 14, single buffered']
    #allocation17 [shape = 's32[1]{0}', space=sflag, size = 0x4, scoped, tag = 'scoped memory for forward.1']
    #allocation18 [shape = 'u8[6144]{0}', space=vmem, size = 0x1800, scoped, tag = 'input window, operand 15, single buffered']
    #allocation19 [shape = 'u8[393216]{0}', space=vmem, size = 0x60000, scoped, tag = 'input window, operand 16, single buffered']
    #allocation20 [shape = 's32[1]{0}', space=sflag, size = 0x4, scoped, tag = 'scoped memory for forward.1']
    #allocation21 [shape = 'u8[1024]{0}', space=vmem, size = 0x400, scoped, tag = 'input window, operand 17, single buffered']
    #allocation22 [shape = 'u8[131072]{0}', space=vmem, size = 0x20000, scoped, tag = 'input window, operand 20, single buffered']
    #allocation23 [shape = 's32[1]{0}', space=sflag, size = 0x4, scoped, tag = 'scoped memory for forward.1']
    #allocation24 [shape = 'u8[65536]{0}', space=vmem, size = 0x10000, scoped, tag = 'input window, operand 21, single buffered']
    #allocation25 [shape = 'u8[393216]{0}', space=vmem, size = 0x60000, scoped, tag = 'input window, operand 23, single buffered']
    #allocation26 [shape = 's32[1]{0}', space=sflag, size = 0x4, scoped, tag = 'scoped memory for forward.1']
    #allocation27 [shape = 'u8[1024]{0}', space=vmem, size = 0x400, scoped, tag = 'input window, operand 24, single buffered']
    #allocation28 [shape = 'u8[131072]{0}', space=vmem, size = 0x20000, scoped, tag = 'input window, operand 27, single buffered']
    #allocation29 [shape = 's32[1]{0}', space=sflag, size = 0x4, scoped, tag = 'scoped memory for forward.1']
    #allocation30 [shape = 'u8[131072]{0}', space=vmem, size = 0x20000, scoped, tag = 'input window, operand 28, single buffered']
    #allocation31 [shape = 'u8[1024]{0}', space=vmem, size = 0x400, scoped, tag = 'input window, operand 29, single buffered']
    #allocation32 [shape = 's32[1]{0}', space=sflag, size = 0x4, scoped, tag = 'scoped memory for forward.1']
    #allocation33 [shape = 'u8[131072]{0}', space=vmem, size = 0x20000, scoped, tag = 'input window, operand 30, single buffered']
    #allocation34 [shape = 'u8[512]{0}', space=vmem, size = 0x400, scoped, tag = 'input window, operand 31, single buffered']
    #allocation35 [shape = 's32[1]{0}', space=sflag, size = 0x4, scoped, tag = 'scoped memory for forward.1']
    #allocation36 [shape = 'u8[131072]{0}', space=vmem, size = 0x20000, scoped, tag = 'input window, operand 32, single buffered']
    #allocation37 [shape = 'u8[2048]{0}', space=vmem, size = 0x800, scoped, tag = 'input window, operand 33, single buffered']
    #allocation38 [shape = 's32[1]{0}', space=sflag, size = 0x4, scoped, tag = 'scoped memory for forward.1']
    #allocation39 [shape = 'u8[393216]{0}', space=vmem, size = 0x60000, scoped, tag = 'input window, operand 35, single buffered']
    #allocation40 [shape = 'u8[1024]{0}', space=vmem, size = 0x400, scoped, tag = 'input window, operand 36, single buffered']
    #allocation41 [shape = 's32[1]{0}', space=sflag, size = 0x4, scoped, tag = 'scoped memory for forward.1']
    #allocation42 [shape = 'u8[131072]{0}', space=vmem, size = 0x20000, scoped, tag = 'input window, operand 39, single buffered']
    #allocation43 [shape = 'u8[65536]{0}', space=vmem, size = 0x10000, scoped, tag = 'input window, operand 40, single buffered']
    #allocation44 [shape = 's32[1]{0}', space=sflag, size = 0x4, scoped, tag = 'scoped memory for forward.1']
    #allocation45 [shape = 'u8[12288]{0}', space=vmem, size = 0x3000, scoped, tag = 'input window, operand 41, single buffered']
    #allocation46 [shape = 'u8[393216]{0}', space=vmem, size = 0x60000, scoped, tag = 'input window, operand 42, single buffered']
    #allocation47 [shape = 's32[1]{0}', space=sflag, size = 0x4, scoped, tag = 'scoped memory for forward.1']
    #allocation48 [shape = 'u8[1024]{0}', space=vmem, size = 0x400, scoped, tag = 'input window, operand 43, single buffered']
    #allocation49 [shape = 'u8[131072]{0}', space=vmem, size = 0x20000, scoped, tag = 'input window, operand 46, single buffered']
    #allocation50 [shape = 's32[1]{0}', space=sflag, size = 0x4, scoped, tag = 'scoped memory for forward.1']
    #allocation51 [shape = 'u8[32768]{0}', space=vmem, size = 0x8000, scoped, tag = 'input window, operand 47, single buffered']
    #allocation52 [shape = 'u8[24576]{0}', space=vmem, size = 0x6000, scoped, tag = 'input window, operand 48, single buffered']
    #allocation53 [shape = 's32[1]{0}', space=sflag, size = 0x4, scoped, tag = 'scoped memory for forward.1']
    #allocation54 [shape = 'u8[1024]{0}', space=vmem, size = 0x400, scoped, tag = 'input window, operand 50, single buffered']
    #allocation55 [shape = 'u8[131072]{0}', space=vmem, size = 0x20000, scoped, tag = 'input window, operand 53, single buffered']
    #allocation56 [shape = 's32[1]{0}', space=sflag, size = 0x4, scoped, tag = 'scoped memory for forward.1']
    #allocation57 [shape = 'u8[16384]{0}', space=vmem, size = 0x4000, scoped, tag = 'input window, operand 54, single buffered']
    #allocation58 [shape = 'u8[196608]{0}', space=vmem, size = 0x30000, scoped, tag = 'input window, operand 56, single buffered']
    #allocation59 [shape = 's32[1]{0}', space=sflag, size = 0x4, scoped, tag = 'scoped memory for forward.1']
    %122 = vsyncpa [#allocation3], 0
    %123 = vsyncpa [#allocation5], 0
    %124 = vsyncpa [#allocation8], 0
    %125 = vsyncpa [#allocation11], 0
    %126 = vsyncpa [#allocation14], 0
    %127 = vsyncpa [#allocation17], 0
    %128 = vsyncpa [#allocation20], 0
    %129 = vsyncpa [#allocation23], 0
    %130 = vsyncpa [#allocation26], 0
    %131 = vsyncpa [#allocation29], 0
    %132 = vsyncpa [#allocation32], 0
    %133 = vsyncpa [#allocation35], 0
    %134 = vsyncpa [#allocation38], 0
    %135 = vsyncpa [#allocation41], 0
    %136 = vsyncpa [#allocation44], 0
    %137 = vsyncpa [#allocation47], 0
    %138 = vsyncpa [#allocation50], 0
    %139 = vsyncpa [#allocation53], 0
    %140 = vsyncpa [#allocation56], 0
    %141 = vsyncpa [#allocation59], 0
    // Predicated region
    $region2: #{forward.1} parent=1 // pred_check
      _
    $region3: #{forward.1} parent=1 // pred_check_branch
      %143 = sbr.rel (0) target = $region5
    $region4: #{forward.1} parent=1 // pred_region
      _
    $region5: #{forward.1} parent=1 // pred_fallthru
      _
    // Predicated region
    $region6: #{forward.1} parent=1 // pred_check
      _
    $region7: #{forward.1} parent=1 // pred_check_branch
      %145 = sbr.rel (0) target = $region9
    $region8: #{forward.1} parent=1 // pred_region
      %147 = vsyncadd [#allocation3], 0
      %s148 = sshll.u32 %s3, 4
      %s149 = int_to_ptr.hbm [resolvable:$true] %s148
      %s150 = sshll.u32 [#allocation2], 4
      %s151 = int_to_ptr.vmem [resolvable:$true] %s150
      %156 = dma.hbm_to_vmem [thread:$0]  %s149, 768, %s151, [#allocation3], 64, 64, 4
    $region9: #{forward.1} parent=1 // pred_fallthru
      _
    // Predicated region
    $region10: #{forward.1} parent=1 // pred_check
      _
    $region11: #{forward.1} parent=1 // pred_check_branch
      %158 = sbr.rel (0) target = $region13
    $region12: #{forward.1} parent=1 // pred_region
      %160 = vsyncadd [#allocation5], 0
      %s161 = sshll.u32 %s5, 4
      %s162 = int_to_ptr.hbm [resolvable:$true] %s161
      %s163 = sshll.u32 [#allocation4], 4
      %s164 = int_to_ptr.vmem [resolvable:$true] %s163
      %169 = dma.hbm_to_vmem [thread:$0]  %s162, 4608, %s164, [#allocation5], 128, 128, 8
    $region13: #{forward.1} parent=1 // pred_fallthru
      _
    // Predicated region
    $region14: #{forward.1} parent=1 // pred_check
      _
    $region15: #{forward.1} parent=1 // pred_check_branch
      %171 = sbr.rel (0) target = $region17
    $region16: #{forward.1} parent=1 // pred_region
      %173 = vsyncadd [#allocation5], 0
      %s175 = sshll.u32 %s7, 4
      %s176 = int_to_ptr.hbm [resolvable:$true] %s175
      %s177 = sshll.u32 [#allocation6], 4
      %s178 = int_to_ptr.vmem [resolvable:$true] %s177
      %180 = dma.hbm_to_vmem [thread:$0]  %s176, 32, %s178, [#allocation5]
    $region17: #{forward.1} parent=1 // pred_fallthru
      _
    // Predicated region
    $region18: #{forward.1} parent=1 // pred_check
      _
    $region19: #{forward.1} parent=1 // pred_check_branch
      %182 = sbr.rel (0) target = $region21
    $region20: #{forward.1} parent=1 // pred_region
      _
    $region21: #{forward.1} parent=1 // pred_fallthru
      _
    // Predicated region
    $region22: #{forward.1} parent=1 // pred_check
      _
    $region23: #{forward.1} parent=1 // pred_check_branch
      %184 = sbr.rel (0) target = $region25
    $region24: #{forward.1} parent=1 // pred_region
      _
    $region25: #{forward.1} parent=1 // pred_fallthru
      _
    // Predicated region
    $region26: #{forward.1} parent=1 // pred_check
      _
    $region27: #{forward.1} parent=1 // pred_check_branch
      %186 = sbr.rel (0) target = $region29
    $region28: #{forward.1} parent=1 // pred_region
      %188 = vsyncadd [#allocation8], 0
      %s189 = sshll.u32 %s13, 4
      %s190 = int_to_ptr.hbm [resolvable:$true] %s189
      %s191 = sshll.u32 [#allocation7], 4
      %s192 = int_to_ptr.vmem [resolvable:$true] %s191
      %197 = dma.hbm_to_vmem [thread:$0]  %s190, 4096, %s192, [#allocation8], 128, 128, 8
    $region29: #{forward.1} parent=1 // pred_fallthru
      _
    // Predicated region
    $region30: #{forward.1} parent=1 // pred_check
      _
    $region31: #{forward.1} parent=1 // pred_check_branch
      %199 = sbr.rel (0) target = $region33
    $region32: #{forward.1} parent=1 // pred_region
      %201 = vsyncadd [#allocation8], 0
      %s202 = sshll.u32 %s15, 4
      %s203 = int_to_ptr.hbm [resolvable:$true] %s202
      %s204 = sshll.u32 [#allocation9], 4
      %s205 = int_to_ptr.vmem [resolvable:$true] %s204
      %210 = dma.hbm_to_vmem [thread:$0]  %s203, 512, %s205, [#allocation8], 256, 256, 16
    $region33: #{forward.1} parent=1 // pred_fallthru
      _
    // Predicated region
    $region34: #{forward.1} parent=1 // pred_check
      _
    $region35: #{forward.1} parent=1 // pred_check_branch
      %212 = sbr.rel (0) target = $region37
    $region36: #{forward.1} parent=1 // pred_region
      %214 = vsyncadd [#allocation11], 0
      %s215 = sshll.u32 %s17, 4
      %s216 = int_to_ptr.hbm [resolvable:$true] %s215
      %s217 = sshll.u32 [#allocation10], 4
      %s218 = int_to_ptr.vmem [resolvable:$true] %s217
      %223 = dma.hbm_to_vmem [thread:$0]  %s216, 384, %s218, [#allocation11], 64, 64, 4
    $region37: #{forward.1} parent=1 // pred_fallthru
      _
    // Predicated region
    $region38: #{forward.1} parent=1 // pred_check
      _
    $region39: #{forward.1} parent=1 // pred_check_branch
      %225 = sbr.rel (0) target = $region41
    $region40: #{forward.1} parent=1 // pred_region
      %227 = vsyncadd [#allocation11], 0
      %s228 = sshll.u32 %s19, 4
      %s229 = int_to_ptr.hbm [resolvable:$true] %s228
      %s230 = sshll.u32 [#allocation12], 4
      %s231 = int_to_ptr.vmem [resolvable:$true] %s230
      %236 = dma.hbm_to_vmem [thread:$0]  %s229, 12288, %s231, [#allocation11], 128, 128, 8
    $region41: #{forward.1} parent=1 // pred_fallthru
      _
    // Predicated region
    $region42: #{forward.1} parent=1 // pred_check
      _
    $region43: #{forward.1} parent=1 // pred_check_branch
      %238 = sbr.rel (0) target = $region45
    $region44: #{forward.1} parent=1 // pred_region
      %240 = vsyncadd [#allocation14], 0
      %s242 = sshll.u32 %s21, 4
      %s243 = int_to_ptr.hbm [resolvable:$true] %s242
      %s244 = sshll.u32 [#allocation13], 4
      %s245 = int_to_ptr.vmem [resolvable:$true] %s244
      %247 = dma.hbm_to_vmem [thread:$0]  %s243, 32, %s245, [#allocation14]
    $region45: #{forward.1} parent=1 // pred_fallthru
      _
    // Predicated region
    $region46: #{forward.1} parent=1 // pred_check
      _
    $region47: #{forward.1} parent=1 // pred_check_branch
      %249 = sbr.rel (0) target = $region49
    $region48: #{forward.1} parent=1 // pred_region
      _
    $region49: #{forward.1} parent=1 // pred_fallthru
      _
    // Predicated region
    $region50: #{forward.1} parent=1 // pred_check
      _
    $region51: #{forward.1} parent=1 // pred_check_branch
      %251 = sbr.rel (0) target = $region53
    $region52: #{forward.1} parent=1 // pred_region
      _
    $region53: #{forward.1} parent=1 // pred_fallthru
      _
    // Predicated region
    $region54: #{forward.1} parent=1 // pred_check
      _
    $region55: #{forward.1} parent=1 // pred_check_branch
      %253 = sbr.rel (0) target = $region57
    $region56: #{forward.1} parent=1 // pred_region
      %255 = vsyncadd [#allocation14], 0
      %s256 = sshll.u32 %s27, 4
      %s257 = int_to_ptr.hbm [resolvable:$true] %s256
      %s258 = sshll.u32 [#allocation15], 4
      %s259 = int_to_ptr.vmem [resolvable:$true] %s258
      %264 = dma.hbm_to_vmem [thread:$0]  %s257, 4096, %s259, [#allocation14], 128, 128, 8
    $region57: #{forward.1} parent=1 // pred_fallthru
      _
    // Predicated region
    $region58: #{forward.1} parent=1 // pred_check
      _
    $region59: #{forward.1} parent=1 // pred_check_branch
      %266 = sbr.rel (0) target = $region61
    $region60: #{forward.1} parent=1 // pred_region
      %268 = vsyncadd [#allocation17], 0
      %s269 = sshll.u32 %s29, 4
      %s270 = int_to_ptr.hbm [resolvable:$true] %s269
      %s271 = sshll.u32 [#allocation16], 4
      %s272 = int_to_ptr.vmem [resolvable:$true] %s271
      %277 = dma.hbm_to_vmem [thread:$0]  %s270, 1024, %s272, [#allocation17], 256, 256, 16
    $region61: #{forward.1} parent=1 // pred_fallthru
      _
    // Predicated region
    $region62: #{forward.1} parent=1 // pred_check
      _
    $region63: #{forward.1} parent=1 // pred_check_branch
      %279 = sbr.rel (0) target = $region65
    $region64: #{forward.1} parent=1 // pred_region
      %281 = vsyncadd [#allocation17], 0
      %s282 = sshll.u32 %s31, 4
      %s283 = int_to_ptr.hbm [resolvable:$true] %s282
      %s284 = sshll.u32 [#allocation18], 4
      %s285 = int_to_ptr.vmem [resolvable:$true] %s284
      %290 = dma.hbm_to_vmem [thread:$0]  %s283, 192, %s285, [#allocation17], 64, 64, 4
    $region65: #{forward.1} parent=1 // pred_fallthru
      _
    // Predicated region
    $region66: #{forward.1} parent=1 // pred_check
      _
    $region67: #{forward.1} parent=1 // pred_check_branch
      %292 = sbr.rel (0) target = $region69
    $region68: #{forward.1} parent=1 // pred_region
      %294 = vsyncadd [#allocation20], 0
      %s295 = sshll.u32 %s33, 4
      %s296 = int_to_ptr.hbm [resolvable:$true] %s295
      %s297 = sshll.u32 [#allocation19], 4
      %s298 = int_to_ptr.vmem [resolvable:$true] %s297
      %303 = dma.hbm_to_vmem [thread:$0]  %s296, 12288, %s298, [#allocation20], 128, 128, 8
    $region69: #{forward.1} parent=1 // pred_fallthru
      _
    // Predicated region
    $region70: #{forward.1} parent=1 // pred_check
      _
    $region71: #{forward.1} parent=1 // pred_check_branch
      %305 = sbr.rel (0) target = $region73
    $region72: #{forward.1} parent=1 // pred_region
      %307 = vsyncadd [#allocation20], 0
      %s309 = sshll.u32 %s35, 4
      %s310 = int_to_ptr.hbm [resolvable:$true] %s309
      %s311 = sshll.u32 [#allocation21], 4
      %s312 = int_to_ptr.vmem [resolvable:$true] %s311
      %314 = dma.hbm_to_vmem [thread:$0]  %s310, 32, %s312, [#allocation20]
    $region73: #{forward.1} parent=1 // pred_fallthru
      _
    // Predicated region
    $region74: #{forward.1} parent=1 // pred_check
      _
    $region75: #{forward.1} parent=1 // pred_check_branch
      %316 = sbr.rel (0) target = $region77
    $region76: #{forward.1} parent=1 // pred_region
      _
    $region77: #{forward.1} parent=1 // pred_fallthru
      _
    // Predicated region
    $region78: #{forward.1} parent=1 // pred_check
      _
    $region79: #{forward.1} parent=1 // pred_check_branch
      %318 = sbr.rel (0) target = $region81
    $region80: #{forward.1} parent=1 // pred_region
      _
    $region81: #{forward.1} parent=1 // pred_fallthru
      _
    // Predicated region
    $region82: #{forward.1} parent=1 // pred_check
      _
    $region83: #{forward.1} parent=1 // pred_check_branch
      %320 = sbr.rel (0) target = $region85
    $region84: #{forward.1} parent=1 // pred_region
      %322 = vsyncadd [#allocation23], 0
      %s323 = sshll.u32 %s41, 4
      %s324 = int_to_ptr.hbm [resolvable:$true] %s323
      %s325 = sshll.u32 [#allocation22], 4
      %s326 = int_to_ptr.vmem [resolvable:$true] %s325
      %331 = dma.hbm_to_vmem [thread:$0]  %s324, 4096, %s326, [#allocation23], 128, 128, 8
    $region85: #{forward.1} parent=1 // pred_fallthru
      _
    // Predicated region
    $region86: #{forward.1} parent=1 // pred_check
      _
    $region87: #{forward.1} parent=1 // pred_check_branch
      %333 = sbr.rel (0) target = $region89
    $region88: #{forward.1} parent=1 // pred_region
      %335 = vsyncadd [#allocation23], 0
      %s336 = sshll.u32 %s43, 4
      %s337 = int_to_ptr.hbm [resolvable:$true] %s336
      %s338 = sshll.u32 [#allocation24], 4
      %s339 = int_to_ptr.vmem [resolvable:$true] %s338
      %344 = dma.hbm_to_vmem [thread:$0]  %s337, 2048, %s339, [#allocation23], 256, 256, 16
    $region89: #{forward.1} parent=1 // pred_fallthru
      _
    // Predicated region
    $region90: #{forward.1} parent=1 // pred_check
      _
    $region91: #{forward.1} parent=1 // pred_check_branch
      %346 = sbr.rel (0) target = $region93
    $region92: #{forward.1} parent=1 // pred_region
      _
    $region93: #{forward.1} parent=1 // pred_fallthru
      _
    // Predicated region
    $region94: #{forward.1} parent=1 // pred_check
      _
    $region95: #{forward.1} parent=1 // pred_check_branch
      %348 = sbr.rel (0) target = $region97
    $region96: #{forward.1} parent=1 // pred_region
      %350 = vsyncadd [#allocation26], 0
      %s351 = sshll.u32 %s47, 4
      %s352 = int_to_ptr.hbm [resolvable:$true] %s351
      %s353 = sshll.u32 [#allocation25], 4
      %s354 = int_to_ptr.vmem [resolvable:$true] %s353
      %359 = dma.hbm_to_vmem [thread:$0]  %s352, 12288, %s354, [#allocation26], 128, 128, 8
    $region97: #{forward.1} parent=1 // pred_fallthru
      _
    // Predicated region
    $region98: #{forward.1} parent=1 // pred_check
      _
    $region99: #{forward.1} parent=1 // pred_check_branch
      %361 = sbr.rel (0) target = $region101
    $region100: #{forward.1} parent=1 // pred_region
      %363 = vsyncadd [#allocation26], 0
      %s365 = sshll.u32 %s49, 4
      %s366 = int_to_ptr.hbm [resolvable:$true] %s365
      %s367 = sshll.u32 [#allocation27], 4
      %s368 = int_to_ptr.vmem [resolvable:$true] %s367
      %370 = dma.hbm_to_vmem [thread:$0]  %s366, 32, %s368, [#allocation26]
    $region101: #{forward.1} parent=1 // pred_fallthru
      _
    // Predicated region
    $region102: #{forward.1} parent=1 // pred_check
      _
    $region103: #{forward.1} parent=1 // pred_check_branch
      %372 = sbr.rel (0) target = $region105
    $region104: #{forward.1} parent=1 // pred_region
      _
    $region105: #{forward.1} parent=1 // pred_fallthru
      _
    // Predicated region
    $region106: #{forward.1} parent=1 // pred_check
      _
    $region107: #{forward.1} parent=1 // pred_check_branch
      %374 = sbr.rel (0) target = $region109
    $region108: #{forward.1} parent=1 // pred_region
      _
    $region109: #{forward.1} parent=1 // pred_fallthru
      _
    // Predicated region
    $region110: #{forward.1} parent=1 // pred_check
      _
    $region111: #{forward.1} parent=1 // pred_check_branch
      %376 = sbr.rel (0) target = $region113
    $region112: #{forward.1} parent=1 // pred_region
      %378 = vsyncadd [#allocation29], 0
      %s379 = sshll.u32 %s55, 4
      %s380 = int_to_ptr.hbm [resolvable:$true] %s379
      %s381 = sshll.u32 [#allocation28], 4
      %s382 = int_to_ptr.vmem [resolvable:$true] %s381
      %387 = dma.hbm_to_vmem [thread:$0]  %s380, 4096, %s382, [#allocation29], 128, 128, 8
    $region113: #{forward.1} parent=1 // pred_fallthru
      _
    // Predicated region
    $region114: #{forward.1} parent=1 // pred_check
      _
    $region115: #{forward.1} parent=1 // pred_check_branch
      %389 = sbr.rel (0) target = $region117
    $region116: #{forward.1} parent=1 // pred_region
      %391 = vsyncadd [#allocation29], 0
      %s392 = sshll.u32 %s57, 4
      %s393 = int_to_ptr.hbm [resolvable:$true] %s392
      %s394 = sshll.u32 [#allocation30], 4
      %s395 = int_to_ptr.vmem [resolvable:$true] %s394
      %400 = dma.hbm_to_vmem [thread:$0]  %s393, 4096, %s395, [#allocation29], 256, 256, 16
    $region117: #{forward.1} parent=1 // pred_fallthru
      _
    // Predicated region
    $region118: #{forward.1} parent=1 // pred_check
      _
    $region119: #{forward.1} parent=1 // pred_check_branch
      %402 = sbr.rel (0) target = $region121
    $region120: #{forward.1} parent=1 // pred_region
      %404 = vsyncadd [#allocation32], 0
      %s405 = sshll.u32 %s59, 4
      %s406 = int_to_ptr.hbm [resolvable:$true] %s405
      %s407 = sshll.u32 [#allocation31], 4
      %s408 = int_to_ptr.vmem [resolvable:$true] %s407
      %413 = dma.hbm_to_vmem [thread:$0]  %s406, 32, %s408, [#allocation32], 16, 16, 1
    $region121: #{forward.1} parent=1 // pred_fallthru
      _
    // Predicated region
    $region122: #{forward.1} parent=1 // pred_check
      _
    $region123: #{forward.1} parent=1 // pred_check_branch
      %415 = sbr.rel (0) target = $region125
    $region124: #{forward.1} parent=1 // pred_region
      %417 = vsyncadd [#allocation32], 0
      %s418 = sshll.u32 %s61, 4
      %s419 = int_to_ptr.hbm [resolvable:$true] %s418
      %s420 = sshll.u32 [#allocation33], 4
      %s421 = int_to_ptr.vmem [resolvable:$true] %s420
      %426 = dma.hbm_to_vmem [thread:$0]  %s419, 4096, %s421, [#allocation32], 64, 64, 4
    $region125: #{forward.1} parent=1 // pred_fallthru
      _
    // Predicated region
    $region126: #{forward.1} parent=1 // pred_check
      _
    $region127: #{forward.1} parent=1 // pred_check_branch
      %428 = sbr.rel (0) target = $region129
    $region128: #{forward.1} parent=1 // pred_region
      %430 = vsyncadd [#allocation35], 0
      %s432 = sshll.u32 %s63, 4
      %s433 = int_to_ptr.hbm [resolvable:$true] %s432
      %s434 = sshll.u32 [#allocation34], 4
      %s435 = int_to_ptr.vmem [resolvable:$true] %s434
      %437 = dma.hbm_to_vmem [thread:$0]  %s433, 16, %s435, [#allocation35]
    $region129: #{forward.1} parent=1 // pred_fallthru
      _
    // Predicated region
    $region130: #{forward.1} parent=1 // pred_check
      _
    $region131: #{forward.1} parent=1 // pred_check_branch
      %439 = sbr.rel (0) target = $region133
    $region132: #{forward.1} parent=1 // pred_region
      %441 = vsyncadd [#allocation35], 0
      %s442 = sshll.u32 %s65, 4
      %s443 = int_to_ptr.hbm [resolvable:$true] %s442
      %s444 = sshll.u32 [#allocation36], 4
      %s445 = int_to_ptr.vmem [resolvable:$true] %s444
      %450 = dma.hbm_to_vmem [thread:$0]  %s443, 4096, %s445, [#allocation35], 256, 256, 16
    $region133: #{forward.1} parent=1 // pred_fallthru
      _
    // Predicated region
    $region134: #{forward.1} parent=1 // pred_check
      _
    $region135: #{forward.1} parent=1 // pred_check_branch
      %452 = sbr.rel (0) target = $region137
    $region136: #{forward.1} parent=1 // pred_region
      %454 = vsyncadd [#allocation38], 0
      %s456 = sshll.u32 %s67, 4
      %s457 = int_to_ptr.hbm [resolvable:$true] %s456
      %s458 = sshll.u32 [#allocation37], 4
      %s459 = int_to_ptr.vmem [resolvable:$true] %s458
      %461 = dma.hbm_to_vmem [thread:$0]  %s457, 64, %s459, [#allocation38]
    $region137: #{forward.1} parent=1 // pred_fallthru
      _
    // Predicated region
    $region138: #{forward.1} parent=1 // pred_check
      _
    $region139: #{forward.1} parent=1 // pred_check_branch
      %463 = sbr.rel (0) target = $region141
    $region140: #{forward.1} parent=1 // pred_region
      _
    $region141: #{forward.1} parent=1 // pred_fallthru
      _
    // Predicated region
    $region142: #{forward.1} parent=1 // pred_check
      _
    $region143: #{forward.1} parent=1 // pred_check_branch
      %465 = sbr.rel (0) target = $region145
    $region144: #{forward.1} parent=1 // pred_region
      %467 = vsyncadd [#allocation38], 0
      %s468 = sshll.u32 %s71, 4
      %s469 = int_to_ptr.hbm [resolvable:$true] %s468
      %s470 = sshll.u32 [#allocation39], 4
      %s471 = int_to_ptr.vmem [resolvable:$true] %s470
      %476 = dma.hbm_to_vmem [thread:$0]  %s469, 12288, %s471, [#allocation38], 128, 128, 8
    $region145: #{forward.1} parent=1 // pred_fallthru
      _
    // Predicated region
    $region146: #{forward.1} parent=1 // pred_check
      _
    $region147: #{forward.1} parent=1 // pred_check_branch
      %478 = sbr.rel (0) target = $region149
    $region148: #{forward.1} parent=1 // pred_region
      %480 = vsyncadd [#allocation41], 0
      %s482 = sshll.u32 %s73, 4
      %s483 = int_to_ptr.hbm [resolvable:$true] %s482
      %s484 = sshll.u32 [#allocation40], 4
      %s485 = int_to_ptr.vmem [resolvable:$true] %s484
      %487 = dma.hbm_to_vmem [thread:$0]  %s483, 32, %s485, [#allocation41]
    $region149: #{forward.1} parent=1 // pred_fallthru
      _
    // Predicated region
    $region150: #{forward.1} parent=1 // pred_check
      _
    $region151: #{forward.1} parent=1 // pred_check_branch
      %489 = sbr.rel (0) target = $region153
    $region152: #{forward.1} parent=1 // pred_region
      _
    $region153: #{forward.1} parent=1 // pred_fallthru
      _
    // Predicated region
    $region154: #{forward.1} parent=1 // pred_check
      _
    $region155: #{forward.1} parent=1 // pred_check_branch
      %491 = sbr.rel (0) target = $region157
    $region156: #{forward.1} parent=1 // pred_region
      _
    $region157: #{forward.1} parent=1 // pred_fallthru
      _
    // Predicated region
    $region158: #{forward.1} parent=1 // pred_check
      _
    $region159: #{forward.1} parent=1 // pred_check_branch
      %493 = sbr.rel (0) target = $region161
    $region160: #{forward.1} parent=1 // pred_region
      %495 = vsyncadd [#allocation41], 0
      %s496 = sshll.u32 %s79, 4
      %s497 = int_to_ptr.hbm [resolvable:$true] %s496
      %s498 = sshll.u32 [#allocation42], 4
      %s499 = int_to_ptr.vmem [resolvable:$true] %s498
      %504 = dma.hbm_to_vmem [thread:$0]  %s497, 4096, %s499, [#allocation41], 128, 128, 8
    $region161: #{forward.1} parent=1 // pred_fallthru
      _
    // Predicated region
    $region162: #{forward.1} parent=1 // pred_check
      _
    $region163: #{forward.1} parent=1 // pred_check_branch
      %506 = sbr.rel (0) target = $region165
    $region164: #{forward.1} parent=1 // pred_region
      %508 = vsyncadd [#allocation44], 0
      %s509 = sshll.u32 %s81, 4
      %s510 = int_to_ptr.hbm [resolvable:$true] %s509
      %s511 = sshll.u32 [#allocation43], 4
      %s512 = int_to_ptr.vmem [resolvable:$true] %s511
      %517 = dma.hbm_to_vmem [thread:$0]  %s510, 2048, %s512, [#allocation44], 256, 256, 16
    $region165: #{forward.1} parent=1 // pred_fallthru
      _
    // Predicated region
    $region166: #{forward.1} parent=1 // pred_check
      _
    $region167: #{forward.1} parent=1 // pred_check_branch
      %519 = sbr.rel (0) target = $region169
    $region168: #{forward.1} parent=1 // pred_region
      %521 = vsyncadd [#allocation44], 0
      %s522 = sshll.u32 %s83, 4
      %s523 = int_to_ptr.hbm [resolvable:$true] %s522
      %s524 = sshll.u32 [#allocation45], 4
      %s525 = int_to_ptr.vmem [resolvable:$true] %s524
      %530 = dma.hbm_to_vmem [thread:$0]  %s523, 384, %s525, [#allocation44], 64, 64, 4
    $region169: #{forward.1} parent=1 // pred_fallthru
      _
    // Predicated region
    $region170: #{forward.1} parent=1 // pred_check
      _
    $region171: #{forward.1} parent=1 // pred_check_branch
      %532 = sbr.rel (0) target = $region173
    $region172: #{forward.1} parent=1 // pred_region
      %534 = vsyncadd [#allocation47], 0
      %s535 = sshll.u32 %s85, 4
      %s536 = int_to_ptr.hbm [resolvable:$true] %s535
      %s537 = sshll.u32 [#allocation46], 4
      %s538 = int_to_ptr.vmem [resolvable:$true] %s537
      %543 = dma.hbm_to_vmem [thread:$0]  %s536, 12288, %s538, [#allocation47], 128, 128, 8
    $region173: #{forward.1} parent=1 // pred_fallthru
      _
    // Predicated region
    $region174: #{forward.1} parent=1 // pred_check
      _
    $region175: #{forward.1} parent=1 // pred_check_branch
      %545 = sbr.rel (0) target = $region177
    $region176: #{forward.1} parent=1 // pred_region
      %547 = vsyncadd [#allocation47], 0
      %s549 = sshll.u32 %s87, 4
      %s550 = int_to_ptr.hbm [resolvable:$true] %s549
      %s551 = sshll.u32 [#allocation48], 4
      %s552 = int_to_ptr.vmem [resolvable:$true] %s551
      %554 = dma.hbm_to_vmem [thread:$0]  %s550, 32, %s552, [#allocation47]
    $region177: #{forward.1} parent=1 // pred_fallthru
      _
    // Predicated region
    $region178: #{forward.1} parent=1 // pred_check
      _
    $region179: #{forward.1} parent=1 // pred_check_branch
      %556 = sbr.rel (0) target = $region181
    $region180: #{forward.1} parent=1 // pred_region
      _
    $region181: #{forward.1} parent=1 // pred_fallthru
      _
    // Predicated region
    $region182: #{forward.1} parent=1 // pred_check
      _
    $region183: #{forward.1} parent=1 // pred_check_branch
      %558 = sbr.rel (0) target = $region185
    $region184: #{forward.1} parent=1 // pred_region
      _
    $region185: #{forward.1} parent=1 // pred_fallthru
      _
    // Predicated region
    $region186: #{forward.1} parent=1 // pred_check
      _
    $region187: #{forward.1} parent=1 // pred_check_branch
      %560 = sbr.rel (0) target = $region189
    $region188: #{forward.1} parent=1 // pred_region
      %562 = vsyncadd [#allocation50], 0
      %s563 = sshll.u32 %s93, 4
      %s564 = int_to_ptr.hbm [resolvable:$true] %s563
      %s565 = sshll.u32 [#allocation49], 4
      %s566 = int_to_ptr.vmem [resolvable:$true] %s565
      %571 = dma.hbm_to_vmem [thread:$0]  %s564, 4096, %s566, [#allocation50], 128, 128, 8
    $region189: #{forward.1} parent=1 // pred_fallthru
      _
    // Predicated region
    $region190: #{forward.1} parent=1 // pred_check
      _
    $region191: #{forward.1} parent=1 // pred_check_branch
      %573 = sbr.rel (0) target = $region193
    $region192: #{forward.1} parent=1 // pred_region
      %575 = vsyncadd [#allocation50], 0
      %s576 = sshll.u32 %s95, 4
      %s577 = int_to_ptr.hbm [resolvable:$true] %s576
      %s578 = sshll.u32 [#allocation51], 4
      %s579 = int_to_ptr.vmem [resolvable:$true] %s578
      %584 = dma.hbm_to_vmem [thread:$0]  %s577, 1024, %s579, [#allocation50], 256, 256, 16
    $region193: #{forward.1} parent=1 // pred_fallthru
      _
    // Predicated region
    $region194: #{forward.1} parent=1 // pred_check
      _
    $region195: #{forward.1} parent=1 // pred_check_branch
      %586 = sbr.rel (0) target = $region197
    $region196: #{forward.1} parent=1 // pred_region
      %588 = vsyncadd [#allocation53], 0
      %s589 = sshll.u32 %s97, 4
      %s590 = int_to_ptr.hbm [resolvable:$true] %s589
      %s591 = sshll.u32 [#allocation52], 4
      %s592 = int_to_ptr.vmem [resolvable:$true] %s591
      %597 = dma.hbm_to_vmem [thread:$0]  %s590, 768, %s592, [#allocation53], 64, 64, 4
    $region197: #{forward.1} parent=1 // pred_fallthru
      _
    // Predicated region
    $region198: #{forward.1} parent=1 // pred_check
      _
    $region199: #{forward.1} parent=1 // pred_check_branch
      %599 = sbr.rel (0) target = $region201
    $region200: #{forward.1} parent=1 // pred_region
      _
    $region201: #{forward.1} parent=1 // pred_fallthru
      _
    // Predicated region
    $region202: #{forward.1} parent=1 // pred_check
      _
    $region203: #{forward.1} parent=1 // pred_check_branch
      %601 = sbr.rel (0) target = $region205
    $region204: #{forward.1} parent=1 // pred_region
      %603 = vsyncadd [#allocation53], 0
      %s605 = sshll.u32 %s101, 4
      %s606 = int_to_ptr.hbm [resolvable:$true] %s605
      %s607 = sshll.u32 [#allocation54], 4
      %s608 = int_to_ptr.vmem [resolvable:$true] %s607
      %610 = dma.hbm_to_vmem [thread:$0]  %s606, 32, %s608, [#allocation53]
    $region205: #{forward.1} parent=1 // pred_fallthru
      _
    // Predicated region
    $region206: #{forward.1} parent=1 // pred_check
      _
    $region207: #{forward.1} parent=1 // pred_check_branch
      %612 = sbr.rel (0) target = $region209
    $region208: #{forward.1} parent=1 // pred_region
      _
    $region209: #{forward.1} parent=1 // pred_fallthru
      _
    // Predicated region
    $region210: #{forward.1} parent=1 // pred_check
      _
    $region211: #{forward.1} parent=1 // pred_check_branch
      %614 = sbr.rel (0) target = $region213
    $region212: #{forward.1} parent=1 // pred_region
      _
    $region213: #{forward.1} parent=1 // pred_fallthru
      _
    // Predicated region
    $region214: #{forward.1} parent=1 // pred_check
      _
    $region215: #{forward.1} parent=1 // pred_check_branch
      %616 = sbr.rel (0) target = $region217
    $region216: #{forward.1} parent=1 // pred_region
      %618 = vsyncadd [#allocation56], 0
      %s619 = sshll.u32 %s107, 4
      %s620 = int_to_ptr.hbm [resolvable:$true] %s619
      %s621 = sshll.u32 [#allocation55], 4
      %s622 = int_to_ptr.vmem [resolvable:$true] %s621
      %627 = dma.hbm_to_vmem [thread:$0]  %s620, 4096, %s622, [#allocation56], 128, 128, 8
    $region217: #{forward.1} parent=1 // pred_fallthru
      _
    // Predicated region
    $region218: #{forward.1} parent=1 // pred_check
      _
    $region219: #{forward.1} parent=1 // pred_check_branch
      %629 = sbr.rel (0) target = $region221
    $region220: #{forward.1} parent=1 // pred_region
      %631 = vsyncadd [#allocation56], 0
      %s632 = sshll.u32 %s109, 4
      %s633 = int_to_ptr.hbm [resolvable:$true] %s632
      %s634 = sshll.u32 [#allocation57], 4
      %s635 = int_to_ptr.vmem [resolvable:$true] %s634
      %640 = dma.hbm_to_vmem [thread:$0]  %s633, 512, %s635, [#allocation56], 256, 256, 16
    $region221: #{forward.1} parent=1 // pred_fallthru
      _
    // Predicated region
    $region222: #{forward.1} parent=1 // pred_check
      _
    $region223: #{forward.1} parent=1 // pred_check_branch
      %642 = sbr.rel (0) target = $region225
    $region224: #{forward.1} parent=1 // pred_region
      _
    $region225: #{forward.1} parent=1 // pred_fallthru
      _
    // Predicated region
    $region226: #{forward.1} parent=1 // pred_check
      _
    $region227: #{forward.1} parent=1 // pred_check_branch
      %644 = sbr.rel (0) target = $region229
    $region228: #{forward.1} parent=1 // pred_region
      %646 = vsyncadd [#allocation59], 0
      %s647 = sshll.u32 %s113, 4
      %s648 = int_to_ptr.hbm [resolvable:$true] %s647
      %s649 = sshll.u32 [#allocation58], 4
      %s650 = int_to_ptr.vmem [resolvable:$true] %s649
      %655 = dma.hbm_to_vmem [thread:$0]  %s648, 6144, %s650, [#allocation59], 64, 64, 4
    $region229: #{forward.1} parent=1 // pred_fallthru
      _
    // Predicated region
    $region230: #{forward.1} parent=1 // pred_check
      _
    $region231: #{forward.1} parent=1 // pred_check_branch
      %657 = sbr.rel (0) target = $region233
    $region232: #{forward.1} parent=1 // pred_region
      _
    $region233: #{forward.1} parent=1 // pred_fallthru
      _
    // Predicated region
    $region234: #{forward.1} parent=1 // pred_check
      _
    $region235: #{forward.1} parent=1 // pred_check_branch
      %659 = sbr.rel (0) target = $region237
    $region236: #{forward.1} parent=1 // pred_region
      %661 = dma.done [#allocation3], 768
    $region237: #{forward.1} parent=1 // pred_fallthru
      _
    // Predicated region
    $region238: #{forward.1} parent=1 // pred_check
      _
    $region239: #{forward.1} parent=1 // pred_check_branch
      %663 = sbr.rel (0) target = $region241
    $region240: #{forward.1} parent=1 // pred_region
      %665 = dma.done [#allocation5], 4608
    $region241: #{forward.1} parent=1 // pred_fallthru
      _
    // Predicated region
    $region242: #{forward.1} parent=1 // pred_check
      _
    $region243: #{forward.1} parent=1 // pred_check_branch
      %667 = sbr.rel (0) target = $region245
    $region244: #{forward.1} parent=1 // pred_region
      %669 = dma.done [#allocation5], 32
    $region245: #{forward.1} parent=1 // pred_fallthru
      _
    // Predicated region
    $region246: #{forward.1} parent=1 // pred_check
      _
    $region247: #{forward.1} parent=1 // pred_check_branch
      %671 = sbr.rel (0) target = $region249
    $region248: #{forward.1} parent=1 // pred_region
      %673 = dma.done [#allocation8], 4096
    $region249: #{forward.1} parent=1 // pred_fallthru
      _
    // Predicated region
    $region250: #{forward.1} parent=1 // pred_check
      _
    $region251: #{forward.1} parent=1 // pred_check_branch
      %675 = sbr.rel (0) target = $region253
    $region252: #{forward.1} parent=1 // pred_region
      %677 = dma.done [#allocation8], 512
    $region253: #{forward.1} parent=1 // pred_fallthru
      _
    // Predicated region
    $region254: #{forward.1} parent=1 // pred_check
      _
    $region255: #{forward.1} parent=1 // pred_check_branch
      %679 = sbr.rel (0) target = $region257
    $region256: #{forward.1} parent=1 // pred_region
      %681 = dma.done [#allocation11], 384
    $region257: #{forward.1} parent=1 // pred_fallthru
      _
    // Predicated region
    $region258: #{forward.1} parent=1 // pred_check
      _
    $region259: #{forward.1} parent=1 // pred_check_branch
      %683 = sbr.rel (0) target = $region261
    $region260: #{forward.1} parent=1 // pred_region
      %685 = dma.done [#allocation11], 12288
    $region261: #{forward.1} parent=1 // pred_fallthru
      _
    // Predicated region
    $region262: #{forward.1} parent=1 // pred_check
      _
    $region263: #{forward.1} parent=1 // pred_check_branch
      %687 = sbr.rel (0) target = $region265
    $region264: #{forward.1} parent=1 // pred_region
      %689 = dma.done [#allocation14], 32
    $region265: #{forward.1} parent=1 // pred_fallthru
      _
    // Predicated region
    $region266: #{forward.1} parent=1 // pred_check
      _
    $region267: #{forward.1} parent=1 // pred_check_branch
      %691 = sbr.rel (0) target = $region269
    $region268: #{forward.1} parent=1 // pred_region
      %693 = dma.done [#allocation14], 4096
    $region269: #{forward.1} parent=1 // pred_fallthru
      _
    // Predicated region
    $region270: #{forward.1} parent=1 // pred_check
      _
    $region271: #{forward.1} parent=1 // pred_check_branch
      %695 = sbr.rel (0) target = $region273
    $region272: #{forward.1} parent=1 // pred_region
      %697 = dma.done [#allocation17], 1024
    $region273: #{forward.1} parent=1 // pred_fallthru
      _
    // Predicated region
    $region274: #{forward.1} parent=1 // pred_check
      _
    $region275: #{forward.1} parent=1 // pred_check_branch
      %699 = sbr.rel (0) target = $region277
    $region276: #{forward.1} parent=1 // pred_region
      %701 = dma.done [#allocation17], 192
    $region277: #{forward.1} parent=1 // pred_fallthru
      _
    // Predicated region
    $region278: #{forward.1} parent=1 // pred_check
      _
    $region279: #{forward.1} parent=1 // pred_check_branch
      %703 = sbr.rel (0) target = $region281
    $region280: #{forward.1} parent=1 // pred_region
      %705 = dma.done [#allocation20], 12288
    $region281: #{forward.1} parent=1 // pred_fallthru
      _
    // Predicated region
    $region282: #{forward.1} parent=1 // pred_check
      _
    $region283: #{forward.1} parent=1 // pred_check_branch
      %707 = sbr.rel (0) target = $region285
    $region284: #{forward.1} parent=1 // pred_region
      %709 = dma.done [#allocation20], 32
    $region285: #{forward.1} parent=1 // pred_fallthru
      _
    // Predicated region
    $region286: #{forward.1} parent=1 // pred_check
      _
    $region287: #{forward.1} parent=1 // pred_check_branch
      %711 = sbr.rel (0) target = $region289
    $region288: #{forward.1} parent=1 // pred_region
      %713 = dma.done [#allocation23], 4096
    $region289: #{forward.1} parent=1 // pred_fallthru
      _
    // Predicated region
    $region290: #{forward.1} parent=1 // pred_check
      _
    $region291: #{forward.1} parent=1 // pred_check_branch
      %715 = sbr.rel (0) target = $region293
    $region292: #{forward.1} parent=1 // pred_region
      %717 = dma.done [#allocation23], 2048
    $region293: #{forward.1} parent=1 // pred_fallthru
      _
    // Predicated region
    $region294: #{forward.1} parent=1 // pred_check
      _
    $region295: #{forward.1} parent=1 // pred_check_branch
      %719 = sbr.rel (0) target = $region297
    $region296: #{forward.1} parent=1 // pred_region
      %721 = dma.done [#allocation26], 12288
    $region297: #{forward.1} parent=1 // pred_fallthru
      _
    // Predicated region
    $region298: #{forward.1} parent=1 // pred_check
      _
    $region299: #{forward.1} parent=1 // pred_check_branch
      %723 = sbr.rel (0) target = $region301
    $region300: #{forward.1} parent=1 // pred_region
      %725 = dma.done [#allocation26], 32
    $region301: #{forward.1} parent=1 // pred_fallthru
      _
    // Predicated region
    $region302: #{forward.1} parent=1 // pred_check
      _
    $region303: #{forward.1} parent=1 // pred_check_branch
      %727 = sbr.rel (0) target = $region305
    $region304: #{forward.1} parent=1 // pred_region
      %729 = dma.done [#allocation29], 4096
    $region305: #{forward.1} parent=1 // pred_fallthru
      _
    // Predicated region
    $region306: #{forward.1} parent=1 // pred_check
      _
    $region307: #{forward.1} parent=1 // pred_check_branch
      %731 = sbr.rel (0) target = $region309
    $region308: #{forward.1} parent=1 // pred_region
      %733 = dma.done [#allocation29], 4096
    $region309: #{forward.1} parent=1 // pred_fallthru
      _
    // Predicated region
    $region310: #{forward.1} parent=1 // pred_check
      _
    $region311: #{forward.1} parent=1 // pred_check_branch
      %735 = sbr.rel (0) target = $region313
    $region312: #{forward.1} parent=1 // pred_region
      %737 = dma.done [#allocation32], 32
    $region313: #{forward.1} parent=1 // pred_fallthru
      _
    // Predicated region
    $region314: #{forward.1} parent=1 // pred_check
      _
    $region315: #{forward.1} parent=1 // pred_check_branch
      %739 = sbr.rel (0) target = $region317
    $region316: #{forward.1} parent=1 // pred_region
      %741 = dma.done [#allocation32], 4096
    $region317: #{forward.1} parent=1 // pred_fallthru
      _
    // Predicated region
    $region318: #{forward.1} parent=1 // pred_check
      _
    $region319: #{forward.1} parent=1 // pred_check_branch
      %743 = sbr.rel (0) target = $region321
    $region320: #{forward.1} parent=1 // pred_region
      %745 = dma.done [#allocation35], 16
    $region321: #{forward.1} parent=1 // pred_fallthru
      _
    // Predicated region
    $region322: #{forward.1} parent=1 // pred_check
      _
    $region323: #{forward.1} parent=1 // pred_check_branch
      %747 = sbr.rel (0) target = $region325
    $region324: #{forward.1} parent=1 // pred_region
      %749 = dma.done [#allocation35], 4096
    $region325: #{forward.1} parent=1 // pred_fallthru
      _
    // Predicated region
    $region326: #{forward.1} parent=1 // pred_check
      _
    $region327: #{forward.1} parent=1 // pred_check_branch
      %751 = sbr.rel (0) target = $region329
    $region328: #{forward.1} parent=1 // pred_region
      %753 = dma.done [#allocation38], 64
    $region329: #{forward.1} parent=1 // pred_fallthru
      _
    // Predicated region
    $region330: #{forward.1} parent=1 // pred_check
      _
    $region331: #{forward.1} parent=1 // pred_check_branch
      %755 = sbr.rel (0) target = $region333
    $region332: #{forward.1} parent=1 // pred_region
      %757 = dma.done [#allocation38], 12288
    $region333: #{forward.1} parent=1 // pred_fallthru
      _
    // Predicated region
    $region334: #{forward.1} parent=1 // pred_check
      _
    $region335: #{forward.1} parent=1 // pred_check_branch
      %759 = sbr.rel (0) target = $region337
    $region336: #{forward.1} parent=1 // pred_region
      %761 = dma.done [#allocation41], 32
    $region337: #{forward.1} parent=1 // pred_fallthru
      _
    // Predicated region
    $region338: #{forward.1} parent=1 // pred_check
      _
    $region339: #{forward.1} parent=1 // pred_check_branch
      %763 = sbr.rel (0) target = $region341
    $region340: #{forward.1} parent=1 // pred_region
      %765 = dma.done [#allocation41], 4096
    $region341: #{forward.1} parent=1 // pred_fallthru
      _
    // Predicated region
    $region342: #{forward.1} parent=1 // pred_check
      _
    $region343: #{forward.1} parent=1 // pred_check_branch
      %767 = sbr.rel (0) target = $region345
    $region344: #{forward.1} parent=1 // pred_region
      %769 = dma.done [#allocation44], 2048
    $region345: #{forward.1} parent=1 // pred_fallthru
      _
    // Predicated region
    $region346: #{forward.1} parent=1 // pred_check
      _
    $region347: #{forward.1} parent=1 // pred_check_branch
      %771 = sbr.rel (0) target = $region349
    $region348: #{forward.1} parent=1 // pred_region
      %773 = dma.done [#allocation44], 384
    $region349: #{forward.1} parent=1 // pred_fallthru
      _
    // Predicated region
    $region350: #{forward.1} parent=1 // pred_check
      _
    $region351: #{forward.1} parent=1 // pred_check_branch
      %775 = sbr.rel (0) target = $region353
    $region352: #{forward.1} parent=1 // pred_region
      %777 = dma.done [#allocation47], 12288
    $region353: #{forward.1} parent=1 // pred_fallthru
      _
    // Predicated region
    $region354: #{forward.1} parent=1 // pred_check
      _
    $region355: #{forward.1} parent=1 // pred_check_branch
      %779 = sbr.rel (0) target = $region357
    $region356: #{forward.1} parent=1 // pred_region
      %781 = dma.done [#allocation47], 32
    $region357: #{forward.1} parent=1 // pred_fallthru
      _
    // Predicated region
    $region358: #{forward.1} parent=1 // pred_check
      _
    $region359: #{forward.1} parent=1 // pred_check_branch
      %783 = sbr.rel (0) target = $region361
    $region360: #{forward.1} parent=1 // pred_region
      %785 = dma.done [#allocation50], 4096
    $region361: #{forward.1} parent=1 // pred_fallthru
      _
    // Predicated region
    $region362: #{forward.1} parent=1 // pred_check
      _
    $region363: #{forward.1} parent=1 // pred_check_branch
      %787 = sbr.rel (0) target = $region365
    $region364: #{forward.1} parent=1 // pred_region
      %789 = dma.done [#allocation50], 1024
    $region365: #{forward.1} parent=1 // pred_fallthru
      _
    // Predicated region
    $region366: #{forward.1} parent=1 // pred_check
      _
    $region367: #{forward.1} parent=1 // pred_check_branch
      %791 = sbr.rel (0) target = $region369
    $region368: #{forward.1} parent=1 // pred_region
      %793 = dma.done [#allocation53], 768
    $region369: #{forward.1} parent=1 // pred_fallthru
      _
    // Predicated region
    $region370: #{forward.1} parent=1 // pred_check
      _
    $region371: #{forward.1} parent=1 // pred_check_branch
      %795 = sbr.rel (0) target = $region373
    $region372: #{forward.1} parent=1 // pred_region
      %797 = dma.done [#allocation53], 32
    $region373: #{forward.1} parent=1 // pred_fallthru
      _
    // Predicated region
    $region374: #{forward.1} parent=1 // pred_check
      _
    $region375: #{forward.1} parent=1 // pred_check_branch
      %799 = sbr.rel (0) target = $region377
    $region376: #{forward.1} parent=1 // pred_region
      %801 = dma.done [#allocation56], 4096
    $region377: #{forward.1} parent=1 // pred_fallthru
      _
    // Predicated region
    $region378: #{forward.1} parent=1 // pred_check
      _
    $region379: #{forward.1} parent=1 // pred_check_branch
      %803 = sbr.rel (0) target = $region381
    $region380: #{forward.1} parent=1 // pred_region
      %805 = dma.done [#allocation56], 512
    $region381: #{forward.1} parent=1 // pred_fallthru
      _
    // Predicated region
    $region382: #{forward.1} parent=1 // pred_check
      _
    $region383: #{forward.1} parent=1 // pred_check_branch
      %807 = sbr.rel (0) target = $region385
    $region384: #{forward.1} parent=1 // pred_region
      %809 = dma.done [#allocation59], 6144
    $region385: #{forward.1} parent=1 // pred_fallthru
      _
    %v811 = vld [vmem:[%s1] sm:$0xff]
    %v812 = vld [vmem:[%s1 + $0x8] sm:$0xff]
    %v813 = vld [vmem:[%s1 + $0x10] sm:$0xff]
    %v814 = vld [vmem:[%s1 + $0x18] sm:$0xff]
    %v815 = vld [vmem:[%s1 + $0x20] sm:$0xff]
    %v816 = vld [vmem:[%s1 + $0x28] sm:$0xff]
    %v817 = vld [vmem:[%s1 + $0x30] sm:$0xff]
    %v818 = vld [vmem:[%s1 + $0x38] sm:$0xff]
    %v819 = vld [vmem:[#allocation4] sm:$0xff]
    %v820 = vld [vmem:[#allocation4 + $0x8] sm:$0xff]
    %v821 = vld [vmem:[#allocation4 + $0x10] sm:$0xff]
    %v822 = vld [vmem:[#allocation4 + $0x18] sm:$0xff]
    %v823 = vld [vmem:[#allocation4 + $0x20] sm:$0xff]
    %v824 = vld [vmem:[#allocation4 + $0x28] sm:$0xff]
    %v825 = vld [vmem:[#allocation4 + $0x30] sm:$0xff]
    %v826 = vld [vmem:[#allocation4 + $0x38] sm:$0xff]
    %v827 = vld [vmem:[#allocation4 + $0x40] sm:$0xff]
    %v828 = vld [vmem:[#allocation4 + $0x48] sm:$0xff]
    %v829 = vld [vmem:[#allocation4 + $0x50] sm:$0xff]
    %v830 = vld [vmem:[#allocation4 + $0x58] sm:$0xff]
    %v831 = vld [vmem:[#allocation4 + $0x60] sm:$0xff]
    %v832 = vld [vmem:[#allocation4 + $0x68] sm:$0xff]
    %v833 = vld [vmem:[#allocation4 + $0x70] sm:$0xff]
    %v834 = vld [vmem:[#allocation4 + $0x78] sm:$0xff]
    %v835 = vld [vmem:[#allocation4 + $0x80] sm:$0xff]
    %v836 = vld [vmem:[#allocation4 + $0x88] sm:$0xff]
    %v837 = vld [vmem:[#allocation4 + $0x90] sm:$0xff]
    %v838 = vld [vmem:[#allocation4 + $0x98] sm:$0xff]
    %v839 = vld [vmem:[#allocation4 + $0xa0] sm:$0xff]
    %v840 = vld [vmem:[#allocation4 + $0xa8] sm:$0xff]
    %v841 = vld [vmem:[#allocation4 + $0xb0] sm:$0xff]
    %v842 = vld [vmem:[#allocation4 + $0xb8] sm:$0xff]
    %v843 = vld [vmem:[#allocation4 + $0xc0] sm:$0xff]
    %v844 = vld [vmem:[#allocation4 + $0xc8] sm:$0xff]
    %v845 = vld [vmem:[#allocation4 + $0xd0] sm:$0xff]
    %v846 = vld [vmem:[#allocation4 + $0xd8] sm:$0xff]
    %v847 = vld [vmem:[#allocation4 + $0xe0] sm:$0xff]
    %v848 = vld [vmem:[#allocation4 + $0xe8] sm:$0xff]
    %v849 = vld [vmem:[#allocation4 + $0xf0] sm:$0xff]
    %v850 = vld [vmem:[#allocation4 + $0xf8] sm:$0xff]
    %v851 = vld [vmem:[#allocation4 + $0x100] sm:$0xff]
    %v852 = vld [vmem:[#allocation4 + $0x108] sm:$0xff]
    %v853 = vld [vmem:[#allocation4 + $0x110] sm:$0xff]
    %v854 = vld [vmem:[#allocation4 + $0x118] sm:$0xff]
    %v855 = vpack.c.bf16 %v812, %v811
    %v856 = vpack.c.bf16 %v814, %v813
    %v857 = vpack.c.bf16 %v816, %v815
    %v858 = vpack.c.bf16 %v818, %v817
    %v859 = vld [vmem:[#allocation2] sm:$0xf]
    %v860 = vld [vmem:[#allocation2 + $0x4] sm:$0xf]
    %v861 = vld [vmem:[#allocation2 + $0x8] sm:$0xf]
    %v862 = vld [vmem:[#allocation2 + $0xc] sm:$0xf]
    %v867 = vunpack.c.l.b16 %v859
    %v868 = vunpack.c.l.b16 %v860
    %v869 = vunpack.c.l.b16 %v861
    %v870 = vunpack.c.l.b16 %v862
    %v871 = vpack.c.b16 %v868, %v867
    %v872 = vpack.c.b16 %v870, %v869
    %vm873 = vcmask 523264
    %v875 = vsel %vm873, %v871, 0
    %v878 = vsel %vm873, %v872, 0
    %880 = vmatpush.bf16.msra.mxu0 0
    %881 = vmatpush.bf16.msra.mxu0 0
    %882 = vmatpush.bf16.msra.mxu0 0
    %883 = vmatpush.bf16.msra.mxu0 0
    %884 = vmatpush.bf16.msra.mxu0 %v858
    %885 = vmatpush.bf16.msra.mxu0 %v857
    %886 = vmatpush.bf16.msra.mxu0 %v856
    %887 = vmatpush.bf16.msra.mxu0 %v855
    %888 = vmatmul.bf16.gmra.mxu0 %v875
    %v889 = vpop.f32.mrf.mxu0
    %v890 = vadd.f32 0.0, %v889
    %v891 = vpop.f32.mrf.mxu0
    %v892 = vadd.f32 0.0, %v891
    %893 = vmatmul.bf16.gmra.mxu0 %v878
    %v894 = vpop.f32.mrf.mxu0
    %v895 = vadd.f32 0.0, %v894
    %v896 = vpop.f32.mrf.mxu0
    %v897 = vadd.f32 0.0, %v896
    %898 = vdwg.mxu0
    %s899 = scalar_lea.vmem [#allocation2], 16
    %v900 = vld [vmem:[%s899] sm:$0xf]
    %v901 = vld [vmem:[%s899 + $0x4] sm:$0xf]
    %v902 = vld [vmem:[%s899 + $0x8] sm:$0xf]
    %v903 = vld [vmem:[%s899 + $0xc] sm:$0xf]
    %v908 = vunpack.c.l.b16 %v900
    %v909 = vunpack.c.l.b16 %v901
    %v910 = vunpack.c.l.b16 %v902
    %v911 = vunpack.c.l.b16 %v903
    %v912 = vpack.c.b16 %v909, %v908
    %v913 = vpack.c.b16 %v911, %v910
    %v915 = vsel %vm873, %v912, 0
    %v918 = vsel %vm873, %v913, 0
    %920 = vmatpush.bf16.msra.mxu0 0
    %921 = vmatpush.bf16.msra.mxu0 0
    %922 = vmatpush.bf16.msra.mxu0 0
    %923 = vmatpush.bf16.msra.mxu0 0
    %924 = vmatpush.bf16.msra.mxu0 %v858
    %925 = vmatpush.bf16.msra.mxu0 %v857
    %926 = vmatpush.bf16.msra.mxu0 %v856
    %927 = vmatpush.bf16.msra.mxu0 %v855
    %928 = vmatmul.bf16.gmra.mxu0 %v915
    %v929 = vpop.f32.mrf.mxu0
    %v930 = vadd.f32 0.0, %v929
    %v931 = vpop.f32.mrf.mxu0
    %v932 = vadd.f32 0.0, %v931
    %933 = vmatmul.bf16.gmra.mxu0 %v918
    %v934 = vpop.f32.mrf.mxu0
    %v935 = vadd.f32 0.0, %v934
    %v936 = vpop.f32.mrf.mxu0
    %v937 = vadd.f32 0.0, %v936
    %938 = vdwg.mxu0
    %s939 = scalar_lea.vmem [#allocation2], 32
    %v940 = vld [vmem:[%s939] sm:$0xf]
    %v941 = vld [vmem:[%s939 + $0x4] sm:$0xf]
    %v942 = vld [vmem:[%s939 + $0x8] sm:$0xf]
    %v943 = vld [vmem:[%s939 + $0xc] sm:$0xf]
    %v948 = vunpack.c.l.b16 %v940
    %v949 = vunpack.c.l.b16 %v941
    %v950 = vunpack.c.l.b16 %v942
    %v951 = vunpack.c.l.b16 %v943
    %v952 = vpack.c.b16 %v949, %v948
    %v953 = vpack.c.b16 %v951, %v950
    %v955 = vsel %vm873, %v952, 0
    %v958 = vsel %vm873, %v953, 0
    %960 = vmatpush.bf16.msra.mxu0 0
    %961 = vmatpush.bf16.msra.mxu0 0
    %962 = vmatpush.bf16.msra.mxu0 0
    %963 = vmatpush.bf16.msra.mxu0 0
    %964 = vmatpush.bf16.msra.mxu0 %v858
    %965 = vmatpush.bf16.msra.mxu0 %v857
    %966 = vmatpush.bf16.msra.mxu0 %v856
    %967 = vmatpush.bf16.msra.mxu0 %v855
    %968 = vmatmul.bf16.gmra.mxu0 %v955
    %v969 = vpop.f32.mrf.mxu0
    %v970 = vadd.f32 0.0, %v969
    %v971 = vpop.f32.mrf.mxu0
    %v972 = vadd.f32 0.0, %v971
    %973 = vmatmul.bf16.gmra.mxu0 %v958
    %v974 = vpop.f32.mrf.mxu0
    %v975 = vadd.f32 0.0, %v974
    %v976 = vpop.f32.mrf.mxu0
    %v977 = vadd.f32 0.0, %v976
    %978 = vdwg.mxu0
    %983 = vrot.lane.b32.xlu0 %v930, 96
    %v984 = vpop.permute.xlu0 %983
    %985 = vrot.lane.b32.xlu0 %v932, 96
    %v986 = vpop.permute.xlu0 %985
    %987 = vrot.lane.b32.xlu0 %v935, 96
    %v988 = vpop.permute.xlu0 %987
    %989 = vrot.lane.b32.xlu0 %v937, 96
    %v990 = vpop.permute.xlu0 %989
    %999 = vrot.lane.b32.xlu0 %v970, 64
    %v1000 = vpop.permute.xlu0 %999
    %1001 = vrot.lane.b32.xlu0 %v972, 64
    %v1002 = vpop.permute.xlu0 %1001
    %1003 = vrot.lane.b32.xlu0 %v975, 64
    %v1004 = vpop.permute.xlu0 %1003
    %1005 = vrot.lane.b32.xlu0 %v977, 64
    %v1006 = vpop.permute.xlu0 %1005
    %vm1011 = vcmask 785408
    %v1012 = vsel %vm1011, %v890, %v984
    %v1013 = vsel %vm1011, %v892, %v986
    %v1014 = vsel %vm1011, %v895, %v988
    %v1015 = vsel %vm1011, %v897, %v990
    %v1016 = vsel %vm873, %v984, %v1000
    %v1017 = vsel %vm873, %v986, %v1002
    %v1018 = vsel %vm873, %v988, %v1004
    %v1019 = vsel %vm873, %v990, %v1006
    %v1020 = vpack.c.bf16 %v1013, %v1012
    %v1021 = vpack.c.bf16 %v1017, %v1016
    %v1022 = vpack.c.bf16 %v1002, %v1000
    %v1023 = vpack.c.bf16 %v1015, %v1014
    %v1024 = vpack.c.bf16 %v1019, %v1018
    %v1025 = vpack.c.bf16 %v1006, %v1004
    %v1026 = vld [vmem:[#allocation6] sm:$0x3]
    %v1028 = vperm.slane %v1026, 0
    %v1029 = vperm.slane %v1026, 1
    %v1068 = vunpack.c.l.b16 %v819
    %v1069 = vunpack.c.h.b16 %v819
    %v1070 = vunpack.c.l.b16 %v820
    %v1071 = vunpack.c.h.b16 %v820
    %v1072 = vunpack.c.l.b16 %v821
    %v1073 = vunpack.c.h.b16 %v821
    %v1074 = vunpack.c.l.b16 %v822
    %v1075 = vunpack.c.h.b16 %v822
    %v1076 = vunpack.c.l.b16 %v823
    %v1077 = vunpack.c.h.b16 %v823
    %v1078 = vunpack.c.l.b16 %v824
    %v1079 = vunpack.c.h.b16 %v824
    %v1080 = vunpack.c.l.b16 %v825
    %v1081 = vunpack.c.h.b16 %v825
    %v1082 = vunpack.c.l.b16 %v826
    %v1083 = vunpack.c.h.b16 %v826
    %v1084 = vunpack.c.l.b16 %v827
    %v1085 = vunpack.c.h.b16 %v827
    %v1086 = vunpack.c.l.b16 %v828
    %v1087 = vunpack.c.h.b16 %v828
    %v1088 = vunpack.c.l.b16 %v829
    %v1089 = vunpack.c.h.b16 %v829
    %v1090 = vunpack.c.l.b16 %v830
    %v1091 = vunpack.c.h.b16 %v830
    %v1092 = vunpack.c.l.b16 %v831
    %v1093 = vunpack.c.h.b16 %v831
    %v1094 = vunpack.c.l.b16 %v832
    %v1095 = vunpack.c.h.b16 %v832
    %v1096 = vunpack.c.l.b16 %v833
    %v1097 = vunpack.c.h.b16 %v833
    %v1098 = vunpack.c.l.b16 %v834
    %v1099 = vunpack.c.h.b16 %v834
    %v1100 = vunpack.c.l.b16 %v835
    %v1101 = vunpack.c.h.b16 %v835
    %v1102 = vunpack.c.l.b16 %v836
    %v1103 = vunpack.c.h.b16 %v836
    %v1104 = vunpack.c.l.b16 %v837
    %v1105 = vunpack.c.h.b16 %v837
    %v1106 = vunpack.c.l.b16 %v838
    %v1107 = vunpack.c.h.b16 %v838
    %v1108 = vunpack.c.l.b16 %v839
    %v1109 = vunpack.c.h.b16 %v839
    %v1110 = vunpack.c.l.b16 %v840
    %v1111 = vunpack.c.h.b16 %v840
    %v1112 = vunpack.c.l.b16 %v841
    %v1113 = vunpack.c.h.b16 %v841
    %v1114 = vunpack.c.l.b16 %v842
    %v1115 = vunpack.c.h.b16 %v842
    %v1116 = vunpack.c.l.b16 %v843
    %v1117 = vunpack.c.h.b16 %v843
    %v1118 = vunpack.c.l.b16 %v844
    %v1119 = vunpack.c.h.b16 %v844
    %v1120 = vunpack.c.l.b16 %v845
    %v1121 = vunpack.c.h.b16 %v845
    %v1122 = vunpack.c.l.b16 %v846
    %v1123 = vunpack.c.h.b16 %v846
    %v1124 = vunpack.c.l.b16 %v847
    %v1125 = vunpack.c.h.b16 %v847
    %v1126 = vunpack.c.l.b16 %v848
    %v1127 = vunpack.c.h.b16 %v848
    %v1128 = vunpack.c.l.b16 %v849
    %v1129 = vunpack.c.h.b16 %v849
    %v1130 = vunpack.c.l.b16 %v850
    %v1131 = vunpack.c.h.b16 %v850
    %v1132 = vunpack.c.l.b16 %v851
    %v1133 = vunpack.c.h.b16 %v851
    %v1134 = vunpack.c.l.b16 %v852
    %v1135 = vunpack.c.h.b16 %v852
    %v1136 = vunpack.c.l.b16 %v853
    %v1137 = vunpack.c.h.b16 %v853
    %v1138 = vunpack.c.l.b16 %v854
    %v1139 = vunpack.c.h.b16 %v854
    %v1140 = vpack.c.b16 %v1070, %v1068
    %v1141 = vpack.c.b16 %v1071, %v1069
    %v1142 = vpack.c.b16 %v1074, %v1072
    %v1143 = vpack.c.b16 %v1075, %v1073
    %v1144 = vpack.c.b16 %v1078, %v1076
    %v1145 = vpack.c.b16 %v1079, %v1077
    %v1146 = vpack.c.b16 %v1082, %v1080
    %v1147 = vpack.c.b16 %v1083, %v1081
    %v1148 = vpack.c.b16 %v1086, %v1084
    %v1149 = vpack.c.b16 %v1087, %v1085
    %v1150 = vpack.c.b16 %v1090, %v1088
    %v1151 = vpack.c.b16 %v1091, %v1089
    %v1152 = vpack.c.b16 %v1094, %v1092
    %v1153 = vpack.c.b16 %v1095, %v1093
    %v1154 = vpack.c.b16 %v1098, %v1096
    %v1155 = vpack.c.b16 %v1099, %v1097
    %v1156 = vpack.c.b16 %v1102, %v1100
    %v1157 = vpack.c.b16 %v1103, %v1101
    %v1158 = vpack.c.b16 %v1106, %v1104
    %v1159 = vpack.c.b16 %v1107, %v1105
    %v1160 = vpack.c.b16 %v1110, %v1108
    %v1161 = vpack.c.b16 %v1111, %v1109
    %v1162 = vpack.c.b16 %v1114, %v1112
    %v1163 = vpack.c.b16 %v1115, %v1113
    %v1164 = vpack.c.b16 %v1118, %v1116
    %v1165 = vpack.c.b16 %v1119, %v1117
    %v1166 = vpack.c.b16 %v1122, %v1120
    %v1167 = vpack.c.b16 %v1123, %v1121
    %v1168 = vpack.c.b16 %v1126, %v1124
    %v1169 = vpack.c.b16 %v1127, %v1125
    %v1170 = vpack.c.b16 %v1130, %v1128
    %v1171 = vpack.c.b16 %v1131, %v1129
    %v1172 = vpack.c.b16 %v1134, %v1132
    %v1173 = vpack.c.b16 %v1135, %v1133
    %v1174 = vpack.c.b16 %v1138, %v1136
    %v1175 = vpack.c.b16 %v1139, %v1137
    %vm1212 = vcmask 261120
    %v1214 = vsel %vm1212, %v1022, 0
    %v1217 = vsel %vm1212, %v1025, 0
    %1219 = vmatpush.bf16.msra.mxu0 %v1154
    %1220 = vmatpush.bf16.msra.mxu0 %v1152
    %1221 = vmatpush.bf16.msra.mxu0 %v1150
    %1222 = vmatpush.bf16.msra.mxu0 %v1148
    %1223 = vmatpush.bf16.msra.mxu0 %v1146
    %1224 = vmatpush.bf16.msra.mxu0 %v1144
    %1225 = vmatpush.bf16.msra.mxu0 %v1142
    %1226 = vmatpush.bf16.msra.mxu0 %v1140
    %1227 = vmatmul.bf16.gmra.mxu0 %v1020
    %v1228 = vpop.f32.mrf.mxu0
    %v1229 = vadd.f32 %v1028, %v1228
    %v1230 = vpop.f32.mrf.mxu0
    %v1231 = vadd.f32 %v1028, %v1230
    %1232 = vmatmul.bf16.gmra.mxu0 %v1023
    %v1233 = vpop.f32.mrf.mxu0
    %v1234 = vadd.f32 %v1028, %v1233
    %v1235 = vpop.f32.mrf.mxu0
    %v1236 = vadd.f32 %v1028, %v1235
    %1237 = vdwg.mxu0
    %1238 = vmatpush.bf16.msra.mxu0 %v1170
    %1239 = vmatpush.bf16.msra.mxu0 %v1168
    %1240 = vmatpush.bf16.msra.mxu0 %v1166
    %1241 = vmatpush.bf16.msra.mxu0 %v1164
    %1242 = vmatpush.bf16.msra.mxu0 %v1162
    %1243 = vmatpush.bf16.msra.mxu0 %v1160
    %1244 = vmatpush.bf16.msra.mxu0 %v1158
    %1245 = vmatpush.bf16.msra.mxu0 %v1156
    %1246 = vmatmul.bf16.gmra.mxu0 %v1021
    %v1247 = vpop.f32.mrf.mxu0
    %v1248 = vadd.f32 %v1229, %v1247
    %v1249 = vpop.f32.mrf.mxu0
    %v1250 = vadd.f32 %v1231, %v1249
    %1251 = vmatmul.bf16.gmra.mxu0 %v1024
    %v1252 = vpop.f32.mrf.mxu0
    %v1253 = vadd.f32 %v1234, %v1252
    %v1254 = vpop.f32.mrf.mxu0
    %v1255 = vadd.f32 %v1236, %v1254
    %1256 = vdwg.mxu0
    %1257 = vmatpush.bf16.msra.mxu0 0
    %1258 = vmatpush.bf16.msra.mxu0 0
    %1259 = vmatpush.bf16.msra.mxu0 0
    %1260 = vmatpush.bf16.msra.mxu0 0
    %1261 = vmatpush.bf16.msra.mxu0 0
    %1262 = vmatpush.bf16.msra.mxu0 0
    %1263 = vmatpush.bf16.msra.mxu0 %v1174
    %1264 = vmatpush.bf16.msra.mxu0 %v1172
    %1265 = vmatmul.bf16.gmra.mxu0 %v1214
    %v1266 = vpop.f32.mrf.mxu0
    %v1267 = vadd.f32 %v1248, %v1266
    %v1268 = vpop.f32.mrf.mxu0
    %v1269 = vadd.f32 %v1250, %v1268
    %1270 = vmatmul.bf16.gmra.mxu0 %v1217
    %v1271 = vpop.f32.mrf.mxu0
    %v1272 = vadd.f32 %v1253, %v1271
    %v1273 = vpop.f32.mrf.mxu0
    %v1274 = vadd.f32 %v1255, %v1273
    %1275 = vdwg.mxu0
    %1276 = vmatpush.bf16.msra.mxu0 %v1155
    %1277 = vmatpush.bf16.msra.mxu0 %v1153
    %1278 = vmatpush.bf16.msra.mxu0 %v1151
    %1279 = vmatpush.bf16.msra.mxu0 %v1149
    %1280 = vmatpush.bf16.msra.mxu0 %v1147
    %1281 = vmatpush.bf16.msra.mxu0 %v1145
    %1282 = vmatpush.bf16.msra.mxu0 %v1143
    %1283 = vmatpush.bf16.msra.mxu0 %v1141
    %1284 = vmatmul.bf16.gmra.mxu0 %v1020
    %v1285 = vpop.f32.mrf.mxu0
    %v1286 = vadd.f32 %v1029, %v1285
    %v1287 = vpop.f32.mrf.mxu0
    %v1288 = vadd.f32 %v1029, %v1287
    %1289 = vmatmul.bf16.gmra.mxu0 %v1023
    %v1290 = vpop.f32.mrf.mxu0
    %v1291 = vadd.f32 %v1029, %v1290
    %v1292 = vpop.f32.mrf.mxu0
    %v1293 = vadd.f32 %v1029, %v1292
    %1294 = vdwg.mxu0
    %1295 = vmatpush.bf16.msra.mxu0 %v1171
    %1296 = vmatpush.bf16.msra.mxu0 %v1169
    %1297 = vmatpush.bf16.msra.mxu0 %v1167
    %1298 = vmatpush.bf16.msra.mxu0 %v1165
    %1299 = vmatpush.bf16.msra.mxu0 %v1163
    %1300 = vmatpush.bf16.msra.mxu0 %v1161
    %1301 = vmatpush.bf16.msra.mxu0 %v1159
    %1302 = vmatpush.bf16.msra.mxu0 %v1157
    %1303 = vmatmul.bf16.gmra.mxu0 %v1021
    %v1304 = vpop.f32.mrf.mxu0
    %v1305 = vadd.f32 %v1286, %v1304
    %v1306 = vpop.f32.mrf.mxu0
    %v1307 = vadd.f32 %v1288, %v1306
    %1308 = vmatmul.bf16.gmra.mxu0 %v1024
    %v1309 = vpop.f32.mrf.mxu0
    %v1310 = vadd.f32 %v1291, %v1309
    %v1311 = vpop.f32.mrf.mxu0
    %v1312 = vadd.f32 %v1293, %v1311
    %1313 = vdwg.mxu0
    %1314 = vmatpush.bf16.msra.mxu0 0
    %1315 = vmatpush.bf16.msra.mxu0 0
    %1316 = vmatpush.bf16.msra.mxu0 0
    %1317 = vmatpush.bf16.msra.mxu0 0
    %1318 = vmatpush.bf16.msra.mxu0 0
    %1319 = vmatpush.bf16.msra.mxu0 0
    %1320 = vmatpush.bf16.msra.mxu0 %v1175
    %1321 = vmatpush.bf16.msra.mxu0 %v1173
    %1322 = vmatmul.bf16.gmra.mxu0 %v1214
    %v1323 = vpop.f32.mrf.mxu0
    %v1324 = vadd.f32 %v1305, %v1323
    %v1325 = vpop.f32.mrf.mxu0
    %v1326 = vadd.f32 %v1307, %v1325
    %1327 = vmatmul.bf16.gmra.mxu0 %v1217
    %v1328 = vpop.f32.mrf.mxu0
    %v1329 = vadd.f32 %v1310, %v1328
    %v1330 = vpop.f32.mrf.mxu0
    %v1331 = vadd.f32 %v1312, %v1330
    %1332 = vdwg.mxu0
    %v1333 = vmax.f32 %v1267, 0.0
    %v1334 = vmax.f32 %v1324, 0.0
    %v1335 = vmax.f32 %v1269, 0.0
    %v1336 = vmax.f32 %v1326, 0.0
    %v1337 = vmax.f32 %v1272, 0.0
    %v1338 = vmax.f32 %v1329, 0.0
    %v1339 = vmax.f32 %v1274, 0.0
    %v1340 = vmax.f32 %v1331, 0.0
    %v1341 = vld [vmem:[#allocation7] sm:$0xff]
    %v1342 = vld [vmem:[#allocation7 + $0x8] sm:$0xff]
    %v1343 = vld [vmem:[#allocation7 + $0x10] sm:$0xff]
    %v1344 = vld [vmem:[#allocation7 + $0x18] sm:$0xff]
    %v1345 = vld [vmem:[#allocation7 + $0x20] sm:$0xff]
    %v1346 = vld [vmem:[#allocation7 + $0x28] sm:$0xff]
    %v1347 = vld [vmem:[#allocation7 + $0x30] sm:$0xff]
    %v1348 = vld [vmem:[#allocation7 + $0x38] sm:$0xff]
    %v1349 = vld [vmem:[#allocation7 + $0x40] sm:$0xff]
    %v1350 = vld [vmem:[#allocation7 + $0x48] sm:$0xff]
    %v1351 = vld [vmem:[#allocation7 + $0x50] sm:$0xff]
    %v1352 = vld [vmem:[#allocation7 + $0x58] sm:$0xff]
    %v1353 = vld [vmem:[#allocation7 + $0x60] sm:$0xff]
    %v1354 = vld [vmem:[#allocation7 + $0x68] sm:$0xff]
    %v1355 = vld [vmem:[#allocation7 + $0x70] sm:$0xff]
    %v1356 = vld [vmem:[#allocation7 + $0x78] sm:$0xff]
    %v1357 = vld [vmem:[#allocation7 + $0x80] sm:$0xff]
    %v1358 = vld [vmem:[#allocation7 + $0x88] sm:$0xff]
    %v1359 = vld [vmem:[#allocation7 + $0x90] sm:$0xff]
    %v1360 = vld [vmem:[#allocation7 + $0x98] sm:$0xff]
    %v1361 = vld [vmem:[#allocation7 + $0xa0] sm:$0xff]
    %v1362 = vld [vmem:[#allocation7 + $0xa8] sm:$0xff]
    %v1363 = vld [vmem:[#allocation7 + $0xb0] sm:$0xff]
    %v1364 = vld [vmem:[#allocation7 + $0xb8] sm:$0xff]
    %v1365 = vld [vmem:[#allocation7 + $0xc0] sm:$0xff]
    %v1366 = vld [vmem:[#allocation7 + $0xc8] sm:$0xff]
    %v1367 = vld [vmem:[#allocation7 + $0xd0] sm:$0xff]
    %v1368 = vld [vmem:[#allocation7 + $0xd8] sm:$0xff]
    %v1369 = vld [vmem:[#allocation7 + $0xe0] sm:$0xff]
    %v1370 = vld [vmem:[#allocation7 + $0xe8] sm:$0xff]
    %v1371 = vld [vmem:[#allocation7 + $0xf0] sm:$0xff]
    %v1372 = vld [vmem:[#allocation7 + $0xf8] sm:$0xff]
    %v1373 = vld [vmem:[#allocation9] sm:$0xff]
    %v1374 = vld [vmem:[#allocation9 + $0x8] sm:$0xff]
    %v1375 = vld [vmem:[#allocation9 + $0x10] sm:$0xff]
    %v1376 = vld [vmem:[#allocation9 + $0x18] sm:$0xff]
    %v1377 = vld [vmem:[%s9] sm:$0x1]
    %v1378 = vld [vmem:[%s11] sm:$0x1]
    %v1379 = vadd.f32 %v1333, %v1335
    %v1380 = vadd.f32 %v1379, %v1337
    %v1381 = vadd.f32 %v1380, %v1339
    %v1382 = vrot.slane %v1381, 4
    %v1383 = vadd.f32 %v1381, %v1382
    %v1384 = vrot.slane %v1383, 2
    %v1385 = vadd.f32 %v1383, %v1384
    %v1386 = vrot.slane %v1385, 1
    %v1387 = vadd.f32 %v1385, %v1386
    %v1388 = vadd.f32 %v1334, %v1336
    %v1389 = vadd.f32 %v1388, %v1338
    %v1390 = vadd.f32 %v1389, %v1340
    %v1391 = vrot.slane %v1390, 4
    %v1392 = vadd.f32 %v1390, %v1391
    %v1393 = vrot.slane %v1392, 2
    %v1394 = vadd.f32 %v1392, %v1393
    %v1395 = vrot.slane %v1394, 1
    %v1396 = vadd.f32 %v1394, %v1395
    %1397 = vmatpush.msra.mxu0 %v1356
    %1398 = vmatpush.msra.mxu0 %v1355
    %1399 = vmatpush.msra.mxu0 %v1354
    %1400 = vmatpush.msra.mxu0 %v1353
    %1401 = vmatpush.msra.mxu0 %v1352
    %1402 = vmatpush.msra.mxu0 %v1351
    %1403 = vmatpush.msra.mxu0 %v1350
    %1404 = vmatpush.msra.mxu0 %v1349
    %1405 = vmatpush.msra.mxu0 %v1348
    %1406 = vmatpush.msra.mxu0 %v1347
    %1407 = vmatpush.msra.mxu0 %v1346
    %1408 = vmatpush.msra.mxu0 %v1345
    %1409 = vmatpush.msra.mxu0 %v1344
    %1410 = vmatpush.msra.mxu0 %v1343
    %1411 = vmatpush.msra.mxu0 %v1342
    %1412 = vmatpush.msra.mxu0 %v1341
    %1413 = vmatmul.f32.gmra.mxu0 %v1387
    %v1414 = vpop.f32.mrf.mxu0
    %v1415 = vadd.f32 0.0, %v1414
    %1416 = vdwg.mxu0
    %1417 = vmatpush.msra.mxu0 %v1372
    %1418 = vmatpush.msra.mxu0 %v1371
    %1419 = vmatpush.msra.mxu0 %v1370
    %1420 = vmatpush.msra.mxu0 %v1369
    %1421 = vmatpush.msra.mxu0 %v1368
    %1422 = vmatpush.msra.mxu0 %v1367
    %1423 = vmatpush.msra.mxu0 %v1366
    %1424 = vmatpush.msra.mxu0 %v1365
    %1425 = vmatpush.msra.mxu0 %v1364
    %1426 = vmatpush.msra.mxu0 %v1363
    %1427 = vmatpush.msra.mxu0 %v1362
    %1428 = vmatpush.msra.mxu0 %v1361
    %1429 = vmatpush.msra.mxu0 %v1360
    %1430 = vmatpush.msra.mxu0 %v1359
    %1431 = vmatpush.msra.mxu0 %v1358
    %1432 = vmatpush.msra.mxu0 %v1357
    %1433 = vmatmul.f32.gmra.mxu0 %v1396
    %v1434 = vpop.f32.mrf.mxu0
    %v1435 = vadd.f32 %v1415, %v1434
    %1436 = vdwg.mxu0
    %v1437 = vmul.f32 %v1435, 0.001953125
    %vm1438 = vcmask 130048
    %v1440 = vsel %vm1438, %v1437, 0
    %1442 = vmatpush.msra.mxu0 0.0
    %1443 = vmatpush.msra.mxu0 0.0
    %1444 = vmatpush.msra.mxu0 0.0
    %1445 = vmatpush.msra.mxu0 0.0
    %1446 = vmatpush.msra.mxu0 0.0
    %1447 = vmatpush.msra.mxu0 0.0
    %1448 = vmatpush.msra.mxu0 0.0
    %1449 = vmatpush.msra.mxu0 0.0
    %1450 = vmatpush.msra.mxu0 0.0
    %1451 = vmatpush.msra.mxu0 0.0
    %1452 = vmatpush.msra.mxu0 0.0
    %1453 = vmatpush.msra.mxu0 0.0
    %1454 = vmatpush.msra.mxu0 0.0
    %1455 = vmatpush.msra.mxu0 0.0
    %1456 = vmatpush.msra.mxu0 %v1375
    %1457 = vmatpush.msra.mxu0 %v1373
    %1458 = vmatmul.f32.gmra.mxu0 %v1440
    %v1459 = vpop.f32.mrf.mxu0
    %v1460 = vadd.f32 0.0, %v1459
    %1461 = vdwg.mxu0
    %1462 = vmatpush.msra.mxu0 0.0
    %1463 = vmatpush.msra.mxu0 0.0
    %1464 = vmatpush.msra.mxu0 0.0
    %1465 = vmatpush.msra.mxu0 0.0
    %1466 = vmatpush.msra.mxu0 0.0
    %1467 = vmatpush.msra.mxu0 0.0
    %1468 = vmatpush.msra.mxu0 0.0
    %1469 = vmatpush.msra.mxu0 0.0
    %1470 = vmatpush.msra.mxu0 0.0
    %1471 = vmatpush.msra.mxu0 0.0
    %1472 = vmatpush.msra.mxu0 0.0
    %1473 = vmatpush.msra.mxu0 0.0
    %1474 = vmatpush.msra.mxu0 0.0
    %1475 = vmatpush.msra.mxu0 0.0
    %1476 = vmatpush.msra.mxu0 %v1376
    %1477 = vmatpush.msra.mxu0 %v1374
    %1478 = vmatmul.f32.gmra.mxu0 %v1440
    %v1479 = vpop.f32.mrf.mxu0
    %v1480 = vadd.f32 0.0, %v1479
    %1481 = vdwg.mxu0
    %v1482 = vperm.slane %v1460, 0
    %v1483 = vperm.slane %v1480, 0
    %v1484 = vsub.f32 %v1333, %v1482
    %v1485 = vsub.f32 %v1334, %v1483
    %v1486 = vsub.f32 %v1335, %v1482
    %v1487 = vsub.f32 %v1336, %v1483
    %v1488 = vsub.f32 %v1337, %v1482
    %v1489 = vsub.f32 %v1338, %v1483
    %v1490 = vsub.f32 %v1339, %v1482
    %v1491 = vsub.f32 %v1340, %v1483
    %v1492 = vmul.f32 %v1484, %v1484
    %v1493 = vmul.f32 %v1485, %v1485
    %v1494 = vmul.f32 %v1486, %v1486
    %v1495 = vmul.f32 %v1487, %v1487
    %v1496 = vmul.f32 %v1488, %v1488
    %v1497 = vmul.f32 %v1489, %v1489
    %v1498 = vmul.f32 %v1490, %v1490
    %v1499 = vmul.f32 %v1491, %v1491
    %v1500 = vadd.f32 %v1492, %v1494
    %v1501 = vadd.f32 %v1500, %v1496
    %v1502 = vadd.f32 %v1501, %v1498
    %v1503 = vrot.slane %v1502, 4
    %v1504 = vadd.f32 %v1502, %v1503
    %v1505 = vrot.slane %v1504, 2
    %v1506 = vadd.f32 %v1504, %v1505
    %v1507 = vrot.slane %v1506, 1
    %v1508 = vadd.f32 %v1506, %v1507
    %v1509 = vadd.f32 %v1493, %v1495
    %v1510 = vadd.f32 %v1509, %v1497
    %v1511 = vadd.f32 %v1510, %v1499
    %v1512 = vrot.slane %v1511, 4
    %v1513 = vadd.f32 %v1511, %v1512
    %v1514 = vrot.slane %v1513, 2
    %v1515 = vadd.f32 %v1513, %v1514
    %v1516 = vrot.slane %v1515, 1
    %v1517 = vadd.f32 %v1515, %v1516
    %1518 = vmatpush.msra.mxu0 %v1356
    %1519 = vmatpush.msra.mxu0 %v1355
    %1520 = vmatpush.msra.mxu0 %v1354
    %1521 = vmatpush.msra.mxu0 %v1353
    %1522 = vmatpush.msra.mxu0 %v1352
    %1523 = vmatpush.msra.mxu0 %v1351
    %1524 = vmatpush.msra.mxu0 %v1350
    %1525 = vmatpush.msra.mxu0 %v1349
    %1526 = vmatpush.msra.mxu0 %v1348
    %1527 = vmatpush.msra.mxu0 %v1347
    %1528 = vmatpush.msra.mxu0 %v1346
    %1529 = vmatpush.msra.mxu0 %v1345
    %1530 = vmatpush.msra.mxu0 %v1344
    %1531 = vmatpush.msra.mxu0 %v1343
    %1532 = vmatpush.msra.mxu0 %v1342
    %1533 = vmatpush.msra.mxu0 %v1341
    %1534 = vmatmul.f32.gmra.mxu0 %v1508
    %v1535 = vpop.f32.mrf.mxu0
    %v1536 = vadd.f32 0.0, %v1535
    %1537 = vdwg.mxu0
    %1538 = vmatpush.msra.mxu0 %v1372
    %1539 = vmatpush.msra.mxu0 %v1371
    %1540 = vmatpush.msra.mxu0 %v1370
    %1541 = vmatpush.msra.mxu0 %v1369
    %1542 = vmatpush.msra.mxu0 %v1368
    %1543 = vmatpush.msra.mxu0 %v1367
    %1544 = vmatpush.msra.mxu0 %v1366
    %1545 = vmatpush.msra.mxu0 %v1365
    %1546 = vmatpush.msra.mxu0 %v1364
    %1547 = vmatpush.msra.mxu0 %v1363
    %1548 = vmatpush.msra.mxu0 %v1362
    %1549 = vmatpush.msra.mxu0 %v1361
    %1550 = vmatpush.msra.mxu0 %v1360
    %1551 = vmatpush.msra.mxu0 %v1359
    %1552 = vmatpush.msra.mxu0 %v1358
    %1553 = vmatpush.msra.mxu0 %v1357
    %1554 = vmatmul.f32.gmra.mxu0 %v1517
    %v1555 = vpop.f32.mrf.mxu0
    %v1556 = vadd.f32 %v1536, %v1555
    %1557 = vdwg.mxu0
    %v1558 = vmul.f32 %v1556, 0.001953125
    %v1559 = vadd.f32 %v1558, 1e-05
    %v1560 = vrsqrt.pop %v1559
    %v1561 = vmul.f32 %v1560, %v1559
    %v1562 = vmul.f32 %v1561, %v1560
    %v1563 = vmul.f32 0.5, %v1562
    %v1564 = vsub.f32 1.5, %v1563
    %v1565 = vmul.f32 %v1560, %v1564
    %vm1566 = vweird.f32 %v1559
    %vm1567 = vweird.f32 %v1560
    %vm1568 = vmor %vm1566, %vm1567
    %v1569 = vsel %vm1568, %v1560, %v1565
    %v1570 = vmul.f32 %v1377, %v1569
    %v1572 = vsel %vm1438, %v1570, 0
    %1574 = vmatpush.msra.mxu0 0.0
    %1575 = vmatpush.msra.mxu0 0.0
    %1576 = vmatpush.msra.mxu0 0.0
    %1577 = vmatpush.msra.mxu0 0.0
    %1578 = vmatpush.msra.mxu0 0.0
    %1579 = vmatpush.msra.mxu0 0.0
    %1580 = vmatpush.msra.mxu0 0.0
    %1581 = vmatpush.msra.mxu0 0.0
    %1582 = vmatpush.msra.mxu0 0.0
    %1583 = vmatpush.msra.mxu0 0.0
    %1584 = vmatpush.msra.mxu0 0.0
    %1585 = vmatpush.msra.mxu0 0.0
    %1586 = vmatpush.msra.mxu0 0.0
    %1587 = vmatpush.msra.mxu0 0.0
    %1588 = vmatpush.msra.mxu0 %v1375
    %1589 = vmatpush.msra.mxu0 %v1373
    %1590 = vmatmul.f32.gmra.mxu0 %v1572
    %v1591 = vpop.f32.mrf.mxu0
    %v1592 = vadd.f32 0.0, %v1591
    %1593 = vdwg.mxu0
    %1594 = vmatpush.msra.mxu0 0.0
    %1595 = vmatpush.msra.mxu0 0.0
    %1596 = vmatpush.msra.mxu0 0.0
    %1597 = vmatpush.msra.mxu0 0.0
    %1598 = vmatpush.msra.mxu0 0.0
    %1599 = vmatpush.msra.mxu0 0.0
    %1600 = vmatpush.msra.mxu0 0.0
    %1601 = vmatpush.msra.mxu0 0.0
    %1602 = vmatpush.msra.mxu0 0.0
    %1603 = vmatpush.msra.mxu0 0.0
    %1604 = vmatpush.msra.mxu0 0.0
    %1605 = vmatpush.msra.mxu0 0.0
    %1606 = vmatpush.msra.mxu0 0.0
    %1607 = vmatpush.msra.mxu0 0.0
    %1608 = vmatpush.msra.mxu0 %v1376
    %1609 = vmatpush.msra.mxu0 %v1374
    %1610 = vmatmul.f32.gmra.mxu0 %v1572
    %v1611 = vpop.f32.mrf.mxu0
    %v1612 = vadd.f32 0.0, %v1611
    %1613 = vdwg.mxu0
    %v1614 = vperm.slane %v1592, 0
    %v1615 = vperm.slane %v1612, 0
    %v1616 = vmul.f32 %v1484, %v1614
    %v1617 = vmul.f32 %v1485, %v1615
    %v1618 = vmul.f32 %v1486, %v1614
    %v1619 = vmul.f32 %v1487, %v1615
    %v1620 = vmul.f32 %v1488, %v1614
    %v1621 = vmul.f32 %v1489, %v1615
    %v1622 = vmul.f32 %v1490, %v1614
    %v1623 = vmul.f32 %v1491, %v1615
    %v1625 = vsel %vm1438, %v1378, 0
    %1627 = vmatpush.msra.mxu0 0.0
    %1628 = vmatpush.msra.mxu0 0.0
    %1629 = vmatpush.msra.mxu0 0.0
    %1630 = vmatpush.msra.mxu0 0.0
    %1631 = vmatpush.msra.mxu0 0.0
    %1632 = vmatpush.msra.mxu0 0.0
    %1633 = vmatpush.msra.mxu0 0.0
    %1634 = vmatpush.msra.mxu0 0.0
    %1635 = vmatpush.msra.mxu0 0.0
    %1636 = vmatpush.msra.mxu0 0.0
    %1637 = vmatpush.msra.mxu0 0.0
    %1638 = vmatpush.msra.mxu0 0.0
    %1639 = vmatpush.msra.mxu0 0.0
    %1640 = vmatpush.msra.mxu0 0.0
    %1641 = vmatpush.msra.mxu0 %v1375
    %1642 = vmatpush.msra.mxu0 %v1373
    %1643 = vmatmul.f32.gmra.mxu0 %v1625
    %v1644 = vpop.f32.mrf.mxu0
    %v1645 = vadd.f32 0.0, %v1644
    %1646 = vdwg.mxu0
    %1647 = vmatpush.msra.mxu0 0.0
    %1648 = vmatpush.msra.mxu0 0.0
    %1649 = vmatpush.msra.mxu0 0.0
    %1650 = vmatpush.msra.mxu0 0.0
    %1651 = vmatpush.msra.mxu0 0.0
    %1652 = vmatpush.msra.mxu0 0.0
    %1653 = vmatpush.msra.mxu0 0.0
    %1654 = vmatpush.msra.mxu0 0.0
    %1655 = vmatpush.msra.mxu0 0.0
    %1656 = vmatpush.msra.mxu0 0.0
    %1657 = vmatpush.msra.mxu0 0.0
    %1658 = vmatpush.msra.mxu0 0.0
    %1659 = vmatpush.msra.mxu0 0.0
    %1660 = vmatpush.msra.mxu0 0.0
    %1661 = vmatpush.msra.mxu0 %v1376
    %1662 = vmatpush.msra.mxu0 %v1374
    %1663 = vmatmul.f32.gmra.mxu0 %v1625
    %v1664 = vpop.f32.mrf.mxu0
    %v1665 = vadd.f32 0.0, %v1664
    %1666 = vdwg.mxu0
    %v1667 = vperm.slane %v1645, 0
    %v1668 = vperm.slane %v1665, 0
    %v1669 = vadd.f32 %v1616, %v1667
    %v1670 = vadd.f32 %v1617, %v1668
    %v1671 = vadd.f32 %v1618, %v1667
    %v1672 = vadd.f32 %v1619, %v1668
    %v1673 = vadd.f32 %v1620, %v1667
    %v1674 = vadd.f32 %v1621, %v1668
    %v1675 = vadd.f32 %v1622, %v1667
    %v1676 = vadd.f32 %v1623, %v1668
    %v1677 = vld [vmem:[#allocation12] sm:$0xff]
    %v1678 = vld [vmem:[#allocation12 + $0x8] sm:$0xff]
    %v1679 = vld [vmem:[#allocation12 + $0x10] sm:$0xff]
    %v1680 = vld [vmem:[#allocation12 + $0x18] sm:$0xff]
    %v1681 = vld [vmem:[#allocation12 + $0x20] sm:$0xff]
    %v1682 = vld [vmem:[#allocation12 + $0x28] sm:$0xff]
    %v1683 = vld [vmem:[#allocation12 + $0x30] sm:$0xff]
    %v1684 = vld [vmem:[#allocation12 + $0x38] sm:$0xff]
    %v1685 = vld [vmem:[#allocation12 + $0x40] sm:$0xff]
    %v1686 = vld [vmem:[#allocation12 + $0x48] sm:$0xff]
    %v1687 = vld [vmem:[#allocation12 + $0x50] sm:$0xff]
    %v1688 = vld [vmem:[#allocation12 + $0x58] sm:$0xff]
    %v1689 = vld [vmem:[#allocation12 + $0x60] sm:$0xff]
    %v1690 = vld [vmem:[#allocation12 + $0x68] sm:$0xff]
    %v1691 = vld [vmem:[#allocation12 + $0x70] sm:$0xff]
    %v1692 = vld [vmem:[#allocation12 + $0x78] sm:$0xff]
    %v1693 = vld [vmem:[#allocation12 + $0x80] sm:$0xff]
    %v1694 = vld [vmem:[#allocation12 + $0x88] sm:$0xff]
    %v1695 = vld [vmem:[#allocation12 + $0x90] sm:$0xff]
    %v1696 = vld [vmem:[#allocation12 + $0x98] sm:$0xff]
    %v1697 = vld [vmem:[#allocation12 + $0xa0] sm:$0xff]
    %v1698 = vld [vmem:[#allocation12 + $0xa8] sm:$0xff]
    %v1699 = vld [vmem:[#allocation12 + $0xb0] sm:$0xff]
    %v1700 = vld [vmem:[#allocation12 + $0xb8] sm:$0xff]
    %v1701 = vld [vmem:[#allocation12 + $0xc0] sm:$0xff]
    %v1702 = vld [vmem:[#allocation12 + $0xc8] sm:$0xff]
    %v1703 = vld [vmem:[#allocation12 + $0xd0] sm:$0xff]
    %v1704 = vld [vmem:[#allocation12 + $0xd8] sm:$0xff]
    %v1705 = vld [vmem:[#allocation12 + $0xe0] sm:$0xff]
    %v1706 = vld [vmem:[#allocation12 + $0xe8] sm:$0xff]
    %v1707 = vld [vmem:[#allocation12 + $0xf0] sm:$0xff]
    %v1708 = vld [vmem:[#allocation12 + $0xf8] sm:$0xff]
    %v1709 = vld [vmem:[#allocation12 + $0x100] sm:$0xff]
    %v1710 = vld [vmem:[#allocation12 + $0x108] sm:$0xff]
    %v1711 = vld [vmem:[#allocation12 + $0x110] sm:$0xff]
    %v1712 = vld [vmem:[#allocation12 + $0x118] sm:$0xff]
    %v1713 = vld [vmem:[#allocation12 + $0x120] sm:$0xff]
    %v1714 = vld [vmem:[#allocation12 + $0x128] sm:$0xff]
    %v1715 = vld [vmem:[#allocation12 + $0x130] sm:$0xff]
    %v1716 = vld [vmem:[#allocation12 + $0x138] sm:$0xff]
    %v1717 = vld [vmem:[#allocation12 + $0x140] sm:$0xff]
    %v1718 = vld [vmem:[#allocation12 + $0x148] sm:$0xff]
    %v1719 = vld [vmem:[#allocation12 + $0x150] sm:$0xff]
    %v1720 = vld [vmem:[#allocation12 + $0x158] sm:$0xff]
    %v1721 = vld [vmem:[#allocation12 + $0x160] sm:$0xff]
    %v1722 = vld [vmem:[#allocation12 + $0x168] sm:$0xff]
    %v1723 = vld [vmem:[#allocation12 + $0x170] sm:$0xff]
    %v1724 = vld [vmem:[#allocation12 + $0x178] sm:$0xff]
    %v1725 = vld [vmem:[#allocation12 + $0x180] sm:$0xff]
    %v1726 = vld [vmem:[#allocation12 + $0x188] sm:$0xff]
    %v1727 = vld [vmem:[#allocation12 + $0x190] sm:$0xff]
    %v1728 = vld [vmem:[#allocation12 + $0x198] sm:$0xff]
    %v1729 = vld [vmem:[#allocation12 + $0x1a0] sm:$0xff]
    %v1730 = vld [vmem:[#allocation12 + $0x1a8] sm:$0xff]
    %v1731 = vld [vmem:[#allocation12 + $0x1b0] sm:$0xff]
    %v1732 = vld [vmem:[#allocation12 + $0x1b8] sm:$0xff]
    %v1733 = vld [vmem:[#allocation12 + $0x1c0] sm:$0xff]
    %v1734 = vld [vmem:[#allocation12 + $0x1c8] sm:$0xff]
    %v1735 = vld [vmem:[#allocation12 + $0x1d0] sm:$0xff]
    %v1736 = vld [vmem:[#allocation12 + $0x1d8] sm:$0xff]
    %v1737 = vld [vmem:[#allocation12 + $0x1e0] sm:$0xff]
    %v1738 = vld [vmem:[#allocation12 + $0x1e8] sm:$0xff]
    %v1739 = vld [vmem:[#allocation12 + $0x1f0] sm:$0xff]
    %v1740 = vld [vmem:[#allocation12 + $0x1f8] sm:$0xff]
    %v1741 = vld [vmem:[#allocation12 + $0x200] sm:$0xff]
    %v1742 = vld [vmem:[#allocation12 + $0x208] sm:$0xff]
    %v1743 = vld [vmem:[#allocation12 + $0x210] sm:$0xff]
    %v1744 = vld [vmem:[#allocation12 + $0x218] sm:$0xff]
    %v1745 = vld [vmem:[#allocation12 + $0x220] sm:$0xff]
    %v1746 = vld [vmem:[#allocation12 + $0x228] sm:$0xff]
    %v1747 = vld [vmem:[#allocation12 + $0x230] sm:$0xff]
    %v1748 = vld [vmem:[#allocation12 + $0x238] sm:$0xff]
    %v1749 = vld [vmem:[#allocation12 + $0x240] sm:$0xff]
    %v1750 = vld [vmem:[#allocation12 + $0x248] sm:$0xff]
    %v1751 = vld [vmem:[#allocation12 + $0x250] sm:$0xff]
    %v1752 = vld [vmem:[#allocation12 + $0x258] sm:$0xff]
    %v1753 = vld [vmem:[#allocation12 + $0x260] sm:$0xff]
    %v1754 = vld [vmem:[#allocation12 + $0x268] sm:$0xff]
    %v1755 = vld [vmem:[#allocation12 + $0x270] sm:$0xff]
    %v1756 = vld [vmem:[#allocation12 + $0x278] sm:$0xff]
    %v1757 = vld [vmem:[#allocation12 + $0x280] sm:$0xff]
    %v1758 = vld [vmem:[#allocation12 + $0x288] sm:$0xff]
    %v1759 = vld [vmem:[#allocation12 + $0x290] sm:$0xff]
    %v1760 = vld [vmem:[#allocation12 + $0x298] sm:$0xff]
    %v1761 = vld [vmem:[#allocation12 + $0x2a0] sm:$0xff]
    %v1762 = vld [vmem:[#allocation12 + $0x2a8] sm:$0xff]
    %v1763 = vld [vmem:[#allocation12 + $0x2b0] sm:$0xff]
    %v1764 = vld [vmem:[#allocation12 + $0x2b8] sm:$0xff]
    %v1765 = vld [vmem:[#allocation12 + $0x2c0] sm:$0xff]
    %v1766 = vld [vmem:[#allocation12 + $0x2c8] sm:$0xff]
    %v1767 = vld [vmem:[#allocation12 + $0x2d0] sm:$0xff]
    %v1768 = vld [vmem:[#allocation12 + $0x2d8] sm:$0xff]
    %v1769 = vld [vmem:[#allocation12 + $0x2e0] sm:$0xff]
    %v1770 = vld [vmem:[#allocation12 + $0x2e8] sm:$0xff]
    %v1771 = vld [vmem:[#allocation12 + $0x2f0] sm:$0xff]
    %v1772 = vld [vmem:[#allocation12 + $0x2f8] sm:$0xff]
    %v1773 = vpack.c.bf16 %v1671, %v1669
    %v1774 = vpack.c.bf16 %v1672, %v1670
    %v1775 = vpack.c.bf16 %v1675, %v1673
    %v1776 = vpack.c.bf16 %v1676, %v1674
    %v1777 = vld [vmem:[#allocation10] sm:$0xf]
    %v1778 = vld [vmem:[#allocation10 + $0x4] sm:$0xf]
    %v1781 = vunpack.c.l.b16 %v1777
    %v1782 = vunpack.c.l.b16 %v1778
    %v1783 = vpack.c.b16 %v1782, %v1781
    %v1785 = vsel %vm1212, %v1783, 0
    %1787 = vmatpush.bf16.msra.mxu0 0
    %1788 = vmatpush.bf16.msra.mxu0 0
    %1789 = vmatpush.bf16.msra.mxu0 0
    %1790 = vmatpush.bf16.msra.mxu0 0
    %1791 = vmatpush.bf16.msra.mxu0 0
    %1792 = vmatpush.bf16.msra.mxu0 0
    %1793 = vmatpush.bf16.msra.mxu0 %v1775
    %1794 = vmatpush.bf16.msra.mxu0 %v1773
    %1795 = vmatmul.bf16.gmra.mxu0 %v1785
    %v1796 = vpop.f32.mrf.mxu0
    %v1797 = vadd.f32 0.0, %v1796
    %v1798 = vpop.f32.mrf.mxu0
    %v1799 = vadd.f32 0.0, %v1798
    %1800 = vdwg.mxu0
    %1801 = vmatpush.bf16.msra.mxu0 0
    %1802 = vmatpush.bf16.msra.mxu0 0
    %1803 = vmatpush.bf16.msra.mxu0 0
    %1804 = vmatpush.bf16.msra.mxu0 0
    %1805 = vmatpush.bf16.msra.mxu0 0
    %1806 = vmatpush.bf16.msra.mxu0 0
    %1807 = vmatpush.bf16.msra.mxu0 %v1776
    %1808 = vmatpush.bf16.msra.mxu0 %v1774
    %1809 = vmatmul.bf16.gmra.mxu0 %v1785
    %v1810 = vpop.f32.mrf.mxu0
    %v1811 = vadd.f32 0.0, %v1810
    %v1812 = vpop.f32.mrf.mxu0
    %v1813 = vadd.f32 0.0, %v1812
    %1814 = vdwg.mxu0
    %s1815 = scalar_lea.vmem [#allocation10], 8
    %v1816 = vld [vmem:[%s1815] sm:$0xf]
    %v1817 = vld [vmem:[%s1815 + $0x4] sm:$0xf]
    %v1820 = vunpack.c.l.b16 %v1816
    %v1821 = vunpack.c.l.b16 %v1817
    %v1822 = vpack.c.b16 %v1821, %v1820
    %v1824 = vsel %vm1212, %v1822, 0
    %1826 = vmatpush.bf16.msra.mxu0 0
    %1827 = vmatpush.bf16.msra.mxu0 0
    %1828 = vmatpush.bf16.msra.mxu0 0
    %1829 = vmatpush.bf16.msra.mxu0 0
    %1830 = vmatpush.bf16.msra.mxu0 0
    %1831 = vmatpush.bf16.msra.mxu0 0
    %1832 = vmatpush.bf16.msra.mxu0 %v1775
    %1833 = vmatpush.bf16.msra.mxu0 %v1773
    %1834 = vmatmul.bf16.gmra.mxu0 %v1824
    %v1835 = vpop.f32.mrf.mxu0
    %v1836 = vadd.f32 0.0, %v1835
    %v1837 = vpop.f32.mrf.mxu0
    %v1838 = vadd.f32 0.0, %v1837
    %1839 = vdwg.mxu0
    %1840 = vmatpush.bf16.msra.mxu0 0
    %1841 = vmatpush.bf16.msra.mxu0 0
    %1842 = vmatpush.bf16.msra.mxu0 0
    %1843 = vmatpush.bf16.msra.mxu0 0
    %1844 = vmatpush.bf16.msra.mxu0 0
    %1845 = vmatpush.bf16.msra.mxu0 0
    %1846 = vmatpush.bf16.msra.mxu0 %v1776
    %1847 = vmatpush.bf16.msra.mxu0 %v1774
    %1848 = vmatmul.bf16.gmra.mxu0 %v1824
    %v1849 = vpop.f32.mrf.mxu0
    %v1850 = vadd.f32 0.0, %v1849
    %v1851 = vpop.f32.mrf.mxu0
    %v1852 = vadd.f32 0.0, %v1851
    %1853 = vdwg.mxu0
    %s1854 = scalar_lea.vmem [#allocation10], 16
    %v1855 = vld [vmem:[%s1854] sm:$0xf]
    %v1856 = vld [vmem:[%s1854 + $0x4] sm:$0xf]
    %v1859 = vunpack.c.l.b16 %v1855
    %v1860 = vunpack.c.l.b16 %v1856
    %v1861 = vpack.c.b16 %v1860, %v1859
    %v1863 = vsel %vm1212, %v1861, 0
    %1865 = vmatpush.bf16.msra.mxu0 0
    %1866 = vmatpush.bf16.msra.mxu0 0
    %1867 = vmatpush.bf16.msra.mxu0 0
    %1868 = vmatpush.bf16.msra.mxu0 0
    %1869 = vmatpush.bf16.msra.mxu0 0
    %1870 = vmatpush.bf16.msra.mxu0 0
    %1871 = vmatpush.bf16.msra.mxu0 %v1775
    %1872 = vmatpush.bf16.msra.mxu0 %v1773
    %1873 = vmatmul.bf16.gmra.mxu0 %v1863
    %v1874 = vpop.f32.mrf.mxu0
    %v1875 = vadd.f32 0.0, %v1874
    %v1876 = vpop.f32.mrf.mxu0
    %v1877 = vadd.f32 0.0, %v1876
    %1878 = vdwg.mxu0
    %1879 = vmatpush.bf16.msra.mxu0 0
    %1880 = vmatpush.bf16.msra.mxu0 0
    %1881 = vmatpush.bf16.msra.mxu0 0
    %1882 = vmatpush.bf16.msra.mxu0 0
    %1883 = vmatpush.bf16.msra.mxu0 0
    %1884 = vmatpush.bf16.msra.mxu0 0
    %1885 = vmatpush.bf16.msra.mxu0 %v1776
    %1886 = vmatpush.bf16.msra.mxu0 %v1774
    %1887 = vmatmul.bf16.gmra.mxu0 %v1863
    %v1888 = vpop.f32.mrf.mxu0
    %v1889 = vadd.f32 0.0, %v1888
    %v1890 = vpop.f32.mrf.mxu0
    %v1891 = vadd.f32 0.0, %v1890
    %1892 = vdwg.mxu0
    %v1893 = vpack.c.bf16 %v1799, %v1797
    %v1894 = vpack.c.bf16 %v1813, %v1811
    %v1895 = vpack.c.bf16 %v1838, %v1836
    %v1896 = vpack.c.bf16 %v1852, %v1850
    %v1897 = vpack.c.bf16 %v1877, %v1875
    %v1898 = vpack.c.bf16 %v1891, %v1889
    %v1899 = vld [vmem:[#allocation13] sm:$0x3]
    %v1901 = vperm.slane %v1899, 0
    %v1902 = vperm.slane %v1899, 1
    %v2001 = vunpack.c.l.b16 %v1677
    %v2002 = vunpack.c.h.b16 %v1677
    %v2003 = vunpack.c.l.b16 %v1678
    %v2004 = vunpack.c.h.b16 %v1678
    %v2005 = vunpack.c.l.b16 %v1679
    %v2006 = vunpack.c.h.b16 %v1679
    %v2007 = vunpack.c.l.b16 %v1680
    %v2008 = vunpack.c.h.b16 %v1680
    %v2009 = vunpack.c.l.b16 %v1681
    %v2010 = vunpack.c.h.b16 %v1681
    %v2011 = vunpack.c.l.b16 %v1682
    %v2012 = vunpack.c.h.b16 %v1682
    %v2013 = vunpack.c.l.b16 %v1683
    %v2014 = vunpack.c.h.b16 %v1683
    %v2015 = vunpack.c.l.b16 %v1684
    %v2016 = vunpack.c.h.b16 %v1684
    %v2017 = vunpack.c.l.b16 %v1685
    %v2018 = vunpack.c.h.b16 %v1685
    %v2019 = vunpack.c.l.b16 %v1686
    %v2020 = vunpack.c.h.b16 %v1686
    %v2021 = vunpack.c.l.b16 %v1687
    %v2022 = vunpack.c.h.b16 %v1687
    %v2023 = vunpack.c.l.b16 %v1688
    %v2024 = vunpack.c.h.b16 %v1688
    %v2025 = vunpack.c.l.b16 %v1689
    %v2026 = vunpack.c.h.b16 %v1689
    %v2027 = vunpack.c.l.b16 %v1690
    %v2028 = vunpack.c.h.b16 %v1690
    %v2029 = vunpack.c.l.b16 %v1691
    %v2030 = vunpack.c.h.b16 %v1691
    %v2031 = vunpack.c.l.b16 %v1692
    %v2032 = vunpack.c.h.b16 %v1692
    %v2033 = vunpack.c.l.b16 %v1693
    %v2034 = vunpack.c.h.b16 %v1693
    %v2035 = vunpack.c.l.b16 %v1694
    %v2036 = vunpack.c.h.b16 %v1694
    %v2037 = vunpack.c.l.b16 %v1695
    %v2038 = vunpack.c.h.b16 %v1695
    %v2039 = vunpack.c.l.b16 %v1696
    %v2040 = vunpack.c.h.b16 %v1696
    %v2041 = vunpack.c.l.b16 %v1697
    %v2042 = vunpack.c.h.b16 %v1697
    %v2043 = vunpack.c.l.b16 %v1698
    %v2044 = vunpack.c.h.b16 %v1698
    %v2045 = vunpack.c.l.b16 %v1699
    %v2046 = vunpack.c.h.b16 %v1699
    %v2047 = vunpack.c.l.b16 %v1700
    %v2048 = vunpack.c.h.b16 %v1700
    %v2049 = vunpack.c.l.b16 %v1701
    %v2050 = vunpack.c.h.b16 %v1701
    %v2051 = vunpack.c.l.b16 %v1702
    %v2052 = vunpack.c.h.b16 %v1702
    %v2053 = vunpack.c.l.b16 %v1703
    %v2054 = vunpack.c.h.b16 %v1703
    %v2055 = vunpack.c.l.b16 %v1704
    %v2056 = vunpack.c.h.b16 %v1704
    %v2057 = vunpack.c.l.b16 %v1705
    %v2058 = vunpack.c.h.b16 %v1705
    %v2059 = vunpack.c.l.b16 %v1706
    %v2060 = vunpack.c.h.b16 %v1706
    %v2061 = vunpack.c.l.b16 %v1707
    %v2062 = vunpack.c.h.b16 %v1707
    %v2063 = vunpack.c.l.b16 %v1708
    %v2064 = vunpack.c.h.b16 %v1708
    %v2065 = vunpack.c.l.b16 %v1709
    %v2066 = vunpack.c.h.b16 %v1709
    %v2067 = vunpack.c.l.b16 %v1710
    %v2068 = vunpack.c.h.b16 %v1710
    %v2069 = vunpack.c.l.b16 %v1711
    %v2070 = vunpack.c.h.b16 %v1711
    %v2071 = vunpack.c.l.b16 %v1712
    %v2072 = vunpack.c.h.b16 %v1712
    %v2073 = vunpack.c.l.b16 %v1713
    %v2074 = vunpack.c.h.b16 %v1713
    %v2075 = vunpack.c.l.b16 %v1714
    %v2076 = vunpack.c.h.b16 %v1714
    %v2077 = vunpack.c.l.b16 %v1715
    %v2078 = vunpack.c.h.b16 %v1715
    %v2079 = vunpack.c.l.b16 %v1716
    %v2080 = vunpack.c.h.b16 %v1716
    %v2081 = vunpack.c.l.b16 %v1717
    %v2082 = vunpack.c.h.b16 %v1717
    %v2083 = vunpack.c.l.b16 %v1718
    %v2084 = vunpack.c.h.b16 %v1718
    %v2085 = vunpack.c.l.b16 %v1719
    %v2086 = vunpack.c.h.b16 %v1719
    %v2087 = vunpack.c.l.b16 %v1720
    %v2088 = vunpack.c.h.b16 %v1720
    %v2089 = vunpack.c.l.b16 %v1721
    %v2090 = vunpack.c.h.b16 %v1721
    %v2091 = vunpack.c.l.b16 %v1722
    %v2092 = vunpack.c.h.b16 %v1722
    %v2093 = vunpack.c.l.b16 %v1723
    %v2094 = vunpack.c.h.b16 %v1723
    %v2095 = vunpack.c.l.b16 %v1724
    %v2096 = vunpack.c.h.b16 %v1724
    %v2097 = vunpack.c.l.b16 %v1725
    %v2098 = vunpack.c.h.b16 %v1725
    %v2099 = vunpack.c.l.b16 %v1726
    %v2100 = vunpack.c.h.b16 %v1726
    %v2101 = vunpack.c.l.b16 %v1727
    %v2102 = vunpack.c.h.b16 %v1727
    %v2103 = vunpack.c.l.b16 %v1728
    %v2104 = vunpack.c.h.b16 %v1728
    %v2105 = vunpack.c.l.b16 %v1729
    %v2106 = vunpack.c.h.b16 %v1729
    %v2107 = vunpack.c.l.b16 %v1730
    %v2108 = vunpack.c.h.b16 %v1730
    %v2109 = vunpack.c.l.b16 %v1731
    %v2110 = vunpack.c.h.b16 %v1731
    %v2111 = vunpack.c.l.b16 %v1732
    %v2112 = vunpack.c.h.b16 %v1732
    %v2113 = vunpack.c.l.b16 %v1733
    %v2114 = vunpack.c.h.b16 %v1733
    %v2115 = vunpack.c.l.b16 %v1734
    %v2116 = vunpack.c.h.b16 %v1734
    %v2117 = vunpack.c.l.b16 %v1735
    %v2118 = vunpack.c.h.b16 %v1735
    %v2119 = vunpack.c.l.b16 %v1736
    %v2120 = vunpack.c.h.b16 %v1736
    %v2121 = vunpack.c.l.b16 %v1737
    %v2122 = vunpack.c.h.b16 %v1737
    %v2123 = vunpack.c.l.b16 %v1738
    %v2124 = vunpack.c.h.b16 %v1738
    %v2125 = vunpack.c.l.b16 %v1739
    %v2126 = vunpack.c.h.b16 %v1739
    %v2127 = vunpack.c.l.b16 %v1740
    %v2128 = vunpack.c.h.b16 %v1740
    %v2129 = vunpack.c.l.b16 %v1741
    %v2130 = vunpack.c.h.b16 %v1741
    %v2131 = vunpack.c.l.b16 %v1742
    %v2132 = vunpack.c.h.b16 %v1742
    %v2133 = vunpack.c.l.b16 %v1743
    %v2134 = vunpack.c.h.b16 %v1743
    %v2135 = vunpack.c.l.b16 %v1744
    %v2136 = vunpack.c.h.b16 %v1744
    %v2137 = vunpack.c.l.b16 %v1745
    %v2138 = vunpack.c.h.b16 %v1745
    %v2139 = vunpack.c.l.b16 %v1746
    %v2140 = vunpack.c.h.b16 %v1746
    %v2141 = vunpack.c.l.b16 %v1747
    %v2142 = vunpack.c.h.b16 %v1747
    %v2143 = vunpack.c.l.b16 %v1748
    %v2144 = vunpack.c.h.b16 %v1748
    %v2145 = vunpack.c.l.b16 %v1749
    %v2146 = vunpack.c.h.b16 %v1749
    %v2147 = vunpack.c.l.b16 %v1750
    %v2148 = vunpack.c.h.b16 %v1750
    %v2149 = vunpack.c.l.b16 %v1751
    %v2150 = vunpack.c.h.b16 %v1751
    %v2151 = vunpack.c.l.b16 %v1752
    %v2152 = vunpack.c.h.b16 %v1752
    %v2153 = vunpack.c.l.b16 %v1753
    %v2154 = vunpack.c.h.b16 %v1753
    %v2155 = vunpack.c.l.b16 %v1754
    %v2156 = vunpack.c.h.b16 %v1754
    %v2157 = vunpack.c.l.b16 %v1755
    %v2158 = vunpack.c.h.b16 %v1755
    %v2159 = vunpack.c.l.b16 %v1756
    %v2160 = vunpack.c.h.b16 %v1756
    %v2161 = vunpack.c.l.b16 %v1757
    %v2162 = vunpack.c.h.b16 %v1757
    %v2163 = vunpack.c.l.b16 %v1758
    %v2164 = vunpack.c.h.b16 %v1758
    %v2165 = vunpack.c.l.b16 %v1759
    %v2166 = vunpack.c.h.b16 %v1759
    %v2167 = vunpack.c.l.b16 %v1760
    %v2168 = vunpack.c.h.b16 %v1760
    %v2169 = vunpack.c.l.b16 %v1761
    %v2170 = vunpack.c.h.b16 %v1761
    %v2171 = vunpack.c.l.b16 %v1762
    %v2172 = vunpack.c.h.b16 %v1762
    %v2173 = vunpack.c.l.b16 %v1763
    %v2174 = vunpack.c.h.b16 %v1763
    %v2175 = vunpack.c.l.b16 %v1764
    %v2176 = vunpack.c.h.b16 %v1764
    %v2177 = vunpack.c.l.b16 %v1765
    %v2178 = vunpack.c.h.b16 %v1765
    %v2179 = vunpack.c.l.b16 %v1766
    %v2180 = vunpack.c.h.b16 %v1766
    %v2181 = vunpack.c.l.b16 %v1767
    %v2182 = vunpack.c.h.b16 %v1767
    %v2183 = vunpack.c.l.b16 %v1768
    %v2184 = vunpack.c.h.b16 %v1768
    %v2185 = vunpack.c.l.b16 %v1769
    %v2186 = vunpack.c.h.b16 %v1769
    %v2187 = vunpack.c.l.b16 %v1770
    %v2188 = vunpack.c.h.b16 %v1770
    %v2189 = vunpack.c.l.b16 %v1771
    %v2190 = vunpack.c.h.b16 %v1771
    %v2191 = vunpack.c.l.b16 %v1772
    %v2192 = vunpack.c.h.b16 %v1772
    %v2193 = vpack.c.b16 %v2003, %v2001
    %v2194 = vpack.c.b16 %v2004, %v2002
    %v2195 = vpack.c.b16 %v2007, %v2005
    %v2196 = vpack.c.b16 %v2008, %v2006
    %v2197 = vpack.c.b16 %v2011, %v2009
    %v2198 = vpack.c.b16 %v2012, %v2010
    %v2199 = vpack.c.b16 %v2015, %v2013
    %v2200 = vpack.c.b16 %v2016, %v2014
    %v2201 = vpack.c.b16 %v2019, %v2017
    %v2202 = vpack.c.b16 %v2020, %v2018
    %v2203 = vpack.c.b16 %v2023, %v2021
    %v2204 = vpack.c.b16 %v2024, %v2022
    %v2205 = vpack.c.b16 %v2027, %v2025
    %v2206 = vpack.c.b16 %v2028, %v2026
    %v2207 = vpack.c.b16 %v2031, %v2029
    %v2208 = vpack.c.b16 %v2032, %v2030
    %v2209 = vpack.c.b16 %v2035, %v2033
    %v2210 = vpack.c.b16 %v2036, %v2034
    %v2211 = vpack.c.b16 %v2039, %v2037
    %v2212 = vpack.c.b16 %v2040, %v2038
    %v2213 = vpack.c.b16 %v2043, %v2041
    %v2214 = vpack.c.b16 %v2044, %v2042
    %v2215 = vpack.c.b16 %v2047, %v2045
    %v2216 = vpack.c.b16 %v2048, %v2046
    %v2217 = vpack.c.b16 %v2051, %v2049
    %v2218 = vpack.c.b16 %v2052, %v2050
    %v2219 = vpack.c.b16 %v2055, %v2053
    %v2220 = vpack.c.b16 %v2056, %v2054
    %v2221 = vpack.c.b16 %v2059, %v2057
    %v2222 = vpack.c.b16 %v2060, %v2058
    %v2223 = vpack.c.b16 %v2063, %v2061
    %v2224 = vpack.c.b16 %v2064, %v2062
    %v2225 = vpack.c.b16 %v2067, %v2065
    %v2226 = vpack.c.b16 %v2068, %v2066
    %v2227 = vpack.c.b16 %v2071, %v2069
    %v2228 = vpack.c.b16 %v2072, %v2070
    %v2229 = vpack.c.b16 %v2075, %v2073
    %v2230 = vpack.c.b16 %v2076, %v2074
    %v2231 = vpack.c.b16 %v2079, %v2077
    %v2232 = vpack.c.b16 %v2080, %v2078
    %v2233 = vpack.c.b16 %v2083, %v2081
    %v2234 = vpack.c.b16 %v2084, %v2082
    %v2235 = vpack.c.b16 %v2087, %v2085
    %v2236 = vpack.c.b16 %v2088, %v2086
    %v2237 = vpack.c.b16 %v2091, %v2089
    %v2238 = vpack.c.b16 %v2092, %v2090
    %v2239 = vpack.c.b16 %v2095, %v2093
    %v2240 = vpack.c.b16 %v2096, %v2094
    %v2241 = vpack.c.b16 %v2099, %v2097
    %v2242 = vpack.c.b16 %v2100, %v2098
    %v2243 = vpack.c.b16 %v2103, %v2101
    %v2244 = vpack.c.b16 %v2104, %v2102
    %v2245 = vpack.c.b16 %v2107, %v2105
    %v2246 = vpack.c.b16 %v2108, %v2106
    %v2247 = vpack.c.b16 %v2111, %v2109
    %v2248 = vpack.c.b16 %v2112, %v2110
    %v2249 = vpack.c.b16 %v2115, %v2113
    %v2250 = vpack.c.b16 %v2116, %v2114
    %v2251 = vpack.c.b16 %v2119, %v2117
    %v2252 = vpack.c.b16 %v2120, %v2118
    %v2253 = vpack.c.b16 %v2123, %v2121
    %v2254 = vpack.c.b16 %v2124, %v2122
    %v2255 = vpack.c.b16 %v2127, %v2125
    %v2256 = vpack.c.b16 %v2128, %v2126
    %v2257 = vpack.c.b16 %v2131, %v2129
    %v2258 = vpack.c.b16 %v2132, %v2130
    %v2259 = vpack.c.b16 %v2135, %v2133
    %v2260 = vpack.c.b16 %v2136, %v2134
    %v2261 = vpack.c.b16 %v2139, %v2137
    %v2262 = vpack.c.b16 %v2140, %v2138
    %v2263 = vpack.c.b16 %v2143, %v2141
    %v2264 = vpack.c.b16 %v2144, %v2142
    %v2265 = vpack.c.b16 %v2147, %v2145
    %v2266 = vpack.c.b16 %v2148, %v2146
    %v2267 = vpack.c.b16 %v2151, %v2149
    %v2268 = vpack.c.b16 %v2152, %v2150
    %v2269 = vpack.c.b16 %v2155, %v2153
    %v2270 = vpack.c.b16 %v2156, %v2154
    %v2271 = vpack.c.b16 %v2159, %v2157
    %v2272 = vpack.c.b16 %v2160, %v2158
    %v2273 = vpack.c.b16 %v2163, %v2161
    %v2274 = vpack.c.b16 %v2164, %v2162
    %v2275 = vpack.c.b16 %v2167, %v2165
    %v2276 = vpack.c.b16 %v2168, %v2166
    %v2277 = vpack.c.b16 %v2171, %v2169
    %v2278 = vpack.c.b16 %v2172, %v2170
    %v2279 = vpack.c.b16 %v2175, %v2173
    %v2280 = vpack.c.b16 %v2176, %v2174
    %v2281 = vpack.c.b16 %v2179, %v2177
    %v2282 = vpack.c.b16 %v2180, %v2178
    %v2283 = vpack.c.b16 %v2183, %v2181
    %v2284 = vpack.c.b16 %v2184, %v2182
    %v2285 = vpack.c.b16 %v2187, %v2185
    %v2286 = vpack.c.b16 %v2188, %v2186
    %v2287 = vpack.c.b16 %v2191, %v2189
    %v2288 = vpack.c.b16 %v2192, %v2190
    %2385 = vmatpush.bf16.msra.mxu0 %v2207
    %2386 = vmatpush.bf16.msra.mxu0 %v2205
    %2387 = vmatpush.bf16.msra.mxu0 %v2203
    %2388 = vmatpush.bf16.msra.mxu0 %v2201
    %2389 = vmatpush.bf16.msra.mxu0 %v2199
    %2390 = vmatpush.bf16.msra.mxu0 %v2197
    %2391 = vmatpush.bf16.msra.mxu0 %v2195
    %2392 = vmatpush.bf16.msra.mxu0 %v2193
    %2393 = vmatmul.bf16.gmra.mxu0 %v1893
    %v2394 = vpop.f32.mrf.mxu0
    %v2395 = vadd.f32 %v1901, %v2394
    %v2396 = vpop.f32.mrf.mxu0
    %v2397 = vadd.f32 %v1901, %v2396
    %2398 = vdwg.mxu0
    %2399 = vmatpush.bf16.msra.mxu0 %v2223
    %2400 = vmatpush.bf16.msra.mxu0 %v2221
    %2401 = vmatpush.bf16.msra.mxu0 %v2219
    %2402 = vmatpush.bf16.msra.mxu0 %v2217
    %2403 = vmatpush.bf16.msra.mxu0 %v2215
    %2404 = vmatpush.bf16.msra.mxu0 %v2213
    %2405 = vmatpush.bf16.msra.mxu0 %v2211
    %2406 = vmatpush.bf16.msra.mxu0 %v2209
    %2407 = vmatmul.bf16.gmra.mxu0 %v1894
    %v2408 = vpop.f32.mrf.mxu0
    %v2409 = vadd.f32 %v2395, %v2408
    %v2410 = vpop.f32.mrf.mxu0
    %v2411 = vadd.f32 %v2397, %v2410
    %2412 = vdwg.mxu0
    %2413 = vmatpush.bf16.msra.mxu0 %v2239
    %2414 = vmatpush.bf16.msra.mxu0 %v2237
    %2415 = vmatpush.bf16.msra.mxu0 %v2235
    %2416 = vmatpush.bf16.msra.mxu0 %v2233
    %2417 = vmatpush.bf16.msra.mxu0 %v2231
    %2418 = vmatpush.bf16.msra.mxu0 %v2229
    %2419 = vmatpush.bf16.msra.mxu0 %v2227
    %2420 = vmatpush.bf16.msra.mxu0 %v2225
    %2421 = vmatmul.bf16.gmra.mxu0 %v1895
    %v2422 = vpop.f32.mrf.mxu0
    %v2423 = vadd.f32 %v2409, %v2422
    %v2424 = vpop.f32.mrf.mxu0
    %v2425 = vadd.f32 %v2411, %v2424
    %2426 = vdwg.mxu0
    %2427 = vmatpush.bf16.msra.mxu0 %v2255
    %2428 = vmatpush.bf16.msra.mxu0 %v2253
    %2429 = vmatpush.bf16.msra.mxu0 %v2251
    %2430 = vmatpush.bf16.msra.mxu0 %v2249
    %2431 = vmatpush.bf16.msra.mxu0 %v2247
    %2432 = vmatpush.bf16.msra.mxu0 %v2245
    %2433 = vmatpush.bf16.msra.mxu0 %v2243
    %2434 = vmatpush.bf16.msra.mxu0 %v2241
    %2435 = vmatmul.bf16.gmra.mxu0 %v1896
    %v2436 = vpop.f32.mrf.mxu0
    %v2437 = vadd.f32 %v2423, %v2436
    %v2438 = vpop.f32.mrf.mxu0
    %v2439 = vadd.f32 %v2425, %v2438
    %2440 = vdwg.mxu0
    %2441 = vmatpush.bf16.msra.mxu0 %v2271
    %2442 = vmatpush.bf16.msra.mxu0 %v2269
    %2443 = vmatpush.bf16.msra.mxu0 %v2267
    %2444 = vmatpush.bf16.msra.mxu0 %v2265
    %2445 = vmatpush.bf16.msra.mxu0 %v2263
    %2446 = vmatpush.bf16.msra.mxu0 %v2261
    %2447 = vmatpush.bf16.msra.mxu0 %v2259
    %2448 = vmatpush.bf16.msra.mxu0 %v2257
    %2449 = vmatmul.bf16.gmra.mxu0 %v1897
    %v2450 = vpop.f32.mrf.mxu0
    %v2451 = vadd.f32 %v2437, %v2450
    %v2452 = vpop.f32.mrf.mxu0
    %v2453 = vadd.f32 %v2439, %v2452
    %2454 = vdwg.mxu0
    %2455 = vmatpush.bf16.msra.mxu0 %v2287
    %2456 = vmatpush.bf16.msra.mxu0 %v2285
    %2457 = vmatpush.bf16.msra.mxu0 %v2283
    %2458 = vmatpush.bf16.msra.mxu0 %v2281
    %2459 = vmatpush.bf16.msra.mxu0 %v2279
    %2460 = vmatpush.bf16.msra.mxu0 %v2277
    %2461 = vmatpush.bf16.msra.mxu0 %v2275
    %2462 = vmatpush.bf16.msra.mxu0 %v2273
    %2463 = vmatmul.bf16.gmra.mxu0 %v1898
    %v2464 = vpop.f32.mrf.mxu0
    %v2465 = vadd.f32 %v2451, %v2464
    %v2466 = vpop.f32.mrf.mxu0
    %v2467 = vadd.f32 %v2453, %v2466
    %2468 = vdwg.mxu0
    %2469 = vmatpush.bf16.msra.mxu0 %v2208
    %2470 = vmatpush.bf16.msra.mxu0 %v2206
    %2471 = vmatpush.bf16.msra.mxu0 %v2204
    %2472 = vmatpush.bf16.msra.mxu0 %v2202
    %2473 = vmatpush.bf16.msra.mxu0 %v2200
    %2474 = vmatpush.bf16.msra.mxu0 %v2198
    %2475 = vmatpush.bf16.msra.mxu0 %v2196
    %2476 = vmatpush.bf16.msra.mxu0 %v2194
    %2477 = vmatmul.bf16.gmra.mxu0 %v1893
    %v2478 = vpop.f32.mrf.mxu0
    %v2479 = vadd.f32 %v1902, %v2478
    %v2480 = vpop.f32.mrf.mxu0
    %v2481 = vadd.f32 %v1902, %v2480
    %2482 = vdwg.mxu0
    %2483 = vmatpush.bf16.msra.mxu0 %v2224
    %2484 = vmatpush.bf16.msra.mxu0 %v2222
    %2485 = vmatpush.bf16.msra.mxu0 %v2220
    %2486 = vmatpush.bf16.msra.mxu0 %v2218
    %2487 = vmatpush.bf16.msra.mxu0 %v2216
    %2488 = vmatpush.bf16.msra.mxu0 %v2214
    %2489 = vmatpush.bf16.msra.mxu0 %v2212
    %2490 = vmatpush.bf16.msra.mxu0 %v2210
    %2491 = vmatmul.bf16.gmra.mxu0 %v1894
    %v2492 = vpop.f32.mrf.mxu0
    %v2493 = vadd.f32 %v2479, %v2492
    %v2494 = vpop.f32.mrf.mxu0
    %v2495 = vadd.f32 %v2481, %v2494
    %2496 = vdwg.mxu0
    %2497 = vmatpush.bf16.msra.mxu0 %v2240
    %2498 = vmatpush.bf16.msra.mxu0 %v2238
    %2499 = vmatpush.bf16.msra.mxu0 %v2236
    %2500 = vmatpush.bf16.msra.mxu0 %v2234
    %2501 = vmatpush.bf16.msra.mxu0 %v2232
    %2502 = vmatpush.bf16.msra.mxu0 %v2230
    %2503 = vmatpush.bf16.msra.mxu0 %v2228
    %2504 = vmatpush.bf16.msra.mxu0 %v2226
    %2505 = vmatmul.bf16.gmra.mxu0 %v1895
    %v2506 = vpop.f32.mrf.mxu0
    %v2507 = vadd.f32 %v2493, %v2506
    %v2508 = vpop.f32.mrf.mxu0
    %v2509 = vadd.f32 %v2495, %v2508
    %2510 = vdwg.mxu0
    %2511 = vmatpush.bf16.msra.mxu0 %v2256
    %2512 = vmatpush.bf16.msra.mxu0 %v2254
    %2513 = vmatpush.bf16.msra.mxu0 %v2252
    %2514 = vmatpush.bf16.msra.mxu0 %v2250
    %2515 = vmatpush.bf16.msra.mxu0 %v2248
    %2516 = vmatpush.bf16.msra.mxu0 %v2246
    %2517 = vmatpush.bf16.msra.mxu0 %v2244
    %2518 = vmatpush.bf16.msra.mxu0 %v2242
    %2519 = vmatmul.bf16.gmra.mxu0 %v1896
    %v2520 = vpop.f32.mrf.mxu0
    %v2521 = vadd.f32 %v2507, %v2520
    %v2522 = vpop.f32.mrf.mxu0
    %v2523 = vadd.f32 %v2509, %v2522
    %2524 = vdwg.mxu0
    %2525 = vmatpush.bf16.msra.mxu0 %v2272
    %2526 = vmatpush.bf16.msra.mxu0 %v2270
    %2527 = vmatpush.bf16.msra.mxu0 %v2268
    %2528 = vmatpush.bf16.msra.mxu0 %v2266
    %2529 = vmatpush.bf16.msra.mxu0 %v2264
    %2530 = vmatpush.bf16.msra.mxu0 %v2262
    %2531 = vmatpush.bf16.msra.mxu0 %v2260
    %2532 = vmatpush.bf16.msra.mxu0 %v2258
    %2533 = vmatmul.bf16.gmra.mxu0 %v1897
    %v2534 = vpop.f32.mrf.mxu0
    %v2535 = vadd.f32 %v2521, %v2534
    %v2536 = vpop.f32.mrf.mxu0
    %v2537 = vadd.f32 %v2523, %v2536
    %2538 = vdwg.mxu0
    %2539 = vmatpush.bf16.msra.mxu0 %v2288
    %2540 = vmatpush.bf16.msra.mxu0 %v2286
    %2541 = vmatpush.bf16.msra.mxu0 %v2284
    %2542 = vmatpush.bf16.msra.mxu0 %v2282
    %2543 = vmatpush.bf16.msra.mxu0 %v2280
    %2544 = vmatpush.bf16.msra.mxu0 %v2278
    %2545 = vmatpush.bf16.msra.mxu0 %v2276
    %2546 = vmatpush.bf16.msra.mxu0 %v2274
    %2547 = vmatmul.bf16.gmra.mxu0 %v1898
    %v2548 = vpop.f32.mrf.mxu0
    %v2549 = vadd.f32 %v2535, %v2548
    %v2550 = vpop.f32.mrf.mxu0
    %v2551 = vadd.f32 %v2537, %v2550
    %2552 = vdwg.mxu0
    %v2553 = vmax.f32 %v2465, 0.0
    %v2554 = vmax.f32 %v2549, 0.0
    %v2555 = vmax.f32 %v2467, 0.0
    %v2556 = vmax.f32 %v2551, 0.0
    %v2557 = vld [vmem:[#allocation15] sm:$0xff]
    %v2558 = vld [vmem:[#allocation15 + $0x8] sm:$0xff]
    %v2559 = vld [vmem:[#allocation15 + $0x10] sm:$0xff]
    %v2560 = vld [vmem:[#allocation15 + $0x18] sm:$0xff]
    %v2561 = vld [vmem:[#allocation15 + $0x20] sm:$0xff]
    %v2562 = vld [vmem:[#allocation15 + $0x28] sm:$0xff]
    %v2563 = vld [vmem:[#allocation15 + $0x30] sm:$0xff]
    %v2564 = vld [vmem:[#allocation15 + $0x38] sm:$0xff]
    %v2565 = vld [vmem:[#allocation15 + $0x40] sm:$0xff]
    %v2566 = vld [vmem:[#allocation15 + $0x48] sm:$0xff]
    %v2567 = vld [vmem:[#allocation15 + $0x50] sm:$0xff]
    %v2568 = vld [vmem:[#allocation15 + $0x58] sm:$0xff]
    %v2569 = vld [vmem:[#allocation15 + $0x60] sm:$0xff]
    %v2570 = vld [vmem:[#allocation15 + $0x68] sm:$0xff]
    %v2571 = vld [vmem:[#allocation15 + $0x70] sm:$0xff]
    %v2572 = vld [vmem:[#allocation15 + $0x78] sm:$0xff]
    %v2573 = vld [vmem:[#allocation15 + $0x80] sm:$0xff]
    %v2574 = vld [vmem:[#allocation15 + $0x88] sm:$0xff]
    %v2575 = vld [vmem:[#allocation15 + $0x90] sm:$0xff]
    %v2576 = vld [vmem:[#allocation15 + $0x98] sm:$0xff]
    %v2577 = vld [vmem:[#allocation15 + $0xa0] sm:$0xff]
    %v2578 = vld [vmem:[#allocation15 + $0xa8] sm:$0xff]
    %v2579 = vld [vmem:[#allocation15 + $0xb0] sm:$0xff]
    %v2580 = vld [vmem:[#allocation15 + $0xb8] sm:$0xff]
    %v2581 = vld [vmem:[#allocation15 + $0xc0] sm:$0xff]
    %v2582 = vld [vmem:[#allocation15 + $0xc8] sm:$0xff]
    %v2583 = vld [vmem:[#allocation15 + $0xd0] sm:$0xff]
    %v2584 = vld [vmem:[#allocation15 + $0xd8] sm:$0xff]
    %v2585 = vld [vmem:[#allocation15 + $0xe0] sm:$0xff]
    %v2586 = vld [vmem:[#allocation15 + $0xe8] sm:$0xff]
    %v2587 = vld [vmem:[#allocation15 + $0xf0] sm:$0xff]
    %v2588 = vld [vmem:[#allocation15 + $0xf8] sm:$0xff]
    %v2589 = vld [vmem:[#allocation16] sm:$0xff]
    %v2590 = vld [vmem:[#allocation16 + $0x8] sm:$0xff]
    %v2591 = vld [vmem:[#allocation16 + $0x10] sm:$0xff]
    %v2592 = vld [vmem:[#allocation16 + $0x18] sm:$0xff]
    %v2593 = vld [vmem:[#allocation16 + $0x20] sm:$0xff]
    %v2594 = vld [vmem:[#allocation16 + $0x28] sm:$0xff]
    %v2595 = vld [vmem:[#allocation16 + $0x30] sm:$0xff]
    %v2596 = vld [vmem:[#allocation16 + $0x38] sm:$0xff]
    %v2597 = vld [vmem:[%s23] sm:$0x1]
    %v2598 = vld [vmem:[%s25] sm:$0x1]
    %v2599 = vadd.f32 %v2553, %v2555
    %v2600 = vrot.slane %v2599, 4
    %v2601 = vadd.f32 %v2599, %v2600
    %v2602 = vrot.slane %v2601, 2
    %v2603 = vadd.f32 %v2601, %v2602
    %v2604 = vrot.slane %v2603, 1
    %v2605 = vadd.f32 %v2603, %v2604
    %v2606 = vadd.f32 %v2554, %v2556
    %v2607 = vrot.slane %v2606, 4
    %v2608 = vadd.f32 %v2606, %v2607
    %v2609 = vrot.slane %v2608, 2
    %v2610 = vadd.f32 %v2608, %v2609
    %v2611 = vrot.slane %v2610, 1
    %v2612 = vadd.f32 %v2610, %v2611
    %2613 = vmatpush.msra.mxu0 %v2572
    %2614 = vmatpush.msra.mxu0 %v2571
    %2615 = vmatpush.msra.mxu0 %v2570
    %2616 = vmatpush.msra.mxu0 %v2569
    %2617 = vmatpush.msra.mxu0 %v2568
    %2618 = vmatpush.msra.mxu0 %v2567
    %2619 = vmatpush.msra.mxu0 %v2566
    %2620 = vmatpush.msra.mxu0 %v2565
    %2621 = vmatpush.msra.mxu0 %v2564
    %2622 = vmatpush.msra.mxu0 %v2563
    %2623 = vmatpush.msra.mxu0 %v2562
    %2624 = vmatpush.msra.mxu0 %v2561
    %2625 = vmatpush.msra.mxu0 %v2560
    %2626 = vmatpush.msra.mxu0 %v2559
    %2627 = vmatpush.msra.mxu0 %v2558
    %2628 = vmatpush.msra.mxu0 %v2557
    %2629 = vmatmul.f32.gmra.mxu0 %v2605
    %v2630 = vpop.f32.mrf.mxu0
    %v2631 = vadd.f32 0.0, %v2630
    %2632 = vdwg.mxu0
    %2633 = vmatpush.msra.mxu0 %v2588
    %2634 = vmatpush.msra.mxu0 %v2587
    %2635 = vmatpush.msra.mxu0 %v2586
    %2636 = vmatpush.msra.mxu0 %v2585
    %2637 = vmatpush.msra.mxu0 %v2584
    %2638 = vmatpush.msra.mxu0 %v2583
    %2639 = vmatpush.msra.mxu0 %v2582
    %2640 = vmatpush.msra.mxu0 %v2581
    %2641 = vmatpush.msra.mxu0 %v2580
    %2642 = vmatpush.msra.mxu0 %v2579
    %2643 = vmatpush.msra.mxu0 %v2578
    %2644 = vmatpush.msra.mxu0 %v2577
    %2645 = vmatpush.msra.mxu0 %v2576
    %2646 = vmatpush.msra.mxu0 %v2575
    %2647 = vmatpush.msra.mxu0 %v2574
    %2648 = vmatpush.msra.mxu0 %v2573
    %2649 = vmatmul.f32.gmra.mxu0 %v2612
    %v2650 = vpop.f32.mrf.mxu0
    %v2651 = vadd.f32 %v2631, %v2650
    %2652 = vdwg.mxu0
    %v2653 = vmul.f32 %v2651, 0.0078125
    %v2655 = vsel %vm1212, %v2653, 0
    %2657 = vmatpush.msra.mxu0 0.0
    %2658 = vmatpush.msra.mxu0 0.0
    %2659 = vmatpush.msra.mxu0 0.0
    %2660 = vmatpush.msra.mxu0 0.0
    %2661 = vmatpush.msra.mxu0 0.0
    %2662 = vmatpush.msra.mxu0 0.0
    %2663 = vmatpush.msra.mxu0 0.0
    %2664 = vmatpush.msra.mxu0 0.0
    %2665 = vmatpush.msra.mxu0 0.0
    %2666 = vmatpush.msra.mxu0 0.0
    %2667 = vmatpush.msra.mxu0 0.0
    %2668 = vmatpush.msra.mxu0 0.0
    %2669 = vmatpush.msra.mxu0 %v2595
    %2670 = vmatpush.msra.mxu0 %v2593
    %2671 = vmatpush.msra.mxu0 %v2591
    %2672 = vmatpush.msra.mxu0 %v2589
    %2673 = vmatmul.f32.gmra.mxu0 %v2655
    %v2674 = vpop.f32.mrf.mxu0
    %v2675 = vadd.f32 0.0, %v2674
    %2676 = vdwg.mxu0
    %2677 = vmatpush.msra.mxu0 0.0
    %2678 = vmatpush.msra.mxu0 0.0
    %2679 = vmatpush.msra.mxu0 0.0
    %2680 = vmatpush.msra.mxu0 0.0
    %2681 = vmatpush.msra.mxu0 0.0
    %2682 = vmatpush.msra.mxu0 0.0
    %2683 = vmatpush.msra.mxu0 0.0
    %2684 = vmatpush.msra.mxu0 0.0
    %2685 = vmatpush.msra.mxu0 0.0
    %2686 = vmatpush.msra.mxu0 0.0
    %2687 = vmatpush.msra.mxu0 0.0
    %2688 = vmatpush.msra.mxu0 0.0
    %2689 = vmatpush.msra.mxu0 %v2596
    %2690 = vmatpush.msra.mxu0 %v2594
    %2691 = vmatpush.msra.mxu0 %v2592
    %2692 = vmatpush.msra.mxu0 %v2590
    %2693 = vmatmul.f32.gmra.mxu0 %v2655
    %v2694 = vpop.f32.mrf.mxu0
    %v2695 = vadd.f32 0.0, %v2694
    %2696 = vdwg.mxu0
    %v2697 = vperm.slane %v2675, 0
    %v2698 = vperm.slane %v2695, 0
    %v2699 = vsub.f32 %v2553, %v2697
    %v2700 = vsub.f32 %v2554, %v2698
    %v2701 = vsub.f32 %v2555, %v2697
    %v2702 = vsub.f32 %v2556, %v2698
    %v2703 = vmul.f32 %v2699, %v2699
    %v2704 = vmul.f32 %v2700, %v2700
    %v2705 = vmul.f32 %v2701, %v2701
    %v2706 = vmul.f32 %v2702, %v2702
    %v2707 = vadd.f32 %v2703, %v2705
    %v2708 = vrot.slane %v2707, 4
    %v2709 = vadd.f32 %v2707, %v2708
    %v2710 = vrot.slane %v2709, 2
    %v2711 = vadd.f32 %v2709, %v2710
    %v2712 = vrot.slane %v2711, 1
    %v2713 = vadd.f32 %v2711, %v2712
    %v2714 = vadd.f32 %v2704, %v2706
    %v2715 = vrot.slane %v2714, 4
    %v2716 = vadd.f32 %v2714, %v2715
    %v2717 = vrot.slane %v2716, 2
    %v2718 = vadd.f32 %v2716, %v2717
    %v2719 = vrot.slane %v2718, 1
    %v2720 = vadd.f32 %v2718, %v2719
    %2721 = vmatpush.msra.mxu0 %v2572
    %2722 = vmatpush.msra.mxu0 %v2571
    %2723 = vmatpush.msra.mxu0 %v2570
    %2724 = vmatpush.msra.mxu0 %v2569
    %2725 = vmatpush.msra.mxu0 %v2568
    %2726 = vmatpush.msra.mxu0 %v2567
    %2727 = vmatpush.msra.mxu0 %v2566
    %2728 = vmatpush.msra.mxu0 %v2565
    %2729 = vmatpush.msra.mxu0 %v2564
    %2730 = vmatpush.msra.mxu0 %v2563
    %2731 = vmatpush.msra.mxu0 %v2562
    %2732 = vmatpush.msra.mxu0 %v2561
    %2733 = vmatpush.msra.mxu0 %v2560
    %2734 = vmatpush.msra.mxu0 %v2559
    %2735 = vmatpush.msra.mxu0 %v2558
    %2736 = vmatpush.msra.mxu0 %v2557
    %2737 = vmatmul.f32.gmra.mxu0 %v2713
    %v2738 = vpop.f32.mrf.mxu0
    %v2739 = vadd.f32 0.0, %v2738
    %2740 = vdwg.mxu0
    %2741 = vmatpush.msra.mxu0 %v2588
    %2742 = vmatpush.msra.mxu0 %v2587
    %2743 = vmatpush.msra.mxu0 %v2586
    %2744 = vmatpush.msra.mxu0 %v2585
    %2745 = vmatpush.msra.mxu0 %v2584
    %2746 = vmatpush.msra.mxu0 %v2583
    %2747 = vmatpush.msra.mxu0 %v2582
    %2748 = vmatpush.msra.mxu0 %v2581
    %2749 = vmatpush.msra.mxu0 %v2580
    %2750 = vmatpush.msra.mxu0 %v2579
    %2751 = vmatpush.msra.mxu0 %v2578
    %2752 = vmatpush.msra.mxu0 %v2577
    %2753 = vmatpush.msra.mxu0 %v2576
    %2754 = vmatpush.msra.mxu0 %v2575
    %2755 = vmatpush.msra.mxu0 %v2574
    %2756 = vmatpush.msra.mxu0 %v2573
    %2757 = vmatmul.f32.gmra.mxu0 %v2720
    %v2758 = vpop.f32.mrf.mxu0
    %v2759 = vadd.f32 %v2739, %v2758
    %2760 = vdwg.mxu0
    %v2761 = vmul.f32 %v2759, 0.0078125
    %v2762 = vadd.f32 %v2761, 1e-05
    %v2763 = vrsqrt.pop %v2762
    %v2764 = vmul.f32 %v2763, %v2762
    %v2765 = vmul.f32 %v2764, %v2763
    %v2766 = vmul.f32 0.5, %v2765
    %v2767 = vsub.f32 1.5, %v2766
    %v2768 = vmul.f32 %v2763, %v2767
    %vm2769 = vweird.f32 %v2762
    %vm2770 = vweird.f32 %v2763
    %vm2771 = vmor %vm2769, %vm2770
    %v2772 = vsel %vm2771, %v2763, %v2768
    %v2773 = vmul.f32 %v2597, %v2772
    %v2775 = vsel %vm1212, %v2773, 0
    %2777 = vmatpush.msra.mxu0 0.0
    %2778 = vmatpush.msra.mxu0 0.0
    %2779 = vmatpush.msra.mxu0 0.0
    %2780 = vmatpush.msra.mxu0 0.0
    %2781 = vmatpush.msra.mxu0 0.0
    %2782 = vmatpush.msra.mxu0 0.0
    %2783 = vmatpush.msra.mxu0 0.0
    %2784 = vmatpush.msra.mxu0 0.0
    %2785 = vmatpush.msra.mxu0 0.0
    %2786 = vmatpush.msra.mxu0 0.0
    %2787 = vmatpush.msra.mxu0 0.0
    %2788 = vmatpush.msra.mxu0 0.0
    %2789 = vmatpush.msra.mxu0 %v2595
    %2790 = vmatpush.msra.mxu0 %v2593
    %2791 = vmatpush.msra.mxu0 %v2591
    %2792 = vmatpush.msra.mxu0 %v2589
    %2793 = vmatmul.f32.gmra.mxu0 %v2775
    %v2794 = vpop.f32.mrf.mxu0
    %v2795 = vadd.f32 0.0, %v2794
    %2796 = vdwg.mxu0
    %2797 = vmatpush.msra.mxu0 0.0
    %2798 = vmatpush.msra.mxu0 0.0
    %2799 = vmatpush.msra.mxu0 0.0
    %2800 = vmatpush.msra.mxu0 0.0
    %2801 = vmatpush.msra.mxu0 0.0
    %2802 = vmatpush.msra.mxu0 0.0
    %2803 = vmatpush.msra.mxu0 0.0
    %2804 = vmatpush.msra.mxu0 0.0
    %2805 = vmatpush.msra.mxu0 0.0
    %2806 = vmatpush.msra.mxu0 0.0
    %2807 = vmatpush.msra.mxu0 0.0
    %2808 = vmatpush.msra.mxu0 0.0
    %2809 = vmatpush.msra.mxu0 %v2596
    %2810 = vmatpush.msra.mxu0 %v2594
    %2811 = vmatpush.msra.mxu0 %v2592
    %2812 = vmatpush.msra.mxu0 %v2590
    %2813 = vmatmul.f32.gmra.mxu0 %v2775
    %v2814 = vpop.f32.mrf.mxu0
    %v2815 = vadd.f32 0.0, %v2814
    %2816 = vdwg.mxu0
    %v2817 = vperm.slane %v2795, 0
    %v2818 = vperm.slane %v2815, 0
    %v2819 = vmul.f32 %v2699, %v2817
    %v2820 = vmul.f32 %v2700, %v2818
    %v2821 = vmul.f32 %v2701, %v2817
    %v2822 = vmul.f32 %v2702, %v2818
    %v2824 = vsel %vm1212, %v2598, 0
    %2826 = vmatpush.msra.mxu0 0.0
    %2827 = vmatpush.msra.mxu0 0.0
    %2828 = vmatpush.msra.mxu0 0.0
    %2829 = vmatpush.msra.mxu0 0.0
    %2830 = vmatpush.msra.mxu0 0.0
    %2831 = vmatpush.msra.mxu0 0.0
    %2832 = vmatpush.msra.mxu0 0.0
    %2833 = vmatpush.msra.mxu0 0.0
    %2834 = vmatpush.msra.mxu0 0.0
    %2835 = vmatpush.msra.mxu0 0.0
    %2836 = vmatpush.msra.mxu0 0.0
    %2837 = vmatpush.msra.mxu0 0.0
    %2838 = vmatpush.msra.mxu0 %v2595
    %2839 = vmatpush.msra.mxu0 %v2593
    %2840 = vmatpush.msra.mxu0 %v2591
    %2841 = vmatpush.msra.mxu0 %v2589
    %2842 = vmatmul.f32.gmra.mxu0 %v2824
    %v2843 = vpop.f32.mrf.mxu0
    %v2844 = vadd.f32 0.0, %v2843
    %2845 = vdwg.mxu0
    %2846 = vmatpush.msra.mxu0 0.0
    %2847 = vmatpush.msra.mxu0 0.0
    %2848 = vmatpush.msra.mxu0 0.0
    %2849 = vmatpush.msra.mxu0 0.0
    %2850 = vmatpush.msra.mxu0 0.0
    %2851 = vmatpush.msra.mxu0 0.0
    %2852 = vmatpush.msra.mxu0 0.0
    %2853 = vmatpush.msra.mxu0 0.0
    %2854 = vmatpush.msra.mxu0 0.0
    %2855 = vmatpush.msra.mxu0 0.0
    %2856 = vmatpush.msra.mxu0 0.0
    %2857 = vmatpush.msra.mxu0 0.0
    %2858 = vmatpush.msra.mxu0 %v2596
    %2859 = vmatpush.msra.mxu0 %v2594
    %2860 = vmatpush.msra.mxu0 %v2592
    %2861 = vmatpush.msra.mxu0 %v2590
    %2862 = vmatmul.f32.gmra.mxu0 %v2824
    %v2863 = vpop.f32.mrf.mxu0
    %v2864 = vadd.f32 0.0, %v2863
    %2865 = vdwg.mxu0
    %v2866 = vperm.slane %v2844, 0
    %v2867 = vperm.slane %v2864, 0
    %v2868 = vadd.f32 %v2819, %v2866
    %v2869 = vadd.f32 %v2820, %v2867
    %v2870 = vadd.f32 %v2821, %v2866
    %v2871 = vadd.f32 %v2822, %v2867
    %v2872 = vld [vmem:[#allocation19] sm:$0xff]
    %v2873 = vld [vmem:[#allocation19 + $0x8] sm:$0xff]
    %v2874 = vld [vmem:[#allocation19 + $0x10] sm:$0xff]
    %v2875 = vld [vmem:[#allocation19 + $0x18] sm:$0xff]
    %v2876 = vld [vmem:[#allocation19 + $0x20] sm:$0xff]
    %v2877 = vld [vmem:[#allocation19 + $0x28] sm:$0xff]
    %v2878 = vld [vmem:[#allocation19 + $0x30] sm:$0xff]
    %v2879 = vld [vmem:[#allocation19 + $0x38] sm:$0xff]
    %v2880 = vld [vmem:[#allocation19 + $0x40] sm:$0xff]
    %v2881 = vld [vmem:[#allocation19 + $0x48] sm:$0xff]
    %v2882 = vld [vmem:[#allocation19 + $0x50] sm:$0xff]
    %v2883 = vld [vmem:[#allocation19 + $0x58] sm:$0xff]
    %v2884 = vld [vmem:[#allocation19 + $0x60] sm:$0xff]
    %v2885 = vld [vmem:[#allocation19 + $0x68] sm:$0xff]
    %v2886 = vld [vmem:[#allocation19 + $0x70] sm:$0xff]
    %v2887 = vld [vmem:[#allocation19 + $0x78] sm:$0xff]
    %v2888 = vld [vmem:[#allocation19 + $0x80] sm:$0xff]
    %v2889 = vld [vmem:[#allocation19 + $0x88] sm:$0xff]
    %v2890 = vld [vmem:[#allocation19 + $0x90] sm:$0xff]
    %v2891 = vld [vmem:[#allocation19 + $0x98] sm:$0xff]
    %v2892 = vld [vmem:[#allocation19 + $0xa0] sm:$0xff]
    %v2893 = vld [vmem:[#allocation19 + $0xa8] sm:$0xff]
    %v2894 = vld [vmem:[#allocation19 + $0xb0] sm:$0xff]
    %v2895 = vld [vmem:[#allocation19 + $0xb8] sm:$0xff]
    %v2896 = vld [vmem:[#allocation19 + $0xc0] sm:$0xff]
    %v2897 = vld [vmem:[#allocation19 + $0xc8] sm:$0xff]
    %v2898 = vld [vmem:[#allocation19 + $0xd0] sm:$0xff]
    %v2899 = vld [vmem:[#allocation19 + $0xd8] sm:$0xff]
    %v2900 = vld [vmem:[#allocation19 + $0xe0] sm:$0xff]
    %v2901 = vld [vmem:[#allocation19 + $0xe8] sm:$0xff]
    %v2902 = vld [vmem:[#allocation19 + $0xf0] sm:$0xff]
    %v2903 = vld [vmem:[#allocation19 + $0xf8] sm:$0xff]
    %v2904 = vld [vmem:[#allocation19 + $0x100] sm:$0xff]
    %v2905 = vld [vmem:[#allocation19 + $0x108] sm:$0xff]
    %v2906 = vld [vmem:[#allocation19 + $0x110] sm:$0xff]
    %v2907 = vld [vmem:[#allocation19 + $0x118] sm:$0xff]
    %v2908 = vld [vmem:[#allocation19 + $0x120] sm:$0xff]
    %v2909 = vld [vmem:[#allocation19 + $0x128] sm:$0xff]
    %v2910 = vld [vmem:[#allocation19 + $0x130] sm:$0xff]
    %v2911 = vld [vmem:[#allocation19 + $0x138] sm:$0xff]
    %v2912 = vld [vmem:[#allocation19 + $0x140] sm:$0xff]
    %v2913 = vld [vmem:[#allocation19 + $0x148] sm:$0xff]
    %v2914 = vld [vmem:[#allocation19 + $0x150] sm:$0xff]
    %v2915 = vld [vmem:[#allocation19 + $0x158] sm:$0xff]
    %v2916 = vld [vmem:[#allocation19 + $0x160] sm:$0xff]
    %v2917 = vld [vmem:[#allocation19 + $0x168] sm:$0xff]
    %v2918 = vld [vmem:[#allocation19 + $0x170] sm:$0xff]
    %v2919 = vld [vmem:[#allocation19 + $0x178] sm:$0xff]
    %v2920 = vld [vmem:[#allocation19 + $0x180] sm:$0xff]
    %v2921 = vld [vmem:[#allocation19 + $0x188] sm:$0xff]
    %v2922 = vld [vmem:[#allocation19 + $0x190] sm:$0xff]
    %v2923 = vld [vmem:[#allocation19 + $0x198] sm:$0xff]
    %v2924 = vld [vmem:[#allocation19 + $0x1a0] sm:$0xff]
    %v2925 = vld [vmem:[#allocation19 + $0x1a8] sm:$0xff]
    %v2926 = vld [vmem:[#allocation19 + $0x1b0] sm:$0xff]
    %v2927 = vld [vmem:[#allocation19 + $0x1b8] sm:$0xff]
    %v2928 = vld [vmem:[#allocation19 + $0x1c0] sm:$0xff]
    %v2929 = vld [vmem:[#allocation19 + $0x1c8] sm:$0xff]
    %v2930 = vld [vmem:[#allocation19 + $0x1d0] sm:$0xff]
    %v2931 = vld [vmem:[#allocation19 + $0x1d8] sm:$0xff]
    %v2932 = vld [vmem:[#allocation19 + $0x1e0] sm:$0xff]
    %v2933 = vld [vmem:[#allocation19 + $0x1e8] sm:$0xff]
    %v2934 = vld [vmem:[#allocation19 + $0x1f0] sm:$0xff]
    %v2935 = vld [vmem:[#allocation19 + $0x1f8] sm:$0xff]
    %v2936 = vld [vmem:[#allocation19 + $0x200] sm:$0xff]
    %v2937 = vld [vmem:[#allocation19 + $0x208] sm:$0xff]
    %v2938 = vld [vmem:[#allocation19 + $0x210] sm:$0xff]
    %v2939 = vld [vmem:[#allocation19 + $0x218] sm:$0xff]
    %v2940 = vld [vmem:[#allocation19 + $0x220] sm:$0xff]
    %v2941 = vld [vmem:[#allocation19 + $0x228] sm:$0xff]
    %v2942 = vld [vmem:[#allocation19 + $0x230] sm:$0xff]
    %v2943 = vld [vmem:[#allocation19 + $0x238] sm:$0xff]
    %v2944 = vld [vmem:[#allocation19 + $0x240] sm:$0xff]
    %v2945 = vld [vmem:[#allocation19 + $0x248] sm:$0xff]
    %v2946 = vld [vmem:[#allocation19 + $0x250] sm:$0xff]
    %v2947 = vld [vmem:[#allocation19 + $0x258] sm:$0xff]
    %v2948 = vld [vmem:[#allocation19 + $0x260] sm:$0xff]
    %v2949 = vld [vmem:[#allocation19 + $0x268] sm:$0xff]
    %v2950 = vld [vmem:[#allocation19 + $0x270] sm:$0xff]
    %v2951 = vld [vmem:[#allocation19 + $0x278] sm:$0xff]
    %v2952 = vld [vmem:[#allocation19 + $0x280] sm:$0xff]
    %v2953 = vld [vmem:[#allocation19 + $0x288] sm:$0xff]
    %v2954 = vld [vmem:[#allocation19 + $0x290] sm:$0xff]
    %v2955 = vld [vmem:[#allocation19 + $0x298] sm:$0xff]
    %v2956 = vld [vmem:[#allocation19 + $0x2a0] sm:$0xff]
    %v2957 = vld [vmem:[#allocation19 + $0x2a8] sm:$0xff]
    %v2958 = vld [vmem:[#allocation19 + $0x2b0] sm:$0xff]
    %v2959 = vld [vmem:[#allocation19 + $0x2b8] sm:$0xff]
    %v2960 = vld [vmem:[#allocation19 + $0x2c0] sm:$0xff]
    %v2961 = vld [vmem:[#allocation19 + $0x2c8] sm:$0xff]
    %v2962 = vld [vmem:[#allocation19 + $0x2d0] sm:$0xff]
    %v2963 = vld [vmem:[#allocation19 + $0x2d8] sm:$0xff]
    %v2964 = vld [vmem:[#allocation19 + $0x2e0] sm:$0xff]
    %v2965 = vld [vmem:[#allocation19 + $0x2e8] sm:$0xff]
    %v2966 = vld [vmem:[#allocation19 + $0x2f0] sm:$0xff]
    %v2967 = vld [vmem:[#allocation19 + $0x2f8] sm:$0xff]
    %v2968 = vpack.c.bf16 %v2870, %v2868
    %v2969 = vpack.c.bf16 %v2871, %v2869
    %v2970 = vld [vmem:[#allocation18] sm:$0xf]
    %v2972 = vsel %vm1438, %v2970, 0
    %2974 = vmatpush.bf16.msra.mxu0 0
    %2975 = vmatpush.bf16.msra.mxu0 0
    %2976 = vmatpush.bf16.msra.mxu0 0
    %2977 = vmatpush.bf16.msra.mxu0 0
    %2978 = vmatpush.bf16.msra.mxu0 0
    %2979 = vmatpush.bf16.msra.mxu0 0
    %2980 = vmatpush.bf16.msra.mxu0 0
    %2981 = vmatpush.bf16.msra.mxu0 %v2968
    %2982 = vmatmul.bf16.gmra.mxu0 %v2972
    %v2983 = vpop.f32.mrf.mxu0
    %v2984 = vadd.f32 0.0, %v2983
    %v2985 = vpop.f32.mrf.mxu0
    %2986 = vdwg.mxu0
    %2987 = vmatpush.bf16.msra.mxu0 0
    %2988 = vmatpush.bf16.msra.mxu0 0
    %2989 = vmatpush.bf16.msra.mxu0 0
    %2990 = vmatpush.bf16.msra.mxu0 0
    %2991 = vmatpush.bf16.msra.mxu0 0
    %2992 = vmatpush.bf16.msra.mxu0 0
    %2993 = vmatpush.bf16.msra.mxu0 0
    %2994 = vmatpush.bf16.msra.mxu0 %v2969
    %2995 = vmatmul.bf16.gmra.mxu0 %v2972
    %v2996 = vpop.f32.mrf.mxu0
    %v2997 = vadd.f32 0.0, %v2996
    %v2998 = vpop.f32.mrf.mxu0
    %2999 = vdwg.mxu0
    %s3000 = scalar_lea.vmem [#allocation18], 4
    %v3001 = vld [vmem:[%s3000] sm:$0xf]
    %v3003 = vsel %vm1438, %v3001, 0
    %3005 = vmatpush.bf16.msra.mxu0 0
    %3006 = vmatpush.bf16.msra.mxu0 0
    %3007 = vmatpush.bf16.msra.mxu0 0
    %3008 = vmatpush.bf16.msra.mxu0 0
    %3009 = vmatpush.bf16.msra.mxu0 0
    %3010 = vmatpush.bf16.msra.mxu0 0
    %3011 = vmatpush.bf16.msra.mxu0 0
    %3012 = vmatpush.bf16.msra.mxu0 %v2968
    %3013 = vmatmul.bf16.gmra.mxu0 %v3003
    %v3014 = vpop.f32.mrf.mxu0
    %v3015 = vadd.f32 0.0, %v3014
    %v3016 = vpop.f32.mrf.mxu0
    %3017 = vdwg.mxu0
    %3018 = vmatpush.bf16.msra.mxu0 0
    %3019 = vmatpush.bf16.msra.mxu0 0
    %3020 = vmatpush.bf16.msra.mxu0 0
    %3021 = vmatpush.bf16.msra.mxu0 0
    %3022 = vmatpush.bf16.msra.mxu0 0
    %3023 = vmatpush.bf16.msra.mxu0 0
    %3024 = vmatpush.bf16.msra.mxu0 0
    %3025 = vmatpush.bf16.msra.mxu0 %v2969
    %3026 = vmatmul.bf16.gmra.mxu0 %v3003
    %v3027 = vpop.f32.mrf.mxu0
    %v3028 = vadd.f32 0.0, %v3027
    %v3029 = vpop.f32.mrf.mxu0
    %3030 = vdwg.mxu0
    %s3031 = scalar_lea.vmem [#allocation18], 8
    %v3032 = vld [vmem:[%s3031] sm:$0xf]
    %v3034 = vsel %vm1438, %v3032, 0
    %3036 = vmatpush.bf16.msra.mxu0 0
    %3037 = vmatpush.bf16.msra.mxu0 0
    %3038 = vmatpush.bf16.msra.mxu0 0
    %3039 = vmatpush.bf16.msra.mxu0 0
    %3040 = vmatpush.bf16.msra.mxu0 0
    %3041 = vmatpush.bf16.msra.mxu0 0
    %3042 = vmatpush.bf16.msra.mxu0 0
    %3043 = vmatpush.bf16.msra.mxu0 %v2968
    %3044 = vmatmul.bf16.gmra.mxu0 %v3034
    %v3045 = vpop.f32.mrf.mxu0
    %v3046 = vadd.f32 0.0, %v3045
    %v3047 = vpop.f32.mrf.mxu0
    %3048 = vdwg.mxu0
    %3049 = vmatpush.bf16.msra.mxu0 0
    %3050 = vmatpush.bf16.msra.mxu0 0
    %3051 = vmatpush.bf16.msra.mxu0 0
    %3052 = vmatpush.bf16.msra.mxu0 0
    %3053 = vmatpush.bf16.msra.mxu0 0
    %3054 = vmatpush.bf16.msra.mxu0 0
    %3055 = vmatpush.bf16.msra.mxu0 0
    %3056 = vmatpush.bf16.msra.mxu0 %v2969
    %3057 = vmatmul.bf16.gmra.mxu0 %v3034
    %v3058 = vpop.f32.mrf.mxu0
    %v3059 = vadd.f32 0.0, %v3058
    %v3060 = vpop.f32.mrf.mxu0
    %3061 = vdwg.mxu0
    %v3062 = vpack.c.bf16 %v2984, %v2984
    %v3063 = vpack.c.bf16 %v2997, %v2997
    %v3064 = vpack.c.bf16 %v3015, %v3015
    %v3065 = vpack.c.bf16 %v3028, %v3028
    %v3066 = vpack.c.bf16 %v3046, %v3046
    %v3067 = vpack.c.bf16 %v3059, %v3059
    %v3068 = vld [vmem:[#allocation21] sm:$0x3]
    %v3070 = vperm.slane %v3068, 0
    %v3071 = vperm.slane %v3068, 1
    %v3170 = vunpack.c.l.b16 %v2872
    %v3171 = vunpack.c.h.b16 %v2872
    %v3172 = vunpack.c.l.b16 %v2873
    %v3173 = vunpack.c.h.b16 %v2873
    %v3174 = vunpack.c.l.b16 %v2874
    %v3175 = vunpack.c.h.b16 %v2874
    %v3176 = vunpack.c.l.b16 %v2875
    %v3177 = vunpack.c.h.b16 %v2875
    %v3178 = vunpack.c.l.b16 %v2876
    %v3179 = vunpack.c.h.b16 %v2876
    %v3180 = vunpack.c.l.b16 %v2877
    %v3181 = vunpack.c.h.b16 %v2877
    %v3182 = vunpack.c.l.b16 %v2878
    %v3183 = vunpack.c.h.b16 %v2878
    %v3184 = vunpack.c.l.b16 %v2879
    %v3185 = vunpack.c.h.b16 %v2879
    %v3186 = vunpack.c.l.b16 %v2880
    %v3187 = vunpack.c.h.b16 %v2880
    %v3188 = vunpack.c.l.b16 %v2881
    %v3189 = vunpack.c.h.b16 %v2881
    %v3190 = vunpack.c.l.b16 %v2882
    %v3191 = vunpack.c.h.b16 %v2882
    %v3192 = vunpack.c.l.b16 %v2883
    %v3193 = vunpack.c.h.b16 %v2883
    %v3194 = vunpack.c.l.b16 %v2884
    %v3195 = vunpack.c.h.b16 %v2884
    %v3196 = vunpack.c.l.b16 %v2885
    %v3197 = vunpack.c.h.b16 %v2885
    %v3198 = vunpack.c.l.b16 %v2886
    %v3199 = vunpack.c.h.b16 %v2886
    %v3200 = vunpack.c.l.b16 %v2887
    %v3201 = vunpack.c.h.b16 %v2887
    %v3202 = vunpack.c.l.b16 %v2888
    %v3203 = vunpack.c.h.b16 %v2888
    %v3204 = vunpack.c.l.b16 %v2889
    %v3205 = vunpack.c.h.b16 %v2889
    %v3206 = vunpack.c.l.b16 %v2890
    %v3207 = vunpack.c.h.b16 %v2890
    %v3208 = vunpack.c.l.b16 %v2891
    %v3209 = vunpack.c.h.b16 %v2891
    %v3210 = vunpack.c.l.b16 %v2892
    %v3211 = vunpack.c.h.b16 %v2892
    %v3212 = vunpack.c.l.b16 %v2893
    %v3213 = vunpack.c.h.b16 %v2893
    %v3214 = vunpack.c.l.b16 %v2894
    %v3215 = vunpack.c.h.b16 %v2894
    %v3216 = vunpack.c.l.b16 %v2895
    %v3217 = vunpack.c.h.b16 %v2895
    %v3218 = vunpack.c.l.b16 %v2896
    %v3219 = vunpack.c.h.b16 %v2896
    %v3220 = vunpack.c.l.b16 %v2897
    %v3221 = vunpack.c.h.b16 %v2897
    %v3222 = vunpack.c.l.b16 %v2898
    %v3223 = vunpack.c.h.b16 %v2898
    %v3224 = vunpack.c.l.b16 %v2899
    %v3225 = vunpack.c.h.b16 %v2899
    %v3226 = vunpack.c.l.b16 %v2900
    %v3227 = vunpack.c.h.b16 %v2900
    %v3228 = vunpack.c.l.b16 %v2901
    %v3229 = vunpack.c.h.b16 %v2901
    %v3230 = vunpack.c.l.b16 %v2902
    %v3231 = vunpack.c.h.b16 %v2902
    %v3232 = vunpack.c.l.b16 %v2903
    %v3233 = vunpack.c.h.b16 %v2903
    %v3234 = vunpack.c.l.b16 %v2904
    %v3235 = vunpack.c.h.b16 %v2904
    %v3236 = vunpack.c.l.b16 %v2905
    %v3237 = vunpack.c.h.b16 %v2905
    %v3238 = vunpack.c.l.b16 %v2906
    %v3239 = vunpack.c.h.b16 %v2906
    %v3240 = vunpack.c.l.b16 %v2907
    %v3241 = vunpack.c.h.b16 %v2907
    %v3242 = vunpack.c.l.b16 %v2908
    %v3243 = vunpack.c.h.b16 %v2908
    %v3244 = vunpack.c.l.b16 %v2909
    %v3245 = vunpack.c.h.b16 %v2909
    %v3246 = vunpack.c.l.b16 %v2910
    %v3247 = vunpack.c.h.b16 %v2910
    %v3248 = vunpack.c.l.b16 %v2911
    %v3249 = vunpack.c.h.b16 %v2911
    %v3250 = vunpack.c.l.b16 %v2912
    %v3251 = vunpack.c.h.b16 %v2912
    %v3252 = vunpack.c.l.b16 %v2913
    %v3253 = vunpack.c.h.b16 %v2913
    %v3254 = vunpack.c.l.b16 %v2914
    %v3255 = vunpack.c.h.b16 %v2914
    %v3256 = vunpack.c.l.b16 %v2915
    %v3257 = vunpack.c.h.b16 %v2915
    %v3258 = vunpack.c.l.b16 %v2916
    %v3259 = vunpack.c.h.b16 %v2916
    %v3260 = vunpack.c.l.b16 %v2917
    %v3261 = vunpack.c.h.b16 %v2917
    %v3262 = vunpack.c.l.b16 %v2918
    %v3263 = vunpack.c.h.b16 %v2918
    %v3264 = vunpack.c.l.b16 %v2919
    %v3265 = vunpack.c.h.b16 %v2919
    %v3266 = vunpack.c.l.b16 %v2920
    %v3267 = vunpack.c.h.b16 %v2920
    %v3268 = vunpack.c.l.b16 %v2921
    %v3269 = vunpack.c.h.b16 %v2921
    %v3270 = vunpack.c.l.b16 %v2922
    %v3271 = vunpack.c.h.b16 %v2922
    %v3272 = vunpack.c.l.b16 %v2923
    %v3273 = vunpack.c.h.b16 %v2923
    %v3274 = vunpack.c.l.b16 %v2924
    %v3275 = vunpack.c.h.b16 %v2924
    %v3276 = vunpack.c.l.b16 %v2925
    %v3277 = vunpack.c.h.b16 %v2925
    %v3278 = vunpack.c.l.b16 %v2926
    %v3279 = vunpack.c.h.b16 %v2926
    %v3280 = vunpack.c.l.b16 %v2927
    %v3281 = vunpack.c.h.b16 %v2927
    %v3282 = vunpack.c.l.b16 %v2928
    %v3283 = vunpack.c.h.b16 %v2928
    %v3284 = vunpack.c.l.b16 %v2929
    %v3285 = vunpack.c.h.b16 %v2929
    %v3286 = vunpack.c.l.b16 %v2930
    %v3287 = vunpack.c.h.b16 %v2930
    %v3288 = vunpack.c.l.b16 %v2931
    %v3289 = vunpack.c.h.b16 %v2931
    %v3290 = vunpack.c.l.b16 %v2932
    %v3291 = vunpack.c.h.b16 %v2932
    %v3292 = vunpack.c.l.b16 %v2933
    %v3293 = vunpack.c.h.b16 %v2933
    %v3294 = vunpack.c.l.b16 %v2934
    %v3295 = vunpack.c.h.b16 %v2934
    %v3296 = vunpack.c.l.b16 %v2935
    %v3297 = vunpack.c.h.b16 %v2935
    %v3298 = vunpack.c.l.b16 %v2936
    %v3299 = vunpack.c.h.b16 %v2936
    %v3300 = vunpack.c.l.b16 %v2937
    %v3301 = vunpack.c.h.b16 %v2937
    %v3302 = vunpack.c.l.b16 %v2938
    %v3303 = vunpack.c.h.b16 %v2938
    %v3304 = vunpack.c.l.b16 %v2939
    %v3305 = vunpack.c.h.b16 %v2939
    %v3306 = vunpack.c.l.b16 %v2940
    %v3307 = vunpack.c.h.b16 %v2940
    %v3308 = vunpack.c.l.b16 %v2941
    %v3309 = vunpack.c.h.b16 %v2941
    %v3310 = vunpack.c.l.b16 %v2942
    %v3311 = vunpack.c.h.b16 %v2942
    %v3312 = vunpack.c.l.b16 %v2943
    %v3313 = vunpack.c.h.b16 %v2943
    %v3314 = vunpack.c.l.b16 %v2944
    %v3315 = vunpack.c.h.b16 %v2944
    %v3316 = vunpack.c.l.b16 %v2945
    %v3317 = vunpack.c.h.b16 %v2945
    %v3318 = vunpack.c.l.b16 %v2946
    %v3319 = vunpack.c.h.b16 %v2946
    %v3320 = vunpack.c.l.b16 %v2947
    %v3321 = vunpack.c.h.b16 %v2947
    %v3322 = vunpack.c.l.b16 %v2948
    %v3323 = vunpack.c.h.b16 %v2948
    %v3324 = vunpack.c.l.b16 %v2949
    %v3325 = vunpack.c.h.b16 %v2949
    %v3326 = vunpack.c.l.b16 %v2950
    %v3327 = vunpack.c.h.b16 %v2950
    %v3328 = vunpack.c.l.b16 %v2951
    %v3329 = vunpack.c.h.b16 %v2951
    %v3330 = vunpack.c.l.b16 %v2952
    %v3331 = vunpack.c.h.b16 %v2952
    %v3332 = vunpack.c.l.b16 %v2953
    %v3333 = vunpack.c.h.b16 %v2953
    %v3334 = vunpack.c.l.b16 %v2954
    %v3335 = vunpack.c.h.b16 %v2954
    %v3336 = vunpack.c.l.b16 %v2955
    %v3337 = vunpack.c.h.b16 %v2955
    %v3338 = vunpack.c.l.b16 %v2956
    %v3339 = vunpack.c.h.b16 %v2956
    %v3340 = vunpack.c.l.b16 %v2957
    %v3341 = vunpack.c.h.b16 %v2957
    %v3342 = vunpack.c.l.b16 %v2958
    %v3343 = vunpack.c.h.b16 %v2958
    %v3344 = vunpack.c.l.b16 %v2959
    %v3345 = vunpack.c.h.b16 %v2959
    %v3346 = vunpack.c.l.b16 %v2960
    %v3347 = vunpack.c.h.b16 %v2960
    %v3348 = vunpack.c.l.b16 %v2961
    %v3349 = vunpack.c.h.b16 %v2961
    %v3350 = vunpack.c.l.b16 %v2962
    %v3351 = vunpack.c.h.b16 %v2962
    %v3352 = vunpack.c.l.b16 %v2963
    %v3353 = vunpack.c.h.b16 %v2963
    %v3354 = vunpack.c.l.b16 %v2964
    %v3355 = vunpack.c.h.b16 %v2964
    %v3356 = vunpack.c.l.b16 %v2965
    %v3357 = vunpack.c.h.b16 %v2965
    %v3358 = vunpack.c.l.b16 %v2966
    %v3359 = vunpack.c.h.b16 %v2966
    %v3360 = vunpack.c.l.b16 %v2967
    %v3361 = vunpack.c.h.b16 %v2967
    %v3362 = vpack.c.b16 %v3172, %v3170
    %v3363 = vpack.c.b16 %v3173, %v3171
    %v3364 = vpack.c.b16 %v3176, %v3174
    %v3365 = vpack.c.b16 %v3177, %v3175
    %v3366 = vpack.c.b16 %v3180, %v3178
    %v3367 = vpack.c.b16 %v3181, %v3179
    %v3368 = vpack.c.b16 %v3184, %v3182
    %v3369 = vpack.c.b16 %v3185, %v3183
    %v3370 = vpack.c.b16 %v3188, %v3186
    %v3371 = vpack.c.b16 %v3189, %v3187
    %v3372 = vpack.c.b16 %v3192, %v3190
    %v3373 = vpack.c.b16 %v3193, %v3191
    %v3374 = vpack.c.b16 %v3196, %v3194
    %v3375 = vpack.c.b16 %v3197, %v3195
    %v3376 = vpack.c.b16 %v3200, %v3198
    %v3377 = vpack.c.b16 %v3201, %v3199
    %v3378 = vpack.c.b16 %v3204, %v3202
    %v3379 = vpack.c.b16 %v3205, %v3203
    %v3380 = vpack.c.b16 %v3208, %v3206
    %v3381 = vpack.c.b16 %v3209, %v3207
    %v3382 = vpack.c.b16 %v3212, %v3210
    %v3383 = vpack.c.b16 %v3213, %v3211
    %v3384 = vpack.c.b16 %v3216, %v3214
    %v3385 = vpack.c.b16 %v3217, %v3215
    %v3386 = vpack.c.b16 %v3220, %v3218
    %v3387 = vpack.c.b16 %v3221, %v3219
    %v3388 = vpack.c.b16 %v3224, %v3222
    %v3389 = vpack.c.b16 %v3225, %v3223
    %v3390 = vpack.c.b16 %v3228, %v3226
    %v3391 = vpack.c.b16 %v3229, %v3227
    %v3392 = vpack.c.b16 %v3232, %v3230
    %v3393 = vpack.c.b16 %v3233, %v3231
    %v3394 = vpack.c.b16 %v3236, %v3234
    %v3395 = vpack.c.b16 %v3237, %v3235
    %v3396 = vpack.c.b16 %v3240, %v3238
    %v3397 = vpack.c.b16 %v3241, %v3239
    %v3398 = vpack.c.b16 %v3244, %v3242
    %v3399 = vpack.c.b16 %v3245, %v3243
    %v3400 = vpack.c.b16 %v3248, %v3246
    %v3401 = vpack.c.b16 %v3249, %v3247
    %v3402 = vpack.c.b16 %v3252, %v3250
    %v3403 = vpack.c.b16 %v3253, %v3251
    %v3404 = vpack.c.b16 %v3256, %v3254
    %v3405 = vpack.c.b16 %v3257, %v3255
    %v3406 = vpack.c.b16 %v3260, %v3258
    %v3407 = vpack.c.b16 %v3261, %v3259
    %v3408 = vpack.c.b16 %v3264, %v3262
    %v3409 = vpack.c.b16 %v3265, %v3263
    %v3410 = vpack.c.b16 %v3268, %v3266
    %v3411 = vpack.c.b16 %v3269, %v3267
    %v3412 = vpack.c.b16 %v3272, %v3270
    %v3413 = vpack.c.b16 %v3273, %v3271
    %v3414 = vpack.c.b16 %v3276, %v3274
    %v3415 = vpack.c.b16 %v3277, %v3275
    %v3416 = vpack.c.b16 %v3280, %v3278
    %v3417 = vpack.c.b16 %v3281, %v3279
    %v3418 = vpack.c.b16 %v3284, %v3282
    %v3419 = vpack.c.b16 %v3285, %v3283
    %v3420 = vpack.c.b16 %v3288, %v3286
    %v3421 = vpack.c.b16 %v3289, %v3287
    %v3422 = vpack.c.b16 %v3292, %v3290
    %v3423 = vpack.c.b16 %v3293, %v3291
    %v3424 = vpack.c.b16 %v3296, %v3294
    %v3425 = vpack.c.b16 %v3297, %v3295
    %v3426 = vpack.c.b16 %v3300, %v3298
    %v3427 = vpack.c.b16 %v3301, %v3299
    %v3428 = vpack.c.b16 %v3304, %v3302
    %v3429 = vpack.c.b16 %v3305, %v3303
    %v3430 = vpack.c.b16 %v3308, %v3306
    %v3431 = vpack.c.b16 %v3309, %v3307
    %v3432 = vpack.c.b16 %v3312, %v3310
    %v3433 = vpack.c.b16 %v3313, %v3311
    %v3434 = vpack.c.b16 %v3316, %v3314
    %v3435 = vpack.c.b16 %v3317, %v3315
    %v3436 = vpack.c.b16 %v3320, %v3318
    %v3437 = vpack.c.b16 %v3321, %v3319
    %v3438 = vpack.c.b16 %v3324, %v3322
    %v3439 = vpack.c.b16 %v3325, %v3323
    %v3440 = vpack.c.b16 %v3328, %v3326
    %v3441 = vpack.c.b16 %v3329, %v3327
    %v3442 = vpack.c.b16 %v3332, %v3330
    %v3443 = vpack.c.b16 %v3333, %v3331
    %v3444 = vpack.c.b16 %v3336, %v3334
    %v3445 = vpack.c.b16 %v3337, %v3335
    %v3446 = vpack.c.b16 %v3340, %v3338
    %v3447 = vpack.c.b16 %v3341, %v3339
    %v3448 = vpack.c.b16 %v3344, %v3342
    %v3449 = vpack.c.b16 %v3345, %v3343
    %v3450 = vpack.c.b16 %v3348, %v3346
    %v3451 = vpack.c.b16 %v3349, %v3347
    %v3452 = vpack.c.b16 %v3352, %v3350
    %v3453 = vpack.c.b16 %v3353, %v3351
    %v3454 = vpack.c.b16 %v3356, %v3354
    %v3455 = vpack.c.b16 %v3357, %v3355
    %v3456 = vpack.c.b16 %v3360, %v3358
    %v3457 = vpack.c.b16 %v3361, %v3359
    %3554 = vmatpush.bf16.msra.mxu0 %v3376
    %3555 = vmatpush.bf16.msra.mxu0 %v3374
    %3556 = vmatpush.bf16.msra.mxu0 %v3372
    %3557 = vmatpush.bf16.msra.mxu0 %v3370
    %3558 = vmatpush.bf16.msra.mxu0 %v3368
    %3559 = vmatpush.bf16.msra.mxu0 %v3366
    %3560 = vmatpush.bf16.msra.mxu0 %v3364
    %3561 = vmatpush.bf16.msra.mxu0 %v3362
    %3562 = vmatmul.bf16.gmra.mxu0 %v3062
    %v3563 = vpop.f32.mrf.mxu0
    %v3564 = vadd.f32 %v3070, %v3563
    %v3565 = vpop.f32.mrf.mxu0
    %3566 = vdwg.mxu0
    %3567 = vmatpush.bf16.msra.mxu0 %v3392
    %3568 = vmatpush.bf16.msra.mxu0 %v3390
    %3569 = vmatpush.bf16.msra.mxu0 %v3388
    %3570 = vmatpush.bf16.msra.mxu0 %v3386
    %3571 = vmatpush.bf16.msra.mxu0 %v3384
    %3572 = vmatpush.bf16.msra.mxu0 %v3382
    %3573 = vmatpush.bf16.msra.mxu0 %v3380
    %3574 = vmatpush.bf16.msra.mxu0 %v3378
    %3575 = vmatmul.bf16.gmra.mxu0 %v3063
    %v3576 = vpop.f32.mrf.mxu0
    %v3577 = vadd.f32 %v3564, %v3576
    %v3578 = vpop.f32.mrf.mxu0
    %3579 = vdwg.mxu0
    %3580 = vmatpush.bf16.msra.mxu0 %v3408
    %3581 = vmatpush.bf16.msra.mxu0 %v3406
    %3582 = vmatpush.bf16.msra.mxu0 %v3404
    %3583 = vmatpush.bf16.msra.mxu0 %v3402
    %3584 = vmatpush.bf16.msra.mxu0 %v3400
    %3585 = vmatpush.bf16.msra.mxu0 %v3398
    %3586 = vmatpush.bf16.msra.mxu0 %v3396
    %3587 = vmatpush.bf16.msra.mxu0 %v3394
    %3588 = vmatmul.bf16.gmra.mxu0 %v3064
    %v3589 = vpop.f32.mrf.mxu0
    %v3590 = vadd.f32 %v3577, %v3589
    %v3591 = vpop.f32.mrf.mxu0
    %3592 = vdwg.mxu0
    %3593 = vmatpush.bf16.msra.mxu0 %v3424
    %3594 = vmatpush.bf16.msra.mxu0 %v3422
    %3595 = vmatpush.bf16.msra.mxu0 %v3420
    %3596 = vmatpush.bf16.msra.mxu0 %v3418
    %3597 = vmatpush.bf16.msra.mxu0 %v3416
    %3598 = vmatpush.bf16.msra.mxu0 %v3414
    %3599 = vmatpush.bf16.msra.mxu0 %v3412
    %3600 = vmatpush.bf16.msra.mxu0 %v3410
    %3601 = vmatmul.bf16.gmra.mxu0 %v3065
    %v3602 = vpop.f32.mrf.mxu0
    %v3603 = vadd.f32 %v3590, %v3602
    %v3604 = vpop.f32.mrf.mxu0
    %3605 = vdwg.mxu0
    %3606 = vmatpush.bf16.msra.mxu0 %v3440
    %3607 = vmatpush.bf16.msra.mxu0 %v3438
    %3608 = vmatpush.bf16.msra.mxu0 %v3436
    %3609 = vmatpush.bf16.msra.mxu0 %v3434
    %3610 = vmatpush.bf16.msra.mxu0 %v3432
    %3611 = vmatpush.bf16.msra.mxu0 %v3430
    %3612 = vmatpush.bf16.msra.mxu0 %v3428
    %3613 = vmatpush.bf16.msra.mxu0 %v3426
    %3614 = vmatmul.bf16.gmra.mxu0 %v3066
    %v3615 = vpop.f32.mrf.mxu0
    %v3616 = vadd.f32 %v3603, %v3615
    %v3617 = vpop.f32.mrf.mxu0
    %3618 = vdwg.mxu0
    %3619 = vmatpush.bf16.msra.mxu0 %v3456
    %3620 = vmatpush.bf16.msra.mxu0 %v3454
    %3621 = vmatpush.bf16.msra.mxu0 %v3452
    %3622 = vmatpush.bf16.msra.mxu0 %v3450
    %3623 = vmatpush.bf16.msra.mxu0 %v3448
    %3624 = vmatpush.bf16.msra.mxu0 %v3446
    %3625 = vmatpush.bf16.msra.mxu0 %v3444
    %3626 = vmatpush.bf16.msra.mxu0 %v3442
    %3627 = vmatmul.bf16.gmra.mxu0 %v3067
    %v3628 = vpop.f32.mrf.mxu0
    %v3629 = vadd.f32 %v3616, %v3628
    %v3630 = vpop.f32.mrf.mxu0
    %3631 = vdwg.mxu0
    %3632 = vmatpush.bf16.msra.mxu0 %v3377
    %3633 = vmatpush.bf16.msra.mxu0 %v3375
    %3634 = vmatpush.bf16.msra.mxu0 %v3373
    %3635 = vmatpush.bf16.msra.mxu0 %v3371
    %3636 = vmatpush.bf16.msra.mxu0 %v3369
    %3637 = vmatpush.bf16.msra.mxu0 %v3367
    %3638 = vmatpush.bf16.msra.mxu0 %v3365
    %3639 = vmatpush.bf16.msra.mxu0 %v3363
    %3640 = vmatmul.bf16.gmra.mxu0 %v3062
    %v3641 = vpop.f32.mrf.mxu0
    %v3642 = vadd.f32 %v3071, %v3641
    %v3643 = vpop.f32.mrf.mxu0
    %3644 = vdwg.mxu0
    %3645 = vmatpush.bf16.msra.mxu0 %v3393
    %3646 = vmatpush.bf16.msra.mxu0 %v3391
    %3647 = vmatpush.bf16.msra.mxu0 %v3389
    %3648 = vmatpush.bf16.msra.mxu0 %v3387
    %3649 = vmatpush.bf16.msra.mxu0 %v3385
    %3650 = vmatpush.bf16.msra.mxu0 %v3383
    %3651 = vmatpush.bf16.msra.mxu0 %v3381
    %3652 = vmatpush.bf16.msra.mxu0 %v3379
    %3653 = vmatmul.bf16.gmra.mxu0 %v3063
    %v3654 = vpop.f32.mrf.mxu0
    %v3655 = vadd.f32 %v3642, %v3654
    %v3656 = vpop.f32.mrf.mxu0
    %3657 = vdwg.mxu0
    %3658 = vmatpush.bf16.msra.mxu0 %v3409
    %3659 = vmatpush.bf16.msra.mxu0 %v3407
    %3660 = vmatpush.bf16.msra.mxu0 %v3405
    %3661 = vmatpush.bf16.msra.mxu0 %v3403
    %3662 = vmatpush.bf16.msra.mxu0 %v3401
    %3663 = vmatpush.bf16.msra.mxu0 %v3399
    %3664 = vmatpush.bf16.msra.mxu0 %v3397
    %3665 = vmatpush.bf16.msra.mxu0 %v3395
    %3666 = vmatmul.bf16.gmra.mxu0 %v3064
    %v3667 = vpop.f32.mrf.mxu0
    %v3668 = vadd.f32 %v3655, %v3667
    %v3669 = vpop.f32.mrf.mxu0
    %3670 = vdwg.mxu0
    %3671 = vmatpush.bf16.msra.mxu0 %v3425
    %3672 = vmatpush.bf16.msra.mxu0 %v3423
    %3673 = vmatpush.bf16.msra.mxu0 %v3421
    %3674 = vmatpush.bf16.msra.mxu0 %v3419
    %3675 = vmatpush.bf16.msra.mxu0 %v3417
    %3676 = vmatpush.bf16.msra.mxu0 %v3415
    %3677 = vmatpush.bf16.msra.mxu0 %v3413
    %3678 = vmatpush.bf16.msra.mxu0 %v3411
    %3679 = vmatmul.bf16.gmra.mxu0 %v3065
    %v3680 = vpop.f32.mrf.mxu0
    %v3681 = vadd.f32 %v3668, %v3680
    %v3682 = vpop.f32.mrf.mxu0
    %3683 = vdwg.mxu0
    %3684 = vmatpush.bf16.msra.mxu0 %v3441
    %3685 = vmatpush.bf16.msra.mxu0 %v3439
    %3686 = vmatpush.bf16.msra.mxu0 %v3437
    %3687 = vmatpush.bf16.msra.mxu0 %v3435
    %3688 = vmatpush.bf16.msra.mxu0 %v3433
    %3689 = vmatpush.bf16.msra.mxu0 %v3431
    %3690 = vmatpush.bf16.msra.mxu0 %v3429
    %3691 = vmatpush.bf16.msra.mxu0 %v3427
    %3692 = vmatmul.bf16.gmra.mxu0 %v3066
    %v3693 = vpop.f32.mrf.mxu0
    %v3694 = vadd.f32 %v3681, %v3693
    %v3695 = vpop.f32.mrf.mxu0
    %3696 = vdwg.mxu0
    %3697 = vmatpush.bf16.msra.mxu0 %v3457
    %3698 = vmatpush.bf16.msra.mxu0 %v3455
    %3699 = vmatpush.bf16.msra.mxu0 %v3453
    %3700 = vmatpush.bf16.msra.mxu0 %v3451
    %3701 = vmatpush.bf16.msra.mxu0 %v3449
    %3702 = vmatpush.bf16.msra.mxu0 %v3447
    %3703 = vmatpush.bf16.msra.mxu0 %v3445
    %3704 = vmatpush.bf16.msra.mxu0 %v3443
    %3705 = vmatmul.bf16.gmra.mxu0 %v3067
    %v3706 = vpop.f32.mrf.mxu0
    %v3707 = vadd.f32 %v3694, %v3706
    %v3708 = vpop.f32.mrf.mxu0
    %3709 = vdwg.mxu0
    %v3710 = vmax.f32 %v3629, 0.0
    %v3711 = vmax.f32 %v3707, 0.0
    %v3712 = vld [vmem:[#allocation22] sm:$0xff]
    %v3713 = vld [vmem:[#allocation22 + $0x8] sm:$0xff]
    %v3714 = vld [vmem:[#allocation22 + $0x10] sm:$0xff]
    %v3715 = vld [vmem:[#allocation22 + $0x18] sm:$0xff]
    %v3716 = vld [vmem:[#allocation22 + $0x20] sm:$0xff]
    %v3717 = vld [vmem:[#allocation22 + $0x28] sm:$0xff]
    %v3718 = vld [vmem:[#allocation22 + $0x30] sm:$0xff]
    %v3719 = vld [vmem:[#allocation22 + $0x38] sm:$0xff]
    %v3720 = vld [vmem:[#allocation22 + $0x40] sm:$0xff]
    %v3721 = vld [vmem:[#allocation22 + $0x48] sm:$0xff]
    %v3722 = vld [vmem:[#allocation22 + $0x50] sm:$0xff]
    %v3723 = vld [vmem:[#allocation22 + $0x58] sm:$0xff]
    %v3724 = vld [vmem:[#allocation22 + $0x60] sm:$0xff]
    %v3725 = vld [vmem:[#allocation22 + $0x68] sm:$0xff]
    %v3726 = vld [vmem:[#allocation22 + $0x70] sm:$0xff]
    %v3727 = vld [vmem:[#allocation22 + $0x78] sm:$0xff]
    %v3728 = vld [vmem:[#allocation22 + $0x80] sm:$0xff]
    %v3729 = vld [vmem:[#allocation22 + $0x88] sm:$0xff]
    %v3730 = vld [vmem:[#allocation22 + $0x90] sm:$0xff]
    %v3731 = vld [vmem:[#allocation22 + $0x98] sm:$0xff]
    %v3732 = vld [vmem:[#allocation22 + $0xa0] sm:$0xff]
    %v3733 = vld [vmem:[#allocation22 + $0xa8] sm:$0xff]
    %v3734 = vld [vmem:[#allocation22 + $0xb0] sm:$0xff]
    %v3735 = vld [vmem:[#allocation22 + $0xb8] sm:$0xff]
    %v3736 = vld [vmem:[#allocation22 + $0xc0] sm:$0xff]
    %v3737 = vld [vmem:[#allocation22 + $0xc8] sm:$0xff]
    %v3738 = vld [vmem:[#allocation22 + $0xd0] sm:$0xff]
    %v3739 = vld [vmem:[#allocation22 + $0xd8] sm:$0xff]
    %v3740 = vld [vmem:[#allocation22 + $0xe0] sm:$0xff]
    %v3741 = vld [vmem:[#allocation22 + $0xe8] sm:$0xff]
    %v3742 = vld [vmem:[#allocation22 + $0xf0] sm:$0xff]
    %v3743 = vld [vmem:[#allocation22 + $0xf8] sm:$0xff]
    %v3744 = vld [vmem:[#allocation24] sm:$0xff]
    %v3745 = vld [vmem:[#allocation24 + $0x8] sm:$0xff]
    %v3746 = vld [vmem:[#allocation24 + $0x10] sm:$0xff]
    %v3747 = vld [vmem:[#allocation24 + $0x18] sm:$0xff]
    %v3748 = vld [vmem:[#allocation24 + $0x20] sm:$0xff]
    %v3749 = vld [vmem:[#allocation24 + $0x28] sm:$0xff]
    %v3750 = vld [vmem:[#allocation24 + $0x30] sm:$0xff]
    %v3751 = vld [vmem:[#allocation24 + $0x38] sm:$0xff]
    %v3752 = vld [vmem:[#allocation24 + $0x40] sm:$0xff]
    %v3753 = vld [vmem:[#allocation24 + $0x48] sm:$0xff]
    %v3754 = vld [vmem:[#allocation24 + $0x50] sm:$0xff]
    %v3755 = vld [vmem:[#allocation24 + $0x58] sm:$0xff]
    %v3756 = vld [vmem:[#allocation24 + $0x60] sm:$0xff]
    %v3757 = vld [vmem:[#allocation24 + $0x68] sm:$0xff]
    %v3758 = vld [vmem:[#allocation24 + $0x70] sm:$0xff]
    %v3759 = vld [vmem:[#allocation24 + $0x78] sm:$0xff]
    %v3760 = vld [vmem:[%s37] sm:$0x1]
    %v3761 = vld [vmem:[%s39] sm:$0x1]
    %v3762 = vrot.slane %v3710, 4
    %v3763 = vadd.f32 %v3710, %v3762
    %v3764 = vrot.slane %v3763, 2
    %v3765 = vadd.f32 %v3763, %v3764
    %v3766 = vrot.slane %v3765, 1
    %v3767 = vadd.f32 %v3765, %v3766
    %v3768 = vrot.slane %v3711, 4
    %v3769 = vadd.f32 %v3711, %v3768
    %v3770 = vrot.slane %v3769, 2
    %v3771 = vadd.f32 %v3769, %v3770
    %v3772 = vrot.slane %v3771, 1
    %v3773 = vadd.f32 %v3771, %v3772
    %3774 = vmatpush.msra.mxu0 %v3727
    %3775 = vmatpush.msra.mxu0 %v3726
    %3776 = vmatpush.msra.mxu0 %v3725
    %3777 = vmatpush.msra.mxu0 %v3724
    %3778 = vmatpush.msra.mxu0 %v3723
    %3779 = vmatpush.msra.mxu0 %v3722
    %3780 = vmatpush.msra.mxu0 %v3721
    %3781 = vmatpush.msra.mxu0 %v3720
    %3782 = vmatpush.msra.mxu0 %v3719
    %3783 = vmatpush.msra.mxu0 %v3718
    %3784 = vmatpush.msra.mxu0 %v3717
    %3785 = vmatpush.msra.mxu0 %v3716
    %3786 = vmatpush.msra.mxu0 %v3715
    %3787 = vmatpush.msra.mxu0 %v3714
    %3788 = vmatpush.msra.mxu0 %v3713
    %3789 = vmatpush.msra.mxu0 %v3712
    %3790 = vmatmul.f32.gmra.mxu0 %v3767
    %v3791 = vpop.f32.mrf.mxu0
    %v3792 = vadd.f32 0.0, %v3791
    %3793 = vdwg.mxu0
    %3794 = vmatpush.msra.mxu0 %v3743
    %3795 = vmatpush.msra.mxu0 %v3742
    %3796 = vmatpush.msra.mxu0 %v3741
    %3797 = vmatpush.msra.mxu0 %v3740
    %3798 = vmatpush.msra.mxu0 %v3739
    %3799 = vmatpush.msra.mxu0 %v3738
    %3800 = vmatpush.msra.mxu0 %v3737
    %3801 = vmatpush.msra.mxu0 %v3736
    %3802 = vmatpush.msra.mxu0 %v3735
    %3803 = vmatpush.msra.mxu0 %v3734
    %3804 = vmatpush.msra.mxu0 %v3733
    %3805 = vmatpush.msra.mxu0 %v3732
    %3806 = vmatpush.msra.mxu0 %v3731
    %3807 = vmatpush.msra.mxu0 %v3730
    %3808 = vmatpush.msra.mxu0 %v3729
    %3809 = vmatpush.msra.mxu0 %v3728
    %3810 = vmatmul.f32.gmra.mxu0 %v3773
    %v3811 = vpop.f32.mrf.mxu0
    %v3812 = vadd.f32 %v3792, %v3811
    %3813 = vdwg.mxu0
    %v3814 = vmul.f32 %v3812, 0.03125
    %v3816 = vsel %vm873, %v3814, 0
    %3818 = vmatpush.msra.mxu0 0.0
    %3819 = vmatpush.msra.mxu0 0.0
    %3820 = vmatpush.msra.mxu0 0.0
    %3821 = vmatpush.msra.mxu0 0.0
    %3822 = vmatpush.msra.mxu0 0.0
    %3823 = vmatpush.msra.mxu0 0.0
    %3824 = vmatpush.msra.mxu0 0.0
    %3825 = vmatpush.msra.mxu0 0.0
    %3826 = vmatpush.msra.mxu0 %v3758
    %3827 = vmatpush.msra.mxu0 %v3756
    %3828 = vmatpush.msra.mxu0 %v3754
    %3829 = vmatpush.msra.mxu0 %v3752
    %3830 = vmatpush.msra.mxu0 %v3750
    %3831 = vmatpush.msra.mxu0 %v3748
    %3832 = vmatpush.msra.mxu0 %v3746
    %3833 = vmatpush.msra.mxu0 %v3744
    %3834 = vmatmul.f32.gmra.mxu0 %v3816
    %v3835 = vpop.f32.mrf.mxu0
    %v3836 = vadd.f32 0.0, %v3835
    %3837 = vdwg.mxu0
    %3838 = vmatpush.msra.mxu0 0.0
    %3839 = vmatpush.msra.mxu0 0.0
    %3840 = vmatpush.msra.mxu0 0.0
    %3841 = vmatpush.msra.mxu0 0.0
    %3842 = vmatpush.msra.mxu0 0.0
    %3843 = vmatpush.msra.mxu0 0.0
    %3844 = vmatpush.msra.mxu0 0.0
    %3845 = vmatpush.msra.mxu0 0.0
    %3846 = vmatpush.msra.mxu0 %v3759
    %3847 = vmatpush.msra.mxu0 %v3757
    %3848 = vmatpush.msra.mxu0 %v3755
    %3849 = vmatpush.msra.mxu0 %v3753
    %3850 = vmatpush.msra.mxu0 %v3751
    %3851 = vmatpush.msra.mxu0 %v3749
    %3852 = vmatpush.msra.mxu0 %v3747
    %3853 = vmatpush.msra.mxu0 %v3745
    %3854 = vmatmul.f32.gmra.mxu0 %v3816
    %v3855 = vpop.f32.mrf.mxu0
    %v3856 = vadd.f32 0.0, %v3855
    %3857 = vdwg.mxu0
    %v3858 = vperm.slane %v3836, 0
    %v3859 = vperm.slane %v3856, 0
    %v3860 = vsub.f32 %v3710, %v3858
    %v3861 = vsub.f32 %v3711, %v3859
    %v3862 = vmul.f32 %v3860, %v3860
    %v3863 = vmul.f32 %v3861, %v3861
    %v3864 = vrot.slane %v3862, 4
    %v3865 = vadd.f32 %v3862, %v3864
    %v3866 = vrot.slane %v3865, 2
    %v3867 = vadd.f32 %v3865, %v3866
    %v3868 = vrot.slane %v3867, 1
    %v3869 = vadd.f32 %v3867, %v3868
    %v3870 = vrot.slane %v3863, 4
    %v3871 = vadd.f32 %v3863, %v3870
    %v3872 = vrot.slane %v3871, 2
    %v3873 = vadd.f32 %v3871, %v3872
    %v3874 = vrot.slane %v3873, 1
    %v3875 = vadd.f32 %v3873, %v3874
    %3876 = vmatpush.msra.mxu0 %v3727
    %3877 = vmatpush.msra.mxu0 %v3726
    %3878 = vmatpush.msra.mxu0 %v3725
    %3879 = vmatpush.msra.mxu0 %v3724
    %3880 = vmatpush.msra.mxu0 %v3723
    %3881 = vmatpush.msra.mxu0 %v3722
    %3882 = vmatpush.msra.mxu0 %v3721
    %3883 = vmatpush.msra.mxu0 %v3720
    %3884 = vmatpush.msra.mxu0 %v3719
    %3885 = vmatpush.msra.mxu0 %v3718
    %3886 = vmatpush.msra.mxu0 %v3717
    %3887 = vmatpush.msra.mxu0 %v3716
    %3888 = vmatpush.msra.mxu0 %v3715
    %3889 = vmatpush.msra.mxu0 %v3714
    %3890 = vmatpush.msra.mxu0 %v3713
    %3891 = vmatpush.msra.mxu0 %v3712
    %3892 = vmatmul.f32.gmra.mxu0 %v3869
    %v3893 = vpop.f32.mrf.mxu0
    %v3894 = vadd.f32 0.0, %v3893
    %3895 = vdwg.mxu0
    %3896 = vmatpush.msra.mxu0 %v3743
    %3897 = vmatpush.msra.mxu0 %v3742
    %3898 = vmatpush.msra.mxu0 %v3741
    %3899 = vmatpush.msra.mxu0 %v3740
    %3900 = vmatpush.msra.mxu0 %v3739
    %3901 = vmatpush.msra.mxu0 %v3738
    %3902 = vmatpush.msra.mxu0 %v3737
    %3903 = vmatpush.msra.mxu0 %v3736
    %3904 = vmatpush.msra.mxu0 %v3735
    %3905 = vmatpush.msra.mxu0 %v3734
    %3906 = vmatpush.msra.mxu0 %v3733
    %3907 = vmatpush.msra.mxu0 %v3732
    %3908 = vmatpush.msra.mxu0 %v3731
    %3909 = vmatpush.msra.mxu0 %v3730
    %3910 = vmatpush.msra.mxu0 %v3729
    %3911 = vmatpush.msra.mxu0 %v3728
    %3912 = vmatmul.f32.gmra.mxu0 %v3875
    %v3913 = vpop.f32.mrf.mxu0
    %v3914 = vadd.f32 %v3894, %v3913
    %3915 = vdwg.mxu0
    %v3916 = vmul.f32 %v3914, 0.03125
    %v3917 = vadd.f32 %v3916, 1e-05
    %v3918 = vrsqrt.pop %v3917
    %v3919 = vmul.f32 %v3918, %v3917
    %v3920 = vmul.f32 %v3919, %v3918
    %v3921 = vmul.f32 0.5, %v3920
    %v3922 = vsub.f32 1.5, %v3921
    %v3923 = vmul.f32 %v3918, %v3922
    %vm3924 = vweird.f32 %v3917
    %vm3925 = vweird.f32 %v3918
    %vm3926 = vmor %vm3924, %vm3925
    %v3927 = vsel %vm3926, %v3918, %v3923
    %v3928 = vmul.f32 %v3760, %v3927
    %v3930 = vsel %vm873, %v3928, 0
    %3932 = vmatpush.msra.mxu0 0.0
    %3933 = vmatpush.msra.mxu0 0.0
    %3934 = vmatpush.msra.mxu0 0.0
    %3935 = vmatpush.msra.mxu0 0.0
    %3936 = vmatpush.msra.mxu0 0.0
    %3937 = vmatpush.msra.mxu0 0.0
    %3938 = vmatpush.msra.mxu0 0.0
    %3939 = vmatpush.msra.mxu0 0.0
    %3940 = vmatpush.msra.mxu0 %v3758
    %3941 = vmatpush.msra.mxu0 %v3756
    %3942 = vmatpush.msra.mxu0 %v3754
    %3943 = vmatpush.msra.mxu0 %v3752
    %3944 = vmatpush.msra.mxu0 %v3750
    %3945 = vmatpush.msra.mxu0 %v3748
    %3946 = vmatpush.msra.mxu0 %v3746
    %3947 = vmatpush.msra.mxu0 %v3744
    %3948 = vmatmul.f32.gmra.mxu0 %v3930
    %v3949 = vpop.f32.mrf.mxu0
    %v3950 = vadd.f32 0.0, %v3949
    %3951 = vdwg.mxu0
    %3952 = vmatpush.msra.mxu0 0.0
    %3953 = vmatpush.msra.mxu0 0.0
    %3954 = vmatpush.msra.mxu0 0.0
    %3955 = vmatpush.msra.mxu0 0.0
    %3956 = vmatpush.msra.mxu0 0.0
    %3957 = vmatpush.msra.mxu0 0.0
    %3958 = vmatpush.msra.mxu0 0.0
    %3959 = vmatpush.msra.mxu0 0.0
    %3960 = vmatpush.msra.mxu0 %v3759
    %3961 = vmatpush.msra.mxu0 %v3757
    %3962 = vmatpush.msra.mxu0 %v3755
    %3963 = vmatpush.msra.mxu0 %v3753
    %3964 = vmatpush.msra.mxu0 %v3751
    %3965 = vmatpush.msra.mxu0 %v3749
    %3966 = vmatpush.msra.mxu0 %v3747
    %3967 = vmatpush.msra.mxu0 %v3745
    %3968 = vmatmul.f32.gmra.mxu0 %v3930
    %v3969 = vpop.f32.mrf.mxu0
    %v3970 = vadd.f32 0.0, %v3969
    %3971 = vdwg.mxu0
    %v3972 = vperm.slane %v3950, 0
    %v3973 = vperm.slane %v3970, 0
    %v3974 = vmul.f32 %v3860, %v3972
    %v3975 = vmul.f32 %v3861, %v3973
    %v3977 = vsel %vm873, %v3761, 0
    %3979 = vmatpush.msra.mxu0 0.0
    %3980 = vmatpush.msra.mxu0 0.0
    %3981 = vmatpush.msra.mxu0 0.0
    %3982 = vmatpush.msra.mxu0 0.0
    %3983 = vmatpush.msra.mxu0 0.0
    %3984 = vmatpush.msra.mxu0 0.0
    %3985 = vmatpush.msra.mxu0 0.0
    %3986 = vmatpush.msra.mxu0 0.0
    %3987 = vmatpush.msra.mxu0 %v3758
    %3988 = vmatpush.msra.mxu0 %v3756
    %3989 = vmatpush.msra.mxu0 %v3754
    %3990 = vmatpush.msra.mxu0 %v3752
    %3991 = vmatpush.msra.mxu0 %v3750
    %3992 = vmatpush.msra.mxu0 %v3748
    %3993 = vmatpush.msra.mxu0 %v3746
    %3994 = vmatpush.msra.mxu0 %v3744
    %3995 = vmatmul.f32.gmra.mxu0 %v3977
    %v3996 = vpop.f32.mrf.mxu0
    %v3997 = vadd.f32 0.0, %v3996
    %3998 = vdwg.mxu0
    %3999 = vmatpush.msra.mxu0 0.0
    %4000 = vmatpush.msra.mxu0 0.0
    %4001 = vmatpush.msra.mxu0 0.0
    %4002 = vmatpush.msra.mxu0 0.0
    %4003 = vmatpush.msra.mxu0 0.0
    %4004 = vmatpush.msra.mxu0 0.0
    %4005 = vmatpush.msra.mxu0 0.0
    %4006 = vmatpush.msra.mxu0 0.0
    %4007 = vmatpush.msra.mxu0 %v3759
    %4008 = vmatpush.msra.mxu0 %v3757
    %4009 = vmatpush.msra.mxu0 %v3755
    %4010 = vmatpush.msra.mxu0 %v3753
    %4011 = vmatpush.msra.mxu0 %v3751
    %4012 = vmatpush.msra.mxu0 %v3749
    %4013 = vmatpush.msra.mxu0 %v3747
    %4014 = vmatpush.msra.mxu0 %v3745
    %4015 = vmatmul.f32.gmra.mxu0 %v3977
    %v4016 = vpop.f32.mrf.mxu0
    %v4017 = vadd.f32 0.0, %v4016
    %4018 = vdwg.mxu0
    %v4019 = vperm.slane %v3997, 0
    %v4020 = vperm.slane %v4017, 0
    %v4021 = vadd.f32 %v3974, %v4019
    %v4022 = vadd.f32 %v3975, %v4020
    %v4023 = vld [vmem:[#allocation25] sm:$0xff]
    %v4024 = vld [vmem:[#allocation25 + $0x8] sm:$0xff]
    %v4025 = vld [vmem:[#allocation25 + $0x10] sm:$0xff]
    %v4026 = vld [vmem:[#allocation25 + $0x18] sm:$0xff]
    %v4027 = vld [vmem:[#allocation25 + $0x20] sm:$0xff]
    %v4028 = vld [vmem:[#allocation25 + $0x28] sm:$0xff]
    %v4029 = vld [vmem:[#allocation25 + $0x30] sm:$0xff]
    %v4030 = vld [vmem:[#allocation25 + $0x38] sm:$0xff]
    %v4031 = vld [vmem:[#allocation25 + $0x40] sm:$0xff]
    %v4032 = vld [vmem:[#allocation25 + $0x48] sm:$0xff]
    %v4033 = vld [vmem:[#allocation25 + $0x50] sm:$0xff]
    %v4034 = vld [vmem:[#allocation25 + $0x58] sm:$0xff]
    %v4035 = vld [vmem:[#allocation25 + $0x60] sm:$0xff]
    %v4036 = vld [vmem:[#allocation25 + $0x68] sm:$0xff]
    %v4037 = vld [vmem:[#allocation25 + $0x70] sm:$0xff]
    %v4038 = vld [vmem:[#allocation25 + $0x78] sm:$0xff]
    %v4039 = vld [vmem:[#allocation25 + $0x80] sm:$0xff]
    %v4040 = vld [vmem:[#allocation25 + $0x88] sm:$0xff]
    %v4041 = vld [vmem:[#allocation25 + $0x90] sm:$0xff]
    %v4042 = vld [vmem:[#allocation25 + $0x98] sm:$0xff]
    %v4043 = vld [vmem:[#allocation25 + $0xa0] sm:$0xff]
    %v4044 = vld [vmem:[#allocation25 + $0xa8] sm:$0xff]
    %v4045 = vld [vmem:[#allocation25 + $0xb0] sm:$0xff]
    %v4046 = vld [vmem:[#allocation25 + $0xb8] sm:$0xff]
    %v4047 = vld [vmem:[#allocation25 + $0xc0] sm:$0xff]
    %v4048 = vld [vmem:[#allocation25 + $0xc8] sm:$0xff]
    %v4049 = vld [vmem:[#allocation25 + $0xd0] sm:$0xff]
    %v4050 = vld [vmem:[#allocation25 + $0xd8] sm:$0xff]
    %v4051 = vld [vmem:[#allocation25 + $0xe0] sm:$0xff]
    %v4052 = vld [vmem:[#allocation25 + $0xe8] sm:$0xff]
    %v4053 = vld [vmem:[#allocation25 + $0xf0] sm:$0xff]
    %v4054 = vld [vmem:[#allocation25 + $0xf8] sm:$0xff]
    %v4055 = vld [vmem:[#allocation25 + $0x100] sm:$0xff]
    %v4056 = vld [vmem:[#allocation25 + $0x108] sm:$0xff]
    %v4057 = vld [vmem:[#allocation25 + $0x110] sm:$0xff]
    %v4058 = vld [vmem:[#allocation25 + $0x118] sm:$0xff]
    %v4059 = vld [vmem:[#allocation25 + $0x120] sm:$0xff]
    %v4060 = vld [vmem:[#allocation25 + $0x128] sm:$0xff]
    %v4061 = vld [vmem:[#allocation25 + $0x130] sm:$0xff]
    %v4062 = vld [vmem:[#allocation25 + $0x138] sm:$0xff]
    %v4063 = vld [vmem:[#allocation25 + $0x140] sm:$0xff]
    %v4064 = vld [vmem:[#allocation25 + $0x148] sm:$0xff]
    %v4065 = vld [vmem:[#allocation25 + $0x150] sm:$0xff]
    %v4066 = vld [vmem:[#allocation25 + $0x158] sm:$0xff]
    %v4067 = vld [vmem:[#allocation25 + $0x160] sm:$0xff]
    %v4068 = vld [vmem:[#allocation25 + $0x168] sm:$0xff]
    %v4069 = vld [vmem:[#allocation25 + $0x170] sm:$0xff]
    %v4070 = vld [vmem:[#allocation25 + $0x178] sm:$0xff]
    %v4071 = vld [vmem:[#allocation25 + $0x180] sm:$0xff]
    %v4072 = vld [vmem:[#allocation25 + $0x188] sm:$0xff]
    %v4073 = vld [vmem:[#allocation25 + $0x190] sm:$0xff]
    %v4074 = vld [vmem:[#allocation25 + $0x198] sm:$0xff]
    %v4075 = vld [vmem:[#allocation25 + $0x1a0] sm:$0xff]
    %v4076 = vld [vmem:[#allocation25 + $0x1a8] sm:$0xff]
    %v4077 = vld [vmem:[#allocation25 + $0x1b0] sm:$0xff]
    %v4078 = vld [vmem:[#allocation25 + $0x1b8] sm:$0xff]
    %v4079 = vld [vmem:[#allocation25 + $0x1c0] sm:$0xff]
    %v4080 = vld [vmem:[#allocation25 + $0x1c8] sm:$0xff]
    %v4081 = vld [vmem:[#allocation25 + $0x1d0] sm:$0xff]
    %v4082 = vld [vmem:[#allocation25 + $0x1d8] sm:$0xff]
    %v4083 = vld [vmem:[#allocation25 + $0x1e0] sm:$0xff]
    %v4084 = vld [vmem:[#allocation25 + $0x1e8] sm:$0xff]
    %v4085 = vld [vmem:[#allocation25 + $0x1f0] sm:$0xff]
    %v4086 = vld [vmem:[#allocation25 + $0x1f8] sm:$0xff]
    %v4087 = vld [vmem:[#allocation25 + $0x200] sm:$0xff]
    %v4088 = vld [vmem:[#allocation25 + $0x208] sm:$0xff]
    %v4089 = vld [vmem:[#allocation25 + $0x210] sm:$0xff]
    %v4090 = vld [vmem:[#allocation25 + $0x218] sm:$0xff]
    %v4091 = vld [vmem:[#allocation25 + $0x220] sm:$0xff]
    %v4092 = vld [vmem:[#allocation25 + $0x228] sm:$0xff]
    %v4093 = vld [vmem:[#allocation25 + $0x230] sm:$0xff]
    %v4094 = vld [vmem:[#allocation25 + $0x238] sm:$0xff]
    %v4095 = vld [vmem:[#allocation25 + $0x240] sm:$0xff]
    %v4096 = vld [vmem:[#allocation25 + $0x248] sm:$0xff]
    %v4097 = vld [vmem:[#allocation25 + $0x250] sm:$0xff]
    %v4098 = vld [vmem:[#allocation25 + $0x258] sm:$0xff]
    %v4099 = vld [vmem:[#allocation25 + $0x260] sm:$0xff]
    %v4100 = vld [vmem:[#allocation25 + $0x268] sm:$0xff]
    %v4101 = vld [vmem:[#allocation25 + $0x270] sm:$0xff]
    %v4102 = vld [vmem:[#allocation25 + $0x278] sm:$0xff]
    %v4103 = vld [vmem:[#allocation25 + $0x280] sm:$0xff]
    %v4104 = vld [vmem:[#allocation25 + $0x288] sm:$0xff]
    %v4105 = vld [vmem:[#allocation25 + $0x290] sm:$0xff]
    %v4106 = vld [vmem:[#allocation25 + $0x298] sm:$0xff]
    %v4107 = vld [vmem:[#allocation25 + $0x2a0] sm:$0xff]
    %v4108 = vld [vmem:[#allocation25 + $0x2a8] sm:$0xff]
    %v4109 = vld [vmem:[#allocation25 + $0x2b0] sm:$0xff]
    %v4110 = vld [vmem:[#allocation25 + $0x2b8] sm:$0xff]
    %v4111 = vld [vmem:[#allocation25 + $0x2c0] sm:$0xff]
    %v4112 = vld [vmem:[#allocation25 + $0x2c8] sm:$0xff]
    %v4113 = vld [vmem:[#allocation25 + $0x2d0] sm:$0xff]
    %v4114 = vld [vmem:[#allocation25 + $0x2d8] sm:$0xff]
    %v4115 = vld [vmem:[#allocation25 + $0x2e0] sm:$0xff]
    %v4116 = vld [vmem:[#allocation25 + $0x2e8] sm:$0xff]
    %v4117 = vld [vmem:[#allocation25 + $0x2f0] sm:$0xff]
    %v4118 = vld [vmem:[#allocation25 + $0x2f8] sm:$0xff]
    %v4119 = vpack.c.bf16 %v4021, %v4021
    %v4120 = vpack.c.bf16 %v4022, %v4022
    %v4121 = vld [vmem:[%s45] sm:$0x3]
    %vm4122 = vcmask 64512
    %v4124 = vsel %vm4122, %v4121, 0
    %vm4126 = vcmask 1043456
    %v4128 = vsel %vm4126, %v4119, 0
    %v4131 = vsel %vm4126, %v4120, 0
    %4133 = vmatpush.bf16.msra.mxu0 0
    %4134 = vmatpush.bf16.msra.mxu0 0
    %4135 = vmatpush.bf16.msra.mxu0 0
    %4136 = vmatpush.bf16.msra.mxu0 0
    %4137 = vmatpush.bf16.msra.mxu0 0
    %4138 = vmatpush.bf16.msra.mxu0 0
    %4139 = vmatpush.bf16.msra.mxu0 0
    %4140 = vmatpush.bf16.msra.mxu0 %v4128
    %4141 = vmatmul.bf16.gmra.mxu0 %v4124
    %v4142 = vpop.f32.mrf.mxu0
    %v4143 = vadd.f32 0.0, %v4142
    %v4144 = vpop.f32.mrf.mxu0
    %4145 = vdwg.mxu0
    %4146 = vmatpush.bf16.msra.mxu0 0
    %4147 = vmatpush.bf16.msra.mxu0 0
    %4148 = vmatpush.bf16.msra.mxu0 0
    %4149 = vmatpush.bf16.msra.mxu0 0
    %4150 = vmatpush.bf16.msra.mxu0 0
    %4151 = vmatpush.bf16.msra.mxu0 0
    %4152 = vmatpush.bf16.msra.mxu0 0
    %4153 = vmatpush.bf16.msra.mxu0 %v4131
    %4154 = vmatmul.bf16.gmra.mxu0 %v4124
    %v4155 = vpop.f32.mrf.mxu0
    %v4156 = vadd.f32 0.0, %v4155
    %v4157 = vpop.f32.mrf.mxu0
    %4158 = vdwg.mxu0
    %s4159 = scalar_lea.vmem %s45, 2
    %v4160 = vld [vmem:[%s4159] sm:$0x3]
    %v4162 = vsel %vm4122, %v4160, 0
    %4164 = vmatpush.bf16.msra.mxu0 0
    %4165 = vmatpush.bf16.msra.mxu0 0
    %4166 = vmatpush.bf16.msra.mxu0 0
    %4167 = vmatpush.bf16.msra.mxu0 0
    %4168 = vmatpush.bf16.msra.mxu0 0
    %4169 = vmatpush.bf16.msra.mxu0 0
    %4170 = vmatpush.bf16.msra.mxu0 0
    %4171 = vmatpush.bf16.msra.mxu0 %v4128
    %4172 = vmatmul.bf16.gmra.mxu0 %v4162
    %v4173 = vpop.f32.mrf.mxu0
    %v4174 = vadd.f32 0.0, %v4173
    %v4175 = vpop.f32.mrf.mxu0
    %4176 = vdwg.mxu0
    %4177 = vmatpush.bf16.msra.mxu0 0
    %4178 = vmatpush.bf16.msra.mxu0 0
    %4179 = vmatpush.bf16.msra.mxu0 0
    %4180 = vmatpush.bf16.msra.mxu0 0
    %4181 = vmatpush.bf16.msra.mxu0 0
    %4182 = vmatpush.bf16.msra.mxu0 0
    %4183 = vmatpush.bf16.msra.mxu0 0
    %4184 = vmatpush.bf16.msra.mxu0 %v4131
    %4185 = vmatmul.bf16.gmra.mxu0 %v4162
    %v4186 = vpop.f32.mrf.mxu0
    %v4187 = vadd.f32 0.0, %v4186
    %v4188 = vpop.f32.mrf.mxu0
    %4189 = vdwg.mxu0
    %s4190 = scalar_lea.vmem %s45, 4
    %v4191 = vld [vmem:[%s4190] sm:$0x3]
    %v4193 = vsel %vm4122, %v4191, 0
    %4195 = vmatpush.bf16.msra.mxu0 0
    %4196 = vmatpush.bf16.msra.mxu0 0
    %4197 = vmatpush.bf16.msra.mxu0 0
    %4198 = vmatpush.bf16.msra.mxu0 0
    %4199 = vmatpush.bf16.msra.mxu0 0
    %4200 = vmatpush.bf16.msra.mxu0 0
    %4201 = vmatpush.bf16.msra.mxu0 0
    %4202 = vmatpush.bf16.msra.mxu0 %v4128
    %4203 = vmatmul.bf16.gmra.mxu0 %v4193
    %v4204 = vpop.f32.mrf.mxu0
    %v4205 = vadd.f32 0.0, %v4204
    %v4206 = vpop.f32.mrf.mxu0
    %4207 = vdwg.mxu0
    %4208 = vmatpush.bf16.msra.mxu0 0
    %4209 = vmatpush.bf16.msra.mxu0 0
    %4210 = vmatpush.bf16.msra.mxu0 0
    %4211 = vmatpush.bf16.msra.mxu0 0
    %4212 = vmatpush.bf16.msra.mxu0 0
    %4213 = vmatpush.bf16.msra.mxu0 0
    %4214 = vmatpush.bf16.msra.mxu0 0
    %4215 = vmatpush.bf16.msra.mxu0 %v4131
    %4216 = vmatmul.bf16.gmra.mxu0 %v4193
    %v4217 = vpop.f32.mrf.mxu0
    %v4218 = vadd.f32 0.0, %v4217
    %v4219 = vpop.f32.mrf.mxu0
    %4220 = vdwg.mxu0
    %v4221 = vpack.c.bf16 %v4143, %v4143
    %v4222 = vpack.c.bf16 %v4156, %v4156
    %v4223 = vpack.c.bf16 %v4174, %v4174
    %v4224 = vpack.c.bf16 %v4187, %v4187
    %v4225 = vpack.c.bf16 %v4205, %v4205
    %v4226 = vpack.c.bf16 %v4218, %v4218
    %v4227 = vld [vmem:[#allocation27] sm:$0x3]
    %v4229 = vperm.slane %v4227, 0
    %v4230 = vperm.slane %v4227, 1
    %v4329 = vunpack.c.l.b16 %v4023
    %v4330 = vunpack.c.h.b16 %v4023
    %v4331 = vunpack.c.l.b16 %v4024
    %v4332 = vunpack.c.h.b16 %v4024
    %v4333 = vunpack.c.l.b16 %v4025
    %v4334 = vunpack.c.h.b16 %v4025
    %v4335 = vunpack.c.l.b16 %v4026
    %v4336 = vunpack.c.h.b16 %v4026
    %v4337 = vunpack.c.l.b16 %v4027
    %v4338 = vunpack.c.h.b16 %v4027
    %v4339 = vunpack.c.l.b16 %v4028
    %v4340 = vunpack.c.h.b16 %v4028
    %v4341 = vunpack.c.l.b16 %v4029
    %v4342 = vunpack.c.h.b16 %v4029
    %v4343 = vunpack.c.l.b16 %v4030
    %v4344 = vunpack.c.h.b16 %v4030
    %v4345 = vunpack.c.l.b16 %v4031
    %v4346 = vunpack.c.h.b16 %v4031
    %v4347 = vunpack.c.l.b16 %v4032
    %v4348 = vunpack.c.h.b16 %v4032
    %v4349 = vunpack.c.l.b16 %v4033
    %v4350 = vunpack.c.h.b16 %v4033
    %v4351 = vunpack.c.l.b16 %v4034
    %v4352 = vunpack.c.h.b16 %v4034
    %v4353 = vunpack.c.l.b16 %v4035
    %v4354 = vunpack.c.h.b16 %v4035
    %v4355 = vunpack.c.l.b16 %v4036
    %v4356 = vunpack.c.h.b16 %v4036
    %v4357 = vunpack.c.l.b16 %v4037
    %v4358 = vunpack.c.h.b16 %v4037
    %v4359 = vunpack.c.l.b16 %v4038
    %v4360 = vunpack.c.h.b16 %v4038
    %v4361 = vunpack.c.l.b16 %v4039
    %v4362 = vunpack.c.h.b16 %v4039
    %v4363 = vunpack.c.l.b16 %v4040
    %v4364 = vunpack.c.h.b16 %v4040
    %v4365 = vunpack.c.l.b16 %v4041
    %v4366 = vunpack.c.h.b16 %v4041
    %v4367 = vunpack.c.l.b16 %v4042
    %v4368 = vunpack.c.h.b16 %v4042
    %v4369 = vunpack.c.l.b16 %v4043
    %v4370 = vunpack.c.h.b16 %v4043
    %v4371 = vunpack.c.l.b16 %v4044
    %v4372 = vunpack.c.h.b16 %v4044
    %v4373 = vunpack.c.l.b16 %v4045
    %v4374 = vunpack.c.h.b16 %v4045
    %v4375 = vunpack.c.l.b16 %v4046
    %v4376 = vunpack.c.h.b16 %v4046
    %v4377 = vunpack.c.l.b16 %v4047
    %v4378 = vunpack.c.h.b16 %v4047
    %v4379 = vunpack.c.l.b16 %v4048
    %v4380 = vunpack.c.h.b16 %v4048
    %v4381 = vunpack.c.l.b16 %v4049
    %v4382 = vunpack.c.h.b16 %v4049
    %v4383 = vunpack.c.l.b16 %v4050
    %v4384 = vunpack.c.h.b16 %v4050
    %v4385 = vunpack.c.l.b16 %v4051
    %v4386 = vunpack.c.h.b16 %v4051
    %v4387 = vunpack.c.l.b16 %v4052
    %v4388 = vunpack.c.h.b16 %v4052
    %v4389 = vunpack.c.l.b16 %v4053
    %v4390 = vunpack.c.h.b16 %v4053
    %v4391 = vunpack.c.l.b16 %v4054
    %v4392 = vunpack.c.h.b16 %v4054
    %v4393 = vunpack.c.l.b16 %v4055
    %v4394 = vunpack.c.h.b16 %v4055
    %v4395 = vunpack.c.l.b16 %v4056
    %v4396 = vunpack.c.h.b16 %v4056
    %v4397 = vunpack.c.l.b16 %v4057
    %v4398 = vunpack.c.h.b16 %v4057
    %v4399 = vunpack.c.l.b16 %v4058
    %v4400 = vunpack.c.h.b16 %v4058
    %v4401 = vunpack.c.l.b16 %v4059
    %v4402 = vunpack.c.h.b16 %v4059
    %v4403 = vunpack.c.l.b16 %v4060
    %v4404 = vunpack.c.h.b16 %v4060
    %v4405 = vunpack.c.l.b16 %v4061
    %v4406 = vunpack.c.h.b16 %v4061
    %v4407 = vunpack.c.l.b16 %v4062
    %v4408 = vunpack.c.h.b16 %v4062
    %v4409 = vunpack.c.l.b16 %v4063
    %v4410 = vunpack.c.h.b16 %v4063
    %v4411 = vunpack.c.l.b16 %v4064
    %v4412 = vunpack.c.h.b16 %v4064
    %v4413 = vunpack.c.l.b16 %v4065
    %v4414 = vunpack.c.h.b16 %v4065
    %v4415 = vunpack.c.l.b16 %v4066
    %v4416 = vunpack.c.h.b16 %v4066
    %v4417 = vunpack.c.l.b16 %v4067
    %v4418 = vunpack.c.h.b16 %v4067
    %v4419 = vunpack.c.l.b16 %v4068
    %v4420 = vunpack.c.h.b16 %v4068
    %v4421 = vunpack.c.l.b16 %v4069
    %v4422 = vunpack.c.h.b16 %v4069
    %v4423 = vunpack.c.l.b16 %v4070
    %v4424 = vunpack.c.h.b16 %v4070
    %v4425 = vunpack.c.l.b16 %v4071
    %v4426 = vunpack.c.h.b16 %v4071
    %v4427 = vunpack.c.l.b16 %v4072
    %v4428 = vunpack.c.h.b16 %v4072
    %v4429 = vunpack.c.l.b16 %v4073
    %v4430 = vunpack.c.h.b16 %v4073
    %v4431 = vunpack.c.l.b16 %v4074
    %v4432 = vunpack.c.h.b16 %v4074
    %v4433 = vunpack.c.l.b16 %v4075
    %v4434 = vunpack.c.h.b16 %v4075
    %v4435 = vunpack.c.l.b16 %v4076
    %v4436 = vunpack.c.h.b16 %v4076
    %v4437 = vunpack.c.l.b16 %v4077
    %v4438 = vunpack.c.h.b16 %v4077
    %v4439 = vunpack.c.l.b16 %v4078
    %v4440 = vunpack.c.h.b16 %v4078
    %v4441 = vunpack.c.l.b16 %v4079
    %v4442 = vunpack.c.h.b16 %v4079
    %v4443 = vunpack.c.l.b16 %v4080
    %v4444 = vunpack.c.h.b16 %v4080
    %v4445 = vunpack.c.l.b16 %v4081
    %v4446 = vunpack.c.h.b16 %v4081
    %v4447 = vunpack.c.l.b16 %v4082
    %v4448 = vunpack.c.h.b16 %v4082
    %v4449 = vunpack.c.l.b16 %v4083
    %v4450 = vunpack.c.h.b16 %v4083
    %v4451 = vunpack.c.l.b16 %v4084
    %v4452 = vunpack.c.h.b16 %v4084
    %v4453 = vunpack.c.l.b16 %v4085
    %v4454 = vunpack.c.h.b16 %v4085
    %v4455 = vunpack.c.l.b16 %v4086
    %v4456 = vunpack.c.h.b16 %v4086
    %v4457 = vunpack.c.l.b16 %v4087
    %v4458 = vunpack.c.h.b16 %v4087
    %v4459 = vunpack.c.l.b16 %v4088
    %v4460 = vunpack.c.h.b16 %v4088
    %v4461 = vunpack.c.l.b16 %v4089
    %v4462 = vunpack.c.h.b16 %v4089
    %v4463 = vunpack.c.l.b16 %v4090
    %v4464 = vunpack.c.h.b16 %v4090
    %v4465 = vunpack.c.l.b16 %v4091
    %v4466 = vunpack.c.h.b16 %v4091
    %v4467 = vunpack.c.l.b16 %v4092
    %v4468 = vunpack.c.h.b16 %v4092
    %v4469 = vunpack.c.l.b16 %v4093
    %v4470 = vunpack.c.h.b16 %v4093
    %v4471 = vunpack.c.l.b16 %v4094
    %v4472 = vunpack.c.h.b16 %v4094
    %v4473 = vunpack.c.l.b16 %v4095
    %v4474 = vunpack.c.h.b16 %v4095
    %v4475 = vunpack.c.l.b16 %v4096
    %v4476 = vunpack.c.h.b16 %v4096
    %v4477 = vunpack.c.l.b16 %v4097
    %v4478 = vunpack.c.h.b16 %v4097
    %v4479 = vunpack.c.l.b16 %v4098
    %v4480 = vunpack.c.h.b16 %v4098
    %v4481 = vunpack.c.l.b16 %v4099
    %v4482 = vunpack.c.h.b16 %v4099
    %v4483 = vunpack.c.l.b16 %v4100
    %v4484 = vunpack.c.h.b16 %v4100
    %v4485 = vunpack.c.l.b16 %v4101
    %v4486 = vunpack.c.h.b16 %v4101
    %v4487 = vunpack.c.l.b16 %v4102
    %v4488 = vunpack.c.h.b16 %v4102
    %v4489 = vunpack.c.l.b16 %v4103
    %v4490 = vunpack.c.h.b16 %v4103
    %v4491 = vunpack.c.l.b16 %v4104
    %v4492 = vunpack.c.h.b16 %v4104
    %v4493 = vunpack.c.l.b16 %v4105
    %v4494 = vunpack.c.h.b16 %v4105
    %v4495 = vunpack.c.l.b16 %v4106
    %v4496 = vunpack.c.h.b16 %v4106
    %v4497 = vunpack.c.l.b16 %v4107
    %v4498 = vunpack.c.h.b16 %v4107
    %v4499 = vunpack.c.l.b16 %v4108
    %v4500 = vunpack.c.h.b16 %v4108
    %v4501 = vunpack.c.l.b16 %v4109
    %v4502 = vunpack.c.h.b16 %v4109
    %v4503 = vunpack.c.l.b16 %v4110
    %v4504 = vunpack.c.h.b16 %v4110
    %v4505 = vunpack.c.l.b16 %v4111
    %v4506 = vunpack.c.h.b16 %v4111
    %v4507 = vunpack.c.l.b16 %v4112
    %v4508 = vunpack.c.h.b16 %v4112
    %v4509 = vunpack.c.l.b16 %v4113
    %v4510 = vunpack.c.h.b16 %v4113
    %v4511 = vunpack.c.l.b16 %v4114
    %v4512 = vunpack.c.h.b16 %v4114
    %v4513 = vunpack.c.l.b16 %v4115
    %v4514 = vunpack.c.h.b16 %v4115
    %v4515 = vunpack.c.l.b16 %v4116
    %v4516 = vunpack.c.h.b16 %v4116
    %v4517 = vunpack.c.l.b16 %v4117
    %v4518 = vunpack.c.h.b16 %v4117
    %v4519 = vunpack.c.l.b16 %v4118
    %v4520 = vunpack.c.h.b16 %v4118
    %v4521 = vpack.c.b16 %v4331, %v4329
    %v4522 = vpack.c.b16 %v4332, %v4330
    %v4523 = vpack.c.b16 %v4335, %v4333
    %v4524 = vpack.c.b16 %v4336, %v4334
    %v4525 = vpack.c.b16 %v4339, %v4337
    %v4526 = vpack.c.b16 %v4340, %v4338
    %v4527 = vpack.c.b16 %v4343, %v4341
    %v4528 = vpack.c.b16 %v4344, %v4342
    %v4529 = vpack.c.b16 %v4347, %v4345
    %v4530 = vpack.c.b16 %v4348, %v4346
    %v4531 = vpack.c.b16 %v4351, %v4349
    %v4532 = vpack.c.b16 %v4352, %v4350
    %v4533 = vpack.c.b16 %v4355, %v4353
    %v4534 = vpack.c.b16 %v4356, %v4354
    %v4535 = vpack.c.b16 %v4359, %v4357
    %v4536 = vpack.c.b16 %v4360, %v4358
    %v4537 = vpack.c.b16 %v4363, %v4361
    %v4538 = vpack.c.b16 %v4364, %v4362
    %v4539 = vpack.c.b16 %v4367, %v4365
    %v4540 = vpack.c.b16 %v4368, %v4366
    %v4541 = vpack.c.b16 %v4371, %v4369
    %v4542 = vpack.c.b16 %v4372, %v4370
    %v4543 = vpack.c.b16 %v4375, %v4373
    %v4544 = vpack.c.b16 %v4376, %v4374
    %v4545 = vpack.c.b16 %v4379, %v4377
    %v4546 = vpack.c.b16 %v4380, %v4378
    %v4547 = vpack.c.b16 %v4383, %v4381
    %v4548 = vpack.c.b16 %v4384, %v4382
    %v4549 = vpack.c.b16 %v4387, %v4385
    %v4550 = vpack.c.b16 %v4388, %v4386
    %v4551 = vpack.c.b16 %v4391, %v4389
    %v4552 = vpack.c.b16 %v4392, %v4390
    %v4553 = vpack.c.b16 %v4395, %v4393
    %v4554 = vpack.c.b16 %v4396, %v4394
    %v4555 = vpack.c.b16 %v4399, %v4397
    %v4556 = vpack.c.b16 %v4400, %v4398
    %v4557 = vpack.c.b16 %v4403, %v4401
    %v4558 = vpack.c.b16 %v4404, %v4402
    %v4559 = vpack.c.b16 %v4407, %v4405
    %v4560 = vpack.c.b16 %v4408, %v4406
    %v4561 = vpack.c.b16 %v4411, %v4409
    %v4562 = vpack.c.b16 %v4412, %v4410
    %v4563 = vpack.c.b16 %v4415, %v4413
    %v4564 = vpack.c.b16 %v4416, %v4414
    %v4565 = vpack.c.b16 %v4419, %v4417
    %v4566 = vpack.c.b16 %v4420, %v4418
    %v4567 = vpack.c.b16 %v4423, %v4421
    %v4568 = vpack.c.b16 %v4424, %v4422
    %v4569 = vpack.c.b16 %v4427, %v4425
    %v4570 = vpack.c.b16 %v4428, %v4426
    %v4571 = vpack.c.b16 %v4431, %v4429
    %v4572 = vpack.c.b16 %v4432, %v4430
    %v4573 = vpack.c.b16 %v4435, %v4433
    %v4574 = vpack.c.b16 %v4436, %v4434
    %v4575 = vpack.c.b16 %v4439, %v4437
    %v4576 = vpack.c.b16 %v4440, %v4438
    %v4577 = vpack.c.b16 %v4443, %v4441
    %v4578 = vpack.c.b16 %v4444, %v4442
    %v4579 = vpack.c.b16 %v4447, %v4445
    %v4580 = vpack.c.b16 %v4448, %v4446
    %v4581 = vpack.c.b16 %v4451, %v4449
    %v4582 = vpack.c.b16 %v4452, %v4450
    %v4583 = vpack.c.b16 %v4455, %v4453
    %v4584 = vpack.c.b16 %v4456, %v4454
    %v4585 = vpack.c.b16 %v4459, %v4457
    %v4586 = vpack.c.b16 %v4460, %v4458
    %v4587 = vpack.c.b16 %v4463, %v4461
    %v4588 = vpack.c.b16 %v4464, %v4462
    %v4589 = vpack.c.b16 %v4467, %v4465
    %v4590 = vpack.c.b16 %v4468, %v4466
    %v4591 = vpack.c.b16 %v4471, %v4469
    %v4592 = vpack.c.b16 %v4472, %v4470
    %v4593 = vpack.c.b16 %v4475, %v4473
    %v4594 = vpack.c.b16 %v4476, %v4474
    %v4595 = vpack.c.b16 %v4479, %v4477
    %v4596 = vpack.c.b16 %v4480, %v4478
    %v4597 = vpack.c.b16 %v4483, %v4481
    %v4598 = vpack.c.b16 %v4484, %v4482
    %v4599 = vpack.c.b16 %v4487, %v4485
    %v4600 = vpack.c.b16 %v4488, %v4486
    %v4601 = vpack.c.b16 %v4491, %v4489
    %v4602 = vpack.c.b16 %v4492, %v4490
    %v4603 = vpack.c.b16 %v4495, %v4493
    %v4604 = vpack.c.b16 %v4496, %v4494
    %v4605 = vpack.c.b16 %v4499, %v4497
    %v4606 = vpack.c.b16 %v4500, %v4498
    %v4607 = vpack.c.b16 %v4503, %v4501
    %v4608 = vpack.c.b16 %v4504, %v4502
    %v4609 = vpack.c.b16 %v4507, %v4505
    %v4610 = vpack.c.b16 %v4508, %v4506
    %v4611 = vpack.c.b16 %v4511, %v4509
    %v4612 = vpack.c.b16 %v4512, %v4510
    %v4613 = vpack.c.b16 %v4515, %v4513
    %v4614 = vpack.c.b16 %v4516, %v4514
    %v4615 = vpack.c.b16 %v4519, %v4517
    %v4616 = vpack.c.b16 %v4520, %v4518
    %4713 = vmatpush.bf16.msra.mxu0 %v4535
    %4714 = vmatpush.bf16.msra.mxu0 %v4533
    %4715 = vmatpush.bf16.msra.mxu0 %v4531
    %4716 = vmatpush.bf16.msra.mxu0 %v4529
    %4717 = vmatpush.bf16.msra.mxu0 %v4527
    %4718 = vmatpush.bf16.msra.mxu0 %v4525
    %4719 = vmatpush.bf16.msra.mxu0 %v4523
    %4720 = vmatpush.bf16.msra.mxu0 %v4521
    %4721 = vmatmul.bf16.gmra.mxu0 %v4221
    %v4722 = vpop.f32.mrf.mxu0
    %v4723 = vadd.f32 %v4229, %v4722
    %v4724 = vpop.f32.mrf.mxu0
    %4725 = vdwg.mxu0
    %4726 = vmatpush.bf16.msra.mxu0 %v4551
    %4727 = vmatpush.bf16.msra.mxu0 %v4549
    %4728 = vmatpush.bf16.msra.mxu0 %v4547
    %4729 = vmatpush.bf16.msra.mxu0 %v4545
    %4730 = vmatpush.bf16.msra.mxu0 %v4543
    %4731 = vmatpush.bf16.msra.mxu0 %v4541
    %4732 = vmatpush.bf16.msra.mxu0 %v4539
    %4733 = vmatpush.bf16.msra.mxu0 %v4537
    %4734 = vmatmul.bf16.gmra.mxu0 %v4222
    %v4735 = vpop.f32.mrf.mxu0
    %v4736 = vadd.f32 %v4723, %v4735
    %v4737 = vpop.f32.mrf.mxu0
    %4738 = vdwg.mxu0
    %4739 = vmatpush.bf16.msra.mxu0 %v4567
    %4740 = vmatpush.bf16.msra.mxu0 %v4565
    %4741 = vmatpush.bf16.msra.mxu0 %v4563
    %4742 = vmatpush.bf16.msra.mxu0 %v4561
    %4743 = vmatpush.bf16.msra.mxu0 %v4559
    %4744 = vmatpush.bf16.msra.mxu0 %v4557
    %4745 = vmatpush.bf16.msra.mxu0 %v4555
    %4746 = vmatpush.bf16.msra.mxu0 %v4553
    %4747 = vmatmul.bf16.gmra.mxu0 %v4223
    %v4748 = vpop.f32.mrf.mxu0
    %v4749 = vadd.f32 %v4736, %v4748
    %v4750 = vpop.f32.mrf.mxu0
    %4751 = vdwg.mxu0
    %4752 = vmatpush.bf16.msra.mxu0 %v4583
    %4753 = vmatpush.bf16.msra.mxu0 %v4581
    %4754 = vmatpush.bf16.msra.mxu0 %v4579
    %4755 = vmatpush.bf16.msra.mxu0 %v4577
    %4756 = vmatpush.bf16.msra.mxu0 %v4575
    %4757 = vmatpush.bf16.msra.mxu0 %v4573
    %4758 = vmatpush.bf16.msra.mxu0 %v4571
    %4759 = vmatpush.bf16.msra.mxu0 %v4569
    %4760 = vmatmul.bf16.gmra.mxu0 %v4224
    %v4761 = vpop.f32.mrf.mxu0
    %v4762 = vadd.f32 %v4749, %v4761
    %v4763 = vpop.f32.mrf.mxu0
    %4764 = vdwg.mxu0
    %4765 = vmatpush.bf16.msra.mxu0 %v4599
    %4766 = vmatpush.bf16.msra.mxu0 %v4597
    %4767 = vmatpush.bf16.msra.mxu0 %v4595
    %4768 = vmatpush.bf16.msra.mxu0 %v4593
    %4769 = vmatpush.bf16.msra.mxu0 %v4591
    %4770 = vmatpush.bf16.msra.mxu0 %v4589
    %4771 = vmatpush.bf16.msra.mxu0 %v4587
    %4772 = vmatpush.bf16.msra.mxu0 %v4585
    %4773 = vmatmul.bf16.gmra.mxu0 %v4225
    %v4774 = vpop.f32.mrf.mxu0
    %v4775 = vadd.f32 %v4762, %v4774
    %v4776 = vpop.f32.mrf.mxu0
    %4777 = vdwg.mxu0
    %4778 = vmatpush.bf16.msra.mxu0 %v4615
    %4779 = vmatpush.bf16.msra.mxu0 %v4613
    %4780 = vmatpush.bf16.msra.mxu0 %v4611
    %4781 = vmatpush.bf16.msra.mxu0 %v4609
    %4782 = vmatpush.bf16.msra.mxu0 %v4607
    %4783 = vmatpush.bf16.msra.mxu0 %v4605
    %4784 = vmatpush.bf16.msra.mxu0 %v4603
    %4785 = vmatpush.bf16.msra.mxu0 %v4601
    %4786 = vmatmul.bf16.gmra.mxu0 %v4226
    %v4787 = vpop.f32.mrf.mxu0
    %v4788 = vadd.f32 %v4775, %v4787
    %v4789 = vpop.f32.mrf.mxu0
    %4790 = vdwg.mxu0
    %4791 = vmatpush.bf16.msra.mxu0 %v4536
    %4792 = vmatpush.bf16.msra.mxu0 %v4534
    %4793 = vmatpush.bf16.msra.mxu0 %v4532
    %4794 = vmatpush.bf16.msra.mxu0 %v4530
    %4795 = vmatpush.bf16.msra.mxu0 %v4528
    %4796 = vmatpush.bf16.msra.mxu0 %v4526
    %4797 = vmatpush.bf16.msra.mxu0 %v4524
    %4798 = vmatpush.bf16.msra.mxu0 %v4522
    %4799 = vmatmul.bf16.gmra.mxu0 %v4221
    %v4800 = vpop.f32.mrf.mxu0
    %v4801 = vadd.f32 %v4230, %v4800
    %v4802 = vpop.f32.mrf.mxu0
    %4803 = vdwg.mxu0
    %4804 = vmatpush.bf16.msra.mxu0 %v4552
    %4805 = vmatpush.bf16.msra.mxu0 %v4550
    %4806 = vmatpush.bf16.msra.mxu0 %v4548
    %4807 = vmatpush.bf16.msra.mxu0 %v4546
    %4808 = vmatpush.bf16.msra.mxu0 %v4544
    %4809 = vmatpush.bf16.msra.mxu0 %v4542
    %4810 = vmatpush.bf16.msra.mxu0 %v4540
    %4811 = vmatpush.bf16.msra.mxu0 %v4538
    %4812 = vmatmul.bf16.gmra.mxu0 %v4222
    %v4813 = vpop.f32.mrf.mxu0
    %v4814 = vadd.f32 %v4801, %v4813
    %v4815 = vpop.f32.mrf.mxu0
    %4816 = vdwg.mxu0
    %4817 = vmatpush.bf16.msra.mxu0 %v4568
    %4818 = vmatpush.bf16.msra.mxu0 %v4566
    %4819 = vmatpush.bf16.msra.mxu0 %v4564
    %4820 = vmatpush.bf16.msra.mxu0 %v4562
    %4821 = vmatpush.bf16.msra.mxu0 %v4560
    %4822 = vmatpush.bf16.msra.mxu0 %v4558
    %4823 = vmatpush.bf16.msra.mxu0 %v4556
    %4824 = vmatpush.bf16.msra.mxu0 %v4554
    %4825 = vmatmul.bf16.gmra.mxu0 %v4223
    %v4826 = vpop.f32.mrf.mxu0
    %v4827 = vadd.f32 %v4814, %v4826
    %v4828 = vpop.f32.mrf.mxu0
    %4829 = vdwg.mxu0
    %4830 = vmatpush.bf16.msra.mxu0 %v4584
    %4831 = vmatpush.bf16.msra.mxu0 %v4582
    %4832 = vmatpush.bf16.msra.mxu0 %v4580
    %4833 = vmatpush.bf16.msra.mxu0 %v4578
    %4834 = vmatpush.bf16.msra.mxu0 %v4576
    %4835 = vmatpush.bf16.msra.mxu0 %v4574
    %4836 = vmatpush.bf16.msra.mxu0 %v4572
    %4837 = vmatpush.bf16.msra.mxu0 %v4570
    %4838 = vmatmul.bf16.gmra.mxu0 %v4224
    %v4839 = vpop.f32.mrf.mxu0
    %v4840 = vadd.f32 %v4827, %v4839
    %v4841 = vpop.f32.mrf.mxu0
    %4842 = vdwg.mxu0
    %4843 = vmatpush.bf16.msra.mxu0 %v4600
    %4844 = vmatpush.bf16.msra.mxu0 %v4598
    %4845 = vmatpush.bf16.msra.mxu0 %v4596
    %4846 = vmatpush.bf16.msra.mxu0 %v4594
    %4847 = vmatpush.bf16.msra.mxu0 %v4592
    %4848 = vmatpush.bf16.msra.mxu0 %v4590
    %4849 = vmatpush.bf16.msra.mxu0 %v4588
    %4850 = vmatpush.bf16.msra.mxu0 %v4586
    %4851 = vmatmul.bf16.gmra.mxu0 %v4225
    %v4852 = vpop.f32.mrf.mxu0
    %v4853 = vadd.f32 %v4840, %v4852
    %v4854 = vpop.f32.mrf.mxu0
    %4855 = vdwg.mxu0
    %4856 = vmatpush.bf16.msra.mxu0 %v4616
    %4857 = vmatpush.bf16.msra.mxu0 %v4614
    %4858 = vmatpush.bf16.msra.mxu0 %v4612
    %4859 = vmatpush.bf16.msra.mxu0 %v4610
    %4860 = vmatpush.bf16.msra.mxu0 %v4608
    %4861 = vmatpush.bf16.msra.mxu0 %v4606
    %4862 = vmatpush.bf16.msra.mxu0 %v4604
    %4863 = vmatpush.bf16.msra.mxu0 %v4602
    %4864 = vmatmul.bf16.gmra.mxu0 %v4226
    %v4865 = vpop.f32.mrf.mxu0
    %v4866 = vadd.f32 %v4853, %v4865
    %v4867 = vpop.f32.mrf.mxu0
    %4868 = vdwg.mxu0
    %v4869 = vmax.f32 %v4788, 0.0
    %v4870 = vmax.f32 %v4866, 0.0
    %v4871 = vld [vmem:[#allocation28] sm:$0xff]
    %v4872 = vld [vmem:[#allocation28 + $0x8] sm:$0xff]
    %v4873 = vld [vmem:[#allocation28 + $0x10] sm:$0xff]
    %v4874 = vld [vmem:[#allocation28 + $0x18] sm:$0xff]
    %v4875 = vld [vmem:[#allocation28 + $0x20] sm:$0xff]
    %v4876 = vld [vmem:[#allocation28 + $0x28] sm:$0xff]
    %v4877 = vld [vmem:[#allocation28 + $0x30] sm:$0xff]
    %v4878 = vld [vmem:[#allocation28 + $0x38] sm:$0xff]
    %v4879 = vld [vmem:[#allocation28 + $0x40] sm:$0xff]
    %v4880 = vld [vmem:[#allocation28 + $0x48] sm:$0xff]
    %v4881 = vld [vmem:[#allocation28 + $0x50] sm:$0xff]
    %v4882 = vld [vmem:[#allocation28 + $0x58] sm:$0xff]
    %v4883 = vld [vmem:[#allocation28 + $0x60] sm:$0xff]
    %v4884 = vld [vmem:[#allocation28 + $0x68] sm:$0xff]
    %v4885 = vld [vmem:[#allocation28 + $0x70] sm:$0xff]
    %v4886 = vld [vmem:[#allocation28 + $0x78] sm:$0xff]
    %v4887 = vld [vmem:[#allocation28 + $0x80] sm:$0xff]
    %v4888 = vld [vmem:[#allocation28 + $0x88] sm:$0xff]
    %v4889 = vld [vmem:[#allocation28 + $0x90] sm:$0xff]
    %v4890 = vld [vmem:[#allocation28 + $0x98] sm:$0xff]
    %v4891 = vld [vmem:[#allocation28 + $0xa0] sm:$0xff]
    %v4892 = vld [vmem:[#allocation28 + $0xa8] sm:$0xff]
    %v4893 = vld [vmem:[#allocation28 + $0xb0] sm:$0xff]
    %v4894 = vld [vmem:[#allocation28 + $0xb8] sm:$0xff]
    %v4895 = vld [vmem:[#allocation28 + $0xc0] sm:$0xff]
    %v4896 = vld [vmem:[#allocation28 + $0xc8] sm:$0xff]
    %v4897 = vld [vmem:[#allocation28 + $0xd0] sm:$0xff]
    %v4898 = vld [vmem:[#allocation28 + $0xd8] sm:$0xff]
    %v4899 = vld [vmem:[#allocation28 + $0xe0] sm:$0xff]
    %v4900 = vld [vmem:[#allocation28 + $0xe8] sm:$0xff]
    %v4901 = vld [vmem:[#allocation28 + $0xf0] sm:$0xff]
    %v4902 = vld [vmem:[#allocation28 + $0xf8] sm:$0xff]
    %v4903 = vld [vmem:[#allocation30] sm:$0xff]
    %v4904 = vld [vmem:[#allocation30 + $0x8] sm:$0xff]
    %v4905 = vld [vmem:[#allocation30 + $0x10] sm:$0xff]
    %v4906 = vld [vmem:[#allocation30 + $0x18] sm:$0xff]
    %v4907 = vld [vmem:[#allocation30 + $0x20] sm:$0xff]
    %v4908 = vld [vmem:[#allocation30 + $0x28] sm:$0xff]
    %v4909 = vld [vmem:[#allocation30 + $0x30] sm:$0xff]
    %v4910 = vld [vmem:[#allocation30 + $0x38] sm:$0xff]
    %v4911 = vld [vmem:[#allocation30 + $0x40] sm:$0xff]
    %v4912 = vld [vmem:[#allocation30 + $0x48] sm:$0xff]
    %v4913 = vld [vmem:[#allocation30 + $0x50] sm:$0xff]
    %v4914 = vld [vmem:[#allocation30 + $0x58] sm:$0xff]
    %v4915 = vld [vmem:[#allocation30 + $0x60] sm:$0xff]
    %v4916 = vld [vmem:[#allocation30 + $0x68] sm:$0xff]
    %v4917 = vld [vmem:[#allocation30 + $0x70] sm:$0xff]
    %v4918 = vld [vmem:[#allocation30 + $0x78] sm:$0xff]
    %v4919 = vld [vmem:[#allocation30 + $0x80] sm:$0xff]
    %v4920 = vld [vmem:[#allocation30 + $0x88] sm:$0xff]
    %v4921 = vld [vmem:[#allocation30 + $0x90] sm:$0xff]
    %v4922 = vld [vmem:[#allocation30 + $0x98] sm:$0xff]
    %v4923 = vld [vmem:[#allocation30 + $0xa0] sm:$0xff]
    %v4924 = vld [vmem:[#allocation30 + $0xa8] sm:$0xff]
    %v4925 = vld [vmem:[#allocation30 + $0xb0] sm:$0xff]
    %v4926 = vld [vmem:[#allocation30 + $0xb8] sm:$0xff]
    %v4927 = vld [vmem:[#allocation30 + $0xc0] sm:$0xff]
    %v4928 = vld [vmem:[#allocation30 + $0xc8] sm:$0xff]
    %v4929 = vld [vmem:[#allocation30 + $0xd0] sm:$0xff]
    %v4930 = vld [vmem:[#allocation30 + $0xd8] sm:$0xff]
    %v4931 = vld [vmem:[#allocation30 + $0xe0] sm:$0xff]
    %v4932 = vld [vmem:[#allocation30 + $0xe8] sm:$0xff]
    %v4933 = vld [vmem:[#allocation30 + $0xf0] sm:$0xff]
    %v4934 = vld [vmem:[#allocation30 + $0xf8] sm:$0xff]
    %v4935 = vld [vmem:[%s51] sm:$0x1]
    %v4936 = vld [vmem:[%s53] sm:$0x1]
    %v4937 = vsel %vm4126, %v4869, 0.0
    %v4938 = vrot.slane %v4937, 4
    %v4939 = vadd.f32 %v4937, %v4938
    %v4940 = vrot.slane %v4939, 2
    %v4941 = vadd.f32 %v4939, %v4940
    %v4942 = vrot.slane %v4941, 1
    %v4943 = vadd.f32 %v4941, %v4942
    %v4944 = vsel %vm4126, %v4870, 0.0
    %v4945 = vrot.slane %v4944, 4
    %v4946 = vadd.f32 %v4944, %v4945
    %v4947 = vrot.slane %v4946, 2
    %v4948 = vadd.f32 %v4946, %v4947
    %v4949 = vrot.slane %v4948, 1
    %v4950 = vadd.f32 %v4948, %v4949
    %4951 = vmatpush.msra.mxu0 %v4886
    %4952 = vmatpush.msra.mxu0 %v4885
    %4953 = vmatpush.msra.mxu0 %v4884
    %4954 = vmatpush.msra.mxu0 %v4883
    %4955 = vmatpush.msra.mxu0 %v4882
    %4956 = vmatpush.msra.mxu0 %v4881
    %4957 = vmatpush.msra.mxu0 %v4880
    %4958 = vmatpush.msra.mxu0 %v4879
    %4959 = vmatpush.msra.mxu0 %v4878
    %4960 = vmatpush.msra.mxu0 %v4877
    %4961 = vmatpush.msra.mxu0 %v4876
    %4962 = vmatpush.msra.mxu0 %v4875
    %4963 = vmatpush.msra.mxu0 %v4874
    %4964 = vmatpush.msra.mxu0 %v4873
    %4965 = vmatpush.msra.mxu0 %v4872
    %4966 = vmatpush.msra.mxu0 %v4871
    %4967 = vmatmul.f32.gmra.mxu0 %v4943
    %v4968 = vpop.f32.mrf.mxu0
    %v4969 = vadd.f32 0.0, %v4968
    %4970 = vdwg.mxu0
    %4971 = vmatpush.msra.mxu0 %v4902
    %4972 = vmatpush.msra.mxu0 %v4901
    %4973 = vmatpush.msra.mxu0 %v4900
    %4974 = vmatpush.msra.mxu0 %v4899
    %4975 = vmatpush.msra.mxu0 %v4898
    %4976 = vmatpush.msra.mxu0 %v4897
    %4977 = vmatpush.msra.mxu0 %v4896
    %4978 = vmatpush.msra.mxu0 %v4895
    %4979 = vmatpush.msra.mxu0 %v4894
    %4980 = vmatpush.msra.mxu0 %v4893
    %4981 = vmatpush.msra.mxu0 %v4892
    %4982 = vmatpush.msra.mxu0 %v4891
    %4983 = vmatpush.msra.mxu0 %v4890
    %4984 = vmatpush.msra.mxu0 %v4889
    %4985 = vmatpush.msra.mxu0 %v4888
    %4986 = vmatpush.msra.mxu0 %v4887
    %4987 = vmatmul.f32.gmra.mxu0 %v4950
    %v4988 = vpop.f32.mrf.mxu0
    %v4989 = vadd.f32 %v4969, %v4988
    %4990 = vdwg.mxu0
    %v4991 = vmul.f32 %v4989, 0.125
    %4992 = vmatpush.msra.mxu0 %v4933
    %4993 = vmatpush.msra.mxu0 %v4931
    %4994 = vmatpush.msra.mxu0 %v4929
    %4995 = vmatpush.msra.mxu0 %v4927
    %4996 = vmatpush.msra.mxu0 %v4925
    %4997 = vmatpush.msra.mxu0 %v4923
    %4998 = vmatpush.msra.mxu0 %v4921
    %4999 = vmatpush.msra.mxu0 %v4919
    %5000 = vmatpush.msra.mxu0 %v4917
    %5001 = vmatpush.msra.mxu0 %v4915
    %5002 = vmatpush.msra.mxu0 %v4913
    %5003 = vmatpush.msra.mxu0 %v4911
    %5004 = vmatpush.msra.mxu0 %v4909
    %5005 = vmatpush.msra.mxu0 %v4907
    %5006 = vmatpush.msra.mxu0 %v4905
    %5007 = vmatpush.msra.mxu0 %v4903
    %5008 = vmatmul.f32.gmra.mxu0 %v4991
    %v5009 = vpop.f32.mrf.mxu0
    %v5010 = vadd.f32 0.0, %v5009
    %5011 = vdwg.mxu0
    %5012 = vmatpush.msra.mxu0 %v4934
    %5013 = vmatpush.msra.mxu0 %v4932
    %5014 = vmatpush.msra.mxu0 %v4930
    %5015 = vmatpush.msra.mxu0 %v4928
    %5016 = vmatpush.msra.mxu0 %v4926
    %5017 = vmatpush.msra.mxu0 %v4924
    %5018 = vmatpush.msra.mxu0 %v4922
    %5019 = vmatpush.msra.mxu0 %v4920
    %5020 = vmatpush.msra.mxu0 %v4918
    %5021 = vmatpush.msra.mxu0 %v4916
    %5022 = vmatpush.msra.mxu0 %v4914
    %5023 = vmatpush.msra.mxu0 %v4912
    %5024 = vmatpush.msra.mxu0 %v4910
    %5025 = vmatpush.msra.mxu0 %v4908
    %5026 = vmatpush.msra.mxu0 %v4906
    %5027 = vmatpush.msra.mxu0 %v4904
    %5028 = vmatmul.f32.gmra.mxu0 %v4991
    %v5029 = vpop.f32.mrf.mxu0
    %v5030 = vadd.f32 0.0, %v5029
    %5031 = vdwg.mxu0
    %v5032 = vperm.slane %v5010, 0
    %v5033 = vperm.slane %v5030, 0
    %v5034 = vsub.f32 %v4869, %v5032
    %v5035 = vsub.f32 %v4870, %v5033
    %v5036 = vmul.f32 %v5034, %v5034
    %v5037 = vmul.f32 %v5035, %v5035
    %v5038 = vsel %vm4126, %v5036, 0.0
    %v5039 = vrot.slane %v5038, 4
    %v5040 = vadd.f32 %v5038, %v5039
    %v5041 = vrot.slane %v5040, 2
    %v5042 = vadd.f32 %v5040, %v5041
    %v5043 = vrot.slane %v5042, 1
    %v5044 = vadd.f32 %v5042, %v5043
    %v5045 = vsel %vm4126, %v5037, 0.0
    %v5046 = vrot.slane %v5045, 4
    %v5047 = vadd.f32 %v5045, %v5046
    %v5048 = vrot.slane %v5047, 2
    %v5049 = vadd.f32 %v5047, %v5048
    %v5050 = vrot.slane %v5049, 1
    %v5051 = vadd.f32 %v5049, %v5050
    %5052 = vmatpush.msra.mxu0 %v4886
    %5053 = vmatpush.msra.mxu0 %v4885
    %5054 = vmatpush.msra.mxu0 %v4884
    %5055 = vmatpush.msra.mxu0 %v4883
    %5056 = vmatpush.msra.mxu0 %v4882
    %5057 = vmatpush.msra.mxu0 %v4881
    %5058 = vmatpush.msra.mxu0 %v4880
    %5059 = vmatpush.msra.mxu0 %v4879
    %5060 = vmatpush.msra.mxu0 %v4878
    %5061 = vmatpush.msra.mxu0 %v4877
    %5062 = vmatpush.msra.mxu0 %v4876
    %5063 = vmatpush.msra.mxu0 %v4875
    %5064 = vmatpush.msra.mxu0 %v4874
    %5065 = vmatpush.msra.mxu0 %v4873
    %5066 = vmatpush.msra.mxu0 %v4872
    %5067 = vmatpush.msra.mxu0 %v4871
    %5068 = vmatmul.f32.gmra.mxu0 %v5044
    %v5069 = vpop.f32.mrf.mxu0
    %v5070 = vadd.f32 0.0, %v5069
    %5071 = vdwg.mxu0
    %5072 = vmatpush.msra.mxu0 %v4902
    %5073 = vmatpush.msra.mxu0 %v4901
    %5074 = vmatpush.msra.mxu0 %v4900
    %5075 = vmatpush.msra.mxu0 %v4899
    %5076 = vmatpush.msra.mxu0 %v4898
    %5077 = vmatpush.msra.mxu0 %v4897
    %5078 = vmatpush.msra.mxu0 %v4896
    %5079 = vmatpush.msra.mxu0 %v4895
    %5080 = vmatpush.msra.mxu0 %v4894
    %5081 = vmatpush.msra.mxu0 %v4893
    %5082 = vmatpush.msra.mxu0 %v4892
    %5083 = vmatpush.msra.mxu0 %v4891
    %5084 = vmatpush.msra.mxu0 %v4890
    %5085 = vmatpush.msra.mxu0 %v4889
    %5086 = vmatpush.msra.mxu0 %v4888
    %5087 = vmatpush.msra.mxu0 %v4887
    %5088 = vmatmul.f32.gmra.mxu0 %v5051
    %v5089 = vpop.f32.mrf.mxu0
    %v5090 = vadd.f32 %v5070, %v5089
    %5091 = vdwg.mxu0
    %v5092 = vmul.f32 %v5090, 0.125
    %v5093 = vadd.f32 %v5092, 1e-05
    %v5094 = vrsqrt.pop %v5093
    %v5095 = vmul.f32 %v5094, %v5093
    %v5096 = vmul.f32 %v5095, %v5094
    %v5097 = vmul.f32 0.5, %v5096
    %v5098 = vsub.f32 1.5, %v5097
    %v5099 = vmul.f32 %v5094, %v5098
    %vm5100 = vweird.f32 %v5093
    %vm5101 = vweird.f32 %v5094
    %vm5102 = vmor %vm5100, %vm5101
    %v5103 = vsel %vm5102, %v5094, %v5099
    %v5104 = vmul.f32 %v4935, %v5103
    %5105 = vmatpush.msra.mxu0 %v4933
    %5106 = vmatpush.msra.mxu0 %v4931
    %5107 = vmatpush.msra.mxu0 %v4929
    %5108 = vmatpush.msra.mxu0 %v4927
    %5109 = vmatpush.msra.mxu0 %v4925
    %5110 = vmatpush.msra.mxu0 %v4923
    %5111 = vmatpush.msra.mxu0 %v4921
    %5112 = vmatpush.msra.mxu0 %v4919
    %5113 = vmatpush.msra.mxu0 %v4917
    %5114 = vmatpush.msra.mxu0 %v4915
    %5115 = vmatpush.msra.mxu0 %v4913
    %5116 = vmatpush.msra.mxu0 %v4911
    %5117 = vmatpush.msra.mxu0 %v4909
    %5118 = vmatpush.msra.mxu0 %v4907
    %5119 = vmatpush.msra.mxu0 %v4905
    %5120 = vmatpush.msra.mxu0 %v4903
    %5121 = vmatmul.f32.gmra.mxu0 %v5104
    %v5122 = vpop.f32.mrf.mxu0
    %v5123 = vadd.f32 0.0, %v5122
    %5124 = vdwg.mxu0
    %5125 = vmatpush.msra.mxu0 %v4934
    %5126 = vmatpush.msra.mxu0 %v4932
    %5127 = vmatpush.msra.mxu0 %v4930
    %5128 = vmatpush.msra.mxu0 %v4928
    %5129 = vmatpush.msra.mxu0 %v4926
    %5130 = vmatpush.msra.mxu0 %v4924
    %5131 = vmatpush.msra.mxu0 %v4922
    %5132 = vmatpush.msra.mxu0 %v4920
    %5133 = vmatpush.msra.mxu0 %v4918
    %5134 = vmatpush.msra.mxu0 %v4916
    %5135 = vmatpush.msra.mxu0 %v4914
    %5136 = vmatpush.msra.mxu0 %v4912
    %5137 = vmatpush.msra.mxu0 %v4910
    %5138 = vmatpush.msra.mxu0 %v4908
    %5139 = vmatpush.msra.mxu0 %v4906
    %5140 = vmatpush.msra.mxu0 %v4904
    %5141 = vmatmul.f32.gmra.mxu0 %v5104
    %v5142 = vpop.f32.mrf.mxu0
    %v5143 = vadd.f32 0.0, %v5142
    %5144 = vdwg.mxu0
    %v5145 = vperm.slane %v5123, 0
    %v5146 = vperm.slane %v5143, 0
    %v5147 = vmul.f32 %v5034, %v5145
    %v5148 = vmul.f32 %v5035, %v5146
    %5149 = vmatpush.msra.mxu0 %v4933
    %5150 = vmatpush.msra.mxu0 %v4931
    %5151 = vmatpush.msra.mxu0 %v4929
    %5152 = vmatpush.msra.mxu0 %v4927
    %5153 = vmatpush.msra.mxu0 %v4925
    %5154 = vmatpush.msra.mxu0 %v4923
    %5155 = vmatpush.msra.mxu0 %v4921
    %5156 = vmatpush.msra.mxu0 %v4919
    %5157 = vmatpush.msra.mxu0 %v4917
    %5158 = vmatpush.msra.mxu0 %v4915
    %5159 = vmatpush.msra.mxu0 %v4913
    %5160 = vmatpush.msra.mxu0 %v4911
    %5161 = vmatpush.msra.mxu0 %v4909
    %5162 = vmatpush.msra.mxu0 %v4907
    %5163 = vmatpush.msra.mxu0 %v4905
    %5164 = vmatpush.msra.mxu0 %v4903
    %5165 = vmatmul.f32.gmra.mxu0 %v4936
    %v5166 = vpop.f32.mrf.mxu0
    %v5167 = vadd.f32 0.0, %v5166
    %5168 = vdwg.mxu0
    %5169 = vmatpush.msra.mxu0 %v4934
    %5170 = vmatpush.msra.mxu0 %v4932
    %5171 = vmatpush.msra.mxu0 %v4930
    %5172 = vmatpush.msra.mxu0 %v4928
    %5173 = vmatpush.msra.mxu0 %v4926
    %5174 = vmatpush.msra.mxu0 %v4924
    %5175 = vmatpush.msra.mxu0 %v4922
    %5176 = vmatpush.msra.mxu0 %v4920
    %5177 = vmatpush.msra.mxu0 %v4918
    %5178 = vmatpush.msra.mxu0 %v4916
    %5179 = vmatpush.msra.mxu0 %v4914
    %5180 = vmatpush.msra.mxu0 %v4912
    %5181 = vmatpush.msra.mxu0 %v4910
    %5182 = vmatpush.msra.mxu0 %v4908
    %5183 = vmatpush.msra.mxu0 %v4906
    %5184 = vmatpush.msra.mxu0 %v4904
    %5185 = vmatmul.f32.gmra.mxu0 %v4936
    %v5186 = vpop.f32.mrf.mxu0
    %v5187 = vadd.f32 0.0, %v5186
    %5188 = vdwg.mxu0
    %v5189 = vperm.slane %v5167, 0
    %v5190 = vperm.slane %v5187, 0
    %v5191 = vadd.f32 %v5147, %v5189
    %v5192 = vadd.f32 %v5148, %v5190
    %v5193 = vld [vmem:[#allocation33] sm:$0xf]
    %v5194 = vld [vmem:[#allocation33 + $0x4] sm:$0xf]
    %v5195 = vld [vmem:[#allocation33 + $0x8] sm:$0xf]
    %v5196 = vld [vmem:[#allocation33 + $0xc] sm:$0xf]
    %v5197 = vld [vmem:[#allocation33 + $0x10] sm:$0xf]
    %v5198 = vld [vmem:[#allocation33 + $0x14] sm:$0xf]
    %v5199 = vld [vmem:[#allocation33 + $0x18] sm:$0xf]
    %v5200 = vld [vmem:[#allocation33 + $0x1c] sm:$0xf]
    %v5201 = vld [vmem:[#allocation33 + $0x20] sm:$0xf]
    %v5202 = vld [vmem:[#allocation33 + $0x24] sm:$0xf]
    %v5203 = vld [vmem:[#allocation33 + $0x28] sm:$0xf]
    %v5204 = vld [vmem:[#allocation33 + $0x2c] sm:$0xf]
    %v5205 = vld [vmem:[#allocation33 + $0x30] sm:$0xf]
    %v5206 = vld [vmem:[#allocation33 + $0x34] sm:$0xf]
    %v5207 = vld [vmem:[#allocation33 + $0x38] sm:$0xf]
    %v5208 = vld [vmem:[#allocation33 + $0x3c] sm:$0xf]
    %v5209 = vld [vmem:[#allocation33 + $0x40] sm:$0xf]
    %v5210 = vld [vmem:[#allocation33 + $0x44] sm:$0xf]
    %v5211 = vld [vmem:[#allocation33 + $0x48] sm:$0xf]
    %v5212 = vld [vmem:[#allocation33 + $0x4c] sm:$0xf]
    %v5213 = vld [vmem:[#allocation33 + $0x50] sm:$0xf]
    %v5214 = vld [vmem:[#allocation33 + $0x54] sm:$0xf]
    %v5215 = vld [vmem:[#allocation33 + $0x58] sm:$0xf]
    %v5216 = vld [vmem:[#allocation33 + $0x5c] sm:$0xf]
    %v5217 = vld [vmem:[#allocation33 + $0x60] sm:$0xf]
    %v5218 = vld [vmem:[#allocation33 + $0x64] sm:$0xf]
    %v5219 = vld [vmem:[#allocation33 + $0x68] sm:$0xf]
    %v5220 = vld [vmem:[#allocation33 + $0x6c] sm:$0xf]
    %v5221 = vld [vmem:[#allocation33 + $0x70] sm:$0xf]
    %v5222 = vld [vmem:[#allocation33 + $0x74] sm:$0xf]
    %v5223 = vld [vmem:[#allocation33 + $0x78] sm:$0xf]
    %v5224 = vld [vmem:[#allocation33 + $0x7c] sm:$0xf]
    %v5225 = vld [vmem:[#allocation33 + $0x80] sm:$0xf]
    %v5226 = vld [vmem:[#allocation33 + $0x84] sm:$0xf]
    %v5227 = vld [vmem:[#allocation33 + $0x88] sm:$0xf]
    %v5228 = vld [vmem:[#allocation33 + $0x8c] sm:$0xf]
    %v5229 = vld [vmem:[#allocation33 + $0x90] sm:$0xf]
    %v5230 = vld [vmem:[#allocation33 + $0x94] sm:$0xf]
    %v5231 = vld [vmem:[#allocation33 + $0x98] sm:$0xf]
    %v5232 = vld [vmem:[#allocation33 + $0x9c] sm:$0xf]
    %v5233 = vld [vmem:[#allocation33 + $0xa0] sm:$0xf]
    %v5234 = vld [vmem:[#allocation33 + $0xa4] sm:$0xf]
    %v5235 = vld [vmem:[#allocation33 + $0xa8] sm:$0xf]
    %v5236 = vld [vmem:[#allocation33 + $0xac] sm:$0xf]
    %v5237 = vld [vmem:[#allocation33 + $0xb0] sm:$0xf]
    %v5238 = vld [vmem:[#allocation33 + $0xb4] sm:$0xf]
    %v5239 = vld [vmem:[#allocation33 + $0xb8] sm:$0xf]
    %v5240 = vld [vmem:[#allocation33 + $0xbc] sm:$0xf]
    %v5241 = vld [vmem:[#allocation33 + $0xc0] sm:$0xf]
    %v5242 = vld [vmem:[#allocation33 + $0xc4] sm:$0xf]
    %v5243 = vld [vmem:[#allocation33 + $0xc8] sm:$0xf]
    %v5244 = vld [vmem:[#allocation33 + $0xcc] sm:$0xf]
    %v5245 = vld [vmem:[#allocation33 + $0xd0] sm:$0xf]
    %v5246 = vld [vmem:[#allocation33 + $0xd4] sm:$0xf]
    %v5247 = vld [vmem:[#allocation33 + $0xd8] sm:$0xf]
    %v5248 = vld [vmem:[#allocation33 + $0xdc] sm:$0xf]
    %v5249 = vld [vmem:[#allocation33 + $0xe0] sm:$0xf]
    %v5250 = vld [vmem:[#allocation33 + $0xe4] sm:$0xf]
    %v5251 = vld [vmem:[#allocation33 + $0xe8] sm:$0xf]
    %v5252 = vld [vmem:[#allocation33 + $0xec] sm:$0xf]
    %v5253 = vld [vmem:[#allocation33 + $0xf0] sm:$0xf]
    %v5254 = vld [vmem:[#allocation33 + $0xf4] sm:$0xf]
    %v5255 = vld [vmem:[#allocation33 + $0xf8] sm:$0xf]
    %v5256 = vld [vmem:[#allocation33 + $0xfc] sm:$0xf]
    %v5257 = vld [vmem:[#allocation36] sm:$0xff]
    %v5258 = vld [vmem:[#allocation36 + $0x8] sm:$0xff]
    %v5259 = vld [vmem:[#allocation36 + $0x10] sm:$0xff]
    %v5260 = vld [vmem:[#allocation36 + $0x18] sm:$0xff]
    %v5261 = vld [vmem:[#allocation36 + $0x20] sm:$0xff]
    %v5262 = vld [vmem:[#allocation36 + $0x28] sm:$0xff]
    %v5263 = vld [vmem:[#allocation36 + $0x30] sm:$0xff]
    %v5264 = vld [vmem:[#allocation36 + $0x38] sm:$0xff]
    %v5265 = vld [vmem:[#allocation36 + $0x40] sm:$0xff]
    %v5266 = vld [vmem:[#allocation36 + $0x48] sm:$0xff]
    %v5267 = vld [vmem:[#allocation36 + $0x50] sm:$0xff]
    %v5268 = vld [vmem:[#allocation36 + $0x58] sm:$0xff]
    %v5269 = vld [vmem:[#allocation36 + $0x60] sm:$0xff]
    %v5270 = vld [vmem:[#allocation36 + $0x68] sm:$0xff]
    %v5271 = vld [vmem:[#allocation36 + $0x70] sm:$0xff]
    %v5272 = vld [vmem:[#allocation36 + $0x78] sm:$0xff]
    %v5273 = vld [vmem:[#allocation36 + $0x80] sm:$0xff]
    %v5274 = vld [vmem:[#allocation36 + $0x88] sm:$0xff]
    %v5275 = vld [vmem:[#allocation36 + $0x90] sm:$0xff]
    %v5276 = vld [vmem:[#allocation36 + $0x98] sm:$0xff]
    %v5277 = vld [vmem:[#allocation36 + $0xa0] sm:$0xff]
    %v5278 = vld [vmem:[#allocation36 + $0xa8] sm:$0xff]
    %v5279 = vld [vmem:[#allocation36 + $0xb0] sm:$0xff]
    %v5280 = vld [vmem:[#allocation36 + $0xb8] sm:$0xff]
    %v5281 = vld [vmem:[#allocation36 + $0xc0] sm:$0xff]
    %v5282 = vld [vmem:[#allocation36 + $0xc8] sm:$0xff]
    %v5283 = vld [vmem:[#allocation36 + $0xd0] sm:$0xff]
    %v5284 = vld [vmem:[#allocation36 + $0xd8] sm:$0xff]
    %v5285 = vld [vmem:[#allocation36 + $0xe0] sm:$0xff]
    %v5286 = vld [vmem:[#allocation36 + $0xe8] sm:$0xff]
    %v5287 = vld [vmem:[#allocation36 + $0xf0] sm:$0xff]
    %v5288 = vld [vmem:[#allocation36 + $0xf8] sm:$0xff]
    %v5289 = vpack.c.bf16 %v5191, %v5191
    %v5290 = vpack.c.bf16 %v5192, %v5192
    %v5291 = vld [vmem:[#allocation31] sm:$0x1]
    %vm5292 = vcmask 31744
    %v5294 = vsel %vm5292, %v5291, 0
    %vm5296 = vcmask 1041408
    %v5298 = vsel %vm5296, %v5289, 0
    %v5301 = vsel %vm5296, %v5290, 0
    %5303 = vmatpush.bf16.msra.mxu0 0
    %5304 = vmatpush.bf16.msra.mxu0 0
    %5305 = vmatpush.bf16.msra.mxu0 0
    %5306 = vmatpush.bf16.msra.mxu0 0
    %5307 = vmatpush.bf16.msra.mxu0 0
    %5308 = vmatpush.bf16.msra.mxu0 0
    %5309 = vmatpush.bf16.msra.mxu0 0
    %5310 = vmatpush.bf16.msra.mxu0 %v5298
    %5311 = vmatmul.bf16.gmra.mxu0 %v5294
    %v5312 = vpop.f32.mrf.mxu0
    %v5313 = vadd.f32 0.0, %v5312
    %v5314 = vpop.f32.mrf.mxu0
    %5315 = vdwg.mxu0
    %5316 = vmatpush.bf16.msra.mxu0 0
    %5317 = vmatpush.bf16.msra.mxu0 0
    %5318 = vmatpush.bf16.msra.mxu0 0
    %5319 = vmatpush.bf16.msra.mxu0 0
    %5320 = vmatpush.bf16.msra.mxu0 0
    %5321 = vmatpush.bf16.msra.mxu0 0
    %5322 = vmatpush.bf16.msra.mxu0 0
    %5323 = vmatpush.bf16.msra.mxu0 %v5301
    %5324 = vmatmul.bf16.gmra.mxu0 %v5294
    %v5325 = vpop.f32.mrf.mxu0
    %v5326 = vadd.f32 0.0, %v5325
    %v5327 = vpop.f32.mrf.mxu0
    %5328 = vdwg.mxu0
    %s5329 = scalar_lea.vmem [#allocation31], 1
    %v5330 = vld [vmem:[%s5329] sm:$0x1]
    %v5332 = vsel %vm5292, %v5330, 0
    %5334 = vmatpush.bf16.msra.mxu0 0
    %5335 = vmatpush.bf16.msra.mxu0 0
    %5336 = vmatpush.bf16.msra.mxu0 0
    %5337 = vmatpush.bf16.msra.mxu0 0
    %5338 = vmatpush.bf16.msra.mxu0 0
    %5339 = vmatpush.bf16.msra.mxu0 0
    %5340 = vmatpush.bf16.msra.mxu0 0
    %5341 = vmatpush.bf16.msra.mxu0 %v5298
    %5342 = vmatmul.bf16.gmra.mxu0 %v5332
    %v5343 = vpop.f32.mrf.mxu0
    %v5344 = vadd.f32 0.0, %v5343
    %v5345 = vpop.f32.mrf.mxu0
    %5346 = vdwg.mxu0
    %5347 = vmatpush.bf16.msra.mxu0 0
    %5348 = vmatpush.bf16.msra.mxu0 0
    %5349 = vmatpush.bf16.msra.mxu0 0
    %5350 = vmatpush.bf16.msra.mxu0 0
    %5351 = vmatpush.bf16.msra.mxu0 0
    %5352 = vmatpush.bf16.msra.mxu0 0
    %5353 = vmatpush.bf16.msra.mxu0 0
    %5354 = vmatpush.bf16.msra.mxu0 %v5301
    %5355 = vmatmul.bf16.gmra.mxu0 %v5332
    %v5356 = vpop.f32.mrf.mxu0
    %v5357 = vadd.f32 0.0, %v5356
    %v5358 = vpop.f32.mrf.mxu0
    %5359 = vdwg.mxu0
    %v5360 = vpack.c.bf16 %v5313, %v5313
    %v5361 = vpack.c.bf16 %v5326, %v5326
    %v5362 = vpack.c.bf16 %v5344, %v5344
    %v5363 = vpack.c.bf16 %v5357, %v5357
    %v5364 = vld [vmem:[#allocation34] sm:$0x1]
    %v5366 = vperm.slane %v5364, 0
    %v5432 = vunpack.c.l.b16 %v5193
    %v5433 = vunpack.c.l.b16 %v5194
    %v5434 = vunpack.c.l.b16 %v5195
    %v5435 = vunpack.c.l.b16 %v5196
    %v5436 = vunpack.c.l.b16 %v5197
    %v5437 = vunpack.c.l.b16 %v5198
    %v5438 = vunpack.c.l.b16 %v5199
    %v5439 = vunpack.c.l.b16 %v5200
    %v5440 = vunpack.c.l.b16 %v5201
    %v5441 = vunpack.c.l.b16 %v5202
    %v5442 = vunpack.c.l.b16 %v5203
    %v5443 = vunpack.c.l.b16 %v5204
    %v5444 = vunpack.c.l.b16 %v5205
    %v5445 = vunpack.c.l.b16 %v5206
    %v5446 = vunpack.c.l.b16 %v5207
    %v5447 = vunpack.c.l.b16 %v5208
    %v5448 = vunpack.c.l.b16 %v5209
    %v5449 = vunpack.c.l.b16 %v5210
    %v5450 = vunpack.c.l.b16 %v5211
    %v5451 = vunpack.c.l.b16 %v5212
    %v5452 = vunpack.c.l.b16 %v5213
    %v5453 = vunpack.c.l.b16 %v5214
    %v5454 = vunpack.c.l.b16 %v5215
    %v5455 = vunpack.c.l.b16 %v5216
    %v5456 = vunpack.c.l.b16 %v5217
    %v5457 = vunpack.c.l.b16 %v5218
    %v5458 = vunpack.c.l.b16 %v5219
    %v5459 = vunpack.c.l.b16 %v5220
    %v5460 = vunpack.c.l.b16 %v5221
    %v5461 = vunpack.c.l.b16 %v5222
    %v5462 = vunpack.c.l.b16 %v5223
    %v5463 = vunpack.c.l.b16 %v5224
    %v5464 = vunpack.c.l.b16 %v5225
    %v5465 = vunpack.c.l.b16 %v5226
    %v5466 = vunpack.c.l.b16 %v5227
    %v5467 = vunpack.c.l.b16 %v5228
    %v5468 = vunpack.c.l.b16 %v5229
    %v5469 = vunpack.c.l.b16 %v5230
    %v5470 = vunpack.c.l.b16 %v5231
    %v5471 = vunpack.c.l.b16 %v5232
    %v5472 = vunpack.c.l.b16 %v5233
    %v5473 = vunpack.c.l.b16 %v5234
    %v5474 = vunpack.c.l.b16 %v5235
    %v5475 = vunpack.c.l.b16 %v5236
    %v5476 = vunpack.c.l.b16 %v5237
    %v5477 = vunpack.c.l.b16 %v5238
    %v5478 = vunpack.c.l.b16 %v5239
    %v5479 = vunpack.c.l.b16 %v5240
    %v5480 = vunpack.c.l.b16 %v5241
    %v5481 = vunpack.c.l.b16 %v5242
    %v5482 = vunpack.c.l.b16 %v5243
    %v5483 = vunpack.c.l.b16 %v5244
    %v5484 = vunpack.c.l.b16 %v5245
    %v5485 = vunpack.c.l.b16 %v5246
    %v5486 = vunpack.c.l.b16 %v5247
    %v5487 = vunpack.c.l.b16 %v5248
    %v5488 = vunpack.c.l.b16 %v5249
    %v5489 = vunpack.c.l.b16 %v5250
    %v5490 = vunpack.c.l.b16 %v5251
    %v5491 = vunpack.c.l.b16 %v5252
    %v5492 = vunpack.c.l.b16 %v5253
    %v5493 = vunpack.c.l.b16 %v5254
    %v5494 = vunpack.c.l.b16 %v5255
    %v5495 = vunpack.c.l.b16 %v5256
    %v5496 = vpack.c.b16 %v5433, %v5432
    %v5497 = vpack.c.b16 %v5435, %v5434
    %v5498 = vpack.c.b16 %v5437, %v5436
    %v5499 = vpack.c.b16 %v5439, %v5438
    %v5500 = vpack.c.b16 %v5441, %v5440
    %v5501 = vpack.c.b16 %v5443, %v5442
    %v5502 = vpack.c.b16 %v5445, %v5444
    %v5503 = vpack.c.b16 %v5447, %v5446
    %v5504 = vpack.c.b16 %v5449, %v5448
    %v5505 = vpack.c.b16 %v5451, %v5450
    %v5506 = vpack.c.b16 %v5453, %v5452
    %v5507 = vpack.c.b16 %v5455, %v5454
    %v5508 = vpack.c.b16 %v5457, %v5456
    %v5509 = vpack.c.b16 %v5459, %v5458
    %v5510 = vpack.c.b16 %v5461, %v5460
    %v5511 = vpack.c.b16 %v5463, %v5462
    %v5512 = vpack.c.b16 %v5465, %v5464
    %v5513 = vpack.c.b16 %v5467, %v5466
    %v5514 = vpack.c.b16 %v5469, %v5468
    %v5515 = vpack.c.b16 %v5471, %v5470
    %v5516 = vpack.c.b16 %v5473, %v5472
    %v5517 = vpack.c.b16 %v5475, %v5474
    %v5518 = vpack.c.b16 %v5477, %v5476
    %v5519 = vpack.c.b16 %v5479, %v5478
    %v5520 = vpack.c.b16 %v5481, %v5480
    %v5521 = vpack.c.b16 %v5483, %v5482
    %v5522 = vpack.c.b16 %v5485, %v5484
    %v5523 = vpack.c.b16 %v5487, %v5486
    %v5524 = vpack.c.b16 %v5489, %v5488
    %v5525 = vpack.c.b16 %v5491, %v5490
    %v5526 = vpack.c.b16 %v5493, %v5492
    %v5527 = vpack.c.b16 %v5495, %v5494
    %5560 = vmatpush.bf16.msra.mxu0 %v5503
    %5561 = vmatpush.bf16.msra.mxu0 %v5502
    %5562 = vmatpush.bf16.msra.mxu0 %v5501
    %5563 = vmatpush.bf16.msra.mxu0 %v5500
    %5564 = vmatpush.bf16.msra.mxu0 %v5499
    %5565 = vmatpush.bf16.msra.mxu0 %v5498
    %5566 = vmatpush.bf16.msra.mxu0 %v5497
    %5567 = vmatpush.bf16.msra.mxu0 %v5496
    %5568 = vmatmul.bf16.gmra.mxu0 %v5360
    %v5569 = vpop.f32.mrf.mxu0
    %v5570 = vadd.f32 %v5366, %v5569
    %v5571 = vpop.f32.mrf.mxu0
    %5572 = vdwg.mxu0
    %5573 = vmatpush.bf16.msra.mxu0 %v5511
    %5574 = vmatpush.bf16.msra.mxu0 %v5510
    %5575 = vmatpush.bf16.msra.mxu0 %v5509
    %5576 = vmatpush.bf16.msra.mxu0 %v5508
    %5577 = vmatpush.bf16.msra.mxu0 %v5507
    %5578 = vmatpush.bf16.msra.mxu0 %v5506
    %5579 = vmatpush.bf16.msra.mxu0 %v5505
    %5580 = vmatpush.bf16.msra.mxu0 %v5504
    %5581 = vmatmul.bf16.gmra.mxu0 %v5361
    %v5582 = vpop.f32.mrf.mxu0
    %v5583 = vadd.f32 %v5570, %v5582
    %v5584 = vpop.f32.mrf.mxu0
    %5585 = vdwg.mxu0
    %5586 = vmatpush.bf16.msra.mxu0 %v5519
    %5587 = vmatpush.bf16.msra.mxu0 %v5518
    %5588 = vmatpush.bf16.msra.mxu0 %v5517
    %5589 = vmatpush.bf16.msra.mxu0 %v5516
    %5590 = vmatpush.bf16.msra.mxu0 %v5515
    %5591 = vmatpush.bf16.msra.mxu0 %v5514
    %5592 = vmatpush.bf16.msra.mxu0 %v5513
    %5593 = vmatpush.bf16.msra.mxu0 %v5512
    %5594 = vmatmul.bf16.gmra.mxu0 %v5362
    %v5595 = vpop.f32.mrf.mxu0
    %v5596 = vadd.f32 %v5583, %v5595
    %v5597 = vpop.f32.mrf.mxu0
    %5598 = vdwg.mxu0
    %5599 = vmatpush.bf16.msra.mxu0 %v5527
    %5600 = vmatpush.bf16.msra.mxu0 %v5526
    %5601 = vmatpush.bf16.msra.mxu0 %v5525
    %5602 = vmatpush.bf16.msra.mxu0 %v5524
    %5603 = vmatpush.bf16.msra.mxu0 %v5523
    %5604 = vmatpush.bf16.msra.mxu0 %v5522
    %5605 = vmatpush.bf16.msra.mxu0 %v5521
    %5606 = vmatpush.bf16.msra.mxu0 %v5520
    %5607 = vmatmul.bf16.gmra.mxu0 %v5363
    %v5608 = vpop.f32.mrf.mxu0
    %v5609 = vadd.f32 %v5596, %v5608
    %v5610 = vpop.f32.mrf.mxu0
    %5611 = vdwg.mxu0
    %v5612 = vpack.c.bf16 %v5609, %v5609
    %v5613 = vld [vmem:[#allocation37] sm:$0xf]
    %v5615 = vperm.slane %v5613, 0
    %v5616 = vperm.slane %v5613, 1
    %v5617 = vperm.slane %v5613, 2
    %v5618 = vperm.slane %v5613, 3
    %v5655 = vunpack.c.l.b16 %v5257
    %v5656 = vunpack.c.h.b16 %v5257
    %v5657 = vunpack.c.l.b16 %v5258
    %v5658 = vunpack.c.h.b16 %v5258
    %v5659 = vunpack.c.l.b16 %v5259
    %v5660 = vunpack.c.h.b16 %v5259
    %v5661 = vunpack.c.l.b16 %v5260
    %v5662 = vunpack.c.h.b16 %v5260
    %v5663 = vunpack.c.l.b16 %v5261
    %v5664 = vunpack.c.h.b16 %v5261
    %v5665 = vunpack.c.l.b16 %v5262
    %v5666 = vunpack.c.h.b16 %v5262
    %v5667 = vunpack.c.l.b16 %v5263
    %v5668 = vunpack.c.h.b16 %v5263
    %v5669 = vunpack.c.l.b16 %v5264
    %v5670 = vunpack.c.h.b16 %v5264
    %v5671 = vunpack.c.l.b16 %v5265
    %v5672 = vunpack.c.h.b16 %v5265
    %v5673 = vunpack.c.l.b16 %v5266
    %v5674 = vunpack.c.h.b16 %v5266
    %v5675 = vunpack.c.l.b16 %v5267
    %v5676 = vunpack.c.h.b16 %v5267
    %v5677 = vunpack.c.l.b16 %v5268
    %v5678 = vunpack.c.h.b16 %v5268
    %v5679 = vunpack.c.l.b16 %v5269
    %v5680 = vunpack.c.h.b16 %v5269
    %v5681 = vunpack.c.l.b16 %v5270
    %v5682 = vunpack.c.h.b16 %v5270
    %v5683 = vunpack.c.l.b16 %v5271
    %v5684 = vunpack.c.h.b16 %v5271
    %v5685 = vunpack.c.l.b16 %v5272
    %v5686 = vunpack.c.h.b16 %v5272
    %v5687 = vunpack.c.l.b16 %v5273
    %v5688 = vunpack.c.h.b16 %v5273
    %v5689 = vunpack.c.l.b16 %v5274
    %v5690 = vunpack.c.h.b16 %v5274
    %v5691 = vunpack.c.l.b16 %v5275
    %v5692 = vunpack.c.h.b16 %v5275
    %v5693 = vunpack.c.l.b16 %v5276
    %v5694 = vunpack.c.h.b16 %v5276
    %v5695 = vunpack.c.l.b16 %v5277
    %v5696 = vunpack.c.h.b16 %v5277
    %v5697 = vunpack.c.l.b16 %v5278
    %v5698 = vunpack.c.h.b16 %v5278
    %v5699 = vunpack.c.l.b16 %v5279
    %v5700 = vunpack.c.h.b16 %v5279
    %v5701 = vunpack.c.l.b16 %v5280
    %v5702 = vunpack.c.h.b16 %v5280
    %v5703 = vunpack.c.l.b16 %v5281
    %v5704 = vunpack.c.h.b16 %v5281
    %v5705 = vunpack.c.l.b16 %v5282
    %v5706 = vunpack.c.h.b16 %v5282
    %v5707 = vunpack.c.l.b16 %v5283
    %v5708 = vunpack.c.h.b16 %v5283
    %v5709 = vunpack.c.l.b16 %v5284
    %v5710 = vunpack.c.h.b16 %v5284
    %v5711 = vunpack.c.l.b16 %v5285
    %v5712 = vunpack.c.h.b16 %v5285
    %v5713 = vunpack.c.l.b16 %v5286
    %v5714 = vunpack.c.h.b16 %v5286
    %v5715 = vunpack.c.l.b16 %v5287
    %v5716 = vunpack.c.h.b16 %v5287
    %v5717 = vunpack.c.l.b16 %v5288
    %v5718 = vunpack.c.h.b16 %v5288
    %v5719 = vpack.c.b16 %v5659, %v5655
    %v5720 = vpack.c.b16 %v5660, %v5656
    %v5721 = vpack.c.b16 %v5661, %v5657
    %v5722 = vpack.c.b16 %v5662, %v5658
    %v5723 = vpack.c.b16 %v5667, %v5663
    %v5724 = vpack.c.b16 %v5668, %v5664
    %v5725 = vpack.c.b16 %v5669, %v5665
    %v5726 = vpack.c.b16 %v5670, %v5666
    %v5727 = vpack.c.b16 %v5675, %v5671
    %v5728 = vpack.c.b16 %v5676, %v5672
    %v5729 = vpack.c.b16 %v5677, %v5673
    %v5730 = vpack.c.b16 %v5678, %v5674
    %v5731 = vpack.c.b16 %v5683, %v5679
    %v5732 = vpack.c.b16 %v5684, %v5680
    %v5733 = vpack.c.b16 %v5685, %v5681
    %v5734 = vpack.c.b16 %v5686, %v5682
    %v5735 = vpack.c.b16 %v5691, %v5687
    %v5736 = vpack.c.b16 %v5692, %v5688
    %v5737 = vpack.c.b16 %v5693, %v5689
    %v5738 = vpack.c.b16 %v5694, %v5690
    %v5739 = vpack.c.b16 %v5699, %v5695
    %v5740 = vpack.c.b16 %v5700, %v5696
    %v5741 = vpack.c.b16 %v5701, %v5697
    %v5742 = vpack.c.b16 %v5702, %v5698
    %v5743 = vpack.c.b16 %v5707, %v5703
    %v5744 = vpack.c.b16 %v5708, %v5704
    %v5745 = vpack.c.b16 %v5709, %v5705
    %v5746 = vpack.c.b16 %v5710, %v5706
    %v5747 = vpack.c.b16 %v5715, %v5711
    %v5748 = vpack.c.b16 %v5716, %v5712
    %v5749 = vpack.c.b16 %v5717, %v5713
    %v5750 = vpack.c.b16 %v5718, %v5714
    %5783 = vmatpush.bf16.msra.mxu0 %v5747
    %5784 = vmatpush.bf16.msra.mxu0 %v5743
    %5785 = vmatpush.bf16.msra.mxu0 %v5739
    %5786 = vmatpush.bf16.msra.mxu0 %v5735
    %5787 = vmatpush.bf16.msra.mxu0 %v5731
    %5788 = vmatpush.bf16.msra.mxu0 %v5727
    %5789 = vmatpush.bf16.msra.mxu0 %v5723
    %5790 = vmatpush.bf16.msra.mxu0 %v5719
    %5791 = vmatmul.bf16.gmra.mxu0 %v5612
    %v5792 = vpop.f32.mrf.mxu0
    %v5793 = vadd.f32 %v5615, %v5792
    %v5794 = vpop.f32.mrf.mxu0
    %5795 = vdwg.mxu0
    %5796 = vmatpush.bf16.msra.mxu0 %v5748
    %5797 = vmatpush.bf16.msra.mxu0 %v5744
    %5798 = vmatpush.bf16.msra.mxu0 %v5740
    %5799 = vmatpush.bf16.msra.mxu0 %v5736
    %5800 = vmatpush.bf16.msra.mxu0 %v5732
    %5801 = vmatpush.bf16.msra.mxu0 %v5728
    %5802 = vmatpush.bf16.msra.mxu0 %v5724
    %5803 = vmatpush.bf16.msra.mxu0 %v5720
    %5804 = vmatmul.bf16.gmra.mxu0 %v5612
    %v5805 = vpop.f32.mrf.mxu0
    %v5806 = vadd.f32 %v5616, %v5805
    %v5807 = vpop.f32.mrf.mxu0
    %5808 = vdwg.mxu0
    %5809 = vmatpush.bf16.msra.mxu0 %v5749
    %5810 = vmatpush.bf16.msra.mxu0 %v5745
    %5811 = vmatpush.bf16.msra.mxu0 %v5741
    %5812 = vmatpush.bf16.msra.mxu0 %v5737
    %5813 = vmatpush.bf16.msra.mxu0 %v5733
    %5814 = vmatpush.bf16.msra.mxu0 %v5729
    %5815 = vmatpush.bf16.msra.mxu0 %v5725
    %5816 = vmatpush.bf16.msra.mxu0 %v5721
    %5817 = vmatmul.bf16.gmra.mxu0 %v5612
    %v5818 = vpop.f32.mrf.mxu0
    %v5819 = vadd.f32 %v5617, %v5818
    %v5820 = vpop.f32.mrf.mxu0
    %5821 = vdwg.mxu0
    %5822 = vmatpush.bf16.msra.mxu0 %v5750
    %5823 = vmatpush.bf16.msra.mxu0 %v5746
    %5824 = vmatpush.bf16.msra.mxu0 %v5742
    %5825 = vmatpush.bf16.msra.mxu0 %v5738
    %5826 = vmatpush.bf16.msra.mxu0 %v5734
    %5827 = vmatpush.bf16.msra.mxu0 %v5730
    %5828 = vmatpush.bf16.msra.mxu0 %v5726
    %5829 = vmatpush.bf16.msra.mxu0 %v5722
    %5830 = vmatmul.bf16.gmra.mxu0 %v5612
    %v5831 = vpop.f32.mrf.mxu0
    %v5832 = vadd.f32 %v5618, %v5831
    %v5833 = vpop.f32.mrf.mxu0
    %5834 = vdwg.mxu0
    %v5837 = vrot.slane %v5819, 6
    %v5838 = vrot.slane %v5832, 6
    %v5841 = vsel %vm5296, %v5793, %v5837
    %v5842 = vsel %vm5296, %v5806, %v5838
    %v5843 = vld [vmem:[#allocation39] sm:$0xff]
    %v5844 = vld [vmem:[#allocation39 + $0x8] sm:$0xff]
    %v5845 = vld [vmem:[#allocation39 + $0x10] sm:$0xff]
    %v5846 = vld [vmem:[#allocation39 + $0x18] sm:$0xff]
    %v5847 = vld [vmem:[#allocation39 + $0x20] sm:$0xff]
    %v5848 = vld [vmem:[#allocation39 + $0x28] sm:$0xff]
    %v5849 = vld [vmem:[#allocation39 + $0x30] sm:$0xff]
    %v5850 = vld [vmem:[#allocation39 + $0x38] sm:$0xff]
    %v5851 = vld [vmem:[#allocation39 + $0x40] sm:$0xff]
    %v5852 = vld [vmem:[#allocation39 + $0x48] sm:$0xff]
    %v5853 = vld [vmem:[#allocation39 + $0x50] sm:$0xff]
    %v5854 = vld [vmem:[#allocation39 + $0x58] sm:$0xff]
    %v5855 = vld [vmem:[#allocation39 + $0x60] sm:$0xff]
    %v5856 = vld [vmem:[#allocation39 + $0x68] sm:$0xff]
    %v5857 = vld [vmem:[#allocation39 + $0x70] sm:$0xff]
    %v5858 = vld [vmem:[#allocation39 + $0x78] sm:$0xff]
    %v5859 = vld [vmem:[#allocation39 + $0x80] sm:$0xff]
    %v5860 = vld [vmem:[#allocation39 + $0x88] sm:$0xff]
    %v5861 = vld [vmem:[#allocation39 + $0x90] sm:$0xff]
    %v5862 = vld [vmem:[#allocation39 + $0x98] sm:$0xff]
    %v5863 = vld [vmem:[#allocation39 + $0xa0] sm:$0xff]
    %v5864 = vld [vmem:[#allocation39 + $0xa8] sm:$0xff]
    %v5865 = vld [vmem:[#allocation39 + $0xb0] sm:$0xff]
    %v5866 = vld [vmem:[#allocation39 + $0xb8] sm:$0xff]
    %v5867 = vld [vmem:[#allocation39 + $0xc0] sm:$0xff]
    %v5868 = vld [vmem:[#allocation39 + $0xc8] sm:$0xff]
    %v5869 = vld [vmem:[#allocation39 + $0xd0] sm:$0xff]
    %v5870 = vld [vmem:[#allocation39 + $0xd8] sm:$0xff]
    %v5871 = vld [vmem:[#allocation39 + $0xe0] sm:$0xff]
    %v5872 = vld [vmem:[#allocation39 + $0xe8] sm:$0xff]
    %v5873 = vld [vmem:[#allocation39 + $0xf0] sm:$0xff]
    %v5874 = vld [vmem:[#allocation39 + $0xf8] sm:$0xff]
    %v5875 = vld [vmem:[#allocation39 + $0x100] sm:$0xff]
    %v5876 = vld [vmem:[#allocation39 + $0x108] sm:$0xff]
    %v5877 = vld [vmem:[#allocation39 + $0x110] sm:$0xff]
    %v5878 = vld [vmem:[#allocation39 + $0x118] sm:$0xff]
    %v5879 = vld [vmem:[#allocation39 + $0x120] sm:$0xff]
    %v5880 = vld [vmem:[#allocation39 + $0x128] sm:$0xff]
    %v5881 = vld [vmem:[#allocation39 + $0x130] sm:$0xff]
    %v5882 = vld [vmem:[#allocation39 + $0x138] sm:$0xff]
    %v5883 = vld [vmem:[#allocation39 + $0x140] sm:$0xff]
    %v5884 = vld [vmem:[#allocation39 + $0x148] sm:$0xff]
    %v5885 = vld [vmem:[#allocation39 + $0x150] sm:$0xff]
    %v5886 = vld [vmem:[#allocation39 + $0x158] sm:$0xff]
    %v5887 = vld [vmem:[#allocation39 + $0x160] sm:$0xff]
    %v5888 = vld [vmem:[#allocation39 + $0x168] sm:$0xff]
    %v5889 = vld [vmem:[#allocation39 + $0x170] sm:$0xff]
    %v5890 = vld [vmem:[#allocation39 + $0x178] sm:$0xff]
    %v5891 = vld [vmem:[#allocation39 + $0x180] sm:$0xff]
    %v5892 = vld [vmem:[#allocation39 + $0x188] sm:$0xff]
    %v5893 = vld [vmem:[#allocation39 + $0x190] sm:$0xff]
    %v5894 = vld [vmem:[#allocation39 + $0x198] sm:$0xff]
    %v5895 = vld [vmem:[#allocation39 + $0x1a0] sm:$0xff]
    %v5896 = vld [vmem:[#allocation39 + $0x1a8] sm:$0xff]
    %v5897 = vld [vmem:[#allocation39 + $0x1b0] sm:$0xff]
    %v5898 = vld [vmem:[#allocation39 + $0x1b8] sm:$0xff]
    %v5899 = vld [vmem:[#allocation39 + $0x1c0] sm:$0xff]
    %v5900 = vld [vmem:[#allocation39 + $0x1c8] sm:$0xff]
    %v5901 = vld [vmem:[#allocation39 + $0x1d0] sm:$0xff]
    %v5902 = vld [vmem:[#allocation39 + $0x1d8] sm:$0xff]
    %v5903 = vld [vmem:[#allocation39 + $0x1e0] sm:$0xff]
    %v5904 = vld [vmem:[#allocation39 + $0x1e8] sm:$0xff]
    %v5905 = vld [vmem:[#allocation39 + $0x1f0] sm:$0xff]
    %v5906 = vld [vmem:[#allocation39 + $0x1f8] sm:$0xff]
    %v5907 = vld [vmem:[#allocation39 + $0x200] sm:$0xff]
    %v5908 = vld [vmem:[#allocation39 + $0x208] sm:$0xff]
    %v5909 = vld [vmem:[#allocation39 + $0x210] sm:$0xff]
    %v5910 = vld [vmem:[#allocation39 + $0x218] sm:$0xff]
    %v5911 = vld [vmem:[#allocation39 + $0x220] sm:$0xff]
    %v5912 = vld [vmem:[#allocation39 + $0x228] sm:$0xff]
    %v5913 = vld [vmem:[#allocation39 + $0x230] sm:$0xff]
    %v5914 = vld [vmem:[#allocation39 + $0x238] sm:$0xff]
    %v5915 = vld [vmem:[#allocation39 + $0x240] sm:$0xff]
    %v5916 = vld [vmem:[#allocation39 + $0x248] sm:$0xff]
    %v5917 = vld [vmem:[#allocation39 + $0x250] sm:$0xff]
    %v5918 = vld [vmem:[#allocation39 + $0x258] sm:$0xff]
    %v5919 = vld [vmem:[#allocation39 + $0x260] sm:$0xff]
    %v5920 = vld [vmem:[#allocation39 + $0x268] sm:$0xff]
    %v5921 = vld [vmem:[#allocation39 + $0x270] sm:$0xff]
    %v5922 = vld [vmem:[#allocation39 + $0x278] sm:$0xff]
    %v5923 = vld [vmem:[#allocation39 + $0x280] sm:$0xff]
    %v5924 = vld [vmem:[#allocation39 + $0x288] sm:$0xff]
    %v5925 = vld [vmem:[#allocation39 + $0x290] sm:$0xff]
    %v5926 = vld [vmem:[#allocation39 + $0x298] sm:$0xff]
    %v5927 = vld [vmem:[#allocation39 + $0x2a0] sm:$0xff]
    %v5928 = vld [vmem:[#allocation39 + $0x2a8] sm:$0xff]
    %v5929 = vld [vmem:[#allocation39 + $0x2b0] sm:$0xff]
    %v5930 = vld [vmem:[#allocation39 + $0x2b8] sm:$0xff]
    %v5931 = vld [vmem:[#allocation39 + $0x2c0] sm:$0xff]
    %v5932 = vld [vmem:[#allocation39 + $0x2c8] sm:$0xff]
    %v5933 = vld [vmem:[#allocation39 + $0x2d0] sm:$0xff]
    %v5934 = vld [vmem:[#allocation39 + $0x2d8] sm:$0xff]
    %v5935 = vld [vmem:[#allocation39 + $0x2e0] sm:$0xff]
    %v5936 = vld [vmem:[#allocation39 + $0x2e8] sm:$0xff]
    %v5937 = vld [vmem:[#allocation39 + $0x2f0] sm:$0xff]
    %v5938 = vld [vmem:[#allocation39 + $0x2f8] sm:$0xff]
    %v5939 = vpack.c.bf16 %v5841, %v5841
    %v5940 = vpack.c.bf16 %v5842, %v5842
    %v5941 = vld [vmem:[%s69] sm:$0xf]
    %v5943 = vsel %vm5292, %v5941, 0
    %v5946 = vsel %vm5296, %v5939, 0
    %v5949 = vsel %vm5296, %v5940, 0
    %5951 = vmatpush.bf16.msra.mxu0 0
    %5952 = vmatpush.bf16.msra.mxu0 0
    %5953 = vmatpush.bf16.msra.mxu0 0
    %5954 = vmatpush.bf16.msra.mxu0 0
    %5955 = vmatpush.bf16.msra.mxu0 0
    %5956 = vmatpush.bf16.msra.mxu0 0
    %5957 = vmatpush.bf16.msra.mxu0 0
    %5958 = vmatpush.bf16.msra.mxu0 %v5946
    %5959 = vmatmul.bf16.gmra.mxu0 %v5943
    %v5960 = vpop.f32.mrf.mxu0
    %v5961 = vadd.f32 0.0, %v5960
    %v5962 = vpop.f32.mrf.mxu0
    %5963 = vdwg.mxu0
    %5964 = vmatpush.bf16.msra.mxu0 0
    %5965 = vmatpush.bf16.msra.mxu0 0
    %5966 = vmatpush.bf16.msra.mxu0 0
    %5967 = vmatpush.bf16.msra.mxu0 0
    %5968 = vmatpush.bf16.msra.mxu0 0
    %5969 = vmatpush.bf16.msra.mxu0 0
    %5970 = vmatpush.bf16.msra.mxu0 0
    %5971 = vmatpush.bf16.msra.mxu0 %v5949
    %5972 = vmatmul.bf16.gmra.mxu0 %v5943
    %v5973 = vpop.f32.mrf.mxu0
    %v5974 = vadd.f32 0.0, %v5973
    %v5975 = vpop.f32.mrf.mxu0
    %5976 = vdwg.mxu0
    %s5977 = scalar_lea.vmem %s69, 4
    %v5978 = vld [vmem:[%s5977] sm:$0xf]
    %v5980 = vsel %vm5292, %v5978, 0
    %5982 = vmatpush.bf16.msra.mxu0 0
    %5983 = vmatpush.bf16.msra.mxu0 0
    %5984 = vmatpush.bf16.msra.mxu0 0
    %5985 = vmatpush.bf16.msra.mxu0 0
    %5986 = vmatpush.bf16.msra.mxu0 0
    %5987 = vmatpush.bf16.msra.mxu0 0
    %5988 = vmatpush.bf16.msra.mxu0 0
    %5989 = vmatpush.bf16.msra.mxu0 %v5946
    %5990 = vmatmul.bf16.gmra.mxu0 %v5980
    %v5991 = vpop.f32.mrf.mxu0
    %v5992 = vadd.f32 0.0, %v5991
    %v5993 = vpop.f32.mrf.mxu0
    %5994 = vdwg.mxu0
    %5995 = vmatpush.bf16.msra.mxu0 0
    %5996 = vmatpush.bf16.msra.mxu0 0
    %5997 = vmatpush.bf16.msra.mxu0 0
    %5998 = vmatpush.bf16.msra.mxu0 0
    %5999 = vmatpush.bf16.msra.mxu0 0
    %6000 = vmatpush.bf16.msra.mxu0 0
    %6001 = vmatpush.bf16.msra.mxu0 0
    %6002 = vmatpush.bf16.msra.mxu0 %v5949
    %6003 = vmatmul.bf16.gmra.mxu0 %v5980
    %v6004 = vpop.f32.mrf.mxu0
    %v6005 = vadd.f32 0.0, %v6004
    %v6006 = vpop.f32.mrf.mxu0
    %6007 = vdwg.mxu0
    %s6008 = scalar_lea.vmem %s69, 8
    %v6009 = vld [vmem:[%s6008] sm:$0xf]
    %v6011 = vsel %vm5292, %v6009, 0
    %6013 = vmatpush.bf16.msra.mxu0 0
    %6014 = vmatpush.bf16.msra.mxu0 0
    %6015 = vmatpush.bf16.msra.mxu0 0
    %6016 = vmatpush.bf16.msra.mxu0 0
    %6017 = vmatpush.bf16.msra.mxu0 0
    %6018 = vmatpush.bf16.msra.mxu0 0
    %6019 = vmatpush.bf16.msra.mxu0 0
    %6020 = vmatpush.bf16.msra.mxu0 %v5946
    %6021 = vmatmul.bf16.gmra.mxu0 %v6011
    %v6022 = vpop.f32.mrf.mxu0
    %v6023 = vadd.f32 0.0, %v6022
    %v6024 = vpop.f32.mrf.mxu0
    %6025 = vdwg.mxu0
    %6026 = vmatpush.bf16.msra.mxu0 0
    %6027 = vmatpush.bf16.msra.mxu0 0
    %6028 = vmatpush.bf16.msra.mxu0 0
    %6029 = vmatpush.bf16.msra.mxu0 0
    %6030 = vmatpush.bf16.msra.mxu0 0
    %6031 = vmatpush.bf16.msra.mxu0 0
    %6032 = vmatpush.bf16.msra.mxu0 0
    %6033 = vmatpush.bf16.msra.mxu0 %v5949
    %6034 = vmatmul.bf16.gmra.mxu0 %v6011
    %v6035 = vpop.f32.mrf.mxu0
    %v6036 = vadd.f32 0.0, %v6035
    %v6037 = vpop.f32.mrf.mxu0
    %6038 = vdwg.mxu0
    %v6039 = vpack.c.bf16 %v5961, %v5961
    %v6040 = vpack.c.bf16 %v5974, %v5974
    %v6041 = vpack.c.bf16 %v5992, %v5992
    %v6042 = vpack.c.bf16 %v6005, %v6005
    %v6043 = vpack.c.bf16 %v6023, %v6023
    %v6044 = vpack.c.bf16 %v6036, %v6036
    %v6045 = vld [vmem:[#allocation40] sm:$0x3]
    %v6047 = vperm.slane %v6045, 0
    %v6048 = vperm.slane %v6045, 1
    %v6147 = vunpack.c.l.b16 %v5843
    %v6148 = vunpack.c.h.b16 %v5843
    %v6149 = vunpack.c.l.b16 %v5844
    %v6150 = vunpack.c.h.b16 %v5844
    %v6151 = vunpack.c.l.b16 %v5845
    %v6152 = vunpack.c.h.b16 %v5845
    %v6153 = vunpack.c.l.b16 %v5846
    %v6154 = vunpack.c.h.b16 %v5846
    %v6155 = vunpack.c.l.b16 %v5847
    %v6156 = vunpack.c.h.b16 %v5847
    %v6157 = vunpack.c.l.b16 %v5848
    %v6158 = vunpack.c.h.b16 %v5848
    %v6159 = vunpack.c.l.b16 %v5849
    %v6160 = vunpack.c.h.b16 %v5849
    %v6161 = vunpack.c.l.b16 %v5850
    %v6162 = vunpack.c.h.b16 %v5850
    %v6163 = vunpack.c.l.b16 %v5851
    %v6164 = vunpack.c.h.b16 %v5851
    %v6165 = vunpack.c.l.b16 %v5852
    %v6166 = vunpack.c.h.b16 %v5852
    %v6167 = vunpack.c.l.b16 %v5853
    %v6168 = vunpack.c.h.b16 %v5853
    %v6169 = vunpack.c.l.b16 %v5854
    %v6170 = vunpack.c.h.b16 %v5854
    %v6171 = vunpack.c.l.b16 %v5855
    %v6172 = vunpack.c.h.b16 %v5855
    %v6173 = vunpack.c.l.b16 %v5856
    %v6174 = vunpack.c.h.b16 %v5856
    %v6175 = vunpack.c.l.b16 %v5857
    %v6176 = vunpack.c.h.b16 %v5857
    %v6177 = vunpack.c.l.b16 %v5858
    %v6178 = vunpack.c.h.b16 %v5858
    %v6179 = vunpack.c.l.b16 %v5859
    %v6180 = vunpack.c.h.b16 %v5859
    %v6181 = vunpack.c.l.b16 %v5860
    %v6182 = vunpack.c.h.b16 %v5860
    %v6183 = vunpack.c.l.b16 %v5861
    %v6184 = vunpack.c.h.b16 %v5861
    %v6185 = vunpack.c.l.b16 %v5862
    %v6186 = vunpack.c.h.b16 %v5862
    %v6187 = vunpack.c.l.b16 %v5863
    %v6188 = vunpack.c.h.b16 %v5863
    %v6189 = vunpack.c.l.b16 %v5864
    %v6190 = vunpack.c.h.b16 %v5864
    %v6191 = vunpack.c.l.b16 %v5865
    %v6192 = vunpack.c.h.b16 %v5865
    %v6193 = vunpack.c.l.b16 %v5866
    %v6194 = vunpack.c.h.b16 %v5866
    %v6195 = vunpack.c.l.b16 %v5867
    %v6196 = vunpack.c.h.b16 %v5867
    %v6197 = vunpack.c.l.b16 %v5868
    %v6198 = vunpack.c.h.b16 %v5868
    %v6199 = vunpack.c.l.b16 %v5869
    %v6200 = vunpack.c.h.b16 %v5869
    %v6201 = vunpack.c.l.b16 %v5870
    %v6202 = vunpack.c.h.b16 %v5870
    %v6203 = vunpack.c.l.b16 %v5871
    %v6204 = vunpack.c.h.b16 %v5871
    %v6205 = vunpack.c.l.b16 %v5872
    %v6206 = vunpack.c.h.b16 %v5872
    %v6207 = vunpack.c.l.b16 %v5873
    %v6208 = vunpack.c.h.b16 %v5873
    %v6209 = vunpack.c.l.b16 %v5874
    %v6210 = vunpack.c.h.b16 %v5874
    %v6211 = vunpack.c.l.b16 %v5875
    %v6212 = vunpack.c.h.b16 %v5875
    %v6213 = vunpack.c.l.b16 %v5876
    %v6214 = vunpack.c.h.b16 %v5876
    %v6215 = vunpack.c.l.b16 %v5877
    %v6216 = vunpack.c.h.b16 %v5877
    %v6217 = vunpack.c.l.b16 %v5878
    %v6218 = vunpack.c.h.b16 %v5878
    %v6219 = vunpack.c.l.b16 %v5879
    %v6220 = vunpack.c.h.b16 %v5879
    %v6221 = vunpack.c.l.b16 %v5880
    %v6222 = vunpack.c.h.b16 %v5880
    %v6223 = vunpack.c.l.b16 %v5881
    %v6224 = vunpack.c.h.b16 %v5881
    %v6225 = vunpack.c.l.b16 %v5882
    %v6226 = vunpack.c.h.b16 %v5882
    %v6227 = vunpack.c.l.b16 %v5883
    %v6228 = vunpack.c.h.b16 %v5883
    %v6229 = vunpack.c.l.b16 %v5884
    %v6230 = vunpack.c.h.b16 %v5884
    %v6231 = vunpack.c.l.b16 %v5885
    %v6232 = vunpack.c.h.b16 %v5885
    %v6233 = vunpack.c.l.b16 %v5886
    %v6234 = vunpack.c.h.b16 %v5886
    %v6235 = vunpack.c.l.b16 %v5887
    %v6236 = vunpack.c.h.b16 %v5887
    %v6237 = vunpack.c.l.b16 %v5888
    %v6238 = vunpack.c.h.b16 %v5888
    %v6239 = vunpack.c.l.b16 %v5889
    %v6240 = vunpack.c.h.b16 %v5889
    %v6241 = vunpack.c.l.b16 %v5890
    %v6242 = vunpack.c.h.b16 %v5890
    %v6243 = vunpack.c.l.b16 %v5891
    %v6244 = vunpack.c.h.b16 %v5891
    %v6245 = vunpack.c.l.b16 %v5892
    %v6246 = vunpack.c.h.b16 %v5892
    %v6247 = vunpack.c.l.b16 %v5893
    %v6248 = vunpack.c.h.b16 %v5893
    %v6249 = vunpack.c.l.b16 %v5894
    %v6250 = vunpack.c.h.b16 %v5894
    %v6251 = vunpack.c.l.b16 %v5895
    %v6252 = vunpack.c.h.b16 %v5895
    %v6253 = vunpack.c.l.b16 %v5896
    %v6254 = vunpack.c.h.b16 %v5896
    %v6255 = vunpack.c.l.b16 %v5897
    %v6256 = vunpack.c.h.b16 %v5897
    %v6257 = vunpack.c.l.b16 %v5898
    %v6258 = vunpack.c.h.b16 %v5898
    %v6259 = vunpack.c.l.b16 %v5899
    %v6260 = vunpack.c.h.b16 %v5899
    %v6261 = vunpack.c.l.b16 %v5900
    %v6262 = vunpack.c.h.b16 %v5900
    %v6263 = vunpack.c.l.b16 %v5901
    %v6264 = vunpack.c.h.b16 %v5901
    %v6265 = vunpack.c.l.b16 %v5902
    %v6266 = vunpack.c.h.b16 %v5902
    %v6267 = vunpack.c.l.b16 %v5903
    %v6268 = vunpack.c.h.b16 %v5903
    %v6269 = vunpack.c.l.b16 %v5904
    %v6270 = vunpack.c.h.b16 %v5904
    %v6271 = vunpack.c.l.b16 %v5905
    %v6272 = vunpack.c.h.b16 %v5905
    %v6273 = vunpack.c.l.b16 %v5906
    %v6274 = vunpack.c.h.b16 %v5906
    %v6275 = vunpack.c.l.b16 %v5907
    %v6276 = vunpack.c.h.b16 %v5907
    %v6277 = vunpack.c.l.b16 %v5908
    %v6278 = vunpack.c.h.b16 %v5908
    %v6279 = vunpack.c.l.b16 %v5909
    %v6280 = vunpack.c.h.b16 %v5909
    %v6281 = vunpack.c.l.b16 %v5910
    %v6282 = vunpack.c.h.b16 %v5910
    %v6283 = vunpack.c.l.b16 %v5911
    %v6284 = vunpack.c.h.b16 %v5911
    %v6285 = vunpack.c.l.b16 %v5912
    %v6286 = vunpack.c.h.b16 %v5912
    %v6287 = vunpack.c.l.b16 %v5913
    %v6288 = vunpack.c.h.b16 %v5913
    %v6289 = vunpack.c.l.b16 %v5914
    %v6290 = vunpack.c.h.b16 %v5914
    %v6291 = vunpack.c.l.b16 %v5915
    %v6292 = vunpack.c.h.b16 %v5915
    %v6293 = vunpack.c.l.b16 %v5916
    %v6294 = vunpack.c.h.b16 %v5916
    %v6295 = vunpack.c.l.b16 %v5917
    %v6296 = vunpack.c.h.b16 %v5917
    %v6297 = vunpack.c.l.b16 %v5918
    %v6298 = vunpack.c.h.b16 %v5918
    %v6299 = vunpack.c.l.b16 %v5919
    %v6300 = vunpack.c.h.b16 %v5919
    %v6301 = vunpack.c.l.b16 %v5920
    %v6302 = vunpack.c.h.b16 %v5920
    %v6303 = vunpack.c.l.b16 %v5921
    %v6304 = vunpack.c.h.b16 %v5921
    %v6305 = vunpack.c.l.b16 %v5922
    %v6306 = vunpack.c.h.b16 %v5922
    %v6307 = vunpack.c.l.b16 %v5923
    %v6308 = vunpack.c.h.b16 %v5923
    %v6309 = vunpack.c.l.b16 %v5924
    %v6310 = vunpack.c.h.b16 %v5924
    %v6311 = vunpack.c.l.b16 %v5925
    %v6312 = vunpack.c.h.b16 %v5925
    %v6313 = vunpack.c.l.b16 %v5926
    %v6314 = vunpack.c.h.b16 %v5926
    %v6315 = vunpack.c.l.b16 %v5927
    %v6316 = vunpack.c.h.b16 %v5927
    %v6317 = vunpack.c.l.b16 %v5928
    %v6318 = vunpack.c.h.b16 %v5928
    %v6319 = vunpack.c.l.b16 %v5929
    %v6320 = vunpack.c.h.b16 %v5929
    %v6321 = vunpack.c.l.b16 %v5930
    %v6322 = vunpack.c.h.b16 %v5930
    %v6323 = vunpack.c.l.b16 %v5931
    %v6324 = vunpack.c.h.b16 %v5931
    %v6325 = vunpack.c.l.b16 %v5932
    %v6326 = vunpack.c.h.b16 %v5932
    %v6327 = vunpack.c.l.b16 %v5933
    %v6328 = vunpack.c.h.b16 %v5933
    %v6329 = vunpack.c.l.b16 %v5934
    %v6330 = vunpack.c.h.b16 %v5934
    %v6331 = vunpack.c.l.b16 %v5935
    %v6332 = vunpack.c.h.b16 %v5935
    %v6333 = vunpack.c.l.b16 %v5936
    %v6334 = vunpack.c.h.b16 %v5936
    %v6335 = vunpack.c.l.b16 %v5937
    %v6336 = vunpack.c.h.b16 %v5937
    %v6337 = vunpack.c.l.b16 %v5938
    %v6338 = vunpack.c.h.b16 %v5938
    %v6339 = vpack.c.b16 %v6149, %v6147
    %v6340 = vpack.c.b16 %v6150, %v6148
    %v6341 = vpack.c.b16 %v6153, %v6151
    %v6342 = vpack.c.b16 %v6154, %v6152
    %v6343 = vpack.c.b16 %v6157, %v6155
    %v6344 = vpack.c.b16 %v6158, %v6156
    %v6345 = vpack.c.b16 %v6161, %v6159
    %v6346 = vpack.c.b16 %v6162, %v6160
    %v6347 = vpack.c.b16 %v6165, %v6163
    %v6348 = vpack.c.b16 %v6166, %v6164
    %v6349 = vpack.c.b16 %v6169, %v6167
    %v6350 = vpack.c.b16 %v6170, %v6168
    %v6351 = vpack.c.b16 %v6173, %v6171
    %v6352 = vpack.c.b16 %v6174, %v6172
    %v6353 = vpack.c.b16 %v6177, %v6175
    %v6354 = vpack.c.b16 %v6178, %v6176
    %v6355 = vpack.c.b16 %v6181, %v6179
    %v6356 = vpack.c.b16 %v6182, %v6180
    %v6357 = vpack.c.b16 %v6185, %v6183
    %v6358 = vpack.c.b16 %v6186, %v6184
    %v6359 = vpack.c.b16 %v6189, %v6187
    %v6360 = vpack.c.b16 %v6190, %v6188
    %v6361 = vpack.c.b16 %v6193, %v6191
    %v6362 = vpack.c.b16 %v6194, %v6192
    %v6363 = vpack.c.b16 %v6197, %v6195
    %v6364 = vpack.c.b16 %v6198, %v6196
    %v6365 = vpack.c.b16 %v6201, %v6199
    %v6366 = vpack.c.b16 %v6202, %v6200
    %v6367 = vpack.c.b16 %v6205, %v6203
    %v6368 = vpack.c.b16 %v6206, %v6204
    %v6369 = vpack.c.b16 %v6209, %v6207
    %v6370 = vpack.c.b16 %v6210, %v6208
    %v6371 = vpack.c.b16 %v6213, %v6211
    %v6372 = vpack.c.b16 %v6214, %v6212
    %v6373 = vpack.c.b16 %v6217, %v6215
    %v6374 = vpack.c.b16 %v6218, %v6216
    %v6375 = vpack.c.b16 %v6221, %v6219
    %v6376 = vpack.c.b16 %v6222, %v6220
    %v6377 = vpack.c.b16 %v6225, %v6223
    %v6378 = vpack.c.b16 %v6226, %v6224
    %v6379 = vpack.c.b16 %v6229, %v6227
    %v6380 = vpack.c.b16 %v6230, %v6228
    %v6381 = vpack.c.b16 %v6233, %v6231
    %v6382 = vpack.c.b16 %v6234, %v6232
    %v6383 = vpack.c.b16 %v6237, %v6235
    %v6384 = vpack.c.b16 %v6238, %v6236
    %v6385 = vpack.c.b16 %v6241, %v6239
    %v6386 = vpack.c.b16 %v6242, %v6240
    %v6387 = vpack.c.b16 %v6245, %v6243
    %v6388 = vpack.c.b16 %v6246, %v6244
    %v6389 = vpack.c.b16 %v6249, %v6247
    %v6390 = vpack.c.b16 %v6250, %v6248
    %v6391 = vpack.c.b16 %v6253, %v6251
    %v6392 = vpack.c.b16 %v6254, %v6252
    %v6393 = vpack.c.b16 %v6257, %v6255
    %v6394 = vpack.c.b16 %v6258, %v6256
    %v6395 = vpack.c.b16 %v6261, %v6259
    %v6396 = vpack.c.b16 %v6262, %v6260
    %v6397 = vpack.c.b16 %v6265, %v6263
    %v6398 = vpack.c.b16 %v6266, %v6264
    %v6399 = vpack.c.b16 %v6269, %v6267
    %v6400 = vpack.c.b16 %v6270, %v6268
    %v6401 = vpack.c.b16 %v6273, %v6271
    %v6402 = vpack.c.b16 %v6274, %v6272
    %v6403 = vpack.c.b16 %v6277, %v6275
    %v6404 = vpack.c.b16 %v6278, %v6276
    %v6405 = vpack.c.b16 %v6281, %v6279
    %v6406 = vpack.c.b16 %v6282, %v6280
    %v6407 = vpack.c.b16 %v6285, %v6283
    %v6408 = vpack.c.b16 %v6286, %v6284
    %v6409 = vpack.c.b16 %v6289, %v6287
    %v6410 = vpack.c.b16 %v6290, %v6288
    %v6411 = vpack.c.b16 %v6293, %v6291
    %v6412 = vpack.c.b16 %v6294, %v6292
    %v6413 = vpack.c.b16 %v6297, %v6295
    %v6414 = vpack.c.b16 %v6298, %v6296
    %v6415 = vpack.c.b16 %v6301, %v6299
    %v6416 = vpack.c.b16 %v6302, %v6300
    %v6417 = vpack.c.b16 %v6305, %v6303
    %v6418 = vpack.c.b16 %v6306, %v6304
    %v6419 = vpack.c.b16 %v6309, %v6307
    %v6420 = vpack.c.b16 %v6310, %v6308
    %v6421 = vpack.c.b16 %v6313, %v6311
    %v6422 = vpack.c.b16 %v6314, %v6312
    %v6423 = vpack.c.b16 %v6317, %v6315
    %v6424 = vpack.c.b16 %v6318, %v6316
    %v6425 = vpack.c.b16 %v6321, %v6319
    %v6426 = vpack.c.b16 %v6322, %v6320
    %v6427 = vpack.c.b16 %v6325, %v6323
    %v6428 = vpack.c.b16 %v6326, %v6324
    %v6429 = vpack.c.b16 %v6329, %v6327
    %v6430 = vpack.c.b16 %v6330, %v6328
    %v6431 = vpack.c.b16 %v6333, %v6331
    %v6432 = vpack.c.b16 %v6334, %v6332
    %v6433 = vpack.c.b16 %v6337, %v6335
    %v6434 = vpack.c.b16 %v6338, %v6336
    %6531 = vmatpush.bf16.msra.mxu0 %v6353
    %6532 = vmatpush.bf16.msra.mxu0 %v6351
    %6533 = vmatpush.bf16.msra.mxu0 %v6349
    %6534 = vmatpush.bf16.msra.mxu0 %v6347
    %6535 = vmatpush.bf16.msra.mxu0 %v6345
    %6536 = vmatpush.bf16.msra.mxu0 %v6343
    %6537 = vmatpush.bf16.msra.mxu0 %v6341
    %6538 = vmatpush.bf16.msra.mxu0 %v6339
    %6539 = vmatmul.bf16.gmra.mxu0 %v6039
    %v6540 = vpop.f32.mrf.mxu0
    %v6541 = vadd.f32 %v6047, %v6540
    %v6542 = vpop.f32.mrf.mxu0
    %6543 = vdwg.mxu0
    %6544 = vmatpush.bf16.msra.mxu0 %v6369
    %6545 = vmatpush.bf16.msra.mxu0 %v6367
    %6546 = vmatpush.bf16.msra.mxu0 %v6365
    %6547 = vmatpush.bf16.msra.mxu0 %v6363
    %6548 = vmatpush.bf16.msra.mxu0 %v6361
    %6549 = vmatpush.bf16.msra.mxu0 %v6359
    %6550 = vmatpush.bf16.msra.mxu0 %v6357
    %6551 = vmatpush.bf16.msra.mxu0 %v6355
    %6552 = vmatmul.bf16.gmra.mxu0 %v6040
    %v6553 = vpop.f32.mrf.mxu0
    %v6554 = vadd.f32 %v6541, %v6553
    %v6555 = vpop.f32.mrf.mxu0
    %6556 = vdwg.mxu0
    %6557 = vmatpush.bf16.msra.mxu0 %v6385
    %6558 = vmatpush.bf16.msra.mxu0 %v6383
    %6559 = vmatpush.bf16.msra.mxu0 %v6381
    %6560 = vmatpush.bf16.msra.mxu0 %v6379
    %6561 = vmatpush.bf16.msra.mxu0 %v6377
    %6562 = vmatpush.bf16.msra.mxu0 %v6375
    %6563 = vmatpush.bf16.msra.mxu0 %v6373
    %6564 = vmatpush.bf16.msra.mxu0 %v6371
    %6565 = vmatmul.bf16.gmra.mxu0 %v6041
    %v6566 = vpop.f32.mrf.mxu0
    %v6567 = vadd.f32 %v6554, %v6566
    %v6568 = vpop.f32.mrf.mxu0
    %6569 = vdwg.mxu0
    %6570 = vmatpush.bf16.msra.mxu0 %v6401
    %6571 = vmatpush.bf16.msra.mxu0 %v6399
    %6572 = vmatpush.bf16.msra.mxu0 %v6397
    %6573 = vmatpush.bf16.msra.mxu0 %v6395
    %6574 = vmatpush.bf16.msra.mxu0 %v6393
    %6575 = vmatpush.bf16.msra.mxu0 %v6391
    %6576 = vmatpush.bf16.msra.mxu0 %v6389
    %6577 = vmatpush.bf16.msra.mxu0 %v6387
    %6578 = vmatmul.bf16.gmra.mxu0 %v6042
    %v6579 = vpop.f32.mrf.mxu0
    %v6580 = vadd.f32 %v6567, %v6579
    %v6581 = vpop.f32.mrf.mxu0
    %6582 = vdwg.mxu0
    %6583 = vmatpush.bf16.msra.mxu0 %v6417
    %6584 = vmatpush.bf16.msra.mxu0 %v6415
    %6585 = vmatpush.bf16.msra.mxu0 %v6413
    %6586 = vmatpush.bf16.msra.mxu0 %v6411
    %6587 = vmatpush.bf16.msra.mxu0 %v6409
    %6588 = vmatpush.bf16.msra.mxu0 %v6407
    %6589 = vmatpush.bf16.msra.mxu0 %v6405
    %6590 = vmatpush.bf16.msra.mxu0 %v6403
    %6591 = vmatmul.bf16.gmra.mxu0 %v6043
    %v6592 = vpop.f32.mrf.mxu0
    %v6593 = vadd.f32 %v6580, %v6592
    %v6594 = vpop.f32.mrf.mxu0
    %6595 = vdwg.mxu0
    %6596 = vmatpush.bf16.msra.mxu0 %v6433
    %6597 = vmatpush.bf16.msra.mxu0 %v6431
    %6598 = vmatpush.bf16.msra.mxu0 %v6429
    %6599 = vmatpush.bf16.msra.mxu0 %v6427
    %6600 = vmatpush.bf16.msra.mxu0 %v6425
    %6601 = vmatpush.bf16.msra.mxu0 %v6423
    %6602 = vmatpush.bf16.msra.mxu0 %v6421
    %6603 = vmatpush.bf16.msra.mxu0 %v6419
    %6604 = vmatmul.bf16.gmra.mxu0 %v6044
    %v6605 = vpop.f32.mrf.mxu0
    %v6606 = vadd.f32 %v6593, %v6605
    %v6607 = vpop.f32.mrf.mxu0
    %6608 = vdwg.mxu0
    %6609 = vmatpush.bf16.msra.mxu0 %v6354
    %6610 = vmatpush.bf16.msra.mxu0 %v6352
    %6611 = vmatpush.bf16.msra.mxu0 %v6350
    %6612 = vmatpush.bf16.msra.mxu0 %v6348
    %6613 = vmatpush.bf16.msra.mxu0 %v6346
    %6614 = vmatpush.bf16.msra.mxu0 %v6344
    %6615 = vmatpush.bf16.msra.mxu0 %v6342
    %6616 = vmatpush.bf16.msra.mxu0 %v6340
    %6617 = vmatmul.bf16.gmra.mxu0 %v6039
    %v6618 = vpop.f32.mrf.mxu0
    %v6619 = vadd.f32 %v6048, %v6618
    %v6620 = vpop.f32.mrf.mxu0
    %6621 = vdwg.mxu0
    %6622 = vmatpush.bf16.msra.mxu0 %v6370
    %6623 = vmatpush.bf16.msra.mxu0 %v6368
    %6624 = vmatpush.bf16.msra.mxu0 %v6366
    %6625 = vmatpush.bf16.msra.mxu0 %v6364
    %6626 = vmatpush.bf16.msra.mxu0 %v6362
    %6627 = vmatpush.bf16.msra.mxu0 %v6360
    %6628 = vmatpush.bf16.msra.mxu0 %v6358
    %6629 = vmatpush.bf16.msra.mxu0 %v6356
    %6630 = vmatmul.bf16.gmra.mxu0 %v6040
    %v6631 = vpop.f32.mrf.mxu0
    %v6632 = vadd.f32 %v6619, %v6631
    %v6633 = vpop.f32.mrf.mxu0
    %6634 = vdwg.mxu0
    %6635 = vmatpush.bf16.msra.mxu0 %v6386
    %6636 = vmatpush.bf16.msra.mxu0 %v6384
    %6637 = vmatpush.bf16.msra.mxu0 %v6382
    %6638 = vmatpush.bf16.msra.mxu0 %v6380
    %6639 = vmatpush.bf16.msra.mxu0 %v6378
    %6640 = vmatpush.bf16.msra.mxu0 %v6376
    %6641 = vmatpush.bf16.msra.mxu0 %v6374
    %6642 = vmatpush.bf16.msra.mxu0 %v6372
    %6643 = vmatmul.bf16.gmra.mxu0 %v6041
    %v6644 = vpop.f32.mrf.mxu0
    %v6645 = vadd.f32 %v6632, %v6644
    %v6646 = vpop.f32.mrf.mxu0
    %6647 = vdwg.mxu0
    %6648 = vmatpush.bf16.msra.mxu0 %v6402
    %6649 = vmatpush.bf16.msra.mxu0 %v6400
    %6650 = vmatpush.bf16.msra.mxu0 %v6398
    %6651 = vmatpush.bf16.msra.mxu0 %v6396
    %6652 = vmatpush.bf16.msra.mxu0 %v6394
    %6653 = vmatpush.bf16.msra.mxu0 %v6392
    %6654 = vmatpush.bf16.msra.mxu0 %v6390
    %6655 = vmatpush.bf16.msra.mxu0 %v6388
    %6656 = vmatmul.bf16.gmra.mxu0 %v6042
    %v6657 = vpop.f32.mrf.mxu0
    %v6658 = vadd.f32 %v6645, %v6657
    %v6659 = vpop.f32.mrf.mxu0
    %6660 = vdwg.mxu0
    %6661 = vmatpush.bf16.msra.mxu0 %v6418
    %6662 = vmatpush.bf16.msra.mxu0 %v6416
    %6663 = vmatpush.bf16.msra.mxu0 %v6414
    %6664 = vmatpush.bf16.msra.mxu0 %v6412
    %6665 = vmatpush.bf16.msra.mxu0 %v6410
    %6666 = vmatpush.bf16.msra.mxu0 %v6408
    %6667 = vmatpush.bf16.msra.mxu0 %v6406
    %6668 = vmatpush.bf16.msra.mxu0 %v6404
    %6669 = vmatmul.bf16.gmra.mxu0 %v6043
    %v6670 = vpop.f32.mrf.mxu0
    %v6671 = vadd.f32 %v6658, %v6670
    %v6672 = vpop.f32.mrf.mxu0
    %6673 = vdwg.mxu0
    %6674 = vmatpush.bf16.msra.mxu0 %v6434
    %6675 = vmatpush.bf16.msra.mxu0 %v6432
    %6676 = vmatpush.bf16.msra.mxu0 %v6430
    %6677 = vmatpush.bf16.msra.mxu0 %v6428
    %6678 = vmatpush.bf16.msra.mxu0 %v6426
    %6679 = vmatpush.bf16.msra.mxu0 %v6424
    %6680 = vmatpush.bf16.msra.mxu0 %v6422
    %6681 = vmatpush.bf16.msra.mxu0 %v6420
    %6682 = vmatmul.bf16.gmra.mxu0 %v6044
    %v6683 = vpop.f32.mrf.mxu0
    %v6684 = vadd.f32 %v6671, %v6683
    %v6685 = vpop.f32.mrf.mxu0
    %6686 = vdwg.mxu0
    %v6687 = vmax.f32 %v6606, 0.0
    %v6688 = vmax.f32 %v6684, 0.0
    %v6689 = vld [vmem:[#allocation42] sm:$0xff]
    %v6690 = vld [vmem:[#allocation42 + $0x8] sm:$0xff]
    %v6691 = vld [vmem:[#allocation42 + $0x10] sm:$0xff]
    %v6692 = vld [vmem:[#allocation42 + $0x18] sm:$0xff]
    %v6693 = vld [vmem:[#allocation42 + $0x20] sm:$0xff]
    %v6694 = vld [vmem:[#allocation42 + $0x28] sm:$0xff]
    %v6695 = vld [vmem:[#allocation42 + $0x30] sm:$0xff]
    %v6696 = vld [vmem:[#allocation42 + $0x38] sm:$0xff]
    %v6697 = vld [vmem:[#allocation42 + $0x40] sm:$0xff]
    %v6698 = vld [vmem:[#allocation42 + $0x48] sm:$0xff]
    %v6699 = vld [vmem:[#allocation42 + $0x50] sm:$0xff]
    %v6700 = vld [vmem:[#allocation42 + $0x58] sm:$0xff]
    %v6701 = vld [vmem:[#allocation42 + $0x60] sm:$0xff]
    %v6702 = vld [vmem:[#allocation42 + $0x68] sm:$0xff]
    %v6703 = vld [vmem:[#allocation42 + $0x70] sm:$0xff]
    %v6704 = vld [vmem:[#allocation42 + $0x78] sm:$0xff]
    %v6705 = vld [vmem:[#allocation42 + $0x80] sm:$0xff]
    %v6706 = vld [vmem:[#allocation42 + $0x88] sm:$0xff]
    %v6707 = vld [vmem:[#allocation42 + $0x90] sm:$0xff]
    %v6708 = vld [vmem:[#allocation42 + $0x98] sm:$0xff]
    %v6709 = vld [vmem:[#allocation42 + $0xa0] sm:$0xff]
    %v6710 = vld [vmem:[#allocation42 + $0xa8] sm:$0xff]
    %v6711 = vld [vmem:[#allocation42 + $0xb0] sm:$0xff]
    %v6712 = vld [vmem:[#allocation42 + $0xb8] sm:$0xff]
    %v6713 = vld [vmem:[#allocation42 + $0xc0] sm:$0xff]
    %v6714 = vld [vmem:[#allocation42 + $0xc8] sm:$0xff]
    %v6715 = vld [vmem:[#allocation42 + $0xd0] sm:$0xff]
    %v6716 = vld [vmem:[#allocation42 + $0xd8] sm:$0xff]
    %v6717 = vld [vmem:[#allocation42 + $0xe0] sm:$0xff]
    %v6718 = vld [vmem:[#allocation42 + $0xe8] sm:$0xff]
    %v6719 = vld [vmem:[#allocation42 + $0xf0] sm:$0xff]
    %v6720 = vld [vmem:[#allocation42 + $0xf8] sm:$0xff]
    %v6721 = vld [vmem:[#allocation43] sm:$0xff]
    %v6722 = vld [vmem:[#allocation43 + $0x8] sm:$0xff]
    %v6723 = vld [vmem:[#allocation43 + $0x10] sm:$0xff]
    %v6724 = vld [vmem:[#allocation43 + $0x18] sm:$0xff]
    %v6725 = vld [vmem:[#allocation43 + $0x20] sm:$0xff]
    %v6726 = vld [vmem:[#allocation43 + $0x28] sm:$0xff]
    %v6727 = vld [vmem:[#allocation43 + $0x30] sm:$0xff]
    %v6728 = vld [vmem:[#allocation43 + $0x38] sm:$0xff]
    %v6729 = vld [vmem:[#allocation43 + $0x40] sm:$0xff]
    %v6730 = vld [vmem:[#allocation43 + $0x48] sm:$0xff]
    %v6731 = vld [vmem:[#allocation43 + $0x50] sm:$0xff]
    %v6732 = vld [vmem:[#allocation43 + $0x58] sm:$0xff]
    %v6733 = vld [vmem:[#allocation43 + $0x60] sm:$0xff]
    %v6734 = vld [vmem:[#allocation43 + $0x68] sm:$0xff]
    %v6735 = vld [vmem:[#allocation43 + $0x70] sm:$0xff]
    %v6736 = vld [vmem:[#allocation43 + $0x78] sm:$0xff]
    %v6737 = vld [vmem:[%s75] sm:$0x1]
    %v6738 = vld [vmem:[%s77] sm:$0x1]
    %v6739 = vrot.slane %v6687, 4
    %v6740 = vadd.f32 %v6687, %v6739
    %v6741 = vrot.slane %v6740, 2
    %v6742 = vadd.f32 %v6740, %v6741
    %v6743 = vrot.slane %v6742, 1
    %v6744 = vadd.f32 %v6742, %v6743
    %v6745 = vrot.slane %v6688, 4
    %v6746 = vadd.f32 %v6688, %v6745
    %v6747 = vrot.slane %v6746, 2
    %v6748 = vadd.f32 %v6746, %v6747
    %v6749 = vrot.slane %v6748, 1
    %v6750 = vadd.f32 %v6748, %v6749
    %6751 = vmatpush.msra.mxu0 %v6704
    %6752 = vmatpush.msra.mxu0 %v6703
    %6753 = vmatpush.msra.mxu0 %v6702
    %6754 = vmatpush.msra.mxu0 %v6701
    %6755 = vmatpush.msra.mxu0 %v6700
    %6756 = vmatpush.msra.mxu0 %v6699
    %6757 = vmatpush.msra.mxu0 %v6698
    %6758 = vmatpush.msra.mxu0 %v6697
    %6759 = vmatpush.msra.mxu0 %v6696
    %6760 = vmatpush.msra.mxu0 %v6695
    %6761 = vmatpush.msra.mxu0 %v6694
    %6762 = vmatpush.msra.mxu0 %v6693
    %6763 = vmatpush.msra.mxu0 %v6692
    %6764 = vmatpush.msra.mxu0 %v6691
    %6765 = vmatpush.msra.mxu0 %v6690
    %6766 = vmatpush.msra.mxu0 %v6689
    %6767 = vmatmul.f32.gmra.mxu0 %v6744
    %v6768 = vpop.f32.mrf.mxu0
    %v6769 = vadd.f32 0.0, %v6768
    %6770 = vdwg.mxu0
    %6771 = vmatpush.msra.mxu0 %v6720
    %6772 = vmatpush.msra.mxu0 %v6719
    %6773 = vmatpush.msra.mxu0 %v6718
    %6774 = vmatpush.msra.mxu0 %v6717
    %6775 = vmatpush.msra.mxu0 %v6716
    %6776 = vmatpush.msra.mxu0 %v6715
    %6777 = vmatpush.msra.mxu0 %v6714
    %6778 = vmatpush.msra.mxu0 %v6713
    %6779 = vmatpush.msra.mxu0 %v6712
    %6780 = vmatpush.msra.mxu0 %v6711
    %6781 = vmatpush.msra.mxu0 %v6710
    %6782 = vmatpush.msra.mxu0 %v6709
    %6783 = vmatpush.msra.mxu0 %v6708
    %6784 = vmatpush.msra.mxu0 %v6707
    %6785 = vmatpush.msra.mxu0 %v6706
    %6786 = vmatpush.msra.mxu0 %v6705
    %6787 = vmatmul.f32.gmra.mxu0 %v6750
    %v6788 = vpop.f32.mrf.mxu0
    %v6789 = vadd.f32 %v6769, %v6788
    %6790 = vdwg.mxu0
    %v6791 = vmul.f32 %v6789, 0.03125
    %v6793 = vsel %vm873, %v6791, 0
    %6795 = vmatpush.msra.mxu0 0.0
    %6796 = vmatpush.msra.mxu0 0.0
    %6797 = vmatpush.msra.mxu0 0.0
    %6798 = vmatpush.msra.mxu0 0.0
    %6799 = vmatpush.msra.mxu0 0.0
    %6800 = vmatpush.msra.mxu0 0.0
    %6801 = vmatpush.msra.mxu0 0.0
    %6802 = vmatpush.msra.mxu0 0.0
    %6803 = vmatpush.msra.mxu0 %v6735
    %6804 = vmatpush.msra.mxu0 %v6733
    %6805 = vmatpush.msra.mxu0 %v6731
    %6806 = vmatpush.msra.mxu0 %v6729
    %6807 = vmatpush.msra.mxu0 %v6727
    %6808 = vmatpush.msra.mxu0 %v6725
    %6809 = vmatpush.msra.mxu0 %v6723
    %6810 = vmatpush.msra.mxu0 %v6721
    %6811 = vmatmul.f32.gmra.mxu0 %v6793
    %v6812 = vpop.f32.mrf.mxu0
    %v6813 = vadd.f32 0.0, %v6812
    %6814 = vdwg.mxu0
    %6815 = vmatpush.msra.mxu0 0.0
    %6816 = vmatpush.msra.mxu0 0.0
    %6817 = vmatpush.msra.mxu0 0.0
    %6818 = vmatpush.msra.mxu0 0.0
    %6819 = vmatpush.msra.mxu0 0.0
    %6820 = vmatpush.msra.mxu0 0.0
    %6821 = vmatpush.msra.mxu0 0.0
    %6822 = vmatpush.msra.mxu0 0.0
    %6823 = vmatpush.msra.mxu0 %v6736
    %6824 = vmatpush.msra.mxu0 %v6734
    %6825 = vmatpush.msra.mxu0 %v6732
    %6826 = vmatpush.msra.mxu0 %v6730
    %6827 = vmatpush.msra.mxu0 %v6728
    %6828 = vmatpush.msra.mxu0 %v6726
    %6829 = vmatpush.msra.mxu0 %v6724
    %6830 = vmatpush.msra.mxu0 %v6722
    %6831 = vmatmul.f32.gmra.mxu0 %v6793
    %v6832 = vpop.f32.mrf.mxu0
    %v6833 = vadd.f32 0.0, %v6832
    %6834 = vdwg.mxu0
    %v6835 = vperm.slane %v6813, 0
    %v6836 = vperm.slane %v6833, 0
    %v6837 = vsub.f32 %v6687, %v6835
    %v6838 = vsub.f32 %v6688, %v6836
    %v6839 = vmul.f32 %v6837, %v6837
    %v6840 = vmul.f32 %v6838, %v6838
    %v6841 = vrot.slane %v6839, 4
    %v6842 = vadd.f32 %v6839, %v6841
    %v6843 = vrot.slane %v6842, 2
    %v6844 = vadd.f32 %v6842, %v6843
    %v6845 = vrot.slane %v6844, 1
    %v6846 = vadd.f32 %v6844, %v6845
    %v6847 = vrot.slane %v6840, 4
    %v6848 = vadd.f32 %v6840, %v6847
    %v6849 = vrot.slane %v6848, 2
    %v6850 = vadd.f32 %v6848, %v6849
    %v6851 = vrot.slane %v6850, 1
    %v6852 = vadd.f32 %v6850, %v6851
    %6853 = vmatpush.msra.mxu0 %v6704
    %6854 = vmatpush.msra.mxu0 %v6703
    %6855 = vmatpush.msra.mxu0 %v6702
    %6856 = vmatpush.msra.mxu0 %v6701
    %6857 = vmatpush.msra.mxu0 %v6700
    %6858 = vmatpush.msra.mxu0 %v6699
    %6859 = vmatpush.msra.mxu0 %v6698
    %6860 = vmatpush.msra.mxu0 %v6697
    %6861 = vmatpush.msra.mxu0 %v6696
    %6862 = vmatpush.msra.mxu0 %v6695
    %6863 = vmatpush.msra.mxu0 %v6694
    %6864 = vmatpush.msra.mxu0 %v6693
    %6865 = vmatpush.msra.mxu0 %v6692
    %6866 = vmatpush.msra.mxu0 %v6691
    %6867 = vmatpush.msra.mxu0 %v6690
    %6868 = vmatpush.msra.mxu0 %v6689
    %6869 = vmatmul.f32.gmra.mxu0 %v6846
    %v6870 = vpop.f32.mrf.mxu0
    %v6871 = vadd.f32 0.0, %v6870
    %6872 = vdwg.mxu0
    %6873 = vmatpush.msra.mxu0 %v6720
    %6874 = vmatpush.msra.mxu0 %v6719
    %6875 = vmatpush.msra.mxu0 %v6718
    %6876 = vmatpush.msra.mxu0 %v6717
    %6877 = vmatpush.msra.mxu0 %v6716
    %6878 = vmatpush.msra.mxu0 %v6715
    %6879 = vmatpush.msra.mxu0 %v6714
    %6880 = vmatpush.msra.mxu0 %v6713
    %6881 = vmatpush.msra.mxu0 %v6712
    %6882 = vmatpush.msra.mxu0 %v6711
    %6883 = vmatpush.msra.mxu0 %v6710
    %6884 = vmatpush.msra.mxu0 %v6709
    %6885 = vmatpush.msra.mxu0 %v6708
    %6886 = vmatpush.msra.mxu0 %v6707
    %6887 = vmatpush.msra.mxu0 %v6706
    %6888 = vmatpush.msra.mxu0 %v6705
    %6889 = vmatmul.f32.gmra.mxu0 %v6852
    %v6890 = vpop.f32.mrf.mxu0
    %v6891 = vadd.f32 %v6871, %v6890
    %6892 = vdwg.mxu0
    %v6893 = vmul.f32 %v6891, 0.03125
    %v6894 = vadd.f32 %v6893, 1e-05
    %v6895 = vrsqrt.pop %v6894
    %v6896 = vmul.f32 %v6895, %v6894
    %v6897 = vmul.f32 %v6896, %v6895
    %v6898 = vmul.f32 0.5, %v6897
    %v6899 = vsub.f32 1.5, %v6898
    %v6900 = vmul.f32 %v6895, %v6899
    %vm6901 = vweird.f32 %v6894
    %vm6902 = vweird.f32 %v6895
    %vm6903 = vmor %vm6901, %vm6902
    %v6904 = vsel %vm6903, %v6895, %v6900
    %v6905 = vmul.f32 %v6737, %v6904
    %v6907 = vsel %vm873, %v6905, 0
    %6909 = vmatpush.msra.mxu0 0.0
    %6910 = vmatpush.msra.mxu0 0.0
    %6911 = vmatpush.msra.mxu0 0.0
    %6912 = vmatpush.msra.mxu0 0.0
    %6913 = vmatpush.msra.mxu0 0.0
    %6914 = vmatpush.msra.mxu0 0.0
    %6915 = vmatpush.msra.mxu0 0.0
    %6916 = vmatpush.msra.mxu0 0.0
    %6917 = vmatpush.msra.mxu0 %v6735
    %6918 = vmatpush.msra.mxu0 %v6733
    %6919 = vmatpush.msra.mxu0 %v6731
    %6920 = vmatpush.msra.mxu0 %v6729
    %6921 = vmatpush.msra.mxu0 %v6727
    %6922 = vmatpush.msra.mxu0 %v6725
    %6923 = vmatpush.msra.mxu0 %v6723
    %6924 = vmatpush.msra.mxu0 %v6721
    %6925 = vmatmul.f32.gmra.mxu0 %v6907
    %v6926 = vpop.f32.mrf.mxu0
    %v6927 = vadd.f32 0.0, %v6926
    %6928 = vdwg.mxu0
    %6929 = vmatpush.msra.mxu0 0.0
    %6930 = vmatpush.msra.mxu0 0.0
    %6931 = vmatpush.msra.mxu0 0.0
    %6932 = vmatpush.msra.mxu0 0.0
    %6933 = vmatpush.msra.mxu0 0.0
    %6934 = vmatpush.msra.mxu0 0.0
    %6935 = vmatpush.msra.mxu0 0.0
    %6936 = vmatpush.msra.mxu0 0.0
    %6937 = vmatpush.msra.mxu0 %v6736
    %6938 = vmatpush.msra.mxu0 %v6734
    %6939 = vmatpush.msra.mxu0 %v6732
    %6940 = vmatpush.msra.mxu0 %v6730
    %6941 = vmatpush.msra.mxu0 %v6728
    %6942 = vmatpush.msra.mxu0 %v6726
    %6943 = vmatpush.msra.mxu0 %v6724
    %6944 = vmatpush.msra.mxu0 %v6722
    %6945 = vmatmul.f32.gmra.mxu0 %v6907
    %v6946 = vpop.f32.mrf.mxu0
    %v6947 = vadd.f32 0.0, %v6946
    %6948 = vdwg.mxu0
    %v6949 = vperm.slane %v6927, 0
    %v6950 = vperm.slane %v6947, 0
    %v6951 = vmul.f32 %v6837, %v6949
    %v6952 = vmul.f32 %v6838, %v6950
    %v6954 = vsel %vm873, %v6738, 0
    %6956 = vmatpush.msra.mxu0 0.0
    %6957 = vmatpush.msra.mxu0 0.0
    %6958 = vmatpush.msra.mxu0 0.0
    %6959 = vmatpush.msra.mxu0 0.0
    %6960 = vmatpush.msra.mxu0 0.0
    %6961 = vmatpush.msra.mxu0 0.0
    %6962 = vmatpush.msra.mxu0 0.0
    %6963 = vmatpush.msra.mxu0 0.0
    %6964 = vmatpush.msra.mxu0 %v6735
    %6965 = vmatpush.msra.mxu0 %v6733
    %6966 = vmatpush.msra.mxu0 %v6731
    %6967 = vmatpush.msra.mxu0 %v6729
    %6968 = vmatpush.msra.mxu0 %v6727
    %6969 = vmatpush.msra.mxu0 %v6725
    %6970 = vmatpush.msra.mxu0 %v6723
    %6971 = vmatpush.msra.mxu0 %v6721
    %6972 = vmatmul.f32.gmra.mxu0 %v6954
    %v6973 = vpop.f32.mrf.mxu0
    %v6974 = vadd.f32 0.0, %v6973
    %6975 = vdwg.mxu0
    %6976 = vmatpush.msra.mxu0 0.0
    %6977 = vmatpush.msra.mxu0 0.0
    %6978 = vmatpush.msra.mxu0 0.0
    %6979 = vmatpush.msra.mxu0 0.0
    %6980 = vmatpush.msra.mxu0 0.0
    %6981 = vmatpush.msra.mxu0 0.0
    %6982 = vmatpush.msra.mxu0 0.0
    %6983 = vmatpush.msra.mxu0 0.0
    %6984 = vmatpush.msra.mxu0 %v6736
    %6985 = vmatpush.msra.mxu0 %v6734
    %6986 = vmatpush.msra.mxu0 %v6732
    %6987 = vmatpush.msra.mxu0 %v6730
    %6988 = vmatpush.msra.mxu0 %v6728
    %6989 = vmatpush.msra.mxu0 %v6726
    %6990 = vmatpush.msra.mxu0 %v6724
    %6991 = vmatpush.msra.mxu0 %v6722
    %6992 = vmatmul.f32.gmra.mxu0 %v6954
    %v6993 = vpop.f32.mrf.mxu0
    %v6994 = vadd.f32 0.0, %v6993
    %6995 = vdwg.mxu0
    %v6996 = vperm.slane %v6974, 0
    %v6997 = vperm.slane %v6994, 0
    %v6998 = vadd.f32 %v6951, %v6996
    %v6999 = vadd.f32 %v6952, %v6997
    %v7000 = vld [vmem:[#allocation46] sm:$0xff]
    %v7001 = vld [vmem:[#allocation46 + $0x8] sm:$0xff]
    %v7002 = vld [vmem:[#allocation46 + $0x10] sm:$0xff]
    %v7003 = vld [vmem:[#allocation46 + $0x18] sm:$0xff]
    %v7004 = vld [vmem:[#allocation46 + $0x20] sm:$0xff]
    %v7005 = vld [vmem:[#allocation46 + $0x28] sm:$0xff]
    %v7006 = vld [vmem:[#allocation46 + $0x30] sm:$0xff]
    %v7007 = vld [vmem:[#allocation46 + $0x38] sm:$0xff]
    %v7008 = vld [vmem:[#allocation46 + $0x40] sm:$0xff]
    %v7009 = vld [vmem:[#allocation46 + $0x48] sm:$0xff]
    %v7010 = vld [vmem:[#allocation46 + $0x50] sm:$0xff]
    %v7011 = vld [vmem:[#allocation46 + $0x58] sm:$0xff]
    %v7012 = vld [vmem:[#allocation46 + $0x60] sm:$0xff]
    %v7013 = vld [vmem:[#allocation46 + $0x68] sm:$0xff]
    %v7014 = vld [vmem:[#allocation46 + $0x70] sm:$0xff]
    %v7015 = vld [vmem:[#allocation46 + $0x78] sm:$0xff]
    %v7016 = vld [vmem:[#allocation46 + $0x80] sm:$0xff]
    %v7017 = vld [vmem:[#allocation46 + $0x88] sm:$0xff]
    %v7018 = vld [vmem:[#allocation46 + $0x90] sm:$0xff]
    %v7019 = vld [vmem:[#allocation46 + $0x98] sm:$0xff]
    %v7020 = vld [vmem:[#allocation46 + $0xa0] sm:$0xff]
    %v7021 = vld [vmem:[#allocation46 + $0xa8] sm:$0xff]
    %v7022 = vld [vmem:[#allocation46 + $0xb0] sm:$0xff]
    %v7023 = vld [vmem:[#allocation46 + $0xb8] sm:$0xff]
    %v7024 = vld [vmem:[#allocation46 + $0xc0] sm:$0xff]
    %v7025 = vld [vmem:[#allocation46 + $0xc8] sm:$0xff]
    %v7026 = vld [vmem:[#allocation46 + $0xd0] sm:$0xff]
    %v7027 = vld [vmem:[#allocation46 + $0xd8] sm:$0xff]
    %v7028 = vld [vmem:[#allocation46 + $0xe0] sm:$0xff]
    %v7029 = vld [vmem:[#allocation46 + $0xe8] sm:$0xff]
    %v7030 = vld [vmem:[#allocation46 + $0xf0] sm:$0xff]
    %v7031 = vld [vmem:[#allocation46 + $0xf8] sm:$0xff]
    %v7032 = vld [vmem:[#allocation46 + $0x100] sm:$0xff]
    %v7033 = vld [vmem:[#allocation46 + $0x108] sm:$0xff]
    %v7034 = vld [vmem:[#allocation46 + $0x110] sm:$0xff]
    %v7035 = vld [vmem:[#allocation46 + $0x118] sm:$0xff]
    %v7036 = vld [vmem:[#allocation46 + $0x120] sm:$0xff]
    %v7037 = vld [vmem:[#allocation46 + $0x128] sm:$0xff]
    %v7038 = vld [vmem:[#allocation46 + $0x130] sm:$0xff]
    %v7039 = vld [vmem:[#allocation46 + $0x138] sm:$0xff]
    %v7040 = vld [vmem:[#allocation46 + $0x140] sm:$0xff]
    %v7041 = vld [vmem:[#allocation46 + $0x148] sm:$0xff]
    %v7042 = vld [vmem:[#allocation46 + $0x150] sm:$0xff]
    %v7043 = vld [vmem:[#allocation46 + $0x158] sm:$0xff]
    %v7044 = vld [vmem:[#allocation46 + $0x160] sm:$0xff]
    %v7045 = vld [vmem:[#allocation46 + $0x168] sm:$0xff]
    %v7046 = vld [vmem:[#allocation46 + $0x170] sm:$0xff]
    %v7047 = vld [vmem:[#allocation46 + $0x178] sm:$0xff]
    %v7048 = vld [vmem:[#allocation46 + $0x180] sm:$0xff]
    %v7049 = vld [vmem:[#allocation46 + $0x188] sm:$0xff]
    %v7050 = vld [vmem:[#allocation46 + $0x190] sm:$0xff]
    %v7051 = vld [vmem:[#allocation46 + $0x198] sm:$0xff]
    %v7052 = vld [vmem:[#allocation46 + $0x1a0] sm:$0xff]
    %v7053 = vld [vmem:[#allocation46 + $0x1a8] sm:$0xff]
    %v7054 = vld [vmem:[#allocation46 + $0x1b0] sm:$0xff]
    %v7055 = vld [vmem:[#allocation46 + $0x1b8] sm:$0xff]
    %v7056 = vld [vmem:[#allocation46 + $0x1c0] sm:$0xff]
    %v7057 = vld [vmem:[#allocation46 + $0x1c8] sm:$0xff]
    %v7058 = vld [vmem:[#allocation46 + $0x1d0] sm:$0xff]
    %v7059 = vld [vmem:[#allocation46 + $0x1d8] sm:$0xff]
    %v7060 = vld [vmem:[#allocation46 + $0x1e0] sm:$0xff]
    %v7061 = vld [vmem:[#allocation46 + $0x1e8] sm:$0xff]
    %v7062 = vld [vmem:[#allocation46 + $0x1f0] sm:$0xff]
    %v7063 = vld [vmem:[#allocation46 + $0x1f8] sm:$0xff]
    %v7064 = vld [vmem:[#allocation46 + $0x200] sm:$0xff]
    %v7065 = vld [vmem:[#allocation46 + $0x208] sm:$0xff]
    %v7066 = vld [vmem:[#allocation46 + $0x210] sm:$0xff]
    %v7067 = vld [vmem:[#allocation46 + $0x218] sm:$0xff]
    %v7068 = vld [vmem:[#allocation46 + $0x220] sm:$0xff]
    %v7069 = vld [vmem:[#allocation46 + $0x228] sm:$0xff]
    %v7070 = vld [vmem:[#allocation46 + $0x230] sm:$0xff]
    %v7071 = vld [vmem:[#allocation46 + $0x238] sm:$0xff]
    %v7072 = vld [vmem:[#allocation46 + $0x240] sm:$0xff]
    %v7073 = vld [vmem:[#allocation46 + $0x248] sm:$0xff]
    %v7074 = vld [vmem:[#allocation46 + $0x250] sm:$0xff]
    %v7075 = vld [vmem:[#allocation46 + $0x258] sm:$0xff]
    %v7076 = vld [vmem:[#allocation46 + $0x260] sm:$0xff]
    %v7077 = vld [vmem:[#allocation46 + $0x268] sm:$0xff]
    %v7078 = vld [vmem:[#allocation46 + $0x270] sm:$0xff]
    %v7079 = vld [vmem:[#allocation46 + $0x278] sm:$0xff]
    %v7080 = vld [vmem:[#allocation46 + $0x280] sm:$0xff]
    %v7081 = vld [vmem:[#allocation46 + $0x288] sm:$0xff]
    %v7082 = vld [vmem:[#allocation46 + $0x290] sm:$0xff]
    %v7083 = vld [vmem:[#allocation46 + $0x298] sm:$0xff]
    %v7084 = vld [vmem:[#allocation46 + $0x2a0] sm:$0xff]
    %v7085 = vld [vmem:[#allocation46 + $0x2a8] sm:$0xff]
    %v7086 = vld [vmem:[#allocation46 + $0x2b0] sm:$0xff]
    %v7087 = vld [vmem:[#allocation46 + $0x2b8] sm:$0xff]
    %v7088 = vld [vmem:[#allocation46 + $0x2c0] sm:$0xff]
    %v7089 = vld [vmem:[#allocation46 + $0x2c8] sm:$0xff]
    %v7090 = vld [vmem:[#allocation46 + $0x2d0] sm:$0xff]
    %v7091 = vld [vmem:[#allocation46 + $0x2d8] sm:$0xff]
    %v7092 = vld [vmem:[#allocation46 + $0x2e0] sm:$0xff]
    %v7093 = vld [vmem:[#allocation46 + $0x2e8] sm:$0xff]
    %v7094 = vld [vmem:[#allocation46 + $0x2f0] sm:$0xff]
    %v7095 = vld [vmem:[#allocation46 + $0x2f8] sm:$0xff]
    %v7096 = vpack.c.bf16 %v6998, %v6998
    %v7097 = vpack.c.bf16 %v6999, %v6999
    %v7098 = vld [vmem:[#allocation45] sm:$0xf]
    %v7099 = vld [vmem:[#allocation45 + $0x4] sm:$0xf]
    %v7102 = vunpack.c.l.b16 %v7098
    %v7103 = vunpack.c.l.b16 %v7099
    %v7104 = vpack.c.b16 %v7103, %v7102
    %v7106 = vsel %vm4122, %v7104, 0
    %v7109 = vsel %vm4126, %v7096, 0
    %v7112 = vsel %vm4126, %v7097, 0
    %7114 = vmatpush.bf16.msra.mxu0 0
    %7115 = vmatpush.bf16.msra.mxu0 0
    %7116 = vmatpush.bf16.msra.mxu0 0
    %7117 = vmatpush.bf16.msra.mxu0 0
    %7118 = vmatpush.bf16.msra.mxu0 0
    %7119 = vmatpush.bf16.msra.mxu0 0
    %7120 = vmatpush.bf16.msra.mxu0 0
    %7121 = vmatpush.bf16.msra.mxu0 %v7109
    %7122 = vmatmul.bf16.gmra.mxu0 %v7106
    %v7123 = vpop.f32.mrf.mxu0
    %v7124 = vadd.f32 0.0, %v7123
    %v7125 = vpop.f32.mrf.mxu0
    %v7126 = vadd.f32 0.0, %v7125
    %7127 = vdwg.mxu0
    %7128 = vmatpush.bf16.msra.mxu0 0
    %7129 = vmatpush.bf16.msra.mxu0 0
    %7130 = vmatpush.bf16.msra.mxu0 0
    %7131 = vmatpush.bf16.msra.mxu0 0
    %7132 = vmatpush.bf16.msra.mxu0 0
    %7133 = vmatpush.bf16.msra.mxu0 0
    %7134 = vmatpush.bf16.msra.mxu0 0
    %7135 = vmatpush.bf16.msra.mxu0 %v7112
    %7136 = vmatmul.bf16.gmra.mxu0 %v7106
    %v7137 = vpop.f32.mrf.mxu0
    %v7138 = vadd.f32 0.0, %v7137
    %v7139 = vpop.f32.mrf.mxu0
    %v7140 = vadd.f32 0.0, %v7139
    %7141 = vdwg.mxu0
    %s7142 = scalar_lea.vmem [#allocation45], 8
    %v7143 = vld [vmem:[%s7142] sm:$0xf]
    %v7144 = vld [vmem:[%s7142 + $0x4] sm:$0xf]
    %v7147 = vunpack.c.l.b16 %v7143
    %v7148 = vunpack.c.l.b16 %v7144
    %v7149 = vpack.c.b16 %v7148, %v7147
    %v7151 = vsel %vm4122, %v7149, 0
    %7153 = vmatpush.bf16.msra.mxu0 0
    %7154 = vmatpush.bf16.msra.mxu0 0
    %7155 = vmatpush.bf16.msra.mxu0 0
    %7156 = vmatpush.bf16.msra.mxu0 0
    %7157 = vmatpush.bf16.msra.mxu0 0
    %7158 = vmatpush.bf16.msra.mxu0 0
    %7159 = vmatpush.bf16.msra.mxu0 0
    %7160 = vmatpush.bf16.msra.mxu0 %v7109
    %7161 = vmatmul.bf16.gmra.mxu0 %v7151
    %v7162 = vpop.f32.mrf.mxu0
    %v7163 = vadd.f32 0.0, %v7162
    %v7164 = vpop.f32.mrf.mxu0
    %v7165 = vadd.f32 0.0, %v7164
    %7166 = vdwg.mxu0
    %7167 = vmatpush.bf16.msra.mxu0 0
    %7168 = vmatpush.bf16.msra.mxu0 0
    %7169 = vmatpush.bf16.msra.mxu0 0
    %7170 = vmatpush.bf16.msra.mxu0 0
    %7171 = vmatpush.bf16.msra.mxu0 0
    %7172 = vmatpush.bf16.msra.mxu0 0
    %7173 = vmatpush.bf16.msra.mxu0 0
    %7174 = vmatpush.bf16.msra.mxu0 %v7112
    %7175 = vmatmul.bf16.gmra.mxu0 %v7151
    %v7176 = vpop.f32.mrf.mxu0
    %v7177 = vadd.f32 0.0, %v7176
    %v7178 = vpop.f32.mrf.mxu0
    %v7179 = vadd.f32 0.0, %v7178
    %7180 = vdwg.mxu0
    %s7181 = scalar_lea.vmem [#allocation45], 16
    %v7182 = vld [vmem:[%s7181] sm:$0xf]
    %v7183 = vld [vmem:[%s7181 + $0x4] sm:$0xf]
    %v7186 = vunpack.c.l.b16 %v7182
    %v7187 = vunpack.c.l.b16 %v7183
    %v7188 = vpack.c.b16 %v7187, %v7186
    %v7190 = vsel %vm4122, %v7188, 0
    %7192 = vmatpush.bf16.msra.mxu0 0
    %7193 = vmatpush.bf16.msra.mxu0 0
    %7194 = vmatpush.bf16.msra.mxu0 0
    %7195 = vmatpush.bf16.msra.mxu0 0
    %7196 = vmatpush.bf16.msra.mxu0 0
    %7197 = vmatpush.bf16.msra.mxu0 0
    %7198 = vmatpush.bf16.msra.mxu0 0
    %7199 = vmatpush.bf16.msra.mxu0 %v7109
    %7200 = vmatmul.bf16.gmra.mxu0 %v7190
    %v7201 = vpop.f32.mrf.mxu0
    %v7202 = vadd.f32 0.0, %v7201
    %v7203 = vpop.f32.mrf.mxu0
    %v7204 = vadd.f32 0.0, %v7203
    %7205 = vdwg.mxu0
    %7206 = vmatpush.bf16.msra.mxu0 0
    %7207 = vmatpush.bf16.msra.mxu0 0
    %7208 = vmatpush.bf16.msra.mxu0 0
    %7209 = vmatpush.bf16.msra.mxu0 0
    %7210 = vmatpush.bf16.msra.mxu0 0
    %7211 = vmatpush.bf16.msra.mxu0 0
    %7212 = vmatpush.bf16.msra.mxu0 0
    %7213 = vmatpush.bf16.msra.mxu0 %v7112
    %7214 = vmatmul.bf16.gmra.mxu0 %v7190
    %v7215 = vpop.f32.mrf.mxu0
    %v7216 = vadd.f32 0.0, %v7215
    %v7217 = vpop.f32.mrf.mxu0
    %v7218 = vadd.f32 0.0, %v7217
    %7219 = vdwg.mxu0
    %v7220 = vpack.c.bf16 %v7126, %v7124
    %v7221 = vpack.c.bf16 %v7140, %v7138
    %v7222 = vpack.c.bf16 %v7165, %v7163
    %v7223 = vpack.c.bf16 %v7179, %v7177
    %v7224 = vpack.c.bf16 %v7204, %v7202
    %v7225 = vpack.c.bf16 %v7218, %v7216
    %v7226 = vld [vmem:[#allocation48] sm:$0x3]
    %v7228 = vperm.slane %v7226, 0
    %v7229 = vperm.slane %v7226, 1
    %v7328 = vunpack.c.l.b16 %v7000
    %v7329 = vunpack.c.h.b16 %v7000
    %v7330 = vunpack.c.l.b16 %v7001
    %v7331 = vunpack.c.h.b16 %v7001
    %v7332 = vunpack.c.l.b16 %v7002
    %v7333 = vunpack.c.h.b16 %v7002
    %v7334 = vunpack.c.l.b16 %v7003
    %v7335 = vunpack.c.h.b16 %v7003
    %v7336 = vunpack.c.l.b16 %v7004
    %v7337 = vunpack.c.h.b16 %v7004
    %v7338 = vunpack.c.l.b16 %v7005
    %v7339 = vunpack.c.h.b16 %v7005
    %v7340 = vunpack.c.l.b16 %v7006
    %v7341 = vunpack.c.h.b16 %v7006
    %v7342 = vunpack.c.l.b16 %v7007
    %v7343 = vunpack.c.h.b16 %v7007
    %v7344 = vunpack.c.l.b16 %v7008
    %v7345 = vunpack.c.h.b16 %v7008
    %v7346 = vunpack.c.l.b16 %v7009
    %v7347 = vunpack.c.h.b16 %v7009
    %v7348 = vunpack.c.l.b16 %v7010
    %v7349 = vunpack.c.h.b16 %v7010
    %v7350 = vunpack.c.l.b16 %v7011
    %v7351 = vunpack.c.h.b16 %v7011
    %v7352 = vunpack.c.l.b16 %v7012
    %v7353 = vunpack.c.h.b16 %v7012
    %v7354 = vunpack.c.l.b16 %v7013
    %v7355 = vunpack.c.h.b16 %v7013
    %v7356 = vunpack.c.l.b16 %v7014
    %v7357 = vunpack.c.h.b16 %v7014
    %v7358 = vunpack.c.l.b16 %v7015
    %v7359 = vunpack.c.h.b16 %v7015
    %v7360 = vunpack.c.l.b16 %v7016
    %v7361 = vunpack.c.h.b16 %v7016
    %v7362 = vunpack.c.l.b16 %v7017
    %v7363 = vunpack.c.h.b16 %v7017
    %v7364 = vunpack.c.l.b16 %v7018
    %v7365 = vunpack.c.h.b16 %v7018
    %v7366 = vunpack.c.l.b16 %v7019
    %v7367 = vunpack.c.h.b16 %v7019
    %v7368 = vunpack.c.l.b16 %v7020
    %v7369 = vunpack.c.h.b16 %v7020
    %v7370 = vunpack.c.l.b16 %v7021
    %v7371 = vunpack.c.h.b16 %v7021
    %v7372 = vunpack.c.l.b16 %v7022
    %v7373 = vunpack.c.h.b16 %v7022
    %v7374 = vunpack.c.l.b16 %v7023
    %v7375 = vunpack.c.h.b16 %v7023
    %v7376 = vunpack.c.l.b16 %v7024
    %v7377 = vunpack.c.h.b16 %v7024
    %v7378 = vunpack.c.l.b16 %v7025
    %v7379 = vunpack.c.h.b16 %v7025
    %v7380 = vunpack.c.l.b16 %v7026
    %v7381 = vunpack.c.h.b16 %v7026
    %v7382 = vunpack.c.l.b16 %v7027
    %v7383 = vunpack.c.h.b16 %v7027
    %v7384 = vunpack.c.l.b16 %v7028
    %v7385 = vunpack.c.h.b16 %v7028
    %v7386 = vunpack.c.l.b16 %v7029
    %v7387 = vunpack.c.h.b16 %v7029
    %v7388 = vunpack.c.l.b16 %v7030
    %v7389 = vunpack.c.h.b16 %v7030
    %v7390 = vunpack.c.l.b16 %v7031
    %v7391 = vunpack.c.h.b16 %v7031
    %v7392 = vunpack.c.l.b16 %v7032
    %v7393 = vunpack.c.h.b16 %v7032
    %v7394 = vunpack.c.l.b16 %v7033
    %v7395 = vunpack.c.h.b16 %v7033
    %v7396 = vunpack.c.l.b16 %v7034
    %v7397 = vunpack.c.h.b16 %v7034
    %v7398 = vunpack.c.l.b16 %v7035
    %v7399 = vunpack.c.h.b16 %v7035
    %v7400 = vunpack.c.l.b16 %v7036
    %v7401 = vunpack.c.h.b16 %v7036
    %v7402 = vunpack.c.l.b16 %v7037
    %v7403 = vunpack.c.h.b16 %v7037
    %v7404 = vunpack.c.l.b16 %v7038
    %v7405 = vunpack.c.h.b16 %v7038
    %v7406 = vunpack.c.l.b16 %v7039
    %v7407 = vunpack.c.h.b16 %v7039
    %v7408 = vunpack.c.l.b16 %v7040
    %v7409 = vunpack.c.h.b16 %v7040
    %v7410 = vunpack.c.l.b16 %v7041
    %v7411 = vunpack.c.h.b16 %v7041
    %v7412 = vunpack.c.l.b16 %v7042
    %v7413 = vunpack.c.h.b16 %v7042
    %v7414 = vunpack.c.l.b16 %v7043
    %v7415 = vunpack.c.h.b16 %v7043
    %v7416 = vunpack.c.l.b16 %v7044
    %v7417 = vunpack.c.h.b16 %v7044
    %v7418 = vunpack.c.l.b16 %v7045
    %v7419 = vunpack.c.h.b16 %v7045
    %v7420 = vunpack.c.l.b16 %v7046
    %v7421 = vunpack.c.h.b16 %v7046
    %v7422 = vunpack.c.l.b16 %v7047
    %v7423 = vunpack.c.h.b16 %v7047
    %v7424 = vunpack.c.l.b16 %v7048
    %v7425 = vunpack.c.h.b16 %v7048
    %v7426 = vunpack.c.l.b16 %v7049
    %v7427 = vunpack.c.h.b16 %v7049
    %v7428 = vunpack.c.l.b16 %v7050
    %v7429 = vunpack.c.h.b16 %v7050
    %v7430 = vunpack.c.l.b16 %v7051
    %v7431 = vunpack.c.h.b16 %v7051
    %v7432 = vunpack.c.l.b16 %v7052
    %v7433 = vunpack.c.h.b16 %v7052
    %v7434 = vunpack.c.l.b16 %v7053
    %v7435 = vunpack.c.h.b16 %v7053
    %v7436 = vunpack.c.l.b16 %v7054
    %v7437 = vunpack.c.h.b16 %v7054
    %v7438 = vunpack.c.l.b16 %v7055
    %v7439 = vunpack.c.h.b16 %v7055
    %v7440 = vunpack.c.l.b16 %v7056
    %v7441 = vunpack.c.h.b16 %v7056
    %v7442 = vunpack.c.l.b16 %v7057
    %v7443 = vunpack.c.h.b16 %v7057
    %v7444 = vunpack.c.l.b16 %v7058
    %v7445 = vunpack.c.h.b16 %v7058
    %v7446 = vunpack.c.l.b16 %v7059
    %v7447 = vunpack.c.h.b16 %v7059
    %v7448 = vunpack.c.l.b16 %v7060
    %v7449 = vunpack.c.h.b16 %v7060
    %v7450 = vunpack.c.l.b16 %v7061
    %v7451 = vunpack.c.h.b16 %v7061
    %v7452 = vunpack.c.l.b16 %v7062
    %v7453 = vunpack.c.h.b16 %v7062
    %v7454 = vunpack.c.l.b16 %v7063
    %v7455 = vunpack.c.h.b16 %v7063
    %v7456 = vunpack.c.l.b16 %v7064
    %v7457 = vunpack.c.h.b16 %v7064
    %v7458 = vunpack.c.l.b16 %v7065
    %v7459 = vunpack.c.h.b16 %v7065
    %v7460 = vunpack.c.l.b16 %v7066
    %v7461 = vunpack.c.h.b16 %v7066
    %v7462 = vunpack.c.l.b16 %v7067
    %v7463 = vunpack.c.h.b16 %v7067
    %v7464 = vunpack.c.l.b16 %v7068
    %v7465 = vunpack.c.h.b16 %v7068
    %v7466 = vunpack.c.l.b16 %v7069
    %v7467 = vunpack.c.h.b16 %v7069
    %v7468 = vunpack.c.l.b16 %v7070
    %v7469 = vunpack.c.h.b16 %v7070
    %v7470 = vunpack.c.l.b16 %v7071
    %v7471 = vunpack.c.h.b16 %v7071
    %v7472 = vunpack.c.l.b16 %v7072
    %v7473 = vunpack.c.h.b16 %v7072
    %v7474 = vunpack.c.l.b16 %v7073
    %v7475 = vunpack.c.h.b16 %v7073
    %v7476 = vunpack.c.l.b16 %v7074
    %v7477 = vunpack.c.h.b16 %v7074
    %v7478 = vunpack.c.l.b16 %v7075
    %v7479 = vunpack.c.h.b16 %v7075
    %v7480 = vunpack.c.l.b16 %v7076
    %v7481 = vunpack.c.h.b16 %v7076
    %v7482 = vunpack.c.l.b16 %v7077
    %v7483 = vunpack.c.h.b16 %v7077
    %v7484 = vunpack.c.l.b16 %v7078
    %v7485 = vunpack.c.h.b16 %v7078
    %v7486 = vunpack.c.l.b16 %v7079
    %v7487 = vunpack.c.h.b16 %v7079
    %v7488 = vunpack.c.l.b16 %v7080
    %v7489 = vunpack.c.h.b16 %v7080
    %v7490 = vunpack.c.l.b16 %v7081
    %v7491 = vunpack.c.h.b16 %v7081
    %v7492 = vunpack.c.l.b16 %v7082
    %v7493 = vunpack.c.h.b16 %v7082
    %v7494 = vunpack.c.l.b16 %v7083
    %v7495 = vunpack.c.h.b16 %v7083
    %v7496 = vunpack.c.l.b16 %v7084
    %v7497 = vunpack.c.h.b16 %v7084
    %v7498 = vunpack.c.l.b16 %v7085
    %v7499 = vunpack.c.h.b16 %v7085
    %v7500 = vunpack.c.l.b16 %v7086
    %v7501 = vunpack.c.h.b16 %v7086
    %v7502 = vunpack.c.l.b16 %v7087
    %v7503 = vunpack.c.h.b16 %v7087
    %v7504 = vunpack.c.l.b16 %v7088
    %v7505 = vunpack.c.h.b16 %v7088
    %v7506 = vunpack.c.l.b16 %v7089
    %v7507 = vunpack.c.h.b16 %v7089
    %v7508 = vunpack.c.l.b16 %v7090
    %v7509 = vunpack.c.h.b16 %v7090
    %v7510 = vunpack.c.l.b16 %v7091
    %v7511 = vunpack.c.h.b16 %v7091
    %v7512 = vunpack.c.l.b16 %v7092
    %v7513 = vunpack.c.h.b16 %v7092
    %v7514 = vunpack.c.l.b16 %v7093
    %v7515 = vunpack.c.h.b16 %v7093
    %v7516 = vunpack.c.l.b16 %v7094
    %v7517 = vunpack.c.h.b16 %v7094
    %v7518 = vunpack.c.l.b16 %v7095
    %v7519 = vunpack.c.h.b16 %v7095
    %v7520 = vpack.c.b16 %v7330, %v7328
    %v7521 = vpack.c.b16 %v7331, %v7329
    %v7522 = vpack.c.b16 %v7334, %v7332
    %v7523 = vpack.c.b16 %v7335, %v7333
    %v7524 = vpack.c.b16 %v7338, %v7336
    %v7525 = vpack.c.b16 %v7339, %v7337
    %v7526 = vpack.c.b16 %v7342, %v7340
    %v7527 = vpack.c.b16 %v7343, %v7341
    %v7528 = vpack.c.b16 %v7346, %v7344
    %v7529 = vpack.c.b16 %v7347, %v7345
    %v7530 = vpack.c.b16 %v7350, %v7348
    %v7531 = vpack.c.b16 %v7351, %v7349
    %v7532 = vpack.c.b16 %v7354, %v7352
    %v7533 = vpack.c.b16 %v7355, %v7353
    %v7534 = vpack.c.b16 %v7358, %v7356
    %v7535 = vpack.c.b16 %v7359, %v7357
    %v7536 = vpack.c.b16 %v7362, %v7360
    %v7537 = vpack.c.b16 %v7363, %v7361
    %v7538 = vpack.c.b16 %v7366, %v7364
    %v7539 = vpack.c.b16 %v7367, %v7365
    %v7540 = vpack.c.b16 %v7370, %v7368
    %v7541 = vpack.c.b16 %v7371, %v7369
    %v7542 = vpack.c.b16 %v7374, %v7372
    %v7543 = vpack.c.b16 %v7375, %v7373
    %v7544 = vpack.c.b16 %v7378, %v7376
    %v7545 = vpack.c.b16 %v7379, %v7377
    %v7546 = vpack.c.b16 %v7382, %v7380
    %v7547 = vpack.c.b16 %v7383, %v7381
    %v7548 = vpack.c.b16 %v7386, %v7384
    %v7549 = vpack.c.b16 %v7387, %v7385
    %v7550 = vpack.c.b16 %v7390, %v7388
    %v7551 = vpack.c.b16 %v7391, %v7389
    %v7552 = vpack.c.b16 %v7394, %v7392
    %v7553 = vpack.c.b16 %v7395, %v7393
    %v7554 = vpack.c.b16 %v7398, %v7396
    %v7555 = vpack.c.b16 %v7399, %v7397
    %v7556 = vpack.c.b16 %v7402, %v7400
    %v7557 = vpack.c.b16 %v7403, %v7401
    %v7558 = vpack.c.b16 %v7406, %v7404
    %v7559 = vpack.c.b16 %v7407, %v7405
    %v7560 = vpack.c.b16 %v7410, %v7408
    %v7561 = vpack.c.b16 %v7411, %v7409
    %v7562 = vpack.c.b16 %v7414, %v7412
    %v7563 = vpack.c.b16 %v7415, %v7413
    %v7564 = vpack.c.b16 %v7418, %v7416
    %v7565 = vpack.c.b16 %v7419, %v7417
    %v7566 = vpack.c.b16 %v7422, %v7420
    %v7567 = vpack.c.b16 %v7423, %v7421
    %v7568 = vpack.c.b16 %v7426, %v7424
    %v7569 = vpack.c.b16 %v7427, %v7425
    %v7570 = vpack.c.b16 %v7430, %v7428
    %v7571 = vpack.c.b16 %v7431, %v7429
    %v7572 = vpack.c.b16 %v7434, %v7432
    %v7573 = vpack.c.b16 %v7435, %v7433
    %v7574 = vpack.c.b16 %v7438, %v7436
    %v7575 = vpack.c.b16 %v7439, %v7437
    %v7576 = vpack.c.b16 %v7442, %v7440
    %v7577 = vpack.c.b16 %v7443, %v7441
    %v7578 = vpack.c.b16 %v7446, %v7444
    %v7579 = vpack.c.b16 %v7447, %v7445
    %v7580 = vpack.c.b16 %v7450, %v7448
    %v7581 = vpack.c.b16 %v7451, %v7449
    %v7582 = vpack.c.b16 %v7454, %v7452
    %v7583 = vpack.c.b16 %v7455, %v7453
    %v7584 = vpack.c.b16 %v7458, %v7456
    %v7585 = vpack.c.b16 %v7459, %v7457
    %v7586 = vpack.c.b16 %v7462, %v7460
    %v7587 = vpack.c.b16 %v7463, %v7461
    %v7588 = vpack.c.b16 %v7466, %v7464
    %v7589 = vpack.c.b16 %v7467, %v7465
    %v7590 = vpack.c.b16 %v7470, %v7468
    %v7591 = vpack.c.b16 %v7471, %v7469
    %v7592 = vpack.c.b16 %v7474, %v7472
    %v7593 = vpack.c.b16 %v7475, %v7473
    %v7594 = vpack.c.b16 %v7478, %v7476
    %v7595 = vpack.c.b16 %v7479, %v7477
    %v7596 = vpack.c.b16 %v7482, %v7480
    %v7597 = vpack.c.b16 %v7483, %v7481
    %v7598 = vpack.c.b16 %v7486, %v7484
    %v7599 = vpack.c.b16 %v7487, %v7485
    %v7600 = vpack.c.b16 %v7490, %v7488
    %v7601 = vpack.c.b16 %v7491, %v7489
    %v7602 = vpack.c.b16 %v7494, %v7492
    %v7603 = vpack.c.b16 %v7495, %v7493
    %v7604 = vpack.c.b16 %v7498, %v7496
    %v7605 = vpack.c.b16 %v7499, %v7497
    %v7606 = vpack.c.b16 %v7502, %v7500
    %v7607 = vpack.c.b16 %v7503, %v7501
    %v7608 = vpack.c.b16 %v7506, %v7504
    %v7609 = vpack.c.b16 %v7507, %v7505
    %v7610 = vpack.c.b16 %v7510, %v7508
    %v7611 = vpack.c.b16 %v7511, %v7509
    %v7612 = vpack.c.b16 %v7514, %v7512
    %v7613 = vpack.c.b16 %v7515, %v7513
    %v7614 = vpack.c.b16 %v7518, %v7516
    %v7615 = vpack.c.b16 %v7519, %v7517
    %7712 = vmatpush.bf16.msra.mxu0 %v7534
    %7713 = vmatpush.bf16.msra.mxu0 %v7532
    %7714 = vmatpush.bf16.msra.mxu0 %v7530
    %7715 = vmatpush.bf16.msra.mxu0 %v7528
    %7716 = vmatpush.bf16.msra.mxu0 %v7526
    %7717 = vmatpush.bf16.msra.mxu0 %v7524
    %7718 = vmatpush.bf16.msra.mxu0 %v7522
    %7719 = vmatpush.bf16.msra.mxu0 %v7520
    %7720 = vmatmul.bf16.gmra.mxu0 %v7220
    %v7721 = vpop.f32.mrf.mxu0
    %v7722 = vadd.f32 %v7228, %v7721
    %v7723 = vpop.f32.mrf.mxu0
    %v7724 = vadd.f32 %v7228, %v7723
    %7725 = vdwg.mxu0
    %7726 = vmatpush.bf16.msra.mxu0 %v7550
    %7727 = vmatpush.bf16.msra.mxu0 %v7548
    %7728 = vmatpush.bf16.msra.mxu0 %v7546
    %7729 = vmatpush.bf16.msra.mxu0 %v7544
    %7730 = vmatpush.bf16.msra.mxu0 %v7542
    %7731 = vmatpush.bf16.msra.mxu0 %v7540
    %7732 = vmatpush.bf16.msra.mxu0 %v7538
    %7733 = vmatpush.bf16.msra.mxu0 %v7536
    %7734 = vmatmul.bf16.gmra.mxu0 %v7221
    %v7735 = vpop.f32.mrf.mxu0
    %v7736 = vadd.f32 %v7722, %v7735
    %v7737 = vpop.f32.mrf.mxu0
    %v7738 = vadd.f32 %v7724, %v7737
    %7739 = vdwg.mxu0
    %7740 = vmatpush.bf16.msra.mxu0 %v7566
    %7741 = vmatpush.bf16.msra.mxu0 %v7564
    %7742 = vmatpush.bf16.msra.mxu0 %v7562
    %7743 = vmatpush.bf16.msra.mxu0 %v7560
    %7744 = vmatpush.bf16.msra.mxu0 %v7558
    %7745 = vmatpush.bf16.msra.mxu0 %v7556
    %7746 = vmatpush.bf16.msra.mxu0 %v7554
    %7747 = vmatpush.bf16.msra.mxu0 %v7552
    %7748 = vmatmul.bf16.gmra.mxu0 %v7222
    %v7749 = vpop.f32.mrf.mxu0
    %v7750 = vadd.f32 %v7736, %v7749
    %v7751 = vpop.f32.mrf.mxu0
    %v7752 = vadd.f32 %v7738, %v7751
    %7753 = vdwg.mxu0
    %7754 = vmatpush.bf16.msra.mxu0 %v7582
    %7755 = vmatpush.bf16.msra.mxu0 %v7580
    %7756 = vmatpush.bf16.msra.mxu0 %v7578
    %7757 = vmatpush.bf16.msra.mxu0 %v7576
    %7758 = vmatpush.bf16.msra.mxu0 %v7574
    %7759 = vmatpush.bf16.msra.mxu0 %v7572
    %7760 = vmatpush.bf16.msra.mxu0 %v7570
    %7761 = vmatpush.bf16.msra.mxu0 %v7568
    %7762 = vmatmul.bf16.gmra.mxu0 %v7223
    %v7763 = vpop.f32.mrf.mxu0
    %v7764 = vadd.f32 %v7750, %v7763
    %v7765 = vpop.f32.mrf.mxu0
    %v7766 = vadd.f32 %v7752, %v7765
    %7767 = vdwg.mxu0
    %7768 = vmatpush.bf16.msra.mxu0 %v7598
    %7769 = vmatpush.bf16.msra.mxu0 %v7596
    %7770 = vmatpush.bf16.msra.mxu0 %v7594
    %7771 = vmatpush.bf16.msra.mxu0 %v7592
    %7772 = vmatpush.bf16.msra.mxu0 %v7590
    %7773 = vmatpush.bf16.msra.mxu0 %v7588
    %7774 = vmatpush.bf16.msra.mxu0 %v7586
    %7775 = vmatpush.bf16.msra.mxu0 %v7584
    %7776 = vmatmul.bf16.gmra.mxu0 %v7224
    %v7777 = vpop.f32.mrf.mxu0
    %v7778 = vadd.f32 %v7764, %v7777
    %v7779 = vpop.f32.mrf.mxu0
    %v7780 = vadd.f32 %v7766, %v7779
    %7781 = vdwg.mxu0
    %7782 = vmatpush.bf16.msra.mxu0 %v7614
    %7783 = vmatpush.bf16.msra.mxu0 %v7612
    %7784 = vmatpush.bf16.msra.mxu0 %v7610
    %7785 = vmatpush.bf16.msra.mxu0 %v7608
    %7786 = vmatpush.bf16.msra.mxu0 %v7606
    %7787 = vmatpush.bf16.msra.mxu0 %v7604
    %7788 = vmatpush.bf16.msra.mxu0 %v7602
    %7789 = vmatpush.bf16.msra.mxu0 %v7600
    %7790 = vmatmul.bf16.gmra.mxu0 %v7225
    %v7791 = vpop.f32.mrf.mxu0
    %v7792 = vadd.f32 %v7778, %v7791
    %v7793 = vpop.f32.mrf.mxu0
    %v7794 = vadd.f32 %v7780, %v7793
    %7795 = vdwg.mxu0
    %7796 = vmatpush.bf16.msra.mxu0 %v7535
    %7797 = vmatpush.bf16.msra.mxu0 %v7533
    %7798 = vmatpush.bf16.msra.mxu0 %v7531
    %7799 = vmatpush.bf16.msra.mxu0 %v7529
    %7800 = vmatpush.bf16.msra.mxu0 %v7527
    %7801 = vmatpush.bf16.msra.mxu0 %v7525
    %7802 = vmatpush.bf16.msra.mxu0 %v7523
    %7803 = vmatpush.bf16.msra.mxu0 %v7521
    %7804 = vmatmul.bf16.gmra.mxu0 %v7220
    %v7805 = vpop.f32.mrf.mxu0
    %v7806 = vadd.f32 %v7229, %v7805
    %v7807 = vpop.f32.mrf.mxu0
    %v7808 = vadd.f32 %v7229, %v7807
    %7809 = vdwg.mxu0
    %7810 = vmatpush.bf16.msra.mxu0 %v7551
    %7811 = vmatpush.bf16.msra.mxu0 %v7549
    %7812 = vmatpush.bf16.msra.mxu0 %v7547
    %7813 = vmatpush.bf16.msra.mxu0 %v7545
    %7814 = vmatpush.bf16.msra.mxu0 %v7543
    %7815 = vmatpush.bf16.msra.mxu0 %v7541
    %7816 = vmatpush.bf16.msra.mxu0 %v7539
    %7817 = vmatpush.bf16.msra.mxu0 %v7537
    %7818 = vmatmul.bf16.gmra.mxu0 %v7221
    %v7819 = vpop.f32.mrf.mxu0
    %v7820 = vadd.f32 %v7806, %v7819
    %v7821 = vpop.f32.mrf.mxu0
    %v7822 = vadd.f32 %v7808, %v7821
    %7823 = vdwg.mxu0
    %7824 = vmatpush.bf16.msra.mxu0 %v7567
    %7825 = vmatpush.bf16.msra.mxu0 %v7565
    %7826 = vmatpush.bf16.msra.mxu0 %v7563
    %7827 = vmatpush.bf16.msra.mxu0 %v7561
    %7828 = vmatpush.bf16.msra.mxu0 %v7559
    %7829 = vmatpush.bf16.msra.mxu0 %v7557
    %7830 = vmatpush.bf16.msra.mxu0 %v7555
    %7831 = vmatpush.bf16.msra.mxu0 %v7553
    %7832 = vmatmul.bf16.gmra.mxu0 %v7222
    %v7833 = vpop.f32.mrf.mxu0
    %v7834 = vadd.f32 %v7820, %v7833
    %v7835 = vpop.f32.mrf.mxu0
    %v7836 = vadd.f32 %v7822, %v7835
    %7837 = vdwg.mxu0
    %7838 = vmatpush.bf16.msra.mxu0 %v7583
    %7839 = vmatpush.bf16.msra.mxu0 %v7581
    %7840 = vmatpush.bf16.msra.mxu0 %v7579
    %7841 = vmatpush.bf16.msra.mxu0 %v7577
    %7842 = vmatpush.bf16.msra.mxu0 %v7575
    %7843 = vmatpush.bf16.msra.mxu0 %v7573
    %7844 = vmatpush.bf16.msra.mxu0 %v7571
    %7845 = vmatpush.bf16.msra.mxu0 %v7569
    %7846 = vmatmul.bf16.gmra.mxu0 %v7223
    %v7847 = vpop.f32.mrf.mxu0
    %v7848 = vadd.f32 %v7834, %v7847
    %v7849 = vpop.f32.mrf.mxu0
    %v7850 = vadd.f32 %v7836, %v7849
    %7851 = vdwg.mxu0
    %7852 = vmatpush.bf16.msra.mxu0 %v7599
    %7853 = vmatpush.bf16.msra.mxu0 %v7597
    %7854 = vmatpush.bf16.msra.mxu0 %v7595
    %7855 = vmatpush.bf16.msra.mxu0 %v7593
    %7856 = vmatpush.bf16.msra.mxu0 %v7591
    %7857 = vmatpush.bf16.msra.mxu0 %v7589
    %7858 = vmatpush.bf16.msra.mxu0 %v7587
    %7859 = vmatpush.bf16.msra.mxu0 %v7585
    %7860 = vmatmul.bf16.gmra.mxu0 %v7224
    %v7861 = vpop.f32.mrf.mxu0
    %v7862 = vadd.f32 %v7848, %v7861
    %v7863 = vpop.f32.mrf.mxu0
    %v7864 = vadd.f32 %v7850, %v7863
    %7865 = vdwg.mxu0
    %7866 = vmatpush.bf16.msra.mxu0 %v7615
    %7867 = vmatpush.bf16.msra.mxu0 %v7613
    %7868 = vmatpush.bf16.msra.mxu0 %v7611
    %7869 = vmatpush.bf16.msra.mxu0 %v7609
    %7870 = vmatpush.bf16.msra.mxu0 %v7607
    %7871 = vmatpush.bf16.msra.mxu0 %v7605
    %7872 = vmatpush.bf16.msra.mxu0 %v7603
    %7873 = vmatpush.bf16.msra.mxu0 %v7601
    %7874 = vmatmul.bf16.gmra.mxu0 %v7225
    %v7875 = vpop.f32.mrf.mxu0
    %v7876 = vadd.f32 %v7862, %v7875
    %v7877 = vpop.f32.mrf.mxu0
    %v7878 = vadd.f32 %v7864, %v7877
    %7879 = vdwg.mxu0
    %v7880 = vmax.f32 %v7792, 0.0
    %v7881 = vmax.f32 %v7876, 0.0
    %v7882 = vmax.f32 %v7794, 0.0
    %v7883 = vmax.f32 %v7878, 0.0
    %v7884 = vld [vmem:[#allocation49] sm:$0xff]
    %v7885 = vld [vmem:[#allocation49 + $0x8] sm:$0xff]
    %v7886 = vld [vmem:[#allocation49 + $0x10] sm:$0xff]
    %v7887 = vld [vmem:[#allocation49 + $0x18] sm:$0xff]
    %v7888 = vld [vmem:[#allocation49 + $0x20] sm:$0xff]
    %v7889 = vld [vmem:[#allocation49 + $0x28] sm:$0xff]
    %v7890 = vld [vmem:[#allocation49 + $0x30] sm:$0xff]
    %v7891 = vld [vmem:[#allocation49 + $0x38] sm:$0xff]
    %v7892 = vld [vmem:[#allocation49 + $0x40] sm:$0xff]
    %v7893 = vld [vmem:[#allocation49 + $0x48] sm:$0xff]
    %v7894 = vld [vmem:[#allocation49 + $0x50] sm:$0xff]
    %v7895 = vld [vmem:[#allocation49 + $0x58] sm:$0xff]
    %v7896 = vld [vmem:[#allocation49 + $0x60] sm:$0xff]
    %v7897 = vld [vmem:[#allocation49 + $0x68] sm:$0xff]
    %v7898 = vld [vmem:[#allocation49 + $0x70] sm:$0xff]
    %v7899 = vld [vmem:[#allocation49 + $0x78] sm:$0xff]
    %v7900 = vld [vmem:[#allocation49 + $0x80] sm:$0xff]
    %v7901 = vld [vmem:[#allocation49 + $0x88] sm:$0xff]
    %v7902 = vld [vmem:[#allocation49 + $0x90] sm:$0xff]
    %v7903 = vld [vmem:[#allocation49 + $0x98] sm:$0xff]
    %v7904 = vld [vmem:[#allocation49 + $0xa0] sm:$0xff]
    %v7905 = vld [vmem:[#allocation49 + $0xa8] sm:$0xff]
    %v7906 = vld [vmem:[#allocation49 + $0xb0] sm:$0xff]
    %v7907 = vld [vmem:[#allocation49 + $0xb8] sm:$0xff]
    %v7908 = vld [vmem:[#allocation49 + $0xc0] sm:$0xff]
    %v7909 = vld [vmem:[#allocation49 + $0xc8] sm:$0xff]
    %v7910 = vld [vmem:[#allocation49 + $0xd0] sm:$0xff]
    %v7911 = vld [vmem:[#allocation49 + $0xd8] sm:$0xff]
    %v7912 = vld [vmem:[#allocation49 + $0xe0] sm:$0xff]
    %v7913 = vld [vmem:[#allocation49 + $0xe8] sm:$0xff]
    %v7914 = vld [vmem:[#allocation49 + $0xf0] sm:$0xff]
    %v7915 = vld [vmem:[#allocation49 + $0xf8] sm:$0xff]
    %v7916 = vld [vmem:[#allocation51] sm:$0xff]
    %v7917 = vld [vmem:[#allocation51 + $0x8] sm:$0xff]
    %v7918 = vld [vmem:[#allocation51 + $0x10] sm:$0xff]
    %v7919 = vld [vmem:[#allocation51 + $0x18] sm:$0xff]
    %v7920 = vld [vmem:[#allocation51 + $0x20] sm:$0xff]
    %v7921 = vld [vmem:[#allocation51 + $0x28] sm:$0xff]
    %v7922 = vld [vmem:[#allocation51 + $0x30] sm:$0xff]
    %v7923 = vld [vmem:[#allocation51 + $0x38] sm:$0xff]
    %v7924 = vld [vmem:[%s89] sm:$0x1]
    %v7925 = vld [vmem:[%s91] sm:$0x1]
    %v7926 = vadd.f32 %v7880, %v7882
    %v7927 = vrot.slane %v7926, 4
    %v7928 = vadd.f32 %v7926, %v7927
    %v7929 = vrot.slane %v7928, 2
    %v7930 = vadd.f32 %v7928, %v7929
    %v7931 = vrot.slane %v7930, 1
    %v7932 = vadd.f32 %v7930, %v7931
    %v7933 = vadd.f32 %v7881, %v7883
    %v7934 = vrot.slane %v7933, 4
    %v7935 = vadd.f32 %v7933, %v7934
    %v7936 = vrot.slane %v7935, 2
    %v7937 = vadd.f32 %v7935, %v7936
    %v7938 = vrot.slane %v7937, 1
    %v7939 = vadd.f32 %v7937, %v7938
    %7940 = vmatpush.msra.mxu0 %v7899
    %7941 = vmatpush.msra.mxu0 %v7898
    %7942 = vmatpush.msra.mxu0 %v7897
    %7943 = vmatpush.msra.mxu0 %v7896
    %7944 = vmatpush.msra.mxu0 %v7895
    %7945 = vmatpush.msra.mxu0 %v7894
    %7946 = vmatpush.msra.mxu0 %v7893
    %7947 = vmatpush.msra.mxu0 %v7892
    %7948 = vmatpush.msra.mxu0 %v7891
    %7949 = vmatpush.msra.mxu0 %v7890
    %7950 = vmatpush.msra.mxu0 %v7889
    %7951 = vmatpush.msra.mxu0 %v7888
    %7952 = vmatpush.msra.mxu0 %v7887
    %7953 = vmatpush.msra.mxu0 %v7886
    %7954 = vmatpush.msra.mxu0 %v7885
    %7955 = vmatpush.msra.mxu0 %v7884
    %7956 = vmatmul.f32.gmra.mxu0 %v7932
    %v7957 = vpop.f32.mrf.mxu0
    %v7958 = vadd.f32 0.0, %v7957
    %7959 = vdwg.mxu0
    %7960 = vmatpush.msra.mxu0 %v7915
    %7961 = vmatpush.msra.mxu0 %v7914
    %7962 = vmatpush.msra.mxu0 %v7913
    %7963 = vmatpush.msra.mxu0 %v7912
    %7964 = vmatpush.msra.mxu0 %v7911
    %7965 = vmatpush.msra.mxu0 %v7910
    %7966 = vmatpush.msra.mxu0 %v7909
    %7967 = vmatpush.msra.mxu0 %v7908
    %7968 = vmatpush.msra.mxu0 %v7907
    %7969 = vmatpush.msra.mxu0 %v7906
    %7970 = vmatpush.msra.mxu0 %v7905
    %7971 = vmatpush.msra.mxu0 %v7904
    %7972 = vmatpush.msra.mxu0 %v7903
    %7973 = vmatpush.msra.mxu0 %v7902
    %7974 = vmatpush.msra.mxu0 %v7901
    %7975 = vmatpush.msra.mxu0 %v7900
    %7976 = vmatmul.f32.gmra.mxu0 %v7939
    %v7977 = vpop.f32.mrf.mxu0
    %v7978 = vadd.f32 %v7958, %v7977
    %7979 = vdwg.mxu0
    %v7980 = vmul.f32 %v7978, 0.0078125
    %v7982 = vsel %vm1212, %v7980, 0
    %7984 = vmatpush.msra.mxu0 0.0
    %7985 = vmatpush.msra.mxu0 0.0
    %7986 = vmatpush.msra.mxu0 0.0
    %7987 = vmatpush.msra.mxu0 0.0
    %7988 = vmatpush.msra.mxu0 0.0
    %7989 = vmatpush.msra.mxu0 0.0
    %7990 = vmatpush.msra.mxu0 0.0
    %7991 = vmatpush.msra.mxu0 0.0
    %7992 = vmatpush.msra.mxu0 0.0
    %7993 = vmatpush.msra.mxu0 0.0
    %7994 = vmatpush.msra.mxu0 0.0
    %7995 = vmatpush.msra.mxu0 0.0
    %7996 = vmatpush.msra.mxu0 %v7922
    %7997 = vmatpush.msra.mxu0 %v7920
    %7998 = vmatpush.msra.mxu0 %v7918
    %7999 = vmatpush.msra.mxu0 %v7916
    %8000 = vmatmul.f32.gmra.mxu0 %v7982
    %v8001 = vpop.f32.mrf.mxu0
    %v8002 = vadd.f32 0.0, %v8001
    %8003 = vdwg.mxu0
    %8004 = vmatpush.msra.mxu0 0.0
    %8005 = vmatpush.msra.mxu0 0.0
    %8006 = vmatpush.msra.mxu0 0.0
    %8007 = vmatpush.msra.mxu0 0.0
    %8008 = vmatpush.msra.mxu0 0.0
    %8009 = vmatpush.msra.mxu0 0.0
    %8010 = vmatpush.msra.mxu0 0.0
    %8011 = vmatpush.msra.mxu0 0.0
    %8012 = vmatpush.msra.mxu0 0.0
    %8013 = vmatpush.msra.mxu0 0.0
    %8014 = vmatpush.msra.mxu0 0.0
    %8015 = vmatpush.msra.mxu0 0.0
    %8016 = vmatpush.msra.mxu0 %v7923
    %8017 = vmatpush.msra.mxu0 %v7921
    %8018 = vmatpush.msra.mxu0 %v7919
    %8019 = vmatpush.msra.mxu0 %v7917
    %8020 = vmatmul.f32.gmra.mxu0 %v7982
    %v8021 = vpop.f32.mrf.mxu0
    %v8022 = vadd.f32 0.0, %v8021
    %8023 = vdwg.mxu0
    %v8024 = vperm.slane %v8002, 0
    %v8025 = vperm.slane %v8022, 0
    %v8026 = vsub.f32 %v7880, %v8024
    %v8027 = vsub.f32 %v7881, %v8025
    %v8028 = vsub.f32 %v7882, %v8024
    %v8029 = vsub.f32 %v7883, %v8025
    %v8030 = vmul.f32 %v8026, %v8026
    %v8031 = vmul.f32 %v8027, %v8027
    %v8032 = vmul.f32 %v8028, %v8028
    %v8033 = vmul.f32 %v8029, %v8029
    %v8034 = vadd.f32 %v8030, %v8032
    %v8035 = vrot.slane %v8034, 4
    %v8036 = vadd.f32 %v8034, %v8035
    %v8037 = vrot.slane %v8036, 2
    %v8038 = vadd.f32 %v8036, %v8037
    %v8039 = vrot.slane %v8038, 1
    %v8040 = vadd.f32 %v8038, %v8039
    %v8041 = vadd.f32 %v8031, %v8033
    %v8042 = vrot.slane %v8041, 4
    %v8043 = vadd.f32 %v8041, %v8042
    %v8044 = vrot.slane %v8043, 2
    %v8045 = vadd.f32 %v8043, %v8044
    %v8046 = vrot.slane %v8045, 1
    %v8047 = vadd.f32 %v8045, %v8046
    %8048 = vmatpush.msra.mxu0 %v7899
    %8049 = vmatpush.msra.mxu0 %v7898
    %8050 = vmatpush.msra.mxu0 %v7897
    %8051 = vmatpush.msra.mxu0 %v7896
    %8052 = vmatpush.msra.mxu0 %v7895
    %8053 = vmatpush.msra.mxu0 %v7894
    %8054 = vmatpush.msra.mxu0 %v7893
    %8055 = vmatpush.msra.mxu0 %v7892
    %8056 = vmatpush.msra.mxu0 %v7891
    %8057 = vmatpush.msra.mxu0 %v7890
    %8058 = vmatpush.msra.mxu0 %v7889
    %8059 = vmatpush.msra.mxu0 %v7888
    %8060 = vmatpush.msra.mxu0 %v7887
    %8061 = vmatpush.msra.mxu0 %v7886
    %8062 = vmatpush.msra.mxu0 %v7885
    %8063 = vmatpush.msra.mxu0 %v7884
    %8064 = vmatmul.f32.gmra.mxu0 %v8040
    %v8065 = vpop.f32.mrf.mxu0
    %v8066 = vadd.f32 0.0, %v8065
    %8067 = vdwg.mxu0
    %8068 = vmatpush.msra.mxu0 %v7915
    %8069 = vmatpush.msra.mxu0 %v7914
    %8070 = vmatpush.msra.mxu0 %v7913
    %8071 = vmatpush.msra.mxu0 %v7912
    %8072 = vmatpush.msra.mxu0 %v7911
    %8073 = vmatpush.msra.mxu0 %v7910
    %8074 = vmatpush.msra.mxu0 %v7909
    %8075 = vmatpush.msra.mxu0 %v7908
    %8076 = vmatpush.msra.mxu0 %v7907
    %8077 = vmatpush.msra.mxu0 %v7906
    %8078 = vmatpush.msra.mxu0 %v7905
    %8079 = vmatpush.msra.mxu0 %v7904
    %8080 = vmatpush.msra.mxu0 %v7903
    %8081 = vmatpush.msra.mxu0 %v7902
    %8082 = vmatpush.msra.mxu0 %v7901
    %8083 = vmatpush.msra.mxu0 %v7900
    %8084 = vmatmul.f32.gmra.mxu0 %v8047
    %v8085 = vpop.f32.mrf.mxu0
    %v8086 = vadd.f32 %v8066, %v8085
    %8087 = vdwg.mxu0
    %v8088 = vmul.f32 %v8086, 0.0078125
    %v8089 = vadd.f32 %v8088, 1e-05
    %v8090 = vrsqrt.pop %v8089
    %v8091 = vmul.f32 %v8090, %v8089
    %v8092 = vmul.f32 %v8091, %v8090
    %v8093 = vmul.f32 0.5, %v8092
    %v8094 = vsub.f32 1.5, %v8093
    %v8095 = vmul.f32 %v8090, %v8094
    %vm8096 = vweird.f32 %v8089
    %vm8097 = vweird.f32 %v8090
    %vm8098 = vmor %vm8096, %vm8097
    %v8099 = vsel %vm8098, %v8090, %v8095
    %v8100 = vmul.f32 %v7924, %v8099
    %v8102 = vsel %vm1212, %v8100, 0
    %8104 = vmatpush.msra.mxu0 0.0
    %8105 = vmatpush.msra.mxu0 0.0
    %8106 = vmatpush.msra.mxu0 0.0
    %8107 = vmatpush.msra.mxu0 0.0
    %8108 = vmatpush.msra.mxu0 0.0
    %8109 = vmatpush.msra.mxu0 0.0
    %8110 = vmatpush.msra.mxu0 0.0
    %8111 = vmatpush.msra.mxu0 0.0
    %8112 = vmatpush.msra.mxu0 0.0
    %8113 = vmatpush.msra.mxu0 0.0
    %8114 = vmatpush.msra.mxu0 0.0
    %8115 = vmatpush.msra.mxu0 0.0
    %8116 = vmatpush.msra.mxu0 %v7922
    %8117 = vmatpush.msra.mxu0 %v7920
    %8118 = vmatpush.msra.mxu0 %v7918
    %8119 = vmatpush.msra.mxu0 %v7916
    %8120 = vmatmul.f32.gmra.mxu0 %v8102
    %v8121 = vpop.f32.mrf.mxu0
    %v8122 = vadd.f32 0.0, %v8121
    %8123 = vdwg.mxu0
    %8124 = vmatpush.msra.mxu0 0.0
    %8125 = vmatpush.msra.mxu0 0.0
    %8126 = vmatpush.msra.mxu0 0.0
    %8127 = vmatpush.msra.mxu0 0.0
    %8128 = vmatpush.msra.mxu0 0.0
    %8129 = vmatpush.msra.mxu0 0.0
    %8130 = vmatpush.msra.mxu0 0.0
    %8131 = vmatpush.msra.mxu0 0.0
    %8132 = vmatpush.msra.mxu0 0.0
    %8133 = vmatpush.msra.mxu0 0.0
    %8134 = vmatpush.msra.mxu0 0.0
    %8135 = vmatpush.msra.mxu0 0.0
    %8136 = vmatpush.msra.mxu0 %v7923
    %8137 = vmatpush.msra.mxu0 %v7921
    %8138 = vmatpush.msra.mxu0 %v7919
    %8139 = vmatpush.msra.mxu0 %v7917
    %8140 = vmatmul.f32.gmra.mxu0 %v8102
    %v8141 = vpop.f32.mrf.mxu0
    %v8142 = vadd.f32 0.0, %v8141
    %8143 = vdwg.mxu0
    %v8144 = vperm.slane %v8122, 0
    %v8145 = vperm.slane %v8142, 0
    %v8146 = vmul.f32 %v8026, %v8144
    %v8147 = vmul.f32 %v8027, %v8145
    %v8148 = vmul.f32 %v8028, %v8144
    %v8149 = vmul.f32 %v8029, %v8145
    %v8151 = vsel %vm1212, %v7925, 0
    %8153 = vmatpush.msra.mxu0 0.0
    %8154 = vmatpush.msra.mxu0 0.0
    %8155 = vmatpush.msra.mxu0 0.0
    %8156 = vmatpush.msra.mxu0 0.0
    %8157 = vmatpush.msra.mxu0 0.0
    %8158 = vmatpush.msra.mxu0 0.0
    %8159 = vmatpush.msra.mxu0 0.0
    %8160 = vmatpush.msra.mxu0 0.0
    %8161 = vmatpush.msra.mxu0 0.0
    %8162 = vmatpush.msra.mxu0 0.0
    %8163 = vmatpush.msra.mxu0 0.0
    %8164 = vmatpush.msra.mxu0 0.0
    %8165 = vmatpush.msra.mxu0 %v7922
    %8166 = vmatpush.msra.mxu0 %v7920
    %8167 = vmatpush.msra.mxu0 %v7918
    %8168 = vmatpush.msra.mxu0 %v7916
    %8169 = vmatmul.f32.gmra.mxu0 %v8151
    %v8170 = vpop.f32.mrf.mxu0
    %v8171 = vadd.f32 0.0, %v8170
    %8172 = vdwg.mxu0
    %8173 = vmatpush.msra.mxu0 0.0
    %8174 = vmatpush.msra.mxu0 0.0
    %8175 = vmatpush.msra.mxu0 0.0
    %8176 = vmatpush.msra.mxu0 0.0
    %8177 = vmatpush.msra.mxu0 0.0
    %8178 = vmatpush.msra.mxu0 0.0
    %8179 = vmatpush.msra.mxu0 0.0
    %8180 = vmatpush.msra.mxu0 0.0
    %8181 = vmatpush.msra.mxu0 0.0
    %8182 = vmatpush.msra.mxu0 0.0
    %8183 = vmatpush.msra.mxu0 0.0
    %8184 = vmatpush.msra.mxu0 0.0
    %8185 = vmatpush.msra.mxu0 %v7923
    %8186 = vmatpush.msra.mxu0 %v7921
    %8187 = vmatpush.msra.mxu0 %v7919
    %8188 = vmatpush.msra.mxu0 %v7917
    %8189 = vmatmul.f32.gmra.mxu0 %v8151
    %v8190 = vpop.f32.mrf.mxu0
    %v8191 = vadd.f32 0.0, %v8190
    %8192 = vdwg.mxu0
    %v8193 = vperm.slane %v8171, 0
    %v8194 = vperm.slane %v8191, 0
    %v8195 = vadd.f32 %v8146, %v8193
    %v8196 = vadd.f32 %v8147, %v8194
    %v8197 = vadd.f32 %v8148, %v8193
    %v8198 = vadd.f32 %v8149, %v8194
    %v8199 = vld [vmem:[%s99] sm:$0xff]
    %v8200 = vld [vmem:[%s99 + $0x8] sm:$0xff]
    %v8201 = vld [vmem:[%s99 + $0x10] sm:$0xff]
    %v8202 = vld [vmem:[%s99 + $0x18] sm:$0xff]
    %v8203 = vld [vmem:[%s99 + $0x20] sm:$0xff]
    %v8204 = vld [vmem:[%s99 + $0x28] sm:$0xff]
    %v8205 = vld [vmem:[%s99 + $0x30] sm:$0xff]
    %v8206 = vld [vmem:[%s99 + $0x38] sm:$0xff]
    %v8207 = vld [vmem:[%s99 + $0x40] sm:$0xff]
    %v8208 = vld [vmem:[%s99 + $0x48] sm:$0xff]
    %v8209 = vld [vmem:[%s99 + $0x50] sm:$0xff]
    %v8210 = vld [vmem:[%s99 + $0x58] sm:$0xff]
    %v8211 = vld [vmem:[%s99 + $0x60] sm:$0xff]
    %v8212 = vld [vmem:[%s99 + $0x68] sm:$0xff]
    %v8213 = vld [vmem:[%s99 + $0x70] sm:$0xff]
    %v8214 = vld [vmem:[%s99 + $0x78] sm:$0xff]
    %v8215 = vld [vmem:[%s99 + $0x80] sm:$0xff]
    %v8216 = vld [vmem:[%s99 + $0x88] sm:$0xff]
    %v8217 = vld [vmem:[%s99 + $0x90] sm:$0xff]
    %v8218 = vld [vmem:[%s99 + $0x98] sm:$0xff]
    %v8219 = vld [vmem:[%s99 + $0xa0] sm:$0xff]
    %v8220 = vld [vmem:[%s99 + $0xa8] sm:$0xff]
    %v8221 = vld [vmem:[%s99 + $0xb0] sm:$0xff]
    %v8222 = vld [vmem:[%s99 + $0xb8] sm:$0xff]
    %v8223 = vld [vmem:[%s99 + $0xc0] sm:$0xff]
    %v8224 = vld [vmem:[%s99 + $0xc8] sm:$0xff]
    %v8225 = vld [vmem:[%s99 + $0xd0] sm:$0xff]
    %v8226 = vld [vmem:[%s99 + $0xd8] sm:$0xff]
    %v8227 = vld [vmem:[%s99 + $0xe0] sm:$0xff]
    %v8228 = vld [vmem:[%s99 + $0xe8] sm:$0xff]
    %v8229 = vld [vmem:[%s99 + $0xf0] sm:$0xff]
    %v8230 = vld [vmem:[%s99 + $0xf8] sm:$0xff]
    %v8231 = vld [vmem:[%s99 + $0x100] sm:$0xff]
    %v8232 = vld [vmem:[%s99 + $0x108] sm:$0xff]
    %v8233 = vld [vmem:[%s99 + $0x110] sm:$0xff]
    %v8234 = vld [vmem:[%s99 + $0x118] sm:$0xff]
    %v8235 = vld [vmem:[%s99 + $0x120] sm:$0xff]
    %v8236 = vld [vmem:[%s99 + $0x128] sm:$0xff]
    %v8237 = vld [vmem:[%s99 + $0x130] sm:$0xff]
    %v8238 = vld [vmem:[%s99 + $0x138] sm:$0xff]
    %v8239 = vld [vmem:[%s99 + $0x140] sm:$0xff]
    %v8240 = vld [vmem:[%s99 + $0x148] sm:$0xff]
    %v8241 = vld [vmem:[%s99 + $0x150] sm:$0xff]
    %v8242 = vld [vmem:[%s99 + $0x158] sm:$0xff]
    %v8243 = vld [vmem:[%s99 + $0x160] sm:$0xff]
    %v8244 = vld [vmem:[%s99 + $0x168] sm:$0xff]
    %v8245 = vld [vmem:[%s99 + $0x170] sm:$0xff]
    %v8246 = vld [vmem:[%s99 + $0x178] sm:$0xff]
    %v8247 = vld [vmem:[%s99 + $0x180] sm:$0xff]
    %v8248 = vld [vmem:[%s99 + $0x188] sm:$0xff]
    %v8249 = vld [vmem:[%s99 + $0x190] sm:$0xff]
    %v8250 = vld [vmem:[%s99 + $0x198] sm:$0xff]
    %v8251 = vld [vmem:[%s99 + $0x1a0] sm:$0xff]
    %v8252 = vld [vmem:[%s99 + $0x1a8] sm:$0xff]
    %v8253 = vld [vmem:[%s99 + $0x1b0] sm:$0xff]
    %v8254 = vld [vmem:[%s99 + $0x1b8] sm:$0xff]
    %v8255 = vld [vmem:[%s99 + $0x1c0] sm:$0xff]
    %v8256 = vld [vmem:[%s99 + $0x1c8] sm:$0xff]
    %v8257 = vld [vmem:[%s99 + $0x1d0] sm:$0xff]
    %v8258 = vld [vmem:[%s99 + $0x1d8] sm:$0xff]
    %v8259 = vld [vmem:[%s99 + $0x1e0] sm:$0xff]
    %v8260 = vld [vmem:[%s99 + $0x1e8] sm:$0xff]
    %v8261 = vld [vmem:[%s99 + $0x1f0] sm:$0xff]
    %v8262 = vld [vmem:[%s99 + $0x1f8] sm:$0xff]
    %v8263 = vld [vmem:[%s99 + $0x200] sm:$0xff]
    %v8264 = vld [vmem:[%s99 + $0x208] sm:$0xff]
    %v8265 = vld [vmem:[%s99 + $0x210] sm:$0xff]
    %v8266 = vld [vmem:[%s99 + $0x218] sm:$0xff]
    %v8267 = vld [vmem:[%s99 + $0x220] sm:$0xff]
    %v8268 = vld [vmem:[%s99 + $0x228] sm:$0xff]
    %v8269 = vld [vmem:[%s99 + $0x230] sm:$0xff]
    %v8270 = vld [vmem:[%s99 + $0x238] sm:$0xff]
    %v8271 = vld [vmem:[%s99 + $0x240] sm:$0xff]
    %v8272 = vld [vmem:[%s99 + $0x248] sm:$0xff]
    %v8273 = vld [vmem:[%s99 + $0x250] sm:$0xff]
    %v8274 = vld [vmem:[%s99 + $0x258] sm:$0xff]
    %v8275 = vld [vmem:[%s99 + $0x260] sm:$0xff]
    %v8276 = vld [vmem:[%s99 + $0x268] sm:$0xff]
    %v8277 = vld [vmem:[%s99 + $0x270] sm:$0xff]
    %v8278 = vld [vmem:[%s99 + $0x278] sm:$0xff]
    %v8279 = vld [vmem:[%s99 + $0x280] sm:$0xff]
    %v8280 = vld [vmem:[%s99 + $0x288] sm:$0xff]
    %v8281 = vld [vmem:[%s99 + $0x290] sm:$0xff]
    %v8282 = vld [vmem:[%s99 + $0x298] sm:$0xff]
    %v8283 = vld [vmem:[%s99 + $0x2a0] sm:$0xff]
    %v8284 = vld [vmem:[%s99 + $0x2a8] sm:$0xff]
    %v8285 = vld [vmem:[%s99 + $0x2b0] sm:$0xff]
    %v8286 = vld [vmem:[%s99 + $0x2b8] sm:$0xff]
    %v8287 = vld [vmem:[%s99 + $0x2c0] sm:$0xff]
    %v8288 = vld [vmem:[%s99 + $0x2c8] sm:$0xff]
    %v8289 = vld [vmem:[%s99 + $0x2d0] sm:$0xff]
    %v8290 = vld [vmem:[%s99 + $0x2d8] sm:$0xff]
    %v8291 = vld [vmem:[%s99 + $0x2e0] sm:$0xff]
    %v8292 = vld [vmem:[%s99 + $0x2e8] sm:$0xff]
    %v8293 = vld [vmem:[%s99 + $0x2f0] sm:$0xff]
    %v8294 = vld [vmem:[%s99 + $0x2f8] sm:$0xff]
    %v8295 = vpack.c.bf16 %v8197, %v8195
    %v8296 = vpack.c.bf16 %v8198, %v8196
    %v8297 = vld [vmem:[#allocation52] sm:$0xf]
    %v8298 = vld [vmem:[#allocation52 + $0x4] sm:$0xf]
    %v8299 = vld [vmem:[#allocation52 + $0x8] sm:$0xf]
    %v8300 = vld [vmem:[#allocation52 + $0xc] sm:$0xf]
    %v8305 = vunpack.c.l.b16 %v8297
    %v8306 = vunpack.c.l.b16 %v8298
    %v8307 = vunpack.c.l.b16 %v8299
    %v8308 = vunpack.c.l.b16 %v8300
    %v8309 = vpack.c.b16 %v8306, %v8305
    %v8310 = vpack.c.b16 %v8308, %v8307
    %v8312 = vsel %vm1438, %v8309, 0
    %v8315 = vsel %vm1438, %v8310, 0
    %8317 = vmatpush.bf16.msra.mxu0 0
    %8318 = vmatpush.bf16.msra.mxu0 0
    %8319 = vmatpush.bf16.msra.mxu0 0
    %8320 = vmatpush.bf16.msra.mxu0 0
    %8321 = vmatpush.bf16.msra.mxu0 0
    %8322 = vmatpush.bf16.msra.mxu0 0
    %8323 = vmatpush.bf16.msra.mxu0 0
    %8324 = vmatpush.bf16.msra.mxu0 %v8295
    %8325 = vmatmul.bf16.gmra.mxu0 %v8312
    %v8326 = vpop.f32.mrf.mxu0
    %v8327 = vadd.f32 0.0, %v8326
    %v8328 = vpop.f32.mrf.mxu0
    %v8329 = vadd.f32 0.0, %v8328
    %8330 = vmatmul.bf16.gmra.mxu0 %v8315
    %v8331 = vpop.f32.mrf.mxu0
    %v8332 = vadd.f32 0.0, %v8331
    %v8333 = vpop.f32.mrf.mxu0
    %v8334 = vadd.f32 0.0, %v8333
    %8335 = vdwg.mxu0
    %8336 = vmatpush.bf16.msra.mxu0 0
    %8337 = vmatpush.bf16.msra.mxu0 0
    %8338 = vmatpush.bf16.msra.mxu0 0
    %8339 = vmatpush.bf16.msra.mxu0 0
    %8340 = vmatpush.bf16.msra.mxu0 0
    %8341 = vmatpush.bf16.msra.mxu0 0
    %8342 = vmatpush.bf16.msra.mxu0 0
    %8343 = vmatpush.bf16.msra.mxu0 %v8296
    %8344 = vmatmul.bf16.gmra.mxu0 %v8312
    %v8345 = vpop.f32.mrf.mxu0
    %v8346 = vadd.f32 0.0, %v8345
    %v8347 = vpop.f32.mrf.mxu0
    %v8348 = vadd.f32 0.0, %v8347
    %8349 = vmatmul.bf16.gmra.mxu0 %v8315
    %v8350 = vpop.f32.mrf.mxu0
    %v8351 = vadd.f32 0.0, %v8350
    %v8352 = vpop.f32.mrf.mxu0
    %v8353 = vadd.f32 0.0, %v8352
    %8354 = vdwg.mxu0
    %s8355 = scalar_lea.vmem [#allocation52], 16
    %v8356 = vld [vmem:[%s8355] sm:$0xf]
    %v8357 = vld [vmem:[%s8355 + $0x4] sm:$0xf]
    %v8358 = vld [vmem:[%s8355 + $0x8] sm:$0xf]
    %v8359 = vld [vmem:[%s8355 + $0xc] sm:$0xf]
    %v8364 = vunpack.c.l.b16 %v8356
    %v8365 = vunpack.c.l.b16 %v8357
    %v8366 = vunpack.c.l.b16 %v8358
    %v8367 = vunpack.c.l.b16 %v8359
    %v8368 = vpack.c.b16 %v8365, %v8364
    %v8369 = vpack.c.b16 %v8367, %v8366
    %v8371 = vsel %vm1438, %v8368, 0
    %v8374 = vsel %vm1438, %v8369, 0
    %8376 = vmatpush.bf16.msra.mxu0 0
    %8377 = vmatpush.bf16.msra.mxu0 0
    %8378 = vmatpush.bf16.msra.mxu0 0
    %8379 = vmatpush.bf16.msra.mxu0 0
    %8380 = vmatpush.bf16.msra.mxu0 0
    %8381 = vmatpush.bf16.msra.mxu0 0
    %8382 = vmatpush.bf16.msra.mxu0 0
    %8383 = vmatpush.bf16.msra.mxu0 %v8295
    %8384 = vmatmul.bf16.gmra.mxu0 %v8371
    %v8385 = vpop.f32.mrf.mxu0
    %v8386 = vadd.f32 0.0, %v8385
    %v8387 = vpop.f32.mrf.mxu0
    %v8388 = vadd.f32 0.0, %v8387
    %8389 = vmatmul.bf16.gmra.mxu0 %v8374
    %v8390 = vpop.f32.mrf.mxu0
    %v8391 = vadd.f32 0.0, %v8390
    %v8392 = vpop.f32.mrf.mxu0
    %v8393 = vadd.f32 0.0, %v8392
    %8394 = vdwg.mxu0
    %8395 = vmatpush.bf16.msra.mxu0 0
    %8396 = vmatpush.bf16.msra.mxu0 0
    %8397 = vmatpush.bf16.msra.mxu0 0
    %8398 = vmatpush.bf16.msra.mxu0 0
    %8399 = vmatpush.bf16.msra.mxu0 0
    %8400 = vmatpush.bf16.msra.mxu0 0
    %8401 = vmatpush.bf16.msra.mxu0 0
    %8402 = vmatpush.bf16.msra.mxu0 %v8296
    %8403 = vmatmul.bf16.gmra.mxu0 %v8371
    %v8404 = vpop.f32.mrf.mxu0
    %v8405 = vadd.f32 0.0, %v8404
    %v8406 = vpop.f32.mrf.mxu0
    %v8407 = vadd.f32 0.0, %v8406
    %8408 = vmatmul.bf16.gmra.mxu0 %v8374
    %v8409 = vpop.f32.mrf.mxu0
    %v8410 = vadd.f32 0.0, %v8409
    %v8411 = vpop.f32.mrf.mxu0
    %v8412 = vadd.f32 0.0, %v8411
    %8413 = vdwg.mxu0
    %s8414 = scalar_lea.vmem [#allocation52], 32
    %v8415 = vld [vmem:[%s8414] sm:$0xf]
    %v8416 = vld [vmem:[%s8414 + $0x4] sm:$0xf]
    %v8417 = vld [vmem:[%s8414 + $0x8] sm:$0xf]
    %v8418 = vld [vmem:[%s8414 + $0xc] sm:$0xf]
    %v8423 = vunpack.c.l.b16 %v8415
    %v8424 = vunpack.c.l.b16 %v8416
    %v8425 = vunpack.c.l.b16 %v8417
    %v8426 = vunpack.c.l.b16 %v8418
    %v8427 = vpack.c.b16 %v8424, %v8423
    %v8428 = vpack.c.b16 %v8426, %v8425
    %v8430 = vsel %vm1438, %v8427, 0
    %v8433 = vsel %vm1438, %v8428, 0
    %8435 = vmatpush.bf16.msra.mxu0 0
    %8436 = vmatpush.bf16.msra.mxu0 0
    %8437 = vmatpush.bf16.msra.mxu0 0
    %8438 = vmatpush.bf16.msra.mxu0 0
    %8439 = vmatpush.bf16.msra.mxu0 0
    %8440 = vmatpush.bf16.msra.mxu0 0
    %8441 = vmatpush.bf16.msra.mxu0 0
    %8442 = vmatpush.bf16.msra.mxu0 %v8295
    %8443 = vmatmul.bf16.gmra.mxu0 %v8430
    %v8444 = vpop.f32.mrf.mxu0
    %v8445 = vadd.f32 0.0, %v8444
    %v8446 = vpop.f32.mrf.mxu0
    %v8447 = vadd.f32 0.0, %v8446
    %8448 = vmatmul.bf16.gmra.mxu0 %v8433
    %v8449 = vpop.f32.mrf.mxu0
    %v8450 = vadd.f32 0.0, %v8449
    %v8451 = vpop.f32.mrf.mxu0
    %v8452 = vadd.f32 0.0, %v8451
    %8453 = vdwg.mxu0
    %8454 = vmatpush.bf16.msra.mxu0 0
    %8455 = vmatpush.bf16.msra.mxu0 0
    %8456 = vmatpush.bf16.msra.mxu0 0
    %8457 = vmatpush.bf16.msra.mxu0 0
    %8458 = vmatpush.bf16.msra.mxu0 0
    %8459 = vmatpush.bf16.msra.mxu0 0
    %8460 = vmatpush.bf16.msra.mxu0 0
    %8461 = vmatpush.bf16.msra.mxu0 %v8296
    %8462 = vmatmul.bf16.gmra.mxu0 %v8430
    %v8463 = vpop.f32.mrf.mxu0
    %v8464 = vadd.f32 0.0, %v8463
    %v8465 = vpop.f32.mrf.mxu0
    %v8466 = vadd.f32 0.0, %v8465
    %8467 = vmatmul.bf16.gmra.mxu0 %v8433
    %v8468 = vpop.f32.mrf.mxu0
    %v8469 = vadd.f32 0.0, %v8468
    %v8470 = vpop.f32.mrf.mxu0
    %v8471 = vadd.f32 0.0, %v8470
    %8472 = vdwg.mxu0
    %v8473 = vpack.c.bf16 %v8329, %v8327
    %v8474 = vpack.c.bf16 %v8348, %v8346
    %v8475 = vpack.c.bf16 %v8388, %v8386
    %v8476 = vpack.c.bf16 %v8407, %v8405
    %v8477 = vpack.c.bf16 %v8447, %v8445
    %v8478 = vpack.c.bf16 %v8466, %v8464
    %v8479 = vpack.c.bf16 %v8334, %v8332
    %v8480 = vpack.c.bf16 %v8353, %v8351
    %v8481 = vpack.c.bf16 %v8393, %v8391
    %v8482 = vpack.c.bf16 %v8412, %v8410
    %v8483 = vpack.c.bf16 %v8452, %v8450
    %v8484 = vpack.c.bf16 %v8471, %v8469
    %v8485 = vld [vmem:[#allocation54] sm:$0x3]
    %v8487 = vperm.slane %v8485, 0
    %v8488 = vperm.slane %v8485, 1
    %v8587 = vunpack.c.l.b16 %v8199
    %v8588 = vunpack.c.h.b16 %v8199
    %v8589 = vunpack.c.l.b16 %v8200
    %v8590 = vunpack.c.h.b16 %v8200
    %v8591 = vunpack.c.l.b16 %v8201
    %v8592 = vunpack.c.h.b16 %v8201
    %v8593 = vunpack.c.l.b16 %v8202
    %v8594 = vunpack.c.h.b16 %v8202
    %v8595 = vunpack.c.l.b16 %v8203
    %v8596 = vunpack.c.h.b16 %v8203
    %v8597 = vunpack.c.l.b16 %v8204
    %v8598 = vunpack.c.h.b16 %v8204
    %v8599 = vunpack.c.l.b16 %v8205
    %v8600 = vunpack.c.h.b16 %v8205
    %v8601 = vunpack.c.l.b16 %v8206
    %v8602 = vunpack.c.h.b16 %v8206
    %v8603 = vunpack.c.l.b16 %v8207
    %v8604 = vunpack.c.h.b16 %v8207
    %v8605 = vunpack.c.l.b16 %v8208
    %v8606 = vunpack.c.h.b16 %v8208
    %v8607 = vunpack.c.l.b16 %v8209
    %v8608 = vunpack.c.h.b16 %v8209
    %v8609 = vunpack.c.l.b16 %v8210
    %v8610 = vunpack.c.h.b16 %v8210
    %v8611 = vunpack.c.l.b16 %v8211
    %v8612 = vunpack.c.h.b16 %v8211
    %v8613 = vunpack.c.l.b16 %v8212
    %v8614 = vunpack.c.h.b16 %v8212
    %v8615 = vunpack.c.l.b16 %v8213
    %v8616 = vunpack.c.h.b16 %v8213
    %v8617 = vunpack.c.l.b16 %v8214
    %v8618 = vunpack.c.h.b16 %v8214
    %v8619 = vunpack.c.l.b16 %v8215
    %v8620 = vunpack.c.h.b16 %v8215
    %v8621 = vunpack.c.l.b16 %v8216
    %v8622 = vunpack.c.h.b16 %v8216
    %v8623 = vunpack.c.l.b16 %v8217
    %v8624 = vunpack.c.h.b16 %v8217
    %v8625 = vunpack.c.l.b16 %v8218
    %v8626 = vunpack.c.h.b16 %v8218
    %v8627 = vunpack.c.l.b16 %v8219
    %v8628 = vunpack.c.h.b16 %v8219
    %v8629 = vunpack.c.l.b16 %v8220
    %v8630 = vunpack.c.h.b16 %v8220
    %v8631 = vunpack.c.l.b16 %v8221
    %v8632 = vunpack.c.h.b16 %v8221
    %v8633 = vunpack.c.l.b16 %v8222
    %v8634 = vunpack.c.h.b16 %v8222
    %v8635 = vunpack.c.l.b16 %v8223
    %v8636 = vunpack.c.h.b16 %v8223
    %v8637 = vunpack.c.l.b16 %v8224
    %v8638 = vunpack.c.h.b16 %v8224
    %v8639 = vunpack.c.l.b16 %v8225
    %v8640 = vunpack.c.h.b16 %v8225
    %v8641 = vunpack.c.l.b16 %v8226
    %v8642 = vunpack.c.h.b16 %v8226
    %v8643 = vunpack.c.l.b16 %v8227
    %v8644 = vunpack.c.h.b16 %v8227
    %v8645 = vunpack.c.l.b16 %v8228
    %v8646 = vunpack.c.h.b16 %v8228
    %v8647 = vunpack.c.l.b16 %v8229
    %v8648 = vunpack.c.h.b16 %v8229
    %v8649 = vunpack.c.l.b16 %v8230
    %v8650 = vunpack.c.h.b16 %v8230
    %v8651 = vunpack.c.l.b16 %v8231
    %v8652 = vunpack.c.h.b16 %v8231
    %v8653 = vunpack.c.l.b16 %v8232
    %v8654 = vunpack.c.h.b16 %v8232
    %v8655 = vunpack.c.l.b16 %v8233
    %v8656 = vunpack.c.h.b16 %v8233
    %v8657 = vunpack.c.l.b16 %v8234
    %v8658 = vunpack.c.h.b16 %v8234
    %v8659 = vunpack.c.l.b16 %v8235
    %v8660 = vunpack.c.h.b16 %v8235
    %v8661 = vunpack.c.l.b16 %v8236
    %v8662 = vunpack.c.h.b16 %v8236
    %v8663 = vunpack.c.l.b16 %v8237
    %v8664 = vunpack.c.h.b16 %v8237
    %v8665 = vunpack.c.l.b16 %v8238
    %v8666 = vunpack.c.h.b16 %v8238
    %v8667 = vunpack.c.l.b16 %v8239
    %v8668 = vunpack.c.h.b16 %v8239
    %v8669 = vunpack.c.l.b16 %v8240
    %v8670 = vunpack.c.h.b16 %v8240
    %v8671 = vunpack.c.l.b16 %v8241
    %v8672 = vunpack.c.h.b16 %v8241
    %v8673 = vunpack.c.l.b16 %v8242
    %v8674 = vunpack.c.h.b16 %v8242
    %v8675 = vunpack.c.l.b16 %v8243
    %v8676 = vunpack.c.h.b16 %v8243
    %v8677 = vunpack.c.l.b16 %v8244
    %v8678 = vunpack.c.h.b16 %v8244
    %v8679 = vunpack.c.l.b16 %v8245
    %v8680 = vunpack.c.h.b16 %v8245
    %v8681 = vunpack.c.l.b16 %v8246
    %v8682 = vunpack.c.h.b16 %v8246
    %v8683 = vunpack.c.l.b16 %v8247
    %v8684 = vunpack.c.h.b16 %v8247
    %v8685 = vunpack.c.l.b16 %v8248
    %v8686 = vunpack.c.h.b16 %v8248
    %v8687 = vunpack.c.l.b16 %v8249
    %v8688 = vunpack.c.h.b16 %v8249
    %v8689 = vunpack.c.l.b16 %v8250
    %v8690 = vunpack.c.h.b16 %v8250
    %v8691 = vunpack.c.l.b16 %v8251
    %v8692 = vunpack.c.h.b16 %v8251
    %v8693 = vunpack.c.l.b16 %v8252
    %v8694 = vunpack.c.h.b16 %v8252
    %v8695 = vunpack.c.l.b16 %v8253
    %v8696 = vunpack.c.h.b16 %v8253
    %v8697 = vunpack.c.l.b16 %v8254
    %v8698 = vunpack.c.h.b16 %v8254
    %v8699 = vunpack.c.l.b16 %v8255
    %v8700 = vunpack.c.h.b16 %v8255
    %v8701 = vunpack.c.l.b16 %v8256
    %v8702 = vunpack.c.h.b16 %v8256
    %v8703 = vunpack.c.l.b16 %v8257
    %v8704 = vunpack.c.h.b16 %v8257
    %v8705 = vunpack.c.l.b16 %v8258
    %v8706 = vunpack.c.h.b16 %v8258
    %v8707 = vunpack.c.l.b16 %v8259
    %v8708 = vunpack.c.h.b16 %v8259
    %v8709 = vunpack.c.l.b16 %v8260
    %v8710 = vunpack.c.h.b16 %v8260
    %v8711 = vunpack.c.l.b16 %v8261
    %v8712 = vunpack.c.h.b16 %v8261
    %v8713 = vunpack.c.l.b16 %v8262
    %v8714 = vunpack.c.h.b16 %v8262
    %v8715 = vunpack.c.l.b16 %v8263
    %v8716 = vunpack.c.h.b16 %v8263
    %v8717 = vunpack.c.l.b16 %v8264
    %v8718 = vunpack.c.h.b16 %v8264
    %v8719 = vunpack.c.l.b16 %v8265
    %v8720 = vunpack.c.h.b16 %v8265
    %v8721 = vunpack.c.l.b16 %v8266
    %v8722 = vunpack.c.h.b16 %v8266
    %v8723 = vunpack.c.l.b16 %v8267
    %v8724 = vunpack.c.h.b16 %v8267
    %v8725 = vunpack.c.l.b16 %v8268
    %v8726 = vunpack.c.h.b16 %v8268
    %v8727 = vunpack.c.l.b16 %v8269
    %v8728 = vunpack.c.h.b16 %v8269
    %v8729 = vunpack.c.l.b16 %v8270
    %v8730 = vunpack.c.h.b16 %v8270
    %v8731 = vunpack.c.l.b16 %v8271
    %v8732 = vunpack.c.h.b16 %v8271
    %v8733 = vunpack.c.l.b16 %v8272
    %v8734 = vunpack.c.h.b16 %v8272
    %v8735 = vunpack.c.l.b16 %v8273
    %v8736 = vunpack.c.h.b16 %v8273
    %v8737 = vunpack.c.l.b16 %v8274
    %v8738 = vunpack.c.h.b16 %v8274
    %v8739 = vunpack.c.l.b16 %v8275
    %v8740 = vunpack.c.h.b16 %v8275
    %v8741 = vunpack.c.l.b16 %v8276
    %v8742 = vunpack.c.h.b16 %v8276
    %v8743 = vunpack.c.l.b16 %v8277
    %v8744 = vunpack.c.h.b16 %v8277
    %v8745 = vunpack.c.l.b16 %v8278
    %v8746 = vunpack.c.h.b16 %v8278
    %v8747 = vunpack.c.l.b16 %v8279
    %v8748 = vunpack.c.h.b16 %v8279
    %v8749 = vunpack.c.l.b16 %v8280
    %v8750 = vunpack.c.h.b16 %v8280
    %v8751 = vunpack.c.l.b16 %v8281
    %v8752 = vunpack.c.h.b16 %v8281
    %v8753 = vunpack.c.l.b16 %v8282
    %v8754 = vunpack.c.h.b16 %v8282
    %v8755 = vunpack.c.l.b16 %v8283
    %v8756 = vunpack.c.h.b16 %v8283
    %v8757 = vunpack.c.l.b16 %v8284
    %v8758 = vunpack.c.h.b16 %v8284
    %v8759 = vunpack.c.l.b16 %v8285
    %v8760 = vunpack.c.h.b16 %v8285
    %v8761 = vunpack.c.l.b16 %v8286
    %v8762 = vunpack.c.h.b16 %v8286
    %v8763 = vunpack.c.l.b16 %v8287
    %v8764 = vunpack.c.h.b16 %v8287
    %v8765 = vunpack.c.l.b16 %v8288
    %v8766 = vunpack.c.h.b16 %v8288
    %v8767 = vunpack.c.l.b16 %v8289
    %v8768 = vunpack.c.h.b16 %v8289
    %v8769 = vunpack.c.l.b16 %v8290
    %v8770 = vunpack.c.h.b16 %v8290
    %v8771 = vunpack.c.l.b16 %v8291
    %v8772 = vunpack.c.h.b16 %v8291
    %v8773 = vunpack.c.l.b16 %v8292
    %v8774 = vunpack.c.h.b16 %v8292
    %v8775 = vunpack.c.l.b16 %v8293
    %v8776 = vunpack.c.h.b16 %v8293
    %v8777 = vunpack.c.l.b16 %v8294
    %v8778 = vunpack.c.h.b16 %v8294
    %v8779 = vpack.c.b16 %v8589, %v8587
    %v8780 = vpack.c.b16 %v8590, %v8588
    %v8781 = vpack.c.b16 %v8593, %v8591
    %v8782 = vpack.c.b16 %v8594, %v8592
    %v8783 = vpack.c.b16 %v8597, %v8595
    %v8784 = vpack.c.b16 %v8598, %v8596
    %v8785 = vpack.c.b16 %v8601, %v8599
    %v8786 = vpack.c.b16 %v8602, %v8600
    %v8787 = vpack.c.b16 %v8605, %v8603
    %v8788 = vpack.c.b16 %v8606, %v8604
    %v8789 = vpack.c.b16 %v8609, %v8607
    %v8790 = vpack.c.b16 %v8610, %v8608
    %v8791 = vpack.c.b16 %v8613, %v8611
    %v8792 = vpack.c.b16 %v8614, %v8612
    %v8793 = vpack.c.b16 %v8617, %v8615
    %v8794 = vpack.c.b16 %v8618, %v8616
    %v8795 = vpack.c.b16 %v8621, %v8619
    %v8796 = vpack.c.b16 %v8622, %v8620
    %v8797 = vpack.c.b16 %v8625, %v8623
    %v8798 = vpack.c.b16 %v8626, %v8624
    %v8799 = vpack.c.b16 %v8629, %v8627
    %v8800 = vpack.c.b16 %v8630, %v8628
    %v8801 = vpack.c.b16 %v8633, %v8631
    %v8802 = vpack.c.b16 %v8634, %v8632
    %v8803 = vpack.c.b16 %v8637, %v8635
    %v8804 = vpack.c.b16 %v8638, %v8636
    %v8805 = vpack.c.b16 %v8641, %v8639
    %v8806 = vpack.c.b16 %v8642, %v8640
    %v8807 = vpack.c.b16 %v8645, %v8643
    %v8808 = vpack.c.b16 %v8646, %v8644
    %v8809 = vpack.c.b16 %v8649, %v8647
    %v8810 = vpack.c.b16 %v8650, %v8648
    %v8811 = vpack.c.b16 %v8653, %v8651
    %v8812 = vpack.c.b16 %v8654, %v8652
    %v8813 = vpack.c.b16 %v8657, %v8655
    %v8814 = vpack.c.b16 %v8658, %v8656
    %v8815 = vpack.c.b16 %v8661, %v8659
    %v8816 = vpack.c.b16 %v8662, %v8660
    %v8817 = vpack.c.b16 %v8665, %v8663
    %v8818 = vpack.c.b16 %v8666, %v8664
    %v8819 = vpack.c.b16 %v8669, %v8667
    %v8820 = vpack.c.b16 %v8670, %v8668
    %v8821 = vpack.c.b16 %v8673, %v8671
    %v8822 = vpack.c.b16 %v8674, %v8672
    %v8823 = vpack.c.b16 %v8677, %v8675
    %v8824 = vpack.c.b16 %v8678, %v8676
    %v8825 = vpack.c.b16 %v8681, %v8679
    %v8826 = vpack.c.b16 %v8682, %v8680
    %v8827 = vpack.c.b16 %v8685, %v8683
    %v8828 = vpack.c.b16 %v8686, %v8684
    %v8829 = vpack.c.b16 %v8689, %v8687
    %v8830 = vpack.c.b16 %v8690, %v8688
    %v8831 = vpack.c.b16 %v8693, %v8691
    %v8832 = vpack.c.b16 %v8694, %v8692
    %v8833 = vpack.c.b16 %v8697, %v8695
    %v8834 = vpack.c.b16 %v8698, %v8696
    %v8835 = vpack.c.b16 %v8701, %v8699
    %v8836 = vpack.c.b16 %v8702, %v8700
    %v8837 = vpack.c.b16 %v8705, %v8703
    %v8838 = vpack.c.b16 %v8706, %v8704
    %v8839 = vpack.c.b16 %v8709, %v8707
    %v8840 = vpack.c.b16 %v8710, %v8708
    %v8841 = vpack.c.b16 %v8713, %v8711
    %v8842 = vpack.c.b16 %v8714, %v8712
    %v8843 = vpack.c.b16 %v8717, %v8715
    %v8844 = vpack.c.b16 %v8718, %v8716
    %v8845 = vpack.c.b16 %v8721, %v8719
    %v8846 = vpack.c.b16 %v8722, %v8720
    %v8847 = vpack.c.b16 %v8725, %v8723
    %v8848 = vpack.c.b16 %v8726, %v8724
    %v8849 = vpack.c.b16 %v8729, %v8727
    %v8850 = vpack.c.b16 %v8730, %v8728
    %v8851 = vpack.c.b16 %v8733, %v8731
    %v8852 = vpack.c.b16 %v8734, %v8732
    %v8853 = vpack.c.b16 %v8737, %v8735
    %v8854 = vpack.c.b16 %v8738, %v8736
    %v8855 = vpack.c.b16 %v8741, %v8739
    %v8856 = vpack.c.b16 %v8742, %v8740
    %v8857 = vpack.c.b16 %v8745, %v8743
    %v8858 = vpack.c.b16 %v8746, %v8744
    %v8859 = vpack.c.b16 %v8749, %v8747
    %v8860 = vpack.c.b16 %v8750, %v8748
    %v8861 = vpack.c.b16 %v8753, %v8751
    %v8862 = vpack.c.b16 %v8754, %v8752
    %v8863 = vpack.c.b16 %v8757, %v8755
    %v8864 = vpack.c.b16 %v8758, %v8756
    %v8865 = vpack.c.b16 %v8761, %v8759
    %v8866 = vpack.c.b16 %v8762, %v8760
    %v8867 = vpack.c.b16 %v8765, %v8763
    %v8868 = vpack.c.b16 %v8766, %v8764
    %v8869 = vpack.c.b16 %v8769, %v8767
    %v8870 = vpack.c.b16 %v8770, %v8768
    %v8871 = vpack.c.b16 %v8773, %v8771
    %v8872 = vpack.c.b16 %v8774, %v8772
    %v8873 = vpack.c.b16 %v8777, %v8775
    %v8874 = vpack.c.b16 %v8778, %v8776
    %8971 = vmatpush.bf16.msra.mxu0 %v8793
    %8972 = vmatpush.bf16.msra.mxu0 %v8791
    %8973 = vmatpush.bf16.msra.mxu0 %v8789
    %8974 = vmatpush.bf16.msra.mxu0 %v8787
    %8975 = vmatpush.bf16.msra.mxu0 %v8785
    %8976 = vmatpush.bf16.msra.mxu0 %v8783
    %8977 = vmatpush.bf16.msra.mxu0 %v8781
    %8978 = vmatpush.bf16.msra.mxu0 %v8779
    %8979 = vmatmul.bf16.gmra.mxu0 %v8473
    %v8980 = vpop.f32.mrf.mxu0
    %v8981 = vadd.f32 %v8487, %v8980
    %v8982 = vpop.f32.mrf.mxu0
    %v8983 = vadd.f32 %v8487, %v8982
    %8984 = vmatmul.bf16.gmra.mxu0 %v8479
    %v8985 = vpop.f32.mrf.mxu0
    %v8986 = vadd.f32 %v8487, %v8985
    %v8987 = vpop.f32.mrf.mxu0
    %v8988 = vadd.f32 %v8487, %v8987
    %8989 = vdwg.mxu0
    %8990 = vmatpush.bf16.msra.mxu0 %v8809
    %8991 = vmatpush.bf16.msra.mxu0 %v8807
    %8992 = vmatpush.bf16.msra.mxu0 %v8805
    %8993 = vmatpush.bf16.msra.mxu0 %v8803
    %8994 = vmatpush.bf16.msra.mxu0 %v8801
    %8995 = vmatpush.bf16.msra.mxu0 %v8799
    %8996 = vmatpush.bf16.msra.mxu0 %v8797
    %8997 = vmatpush.bf16.msra.mxu0 %v8795
    %8998 = vmatmul.bf16.gmra.mxu0 %v8474
    %v8999 = vpop.f32.mrf.mxu0
    %v9000 = vadd.f32 %v8981, %v8999
    %v9001 = vpop.f32.mrf.mxu0
    %v9002 = vadd.f32 %v8983, %v9001
    %9003 = vmatmul.bf16.gmra.mxu0 %v8480
    %v9004 = vpop.f32.mrf.mxu0
    %v9005 = vadd.f32 %v8986, %v9004
    %v9006 = vpop.f32.mrf.mxu0
    %v9007 = vadd.f32 %v8988, %v9006
    %9008 = vdwg.mxu0
    %9009 = vmatpush.bf16.msra.mxu0 %v8825
    %9010 = vmatpush.bf16.msra.mxu0 %v8823
    %9011 = vmatpush.bf16.msra.mxu0 %v8821
    %9012 = vmatpush.bf16.msra.mxu0 %v8819
    %9013 = vmatpush.bf16.msra.mxu0 %v8817
    %9014 = vmatpush.bf16.msra.mxu0 %v8815
    %9015 = vmatpush.bf16.msra.mxu0 %v8813
    %9016 = vmatpush.bf16.msra.mxu0 %v8811
    %9017 = vmatmul.bf16.gmra.mxu0 %v8475
    %v9018 = vpop.f32.mrf.mxu0
    %v9019 = vadd.f32 %v9000, %v9018
    %v9020 = vpop.f32.mrf.mxu0
    %v9021 = vadd.f32 %v9002, %v9020
    %9022 = vmatmul.bf16.gmra.mxu0 %v8481
    %v9023 = vpop.f32.mrf.mxu0
    %v9024 = vadd.f32 %v9005, %v9023
    %v9025 = vpop.f32.mrf.mxu0
    %v9026 = vadd.f32 %v9007, %v9025
    %9027 = vdwg.mxu0
    %9028 = vmatpush.bf16.msra.mxu0 %v8841
    %9029 = vmatpush.bf16.msra.mxu0 %v8839
    %9030 = vmatpush.bf16.msra.mxu0 %v8837
    %9031 = vmatpush.bf16.msra.mxu0 %v8835
    %9032 = vmatpush.bf16.msra.mxu0 %v8833
    %9033 = vmatpush.bf16.msra.mxu0 %v8831
    %9034 = vmatpush.bf16.msra.mxu0 %v8829
    %9035 = vmatpush.bf16.msra.mxu0 %v8827
    %9036 = vmatmul.bf16.gmra.mxu0 %v8476
    %v9037 = vpop.f32.mrf.mxu0
    %v9038 = vadd.f32 %v9019, %v9037
    %v9039 = vpop.f32.mrf.mxu0
    %v9040 = vadd.f32 %v9021, %v9039
    %9041 = vmatmul.bf16.gmra.mxu0 %v8482
    %v9042 = vpop.f32.mrf.mxu0
    %v9043 = vadd.f32 %v9024, %v9042
    %v9044 = vpop.f32.mrf.mxu0
    %v9045 = vadd.f32 %v9026, %v9044
    %9046 = vdwg.mxu0
    %9047 = vmatpush.bf16.msra.mxu0 %v8857
    %9048 = vmatpush.bf16.msra.mxu0 %v8855
    %9049 = vmatpush.bf16.msra.mxu0 %v8853
    %9050 = vmatpush.bf16.msra.mxu0 %v8851
    %9051 = vmatpush.bf16.msra.mxu0 %v8849
    %9052 = vmatpush.bf16.msra.mxu0 %v8847
    %9053 = vmatpush.bf16.msra.mxu0 %v8845
    %9054 = vmatpush.bf16.msra.mxu0 %v8843
    %9055 = vmatmul.bf16.gmra.mxu0 %v8477
    %v9056 = vpop.f32.mrf.mxu0
    %v9057 = vadd.f32 %v9038, %v9056
    %v9058 = vpop.f32.mrf.mxu0
    %v9059 = vadd.f32 %v9040, %v9058
    %9060 = vmatmul.bf16.gmra.mxu0 %v8483
    %v9061 = vpop.f32.mrf.mxu0
    %v9062 = vadd.f32 %v9043, %v9061
    %v9063 = vpop.f32.mrf.mxu0
    %v9064 = vadd.f32 %v9045, %v9063
    %9065 = vdwg.mxu0
    %9066 = vmatpush.bf16.msra.mxu0 %v8873
    %9067 = vmatpush.bf16.msra.mxu0 %v8871
    %9068 = vmatpush.bf16.msra.mxu0 %v8869
    %9069 = vmatpush.bf16.msra.mxu0 %v8867
    %9070 = vmatpush.bf16.msra.mxu0 %v8865
    %9071 = vmatpush.bf16.msra.mxu0 %v8863
    %9072 = vmatpush.bf16.msra.mxu0 %v8861
    %9073 = vmatpush.bf16.msra.mxu0 %v8859
    %9074 = vmatmul.bf16.gmra.mxu0 %v8478
    %v9075 = vpop.f32.mrf.mxu0
    %v9076 = vadd.f32 %v9057, %v9075
    %v9077 = vpop.f32.mrf.mxu0
    %v9078 = vadd.f32 %v9059, %v9077
    %9079 = vmatmul.bf16.gmra.mxu0 %v8484
    %v9080 = vpop.f32.mrf.mxu0
    %v9081 = vadd.f32 %v9062, %v9080
    %v9082 = vpop.f32.mrf.mxu0
    %v9083 = vadd.f32 %v9064, %v9082
    %9084 = vdwg.mxu0
    %9085 = vmatpush.bf16.msra.mxu0 %v8794
    %9086 = vmatpush.bf16.msra.mxu0 %v8792
    %9087 = vmatpush.bf16.msra.mxu0 %v8790
    %9088 = vmatpush.bf16.msra.mxu0 %v8788
    %9089 = vmatpush.bf16.msra.mxu0 %v8786
    %9090 = vmatpush.bf16.msra.mxu0 %v8784
    %9091 = vmatpush.bf16.msra.mxu0 %v8782
    %9092 = vmatpush.bf16.msra.mxu0 %v8780
    %9093 = vmatmul.bf16.gmra.mxu0 %v8473
    %v9094 = vpop.f32.mrf.mxu0
    %v9095 = vadd.f32 %v8488, %v9094
    %v9096 = vpop.f32.mrf.mxu0
    %v9097 = vadd.f32 %v8488, %v9096
    %9098 = vmatmul.bf16.gmra.mxu0 %v8479
    %v9099 = vpop.f32.mrf.mxu0
    %v9100 = vadd.f32 %v8488, %v9099
    %v9101 = vpop.f32.mrf.mxu0
    %v9102 = vadd.f32 %v8488, %v9101
    %9103 = vdwg.mxu0
    %9104 = vmatpush.bf16.msra.mxu0 %v8810
    %9105 = vmatpush.bf16.msra.mxu0 %v8808
    %9106 = vmatpush.bf16.msra.mxu0 %v8806
    %9107 = vmatpush.bf16.msra.mxu0 %v8804
    %9108 = vmatpush.bf16.msra.mxu0 %v8802
    %9109 = vmatpush.bf16.msra.mxu0 %v8800
    %9110 = vmatpush.bf16.msra.mxu0 %v8798
    %9111 = vmatpush.bf16.msra.mxu0 %v8796
    %9112 = vmatmul.bf16.gmra.mxu0 %v8474
    %v9113 = vpop.f32.mrf.mxu0
    %v9114 = vadd.f32 %v9095, %v9113
    %v9115 = vpop.f32.mrf.mxu0
    %v9116 = vadd.f32 %v9097, %v9115
    %9117 = vmatmul.bf16.gmra.mxu0 %v8480
    %v9118 = vpop.f32.mrf.mxu0
    %v9119 = vadd.f32 %v9100, %v9118
    %v9120 = vpop.f32.mrf.mxu0
    %v9121 = vadd.f32 %v9102, %v9120
    %9122 = vdwg.mxu0
    %9123 = vmatpush.bf16.msra.mxu0 %v8826
    %9124 = vmatpush.bf16.msra.mxu0 %v8824
    %9125 = vmatpush.bf16.msra.mxu0 %v8822
    %9126 = vmatpush.bf16.msra.mxu0 %v8820
    %9127 = vmatpush.bf16.msra.mxu0 %v8818
    %9128 = vmatpush.bf16.msra.mxu0 %v8816
    %9129 = vmatpush.bf16.msra.mxu0 %v8814
    %9130 = vmatpush.bf16.msra.mxu0 %v8812
    %9131 = vmatmul.bf16.gmra.mxu0 %v8475
    %v9132 = vpop.f32.mrf.mxu0
    %v9133 = vadd.f32 %v9114, %v9132
    %v9134 = vpop.f32.mrf.mxu0
    %v9135 = vadd.f32 %v9116, %v9134
    %9136 = vmatmul.bf16.gmra.mxu0 %v8481
    %v9137 = vpop.f32.mrf.mxu0
    %v9138 = vadd.f32 %v9119, %v9137
    %v9139 = vpop.f32.mrf.mxu0
    %v9140 = vadd.f32 %v9121, %v9139
    %9141 = vdwg.mxu0
    %9142 = vmatpush.bf16.msra.mxu0 %v8842
    %9143 = vmatpush.bf16.msra.mxu0 %v8840
    %9144 = vmatpush.bf16.msra.mxu0 %v8838
    %9145 = vmatpush.bf16.msra.mxu0 %v8836
    %9146 = vmatpush.bf16.msra.mxu0 %v8834
    %9147 = vmatpush.bf16.msra.mxu0 %v8832
    %9148 = vmatpush.bf16.msra.mxu0 %v8830
    %9149 = vmatpush.bf16.msra.mxu0 %v8828
    %9150 = vmatmul.bf16.gmra.mxu0 %v8476
    %v9151 = vpop.f32.mrf.mxu0
    %v9152 = vadd.f32 %v9133, %v9151
    %v9153 = vpop.f32.mrf.mxu0
    %v9154 = vadd.f32 %v9135, %v9153
    %9155 = vmatmul.bf16.gmra.mxu0 %v8482
    %v9156 = vpop.f32.mrf.mxu0
    %v9157 = vadd.f32 %v9138, %v9156
    %v9158 = vpop.f32.mrf.mxu0
    %v9159 = vadd.f32 %v9140, %v9158
    %9160 = vdwg.mxu0
    %9161 = vmatpush.bf16.msra.mxu0 %v8858
    %9162 = vmatpush.bf16.msra.mxu0 %v8856
    %9163 = vmatpush.bf16.msra.mxu0 %v8854
    %9164 = vmatpush.bf16.msra.mxu0 %v8852
    %9165 = vmatpush.bf16.msra.mxu0 %v8850
    %9166 = vmatpush.bf16.msra.mxu0 %v8848
    %9167 = vmatpush.bf16.msra.mxu0 %v8846
    %9168 = vmatpush.bf16.msra.mxu0 %v8844
    %9169 = vmatmul.bf16.gmra.mxu0 %v8477
    %v9170 = vpop.f32.mrf.mxu0
    %v9171 = vadd.f32 %v9152, %v9170
    %v9172 = vpop.f32.mrf.mxu0
    %v9173 = vadd.f32 %v9154, %v9172
    %9174 = vmatmul.bf16.gmra.mxu0 %v8483
    %v9175 = vpop.f32.mrf.mxu0
    %v9176 = vadd.f32 %v9157, %v9175
    %v9177 = vpop.f32.mrf.mxu0
    %v9178 = vadd.f32 %v9159, %v9177
    %9179 = vdwg.mxu0
    %9180 = vmatpush.bf16.msra.mxu0 %v8874
    %9181 = vmatpush.bf16.msra.mxu0 %v8872
    %9182 = vmatpush.bf16.msra.mxu0 %v8870
    %9183 = vmatpush.bf16.msra.mxu0 %v8868
    %9184 = vmatpush.bf16.msra.mxu0 %v8866
    %9185 = vmatpush.bf16.msra.mxu0 %v8864
    %9186 = vmatpush.bf16.msra.mxu0 %v8862
    %9187 = vmatpush.bf16.msra.mxu0 %v8860
    %9188 = vmatmul.bf16.gmra.mxu0 %v8478
    %v9189 = vpop.f32.mrf.mxu0
    %v9190 = vadd.f32 %v9171, %v9189
    %v9191 = vpop.f32.mrf.mxu0
    %v9192 = vadd.f32 %v9173, %v9191
    %9193 = vmatmul.bf16.gmra.mxu0 %v8484
    %v9194 = vpop.f32.mrf.mxu0
    %v9195 = vadd.f32 %v9176, %v9194
    %v9196 = vpop.f32.mrf.mxu0
    %v9197 = vadd.f32 %v9178, %v9196
    %9198 = vdwg.mxu0
    %v9199 = vmax.f32 %v9076, 0.0
    %v9200 = vmax.f32 %v9190, 0.0
    %v9201 = vmax.f32 %v9078, 0.0
    %v9202 = vmax.f32 %v9192, 0.0
    %v9203 = vmax.f32 %v9081, 0.0
    %v9204 = vmax.f32 %v9195, 0.0
    %v9205 = vmax.f32 %v9083, 0.0
    %v9206 = vmax.f32 %v9197, 0.0
    %v9207 = vld [vmem:[#allocation55] sm:$0xff]
    %v9208 = vld [vmem:[#allocation55 + $0x8] sm:$0xff]
    %v9209 = vld [vmem:[#allocation55 + $0x10] sm:$0xff]
    %v9210 = vld [vmem:[#allocation55 + $0x18] sm:$0xff]
    %v9211 = vld [vmem:[#allocation55 + $0x20] sm:$0xff]
    %v9212 = vld [vmem:[#allocation55 + $0x28] sm:$0xff]
    %v9213 = vld [vmem:[#allocation55 + $0x30] sm:$0xff]
    %v9214 = vld [vmem:[#allocation55 + $0x38] sm:$0xff]
    %v9215 = vld [vmem:[#allocation55 + $0x40] sm:$0xff]
    %v9216 = vld [vmem:[#allocation55 + $0x48] sm:$0xff]
    %v9217 = vld [vmem:[#allocation55 + $0x50] sm:$0xff]
    %v9218 = vld [vmem:[#allocation55 + $0x58] sm:$0xff]
    %v9219 = vld [vmem:[#allocation55 + $0x60] sm:$0xff]
    %v9220 = vld [vmem:[#allocation55 + $0x68] sm:$0xff]
    %v9221 = vld [vmem:[#allocation55 + $0x70] sm:$0xff]
    %v9222 = vld [vmem:[#allocation55 + $0x78] sm:$0xff]
    %v9223 = vld [vmem:[#allocation55 + $0x80] sm:$0xff]
    %v9224 = vld [vmem:[#allocation55 + $0x88] sm:$0xff]
    %v9225 = vld [vmem:[#allocation55 + $0x90] sm:$0xff]
    %v9226 = vld [vmem:[#allocation55 + $0x98] sm:$0xff]
    %v9227 = vld [vmem:[#allocation55 + $0xa0] sm:$0xff]
    %v9228 = vld [vmem:[#allocation55 + $0xa8] sm:$0xff]
    %v9229 = vld [vmem:[#allocation55 + $0xb0] sm:$0xff]
    %v9230 = vld [vmem:[#allocation55 + $0xb8] sm:$0xff]
    %v9231 = vld [vmem:[#allocation55 + $0xc0] sm:$0xff]
    %v9232 = vld [vmem:[#allocation55 + $0xc8] sm:$0xff]
    %v9233 = vld [vmem:[#allocation55 + $0xd0] sm:$0xff]
    %v9234 = vld [vmem:[#allocation55 + $0xd8] sm:$0xff]
    %v9235 = vld [vmem:[#allocation55 + $0xe0] sm:$0xff]
    %v9236 = vld [vmem:[#allocation55 + $0xe8] sm:$0xff]
    %v9237 = vld [vmem:[#allocation55 + $0xf0] sm:$0xff]
    %v9238 = vld [vmem:[#allocation55 + $0xf8] sm:$0xff]
    %v9239 = vld [vmem:[#allocation57] sm:$0xff]
    %v9240 = vld [vmem:[#allocation57 + $0x8] sm:$0xff]
    %v9241 = vld [vmem:[#allocation57 + $0x10] sm:$0xff]
    %v9242 = vld [vmem:[#allocation57 + $0x18] sm:$0xff]
    %v9243 = vld [vmem:[%s103] sm:$0x1]
    %v9244 = vld [vmem:[%s105] sm:$0x1]
    %v9245 = vadd.f32 %v9199, %v9201
    %v9246 = vadd.f32 %v9245, %v9203
    %v9247 = vadd.f32 %v9246, %v9205
    %v9248 = vrot.slane %v9247, 4
    %v9249 = vadd.f32 %v9247, %v9248
    %v9250 = vrot.slane %v9249, 2
    %v9251 = vadd.f32 %v9249, %v9250
    %v9252 = vrot.slane %v9251, 1
    %v9253 = vadd.f32 %v9251, %v9252
    %v9254 = vadd.f32 %v9200, %v9202
    %v9255 = vadd.f32 %v9254, %v9204
    %v9256 = vadd.f32 %v9255, %v9206
    %v9257 = vrot.slane %v9256, 4
    %v9258 = vadd.f32 %v9256, %v9257
    %v9259 = vrot.slane %v9258, 2
    %v9260 = vadd.f32 %v9258, %v9259
    %v9261 = vrot.slane %v9260, 1
    %v9262 = vadd.f32 %v9260, %v9261
    %9263 = vmatpush.msra.mxu0 %v9222
    %9264 = vmatpush.msra.mxu0 %v9221
    %9265 = vmatpush.msra.mxu0 %v9220
    %9266 = vmatpush.msra.mxu0 %v9219
    %9267 = vmatpush.msra.mxu0 %v9218
    %9268 = vmatpush.msra.mxu0 %v9217
    %9269 = vmatpush.msra.mxu0 %v9216
    %9270 = vmatpush.msra.mxu0 %v9215
    %9271 = vmatpush.msra.mxu0 %v9214
    %9272 = vmatpush.msra.mxu0 %v9213
    %9273 = vmatpush.msra.mxu0 %v9212
    %9274 = vmatpush.msra.mxu0 %v9211
    %9275 = vmatpush.msra.mxu0 %v9210
    %9276 = vmatpush.msra.mxu0 %v9209
    %9277 = vmatpush.msra.mxu0 %v9208
    %9278 = vmatpush.msra.mxu0 %v9207
    %9279 = vmatmul.f32.gmra.mxu0 %v9253
    %v9280 = vpop.f32.mrf.mxu0
    %v9281 = vadd.f32 0.0, %v9280
    %9282 = vdwg.mxu0
    %9283 = vmatpush.msra.mxu0 %v9238
    %9284 = vmatpush.msra.mxu0 %v9237
    %9285 = vmatpush.msra.mxu0 %v9236
    %9286 = vmatpush.msra.mxu0 %v9235
    %9287 = vmatpush.msra.mxu0 %v9234
    %9288 = vmatpush.msra.mxu0 %v9233
    %9289 = vmatpush.msra.mxu0 %v9232
    %9290 = vmatpush.msra.mxu0 %v9231
    %9291 = vmatpush.msra.mxu0 %v9230
    %9292 = vmatpush.msra.mxu0 %v9229
    %9293 = vmatpush.msra.mxu0 %v9228
    %9294 = vmatpush.msra.mxu0 %v9227
    %9295 = vmatpush.msra.mxu0 %v9226
    %9296 = vmatpush.msra.mxu0 %v9225
    %9297 = vmatpush.msra.mxu0 %v9224
    %9298 = vmatpush.msra.mxu0 %v9223
    %9299 = vmatmul.f32.gmra.mxu0 %v9262
    %v9300 = vpop.f32.mrf.mxu0
    %v9301 = vadd.f32 %v9281, %v9300
    %9302 = vdwg.mxu0
    %v9303 = vmul.f32 %v9301, 0.001953125
    %v9305 = vsel %vm1438, %v9303, 0
    %9307 = vmatpush.msra.mxu0 0.0
    %9308 = vmatpush.msra.mxu0 0.0
    %9309 = vmatpush.msra.mxu0 0.0
    %9310 = vmatpush.msra.mxu0 0.0
    %9311 = vmatpush.msra.mxu0 0.0
    %9312 = vmatpush.msra.mxu0 0.0
    %9313 = vmatpush.msra.mxu0 0.0
    %9314 = vmatpush.msra.mxu0 0.0
    %9315 = vmatpush.msra.mxu0 0.0
    %9316 = vmatpush.msra.mxu0 0.0
    %9317 = vmatpush.msra.mxu0 0.0
    %9318 = vmatpush.msra.mxu0 0.0
    %9319 = vmatpush.msra.mxu0 0.0
    %9320 = vmatpush.msra.mxu0 0.0
    %9321 = vmatpush.msra.mxu0 %v9241
    %9322 = vmatpush.msra.mxu0 %v9239
    %9323 = vmatmul.f32.gmra.mxu0 %v9305
    %v9324 = vpop.f32.mrf.mxu0
    %v9325 = vadd.f32 0.0, %v9324
    %9326 = vdwg.mxu0
    %9327 = vmatpush.msra.mxu0 0.0
    %9328 = vmatpush.msra.mxu0 0.0
    %9329 = vmatpush.msra.mxu0 0.0
    %9330 = vmatpush.msra.mxu0 0.0
    %9331 = vmatpush.msra.mxu0 0.0
    %9332 = vmatpush.msra.mxu0 0.0
    %9333 = vmatpush.msra.mxu0 0.0
    %9334 = vmatpush.msra.mxu0 0.0
    %9335 = vmatpush.msra.mxu0 0.0
    %9336 = vmatpush.msra.mxu0 0.0
    %9337 = vmatpush.msra.mxu0 0.0
    %9338 = vmatpush.msra.mxu0 0.0
    %9339 = vmatpush.msra.mxu0 0.0
    %9340 = vmatpush.msra.mxu0 0.0
    %9341 = vmatpush.msra.mxu0 %v9242
    %9342 = vmatpush.msra.mxu0 %v9240
    %9343 = vmatmul.f32.gmra.mxu0 %v9305
    %v9344 = vpop.f32.mrf.mxu0
    %v9345 = vadd.f32 0.0, %v9344
    %9346 = vdwg.mxu0
    %v9347 = vperm.slane %v9325, 0
    %v9348 = vperm.slane %v9345, 0
    %v9349 = vsub.f32 %v9199, %v9347
    %v9350 = vsub.f32 %v9200, %v9348
    %v9351 = vsub.f32 %v9201, %v9347
    %v9352 = vsub.f32 %v9202, %v9348
    %v9353 = vsub.f32 %v9203, %v9347
    %v9354 = vsub.f32 %v9204, %v9348
    %v9355 = vsub.f32 %v9205, %v9347
    %v9356 = vsub.f32 %v9206, %v9348
    %v9357 = vmul.f32 %v9349, %v9349
    %v9358 = vmul.f32 %v9350, %v9350
    %v9359 = vmul.f32 %v9351, %v9351
    %v9360 = vmul.f32 %v9352, %v9352
    %v9361 = vmul.f32 %v9353, %v9353
    %v9362 = vmul.f32 %v9354, %v9354
    %v9363 = vmul.f32 %v9355, %v9355
    %v9364 = vmul.f32 %v9356, %v9356
    %v9365 = vadd.f32 %v9357, %v9359
    %v9366 = vadd.f32 %v9365, %v9361
    %v9367 = vadd.f32 %v9366, %v9363
    %v9368 = vrot.slane %v9367, 4
    %v9369 = vadd.f32 %v9367, %v9368
    %v9370 = vrot.slane %v9369, 2
    %v9371 = vadd.f32 %v9369, %v9370
    %v9372 = vrot.slane %v9371, 1
    %v9373 = vadd.f32 %v9371, %v9372
    %v9374 = vadd.f32 %v9358, %v9360
    %v9375 = vadd.f32 %v9374, %v9362
    %v9376 = vadd.f32 %v9375, %v9364
    %v9377 = vrot.slane %v9376, 4
    %v9378 = vadd.f32 %v9376, %v9377
    %v9379 = vrot.slane %v9378, 2
    %v9380 = vadd.f32 %v9378, %v9379
    %v9381 = vrot.slane %v9380, 1
    %v9382 = vadd.f32 %v9380, %v9381
    %9383 = vmatpush.msra.mxu0 %v9222
    %9384 = vmatpush.msra.mxu0 %v9221
    %9385 = vmatpush.msra.mxu0 %v9220
    %9386 = vmatpush.msra.mxu0 %v9219
    %9387 = vmatpush.msra.mxu0 %v9218
    %9388 = vmatpush.msra.mxu0 %v9217
    %9389 = vmatpush.msra.mxu0 %v9216
    %9390 = vmatpush.msra.mxu0 %v9215
    %9391 = vmatpush.msra.mxu0 %v9214
    %9392 = vmatpush.msra.mxu0 %v9213
    %9393 = vmatpush.msra.mxu0 %v9212
    %9394 = vmatpush.msra.mxu0 %v9211
    %9395 = vmatpush.msra.mxu0 %v9210
    %9396 = vmatpush.msra.mxu0 %v9209
    %9397 = vmatpush.msra.mxu0 %v9208
    %9398 = vmatpush.msra.mxu0 %v9207
    %9399 = vmatmul.f32.gmra.mxu0 %v9373
    %v9400 = vpop.f32.mrf.mxu0
    %v9401 = vadd.f32 0.0, %v9400
    %9402 = vdwg.mxu0
    %9403 = vmatpush.msra.mxu0 %v9238
    %9404 = vmatpush.msra.mxu0 %v9237
    %9405 = vmatpush.msra.mxu0 %v9236
    %9406 = vmatpush.msra.mxu0 %v9235
    %9407 = vmatpush.msra.mxu0 %v9234
    %9408 = vmatpush.msra.mxu0 %v9233
    %9409 = vmatpush.msra.mxu0 %v9232
    %9410 = vmatpush.msra.mxu0 %v9231
    %9411 = vmatpush.msra.mxu0 %v9230
    %9412 = vmatpush.msra.mxu0 %v9229
    %9413 = vmatpush.msra.mxu0 %v9228
    %9414 = vmatpush.msra.mxu0 %v9227
    %9415 = vmatpush.msra.mxu0 %v9226
    %9416 = vmatpush.msra.mxu0 %v9225
    %9417 = vmatpush.msra.mxu0 %v9224
    %9418 = vmatpush.msra.mxu0 %v9223
    %9419 = vmatmul.f32.gmra.mxu0 %v9382
    %v9420 = vpop.f32.mrf.mxu0
    %v9421 = vadd.f32 %v9401, %v9420
    %9422 = vdwg.mxu0
    %v9423 = vmul.f32 %v9421, 0.001953125
    %v9424 = vadd.f32 %v9423, 1e-05
    %v9425 = vrsqrt.pop %v9424
    %v9426 = vmul.f32 %v9425, %v9424
    %v9427 = vmul.f32 %v9426, %v9425
    %v9428 = vmul.f32 0.5, %v9427
    %v9429 = vsub.f32 1.5, %v9428
    %v9430 = vmul.f32 %v9425, %v9429
    %vm9431 = vweird.f32 %v9424
    %vm9432 = vweird.f32 %v9425
    %vm9433 = vmor %vm9431, %vm9432
    %v9434 = vsel %vm9433, %v9425, %v9430
    %v9435 = vmul.f32 %v9243, %v9434
    %v9437 = vsel %vm1438, %v9435, 0
    %9439 = vmatpush.msra.mxu0 0.0
    %9440 = vmatpush.msra.mxu0 0.0
    %9441 = vmatpush.msra.mxu0 0.0
    %9442 = vmatpush.msra.mxu0 0.0
    %9443 = vmatpush.msra.mxu0 0.0
    %9444 = vmatpush.msra.mxu0 0.0
    %9445 = vmatpush.msra.mxu0 0.0
    %9446 = vmatpush.msra.mxu0 0.0
    %9447 = vmatpush.msra.mxu0 0.0
    %9448 = vmatpush.msra.mxu0 0.0
    %9449 = vmatpush.msra.mxu0 0.0
    %9450 = vmatpush.msra.mxu0 0.0
    %9451 = vmatpush.msra.mxu0 0.0
    %9452 = vmatpush.msra.mxu0 0.0
    %9453 = vmatpush.msra.mxu0 %v9241
    %9454 = vmatpush.msra.mxu0 %v9239
    %9455 = vmatmul.f32.gmra.mxu0 %v9437
    %v9456 = vpop.f32.mrf.mxu0
    %v9457 = vadd.f32 0.0, %v9456
    %9458 = vdwg.mxu0
    %9459 = vmatpush.msra.mxu0 0.0
    %9460 = vmatpush.msra.mxu0 0.0
    %9461 = vmatpush.msra.mxu0 0.0
    %9462 = vmatpush.msra.mxu0 0.0
    %9463 = vmatpush.msra.mxu0 0.0
    %9464 = vmatpush.msra.mxu0 0.0
    %9465 = vmatpush.msra.mxu0 0.0
    %9466 = vmatpush.msra.mxu0 0.0
    %9467 = vmatpush.msra.mxu0 0.0
    %9468 = vmatpush.msra.mxu0 0.0
    %9469 = vmatpush.msra.mxu0 0.0
    %9470 = vmatpush.msra.mxu0 0.0
    %9471 = vmatpush.msra.mxu0 0.0
    %9472 = vmatpush.msra.mxu0 0.0
    %9473 = vmatpush.msra.mxu0 %v9242
    %9474 = vmatpush.msra.mxu0 %v9240
    %9475 = vmatmul.f32.gmra.mxu0 %v9437
    %v9476 = vpop.f32.mrf.mxu0
    %v9477 = vadd.f32 0.0, %v9476
    %9478 = vdwg.mxu0
    %v9479 = vperm.slane %v9457, 0
    %v9480 = vperm.slane %v9477, 0
    %v9481 = vmul.f32 %v9349, %v9479
    %v9482 = vmul.f32 %v9350, %v9480
    %v9483 = vmul.f32 %v9351, %v9479
    %v9484 = vmul.f32 %v9352, %v9480
    %v9485 = vmul.f32 %v9353, %v9479
    %v9486 = vmul.f32 %v9354, %v9480
    %v9487 = vmul.f32 %v9355, %v9479
    %v9488 = vmul.f32 %v9356, %v9480
    %v9490 = vsel %vm1438, %v9244, 0
    %9492 = vmatpush.msra.mxu0 0.0
    %9493 = vmatpush.msra.mxu0 0.0
    %9494 = vmatpush.msra.mxu0 0.0
    %9495 = vmatpush.msra.mxu0 0.0
    %9496 = vmatpush.msra.mxu0 0.0
    %9497 = vmatpush.msra.mxu0 0.0
    %9498 = vmatpush.msra.mxu0 0.0
    %9499 = vmatpush.msra.mxu0 0.0
    %9500 = vmatpush.msra.mxu0 0.0
    %9501 = vmatpush.msra.mxu0 0.0
    %9502 = vmatpush.msra.mxu0 0.0
    %9503 = vmatpush.msra.mxu0 0.0
    %9504 = vmatpush.msra.mxu0 0.0
    %9505 = vmatpush.msra.mxu0 0.0
    %9506 = vmatpush.msra.mxu0 %v9241
    %9507 = vmatpush.msra.mxu0 %v9239
    %9508 = vmatmul.f32.gmra.mxu0 %v9490
    %v9509 = vpop.f32.mrf.mxu0
    %v9510 = vadd.f32 0.0, %v9509
    %9511 = vdwg.mxu0
    %9512 = vmatpush.msra.mxu0 0.0
    %9513 = vmatpush.msra.mxu0 0.0
    %9514 = vmatpush.msra.mxu0 0.0
    %9515 = vmatpush.msra.mxu0 0.0
    %9516 = vmatpush.msra.mxu0 0.0
    %9517 = vmatpush.msra.mxu0 0.0
    %9518 = vmatpush.msra.mxu0 0.0
    %9519 = vmatpush.msra.mxu0 0.0
    %9520 = vmatpush.msra.mxu0 0.0
    %9521 = vmatpush.msra.mxu0 0.0
    %9522 = vmatpush.msra.mxu0 0.0
    %9523 = vmatpush.msra.mxu0 0.0
    %9524 = vmatpush.msra.mxu0 0.0
    %9525 = vmatpush.msra.mxu0 0.0
    %9526 = vmatpush.msra.mxu0 %v9242
    %9527 = vmatpush.msra.mxu0 %v9240
    %9528 = vmatmul.f32.gmra.mxu0 %v9490
    %v9529 = vpop.f32.mrf.mxu0
    %v9530 = vadd.f32 0.0, %v9529
    %9531 = vdwg.mxu0
    %v9532 = vperm.slane %v9510, 0
    %v9533 = vperm.slane %v9530, 0
    %v9534 = vadd.f32 %v9481, %v9532
    %v9535 = vadd.f32 %v9482, %v9533
    %v9536 = vadd.f32 %v9483, %v9532
    %v9537 = vadd.f32 %v9484, %v9533
    %v9538 = vadd.f32 %v9485, %v9532
    %v9539 = vadd.f32 %v9486, %v9533
    %v9540 = vadd.f32 %v9487, %v9532
    %v9541 = vadd.f32 %v9488, %v9533
    %v9542 = vld [vmem:[#allocation58] sm:$0xf]
    %v9543 = vld [vmem:[#allocation58 + $0x4] sm:$0xf]
    %v9544 = vld [vmem:[#allocation58 + $0x8] sm:$0xf]
    %v9545 = vld [vmem:[#allocation58 + $0xc] sm:$0xf]
    %v9546 = vld [vmem:[#allocation58 + $0x10] sm:$0xf]
    %v9547 = vld [vmem:[#allocation58 + $0x14] sm:$0xf]
    %v9548 = vld [vmem:[#allocation58 + $0x18] sm:$0xf]
    %v9549 = vld [vmem:[#allocation58 + $0x1c] sm:$0xf]
    %v9550 = vld [vmem:[#allocation58 + $0x20] sm:$0xf]
    %v9551 = vld [vmem:[#allocation58 + $0x24] sm:$0xf]
    %v9552 = vld [vmem:[#allocation58 + $0x28] sm:$0xf]
    %v9553 = vld [vmem:[#allocation58 + $0x2c] sm:$0xf]
    %v9554 = vld [vmem:[#allocation58 + $0x30] sm:$0xf]
    %v9555 = vld [vmem:[#allocation58 + $0x34] sm:$0xf]
    %v9556 = vld [vmem:[#allocation58 + $0x38] sm:$0xf]
    %v9557 = vld [vmem:[#allocation58 + $0x3c] sm:$0xf]
    %v9558 = vld [vmem:[#allocation58 + $0x40] sm:$0xf]
    %v9559 = vld [vmem:[#allocation58 + $0x44] sm:$0xf]
    %v9560 = vld [vmem:[#allocation58 + $0x48] sm:$0xf]
    %v9561 = vld [vmem:[#allocation58 + $0x4c] sm:$0xf]
    %v9562 = vld [vmem:[#allocation58 + $0x50] sm:$0xf]
    %v9563 = vld [vmem:[#allocation58 + $0x54] sm:$0xf]
    %v9564 = vld [vmem:[#allocation58 + $0x58] sm:$0xf]
    %v9565 = vld [vmem:[#allocation58 + $0x5c] sm:$0xf]
    %v9566 = vld [vmem:[#allocation58 + $0x60] sm:$0xf]
    %v9567 = vld [vmem:[#allocation58 + $0x64] sm:$0xf]
    %v9568 = vld [vmem:[#allocation58 + $0x68] sm:$0xf]
    %v9569 = vld [vmem:[#allocation58 + $0x6c] sm:$0xf]
    %v9570 = vld [vmem:[#allocation58 + $0x70] sm:$0xf]
    %v9571 = vld [vmem:[#allocation58 + $0x74] sm:$0xf]
    %v9572 = vld [vmem:[#allocation58 + $0x78] sm:$0xf]
    %v9573 = vld [vmem:[#allocation58 + $0x7c] sm:$0xf]
    %v9574 = vld [vmem:[#allocation58 + $0x80] sm:$0xf]
    %v9575 = vld [vmem:[#allocation58 + $0x84] sm:$0xf]
    %v9576 = vld [vmem:[#allocation58 + $0x88] sm:$0xf]
    %v9577 = vld [vmem:[#allocation58 + $0x8c] sm:$0xf]
    %v9578 = vld [vmem:[#allocation58 + $0x90] sm:$0xf]
    %v9579 = vld [vmem:[#allocation58 + $0x94] sm:$0xf]
    %v9580 = vld [vmem:[#allocation58 + $0x98] sm:$0xf]
    %v9581 = vld [vmem:[#allocation58 + $0x9c] sm:$0xf]
    %v9582 = vld [vmem:[#allocation58 + $0xa0] sm:$0xf]
    %v9583 = vld [vmem:[#allocation58 + $0xa4] sm:$0xf]
    %v9584 = vld [vmem:[#allocation58 + $0xa8] sm:$0xf]
    %v9585 = vld [vmem:[#allocation58 + $0xac] sm:$0xf]
    %v9586 = vld [vmem:[#allocation58 + $0xb0] sm:$0xf]
    %v9587 = vld [vmem:[#allocation58 + $0xb4] sm:$0xf]
    %v9588 = vld [vmem:[#allocation58 + $0xb8] sm:$0xf]
    %v9589 = vld [vmem:[#allocation58 + $0xbc] sm:$0xf]
    %v9590 = vld [vmem:[#allocation58 + $0xc0] sm:$0xf]
    %v9591 = vld [vmem:[#allocation58 + $0xc4] sm:$0xf]
    %v9592 = vld [vmem:[#allocation58 + $0xc8] sm:$0xf]
    %v9593 = vld [vmem:[#allocation58 + $0xcc] sm:$0xf]
    %v9594 = vld [vmem:[#allocation58 + $0xd0] sm:$0xf]
    %v9595 = vld [vmem:[#allocation58 + $0xd4] sm:$0xf]
    %v9596 = vld [vmem:[#allocation58 + $0xd8] sm:$0xf]
    %v9597 = vld [vmem:[#allocation58 + $0xdc] sm:$0xf]
    %v9598 = vld [vmem:[#allocation58 + $0xe0] sm:$0xf]
    %v9599 = vld [vmem:[#allocation58 + $0xe4] sm:$0xf]
    %v9600 = vld [vmem:[#allocation58 + $0xe8] sm:$0xf]
    %v9601 = vld [vmem:[#allocation58 + $0xec] sm:$0xf]
    %v9602 = vld [vmem:[#allocation58 + $0xf0] sm:$0xf]
    %v9603 = vld [vmem:[#allocation58 + $0xf4] sm:$0xf]
    %v9604 = vld [vmem:[#allocation58 + $0xf8] sm:$0xf]
    %v9605 = vld [vmem:[#allocation58 + $0xfc] sm:$0xf]
    %v9606 = vld [vmem:[#allocation58 + $0x100] sm:$0xf]
    %v9607 = vld [vmem:[#allocation58 + $0x104] sm:$0xf]
    %v9608 = vld [vmem:[#allocation58 + $0x108] sm:$0xf]
    %v9609 = vld [vmem:[#allocation58 + $0x10c] sm:$0xf]
    %v9610 = vld [vmem:[#allocation58 + $0x110] sm:$0xf]
    %v9611 = vld [vmem:[#allocation58 + $0x114] sm:$0xf]
    %v9612 = vld [vmem:[#allocation58 + $0x118] sm:$0xf]
    %v9613 = vld [vmem:[#allocation58 + $0x11c] sm:$0xf]
    %v9614 = vld [vmem:[#allocation58 + $0x120] sm:$0xf]
    %v9615 = vld [vmem:[#allocation58 + $0x124] sm:$0xf]
    %v9616 = vld [vmem:[#allocation58 + $0x128] sm:$0xf]
    %v9617 = vld [vmem:[#allocation58 + $0x12c] sm:$0xf]
    %v9618 = vld [vmem:[#allocation58 + $0x130] sm:$0xf]
    %v9619 = vld [vmem:[#allocation58 + $0x134] sm:$0xf]
    %v9620 = vld [vmem:[#allocation58 + $0x138] sm:$0xf]
    %v9621 = vld [vmem:[#allocation58 + $0x13c] sm:$0xf]
    %v9622 = vld [vmem:[#allocation58 + $0x140] sm:$0xf]
    %v9623 = vld [vmem:[#allocation58 + $0x144] sm:$0xf]
    %v9624 = vld [vmem:[#allocation58 + $0x148] sm:$0xf]
    %v9625 = vld [vmem:[#allocation58 + $0x14c] sm:$0xf]
    %v9626 = vld [vmem:[#allocation58 + $0x150] sm:$0xf]
    %v9627 = vld [vmem:[#allocation58 + $0x154] sm:$0xf]
    %v9628 = vld [vmem:[#allocation58 + $0x158] sm:$0xf]
    %v9629 = vld [vmem:[#allocation58 + $0x15c] sm:$0xf]
    %v9630 = vld [vmem:[#allocation58 + $0x160] sm:$0xf]
    %v9631 = vld [vmem:[#allocation58 + $0x164] sm:$0xf]
    %v9632 = vld [vmem:[#allocation58 + $0x168] sm:$0xf]
    %v9633 = vld [vmem:[#allocation58 + $0x16c] sm:$0xf]
    %v9634 = vld [vmem:[#allocation58 + $0x170] sm:$0xf]
    %v9635 = vld [vmem:[#allocation58 + $0x174] sm:$0xf]
    %v9636 = vld [vmem:[#allocation58 + $0x178] sm:$0xf]
    %v9637 = vld [vmem:[#allocation58 + $0x17c] sm:$0xf]
    %v9638 = vpack.c.bf16 %v9536, %v9534
    %v9639 = vpack.c.bf16 %v9537, %v9535
    %v9640 = vpack.c.bf16 %v9540, %v9538
    %v9641 = vpack.c.bf16 %v9541, %v9539
    %v9642 = vld [vmem:[%s111] sm:$0xf]
    %v9643 = vld [vmem:[%s111 + $0x4] sm:$0xf]
    %v9644 = vld [vmem:[%s111 + $0x8] sm:$0xf]
    %v9645 = vld [vmem:[%s111 + $0xc] sm:$0xf]
    %v9646 = vld [vmem:[%s111 + $0x10] sm:$0xf]
    %v9647 = vld [vmem:[%s111 + $0x14] sm:$0xf]
    %v9648 = vld [vmem:[%s111 + $0x18] sm:$0xf]
    %v9649 = vld [vmem:[%s111 + $0x1c] sm:$0xf]
    %v9658 = vunpack.c.l.b16 %v9642
    %v9659 = vunpack.c.l.b16 %v9643
    %v9660 = vunpack.c.l.b16 %v9644
    %v9661 = vunpack.c.l.b16 %v9645
    %v9662 = vunpack.c.l.b16 %v9646
    %v9663 = vunpack.c.l.b16 %v9647
    %v9664 = vunpack.c.l.b16 %v9648
    %v9665 = vunpack.c.l.b16 %v9649
    %v9666 = vpack.c.b16 %v9659, %v9658
    %v9667 = vpack.c.b16 %v9661, %v9660
    %v9668 = vpack.c.b16 %v9663, %v9662
    %v9669 = vpack.c.b16 %v9665, %v9664
    %v9671 = vsel %vm1212, %v9666, 0
    %v9674 = vsel %vm1212, %v9667, 0
    %v9677 = vsel %vm1212, %v9668, 0
    %v9680 = vsel %vm1212, %v9669, 0
    %9682 = vmatpush.bf16.msra.mxu0 0
    %9683 = vmatpush.bf16.msra.mxu0 0
    %9684 = vmatpush.bf16.msra.mxu0 0
    %9685 = vmatpush.bf16.msra.mxu0 0
    %9686 = vmatpush.bf16.msra.mxu0 0
    %9687 = vmatpush.bf16.msra.mxu0 0
    %9688 = vmatpush.bf16.msra.mxu0 %v9640
    %9689 = vmatpush.bf16.msra.mxu0 %v9638
    %9690 = vmatmul.bf16.gmra.mxu0 %v9671
    %v9691 = vpop.f32.mrf.mxu0
    %v9692 = vadd.f32 0.0, %v9691
    %v9693 = vpop.f32.mrf.mxu0
    %v9694 = vadd.f32 0.0, %v9693
    %9695 = vmatmul.bf16.gmra.mxu0 %v9674
    %v9696 = vpop.f32.mrf.mxu0
    %v9697 = vadd.f32 0.0, %v9696
    %v9698 = vpop.f32.mrf.mxu0
    %v9699 = vadd.f32 0.0, %v9698
    %9700 = vmatmul.bf16.gmra.mxu0 %v9677
    %v9701 = vpop.f32.mrf.mxu0
    %v9702 = vadd.f32 0.0, %v9701
    %v9703 = vpop.f32.mrf.mxu0
    %v9704 = vadd.f32 0.0, %v9703
    %9705 = vmatmul.bf16.gmra.mxu0 %v9680
    %v9706 = vpop.f32.mrf.mxu0
    %v9707 = vadd.f32 0.0, %v9706
    %v9708 = vpop.f32.mrf.mxu0
    %v9709 = vadd.f32 0.0, %v9708
    %9710 = vdwg.mxu0
    %9711 = vmatpush.bf16.msra.mxu0 0
    %9712 = vmatpush.bf16.msra.mxu0 0
    %9713 = vmatpush.bf16.msra.mxu0 0
    %9714 = vmatpush.bf16.msra.mxu0 0
    %9715 = vmatpush.bf16.msra.mxu0 0
    %9716 = vmatpush.bf16.msra.mxu0 0
    %9717 = vmatpush.bf16.msra.mxu0 %v9641
    %9718 = vmatpush.bf16.msra.mxu0 %v9639
    %9719 = vmatmul.bf16.gmra.mxu0 %v9671
    %v9720 = vpop.f32.mrf.mxu0
    %v9721 = vadd.f32 0.0, %v9720
    %v9722 = vpop.f32.mrf.mxu0
    %v9723 = vadd.f32 0.0, %v9722
    %9724 = vmatmul.bf16.gmra.mxu0 %v9674
    %v9725 = vpop.f32.mrf.mxu0
    %v9726 = vadd.f32 0.0, %v9725
    %v9727 = vpop.f32.mrf.mxu0
    %v9728 = vadd.f32 0.0, %v9727
    %9729 = vmatmul.bf16.gmra.mxu0 %v9677
    %v9730 = vpop.f32.mrf.mxu0
    %v9731 = vadd.f32 0.0, %v9730
    %v9732 = vpop.f32.mrf.mxu0
    %v9733 = vadd.f32 0.0, %v9732
    %9734 = vmatmul.bf16.gmra.mxu0 %v9680
    %v9735 = vpop.f32.mrf.mxu0
    %v9736 = vadd.f32 0.0, %v9735
    %v9737 = vpop.f32.mrf.mxu0
    %v9738 = vadd.f32 0.0, %v9737
    %9739 = vdwg.mxu0
    %s9740 = scalar_lea.vmem %s111, 32
    %v9741 = vld [vmem:[%s9740] sm:$0xf]
    %v9742 = vld [vmem:[%s9740 + $0x4] sm:$0xf]
    %v9743 = vld [vmem:[%s9740 + $0x8] sm:$0xf]
    %v9744 = vld [vmem:[%s9740 + $0xc] sm:$0xf]
    %v9745 = vld [vmem:[%s9740 + $0x10] sm:$0xf]
    %v9746 = vld [vmem:[%s9740 + $0x14] sm:$0xf]
    %v9747 = vld [vmem:[%s9740 + $0x18] sm:$0xf]
    %v9748 = vld [vmem:[%s9740 + $0x1c] sm:$0xf]
    %v9757 = vunpack.c.l.b16 %v9741
    %v9758 = vunpack.c.l.b16 %v9742
    %v9759 = vunpack.c.l.b16 %v9743
    %v9760 = vunpack.c.l.b16 %v9744
    %v9761 = vunpack.c.l.b16 %v9745
    %v9762 = vunpack.c.l.b16 %v9746
    %v9763 = vunpack.c.l.b16 %v9747
    %v9764 = vunpack.c.l.b16 %v9748
    %v9765 = vpack.c.b16 %v9758, %v9757
    %v9766 = vpack.c.b16 %v9760, %v9759
    %v9767 = vpack.c.b16 %v9762, %v9761
    %v9768 = vpack.c.b16 %v9764, %v9763
    %v9770 = vsel %vm1212, %v9765, 0
    %v9773 = vsel %vm1212, %v9766, 0
    %v9776 = vsel %vm1212, %v9767, 0
    %v9779 = vsel %vm1212, %v9768, 0
    %9781 = vmatpush.bf16.msra.mxu0 0
    %9782 = vmatpush.bf16.msra.mxu0 0
    %9783 = vmatpush.bf16.msra.mxu0 0
    %9784 = vmatpush.bf16.msra.mxu0 0
    %9785 = vmatpush.bf16.msra.mxu0 0
    %9786 = vmatpush.bf16.msra.mxu0 0
    %9787 = vmatpush.bf16.msra.mxu0 %v9640
    %9788 = vmatpush.bf16.msra.mxu0 %v9638
    %9789 = vmatmul.bf16.gmra.mxu0 %v9770
    %v9790 = vpop.f32.mrf.mxu0
    %v9791 = vadd.f32 0.0, %v9790
    %v9792 = vpop.f32.mrf.mxu0
    %v9793 = vadd.f32 0.0, %v9792
    %9794 = vmatmul.bf16.gmra.mxu0 %v9773
    %v9795 = vpop.f32.mrf.mxu0
    %v9796 = vadd.f32 0.0, %v9795
    %v9797 = vpop.f32.mrf.mxu0
    %v9798 = vadd.f32 0.0, %v9797
    %9799 = vmatmul.bf16.gmra.mxu0 %v9776
    %v9800 = vpop.f32.mrf.mxu0
    %v9801 = vadd.f32 0.0, %v9800
    %v9802 = vpop.f32.mrf.mxu0
    %v9803 = vadd.f32 0.0, %v9802
    %9804 = vmatmul.bf16.gmra.mxu0 %v9779
    %v9805 = vpop.f32.mrf.mxu0
    %v9806 = vadd.f32 0.0, %v9805
    %v9807 = vpop.f32.mrf.mxu0
    %v9808 = vadd.f32 0.0, %v9807
    %9809 = vdwg.mxu0
    %9810 = vmatpush.bf16.msra.mxu0 0
    %9811 = vmatpush.bf16.msra.mxu0 0
    %9812 = vmatpush.bf16.msra.mxu0 0
    %9813 = vmatpush.bf16.msra.mxu0 0
    %9814 = vmatpush.bf16.msra.mxu0 0
    %9815 = vmatpush.bf16.msra.mxu0 0
    %9816 = vmatpush.bf16.msra.mxu0 %v9641
    %9817 = vmatpush.bf16.msra.mxu0 %v9639
    %9818 = vmatmul.bf16.gmra.mxu0 %v9770
    %v9819 = vpop.f32.mrf.mxu0
    %v9820 = vadd.f32 0.0, %v9819
    %v9821 = vpop.f32.mrf.mxu0
    %v9822 = vadd.f32 0.0, %v9821
    %9823 = vmatmul.bf16.gmra.mxu0 %v9773
    %v9824 = vpop.f32.mrf.mxu0
    %v9825 = vadd.f32 0.0, %v9824
    %v9826 = vpop.f32.mrf.mxu0
    %v9827 = vadd.f32 0.0, %v9826
    %9828 = vmatmul.bf16.gmra.mxu0 %v9776
    %v9829 = vpop.f32.mrf.mxu0
    %v9830 = vadd.f32 0.0, %v9829
    %v9831 = vpop.f32.mrf.mxu0
    %v9832 = vadd.f32 0.0, %v9831
    %9833 = vmatmul.bf16.gmra.mxu0 %v9779
    %v9834 = vpop.f32.mrf.mxu0
    %v9835 = vadd.f32 0.0, %v9834
    %v9836 = vpop.f32.mrf.mxu0
    %v9837 = vadd.f32 0.0, %v9836
    %9838 = vdwg.mxu0
    %s9839 = scalar_lea.vmem %s111, 64
    %v9840 = vld [vmem:[%s9839] sm:$0xf]
    %v9841 = vld [vmem:[%s9839 + $0x4] sm:$0xf]
    %v9842 = vld [vmem:[%s9839 + $0x8] sm:$0xf]
    %v9843 = vld [vmem:[%s9839 + $0xc] sm:$0xf]
    %v9844 = vld [vmem:[%s9839 + $0x10] sm:$0xf]
    %v9845 = vld [vmem:[%s9839 + $0x14] sm:$0xf]
    %v9846 = vld [vmem:[%s9839 + $0x18] sm:$0xf]
    %v9847 = vld [vmem:[%s9839 + $0x1c] sm:$0xf]
    %v9856 = vunpack.c.l.b16 %v9840
    %v9857 = vunpack.c.l.b16 %v9841
    %v9858 = vunpack.c.l.b16 %v9842
    %v9859 = vunpack.c.l.b16 %v9843
    %v9860 = vunpack.c.l.b16 %v9844
    %v9861 = vunpack.c.l.b16 %v9845
    %v9862 = vunpack.c.l.b16 %v9846
    %v9863 = vunpack.c.l.b16 %v9847
    %v9864 = vpack.c.b16 %v9857, %v9856
    %v9865 = vpack.c.b16 %v9859, %v9858
    %v9866 = vpack.c.b16 %v9861, %v9860
    %v9867 = vpack.c.b16 %v9863, %v9862
    %v9869 = vsel %vm1212, %v9864, 0
    %v9872 = vsel %vm1212, %v9865, 0
    %v9875 = vsel %vm1212, %v9866, 0
    %v9878 = vsel %vm1212, %v9867, 0
    %9880 = vmatpush.bf16.msra.mxu0 0
    %9881 = vmatpush.bf16.msra.mxu0 0
    %9882 = vmatpush.bf16.msra.mxu0 0
    %9883 = vmatpush.bf16.msra.mxu0 0
    %9884 = vmatpush.bf16.msra.mxu0 0
    %9885 = vmatpush.bf16.msra.mxu0 0
    %9886 = vmatpush.bf16.msra.mxu0 %v9640
    %9887 = vmatpush.bf16.msra.mxu0 %v9638
    %9888 = vmatmul.bf16.gmra.mxu0 %v9869
    %v9889 = vpop.f32.mrf.mxu0
    %v9890 = vadd.f32 0.0, %v9889
    %v9891 = vpop.f32.mrf.mxu0
    %v9892 = vadd.f32 0.0, %v9891
    %9893 = vmatmul.bf16.gmra.mxu0 %v9872
    %v9894 = vpop.f32.mrf.mxu0
    %v9895 = vadd.f32 0.0, %v9894
    %v9896 = vpop.f32.mrf.mxu0
    %v9897 = vadd.f32 0.0, %v9896
    %9898 = vmatmul.bf16.gmra.mxu0 %v9875
    %v9899 = vpop.f32.mrf.mxu0
    %v9900 = vadd.f32 0.0, %v9899
    %v9901 = vpop.f32.mrf.mxu0
    %v9902 = vadd.f32 0.0, %v9901
    %9903 = vmatmul.bf16.gmra.mxu0 %v9878
    %v9904 = vpop.f32.mrf.mxu0
    %v9905 = vadd.f32 0.0, %v9904
    %v9906 = vpop.f32.mrf.mxu0
    %v9907 = vadd.f32 0.0, %v9906
    %9908 = vdwg.mxu0
    %9909 = vmatpush.bf16.msra.mxu0 0
    %9910 = vmatpush.bf16.msra.mxu0 0
    %9911 = vmatpush.bf16.msra.mxu0 0
    %9912 = vmatpush.bf16.msra.mxu0 0
    %9913 = vmatpush.bf16.msra.mxu0 0
    %9914 = vmatpush.bf16.msra.mxu0 0
    %9915 = vmatpush.bf16.msra.mxu0 %v9641
    %9916 = vmatpush.bf16.msra.mxu0 %v9639
    %9917 = vmatmul.bf16.gmra.mxu0 %v9869
    %v9918 = vpop.f32.mrf.mxu0
    %v9919 = vadd.f32 0.0, %v9918
    %v9920 = vpop.f32.mrf.mxu0
    %v9921 = vadd.f32 0.0, %v9920
    %9922 = vmatmul.bf16.gmra.mxu0 %v9872
    %v9923 = vpop.f32.mrf.mxu0
    %v9924 = vadd.f32 0.0, %v9923
    %v9925 = vpop.f32.mrf.mxu0
    %v9926 = vadd.f32 0.0, %v9925
    %9927 = vmatmul.bf16.gmra.mxu0 %v9875
    %v9928 = vpop.f32.mrf.mxu0
    %v9929 = vadd.f32 0.0, %v9928
    %v9930 = vpop.f32.mrf.mxu0
    %v9931 = vadd.f32 0.0, %v9930
    %9932 = vmatmul.bf16.gmra.mxu0 %v9878
    %v9933 = vpop.f32.mrf.mxu0
    %v9934 = vadd.f32 0.0, %v9933
    %v9935 = vpop.f32.mrf.mxu0
    %v9936 = vadd.f32 0.0, %v9935
    %9937 = vdwg.mxu0
    %v9938 = vpack.c.bf16 %v9694, %v9692
    %v9939 = vpack.c.bf16 %v9723, %v9721
    %v9940 = vpack.c.bf16 %v9793, %v9791
    %v9941 = vpack.c.bf16 %v9822, %v9820
    %v9942 = vpack.c.bf16 %v9892, %v9890
    %v9943 = vpack.c.bf16 %v9921, %v9919
    %v9944 = vpack.c.bf16 %v9699, %v9697
    %v9945 = vpack.c.bf16 %v9728, %v9726
    %v9946 = vpack.c.bf16 %v9798, %v9796
    %v9947 = vpack.c.bf16 %v9827, %v9825
    %v9948 = vpack.c.bf16 %v9897, %v9895
    %v9949 = vpack.c.bf16 %v9926, %v9924
    %v9950 = vpack.c.bf16 %v9704, %v9702
    %v9951 = vpack.c.bf16 %v9733, %v9731
    %v9952 = vpack.c.bf16 %v9803, %v9801
    %v9953 = vpack.c.bf16 %v9832, %v9830
    %v9954 = vpack.c.bf16 %v9902, %v9900
    %v9955 = vpack.c.bf16 %v9931, %v9929
    %v9956 = vpack.c.bf16 %v9709, %v9707
    %v9957 = vpack.c.bf16 %v9738, %v9736
    %v9958 = vpack.c.bf16 %v9808, %v9806
    %v9959 = vpack.c.bf16 %v9837, %v9835
    %v9960 = vpack.c.bf16 %v9907, %v9905
    %v9961 = vpack.c.bf16 %v9936, %v9934
    %v9962 = vld [vmem:[%s115] sm:$0x1]
    %v9964 = vperm.slane %v9962, 0
    %v10062 = vunpack.c.l.b16 %v9542
    %v10063 = vunpack.c.l.b16 %v9543
    %v10064 = vunpack.c.l.b16 %v9544
    %v10065 = vunpack.c.l.b16 %v9545
    %v10066 = vunpack.c.l.b16 %v9546
    %v10067 = vunpack.c.l.b16 %v9547
    %v10068 = vunpack.c.l.b16 %v9548
    %v10069 = vunpack.c.l.b16 %v9549
    %v10070 = vunpack.c.l.b16 %v9550
    %v10071 = vunpack.c.l.b16 %v9551
    %v10072 = vunpack.c.l.b16 %v9552
    %v10073 = vunpack.c.l.b16 %v9553
    %v10074 = vunpack.c.l.b16 %v9554
    %v10075 = vunpack.c.l.b16 %v9555
    %v10076 = vunpack.c.l.b16 %v9556
    %v10077 = vunpack.c.l.b16 %v9557
    %v10078 = vunpack.c.l.b16 %v9558
    %v10079 = vunpack.c.l.b16 %v9559
    %v10080 = vunpack.c.l.b16 %v9560
    %v10081 = vunpack.c.l.b16 %v9561
    %v10082 = vunpack.c.l.b16 %v9562
    %v10083 = vunpack.c.l.b16 %v9563
    %v10084 = vunpack.c.l.b16 %v9564
    %v10085 = vunpack.c.l.b16 %v9565
    %v10086 = vunpack.c.l.b16 %v9566
    %v10087 = vunpack.c.l.b16 %v9567
    %v10088 = vunpack.c.l.b16 %v9568
    %v10089 = vunpack.c.l.b16 %v9569
    %v10090 = vunpack.c.l.b16 %v9570
    %v10091 = vunpack.c.l.b16 %v9571
    %v10092 = vunpack.c.l.b16 %v9572
    %v10093 = vunpack.c.l.b16 %v9573
    %v10094 = vunpack.c.l.b16 %v9574
    %v10095 = vunpack.c.l.b16 %v9575
    %v10096 = vunpack.c.l.b16 %v9576
    %v10097 = vunpack.c.l.b16 %v9577
    %v10098 = vunpack.c.l.b16 %v9578
    %v10099 = vunpack.c.l.b16 %v9579
    %v10100 = vunpack.c.l.b16 %v9580
    %v10101 = vunpack.c.l.b16 %v9581
    %v10102 = vunpack.c.l.b16 %v9582
    %v10103 = vunpack.c.l.b16 %v9583
    %v10104 = vunpack.c.l.b16 %v9584
    %v10105 = vunpack.c.l.b16 %v9585
    %v10106 = vunpack.c.l.b16 %v9586
    %v10107 = vunpack.c.l.b16 %v9587
    %v10108 = vunpack.c.l.b16 %v9588
    %v10109 = vunpack.c.l.b16 %v9589
    %v10110 = vunpack.c.l.b16 %v9590
    %v10111 = vunpack.c.l.b16 %v9591
    %v10112 = vunpack.c.l.b16 %v9592
    %v10113 = vunpack.c.l.b16 %v9593
    %v10114 = vunpack.c.l.b16 %v9594
    %v10115 = vunpack.c.l.b16 %v9595
    %v10116 = vunpack.c.l.b16 %v9596
    %v10117 = vunpack.c.l.b16 %v9597
    %v10118 = vunpack.c.l.b16 %v9598
    %v10119 = vunpack.c.l.b16 %v9599
    %v10120 = vunpack.c.l.b16 %v9600
    %v10121 = vunpack.c.l.b16 %v9601
    %v10122 = vunpack.c.l.b16 %v9602
    %v10123 = vunpack.c.l.b16 %v9603
    %v10124 = vunpack.c.l.b16 %v9604
    %v10125 = vunpack.c.l.b16 %v9605
    %v10126 = vunpack.c.l.b16 %v9606
    %v10127 = vunpack.c.l.b16 %v9607
    %v10128 = vunpack.c.l.b16 %v9608
    %v10129 = vunpack.c.l.b16 %v9609
    %v10130 = vunpack.c.l.b16 %v9610
    %v10131 = vunpack.c.l.b16 %v9611
    %v10132 = vunpack.c.l.b16 %v9612
    %v10133 = vunpack.c.l.b16 %v9613
    %v10134 = vunpack.c.l.b16 %v9614
    %v10135 = vunpack.c.l.b16 %v9615
    %v10136 = vunpack.c.l.b16 %v9616
    %v10137 = vunpack.c.l.b16 %v9617
    %v10138 = vunpack.c.l.b16 %v9618
    %v10139 = vunpack.c.l.b16 %v9619
    %v10140 = vunpack.c.l.b16 %v9620
    %v10141 = vunpack.c.l.b16 %v9621
    %v10142 = vunpack.c.l.b16 %v9622
    %v10143 = vunpack.c.l.b16 %v9623
    %v10144 = vunpack.c.l.b16 %v9624
    %v10145 = vunpack.c.l.b16 %v9625
    %v10146 = vunpack.c.l.b16 %v9626
    %v10147 = vunpack.c.l.b16 %v9627
    %v10148 = vunpack.c.l.b16 %v9628
    %v10149 = vunpack.c.l.b16 %v9629
    %v10150 = vunpack.c.l.b16 %v9630
    %v10151 = vunpack.c.l.b16 %v9631
    %v10152 = vunpack.c.l.b16 %v9632
    %v10153 = vunpack.c.l.b16 %v9633
    %v10154 = vunpack.c.l.b16 %v9634
    %v10155 = vunpack.c.l.b16 %v9635
    %v10156 = vunpack.c.l.b16 %v9636
    %v10157 = vunpack.c.l.b16 %v9637
    %v10158 = vpack.c.b16 %v10063, %v10062
    %v10159 = vpack.c.b16 %v10065, %v10064
    %v10160 = vpack.c.b16 %v10067, %v10066
    %v10161 = vpack.c.b16 %v10069, %v10068
    %v10162 = vpack.c.b16 %v10071, %v10070
    %v10163 = vpack.c.b16 %v10073, %v10072
    %v10164 = vpack.c.b16 %v10075, %v10074
    %v10165 = vpack.c.b16 %v10077, %v10076
    %v10166 = vpack.c.b16 %v10079, %v10078
    %v10167 = vpack.c.b16 %v10081, %v10080
    %v10168 = vpack.c.b16 %v10083, %v10082
    %v10169 = vpack.c.b16 %v10085, %v10084
    %v10170 = vpack.c.b16 %v10087, %v10086
    %v10171 = vpack.c.b16 %v10089, %v10088
    %v10172 = vpack.c.b16 %v10091, %v10090
    %v10173 = vpack.c.b16 %v10093, %v10092
    %v10174 = vpack.c.b16 %v10095, %v10094
    %v10175 = vpack.c.b16 %v10097, %v10096
    %v10176 = vpack.c.b16 %v10099, %v10098
    %v10177 = vpack.c.b16 %v10101, %v10100
    %v10178 = vpack.c.b16 %v10103, %v10102
    %v10179 = vpack.c.b16 %v10105, %v10104
    %v10180 = vpack.c.b16 %v10107, %v10106
    %v10181 = vpack.c.b16 %v10109, %v10108
    %v10182 = vpack.c.b16 %v10111, %v10110
    %v10183 = vpack.c.b16 %v10113, %v10112
    %v10184 = vpack.c.b16 %v10115, %v10114
    %v10185 = vpack.c.b16 %v10117, %v10116
    %v10186 = vpack.c.b16 %v10119, %v10118
    %v10187 = vpack.c.b16 %v10121, %v10120
    %v10188 = vpack.c.b16 %v10123, %v10122
    %v10189 = vpack.c.b16 %v10125, %v10124
    %v10190 = vpack.c.b16 %v10127, %v10126
    %v10191 = vpack.c.b16 %v10129, %v10128
    %v10192 = vpack.c.b16 %v10131, %v10130
    %v10193 = vpack.c.b16 %v10133, %v10132
    %v10194 = vpack.c.b16 %v10135, %v10134
    %v10195 = vpack.c.b16 %v10137, %v10136
    %v10196 = vpack.c.b16 %v10139, %v10138
    %v10197 = vpack.c.b16 %v10141, %v10140
    %v10198 = vpack.c.b16 %v10143, %v10142
    %v10199 = vpack.c.b16 %v10145, %v10144
    %v10200 = vpack.c.b16 %v10147, %v10146
    %v10201 = vpack.c.b16 %v10149, %v10148
    %v10202 = vpack.c.b16 %v10151, %v10150
    %v10203 = vpack.c.b16 %v10153, %v10152
    %v10204 = vpack.c.b16 %v10155, %v10154
    %v10205 = vpack.c.b16 %v10157, %v10156
    %10254 = vmatpush.bf16.msra.mxu0 %v10165
    %10255 = vmatpush.bf16.msra.mxu0 %v10164
    %10256 = vmatpush.bf16.msra.mxu0 %v10163
    %10257 = vmatpush.bf16.msra.mxu0 %v10162
    %10258 = vmatpush.bf16.msra.mxu0 %v10161
    %10259 = vmatpush.bf16.msra.mxu0 %v10160
    %10260 = vmatpush.bf16.msra.mxu0 %v10159
    %10261 = vmatpush.bf16.msra.mxu0 %v10158
    %10262 = vmatmul.bf16.gmra.mxu0 %v9938
    %v10263 = vpop.f32.mrf.mxu0
    %v10264 = vadd.f32 %v9964, %v10263
    %v10265 = vpop.f32.mrf.mxu0
    %v10266 = vadd.f32 %v9964, %v10265
    %10267 = vmatmul.bf16.gmra.mxu0 %v9944
    %v10268 = vpop.f32.mrf.mxu0
    %v10269 = vadd.f32 %v9964, %v10268
    %v10270 = vpop.f32.mrf.mxu0
    %v10271 = vadd.f32 %v9964, %v10270
    %10272 = vmatmul.bf16.gmra.mxu0 %v9950
    %v10273 = vpop.f32.mrf.mxu0
    %v10274 = vadd.f32 %v9964, %v10273
    %v10275 = vpop.f32.mrf.mxu0
    %v10276 = vadd.f32 %v9964, %v10275
    %10277 = vmatmul.bf16.gmra.mxu0 %v9956
    %v10278 = vpop.f32.mrf.mxu0
    %v10279 = vadd.f32 %v9964, %v10278
    %v10280 = vpop.f32.mrf.mxu0
    %v10281 = vadd.f32 %v9964, %v10280
    %10282 = vdwg.mxu0
    %10283 = vmatpush.bf16.msra.mxu0 %v10173
    %10284 = vmatpush.bf16.msra.mxu0 %v10172
    %10285 = vmatpush.bf16.msra.mxu0 %v10171
    %10286 = vmatpush.bf16.msra.mxu0 %v10170
    %10287 = vmatpush.bf16.msra.mxu0 %v10169
    %10288 = vmatpush.bf16.msra.mxu0 %v10168
    %10289 = vmatpush.bf16.msra.mxu0 %v10167
    %10290 = vmatpush.bf16.msra.mxu0 %v10166
    %10291 = vmatmul.bf16.gmra.mxu0 %v9939
    %v10292 = vpop.f32.mrf.mxu0
    %v10293 = vadd.f32 %v10264, %v10292
    %v10294 = vpop.f32.mrf.mxu0
    %v10295 = vadd.f32 %v10266, %v10294
    %10296 = vmatmul.bf16.gmra.mxu0 %v9945
    %v10297 = vpop.f32.mrf.mxu0
    %v10298 = vadd.f32 %v10269, %v10297
    %v10299 = vpop.f32.mrf.mxu0
    %v10300 = vadd.f32 %v10271, %v10299
    %10301 = vmatmul.bf16.gmra.mxu0 %v9951
    %v10302 = vpop.f32.mrf.mxu0
    %v10303 = vadd.f32 %v10274, %v10302
    %v10304 = vpop.f32.mrf.mxu0
    %v10305 = vadd.f32 %v10276, %v10304
    %10306 = vmatmul.bf16.gmra.mxu0 %v9957
    %v10307 = vpop.f32.mrf.mxu0
    %v10308 = vadd.f32 %v10279, %v10307
    %v10309 = vpop.f32.mrf.mxu0
    %v10310 = vadd.f32 %v10281, %v10309
    %10311 = vdwg.mxu0
    %10312 = vmatpush.bf16.msra.mxu0 %v10181
    %10313 = vmatpush.bf16.msra.mxu0 %v10180
    %10314 = vmatpush.bf16.msra.mxu0 %v10179
    %10315 = vmatpush.bf16.msra.mxu0 %v10178
    %10316 = vmatpush.bf16.msra.mxu0 %v10177
    %10317 = vmatpush.bf16.msra.mxu0 %v10176
    %10318 = vmatpush.bf16.msra.mxu0 %v10175
    %10319 = vmatpush.bf16.msra.mxu0 %v10174
    %10320 = vmatmul.bf16.gmra.mxu0 %v9940
    %v10321 = vpop.f32.mrf.mxu0
    %v10322 = vadd.f32 %v10293, %v10321
    %v10323 = vpop.f32.mrf.mxu0
    %v10324 = vadd.f32 %v10295, %v10323
    %10325 = vmatmul.bf16.gmra.mxu0 %v9946
    %v10326 = vpop.f32.mrf.mxu0
    %v10327 = vadd.f32 %v10298, %v10326
    %v10328 = vpop.f32.mrf.mxu0
    %v10329 = vadd.f32 %v10300, %v10328
    %10330 = vmatmul.bf16.gmra.mxu0 %v9952
    %v10331 = vpop.f32.mrf.mxu0
    %v10332 = vadd.f32 %v10303, %v10331
    %v10333 = vpop.f32.mrf.mxu0
    %v10334 = vadd.f32 %v10305, %v10333
    %10335 = vmatmul.bf16.gmra.mxu0 %v9958
    %v10336 = vpop.f32.mrf.mxu0
    %v10337 = vadd.f32 %v10308, %v10336
    %v10338 = vpop.f32.mrf.mxu0
    %v10339 = vadd.f32 %v10310, %v10338
    %10340 = vdwg.mxu0
    %10341 = vmatpush.bf16.msra.mxu0 %v10189
    %10342 = vmatpush.bf16.msra.mxu0 %v10188
    %10343 = vmatpush.bf16.msra.mxu0 %v10187
    %10344 = vmatpush.bf16.msra.mxu0 %v10186
    %10345 = vmatpush.bf16.msra.mxu0 %v10185
    %10346 = vmatpush.bf16.msra.mxu0 %v10184
    %10347 = vmatpush.bf16.msra.mxu0 %v10183
    %10348 = vmatpush.bf16.msra.mxu0 %v10182
    %10349 = vmatmul.bf16.gmra.mxu0 %v9941
    %v10350 = vpop.f32.mrf.mxu0
    %v10351 = vadd.f32 %v10322, %v10350
    %v10352 = vpop.f32.mrf.mxu0
    %v10353 = vadd.f32 %v10324, %v10352
    %10354 = vmatmul.bf16.gmra.mxu0 %v9947
    %v10355 = vpop.f32.mrf.mxu0
    %v10356 = vadd.f32 %v10327, %v10355
    %v10357 = vpop.f32.mrf.mxu0
    %v10358 = vadd.f32 %v10329, %v10357
    %10359 = vmatmul.bf16.gmra.mxu0 %v9953
    %v10360 = vpop.f32.mrf.mxu0
    %v10361 = vadd.f32 %v10332, %v10360
    %v10362 = vpop.f32.mrf.mxu0
    %v10363 = vadd.f32 %v10334, %v10362
    %10364 = vmatmul.bf16.gmra.mxu0 %v9959
    %v10365 = vpop.f32.mrf.mxu0
    %v10366 = vadd.f32 %v10337, %v10365
    %v10367 = vpop.f32.mrf.mxu0
    %v10368 = vadd.f32 %v10339, %v10367
    %10369 = vdwg.mxu0
    %10370 = vmatpush.bf16.msra.mxu0 %v10197
    %10371 = vmatpush.bf16.msra.mxu0 %v10196
    %10372 = vmatpush.bf16.msra.mxu0 %v10195
    %10373 = vmatpush.bf16.msra.mxu0 %v10194
    %10374 = vmatpush.bf16.msra.mxu0 %v10193
    %10375 = vmatpush.bf16.msra.mxu0 %v10192
    %10376 = vmatpush.bf16.msra.mxu0 %v10191
    %10377 = vmatpush.bf16.msra.mxu0 %v10190
    %10378 = vmatmul.bf16.gmra.mxu0 %v9942
    %v10379 = vpop.f32.mrf.mxu0
    %v10380 = vadd.f32 %v10351, %v10379
    %v10381 = vpop.f32.mrf.mxu0
    %v10382 = vadd.f32 %v10353, %v10381
    %10383 = vmatmul.bf16.gmra.mxu0 %v9948
    %v10384 = vpop.f32.mrf.mxu0
    %v10385 = vadd.f32 %v10356, %v10384
    %v10386 = vpop.f32.mrf.mxu0
    %v10387 = vadd.f32 %v10358, %v10386
    %10388 = vmatmul.bf16.gmra.mxu0 %v9954
    %v10389 = vpop.f32.mrf.mxu0
    %v10390 = vadd.f32 %v10361, %v10389
    %v10391 = vpop.f32.mrf.mxu0
    %v10392 = vadd.f32 %v10363, %v10391
    %10393 = vmatmul.bf16.gmra.mxu0 %v9960
    %v10394 = vpop.f32.mrf.mxu0
    %v10395 = vadd.f32 %v10366, %v10394
    %v10396 = vpop.f32.mrf.mxu0
    %v10397 = vadd.f32 %v10368, %v10396
    %10398 = vdwg.mxu0
    %10399 = vmatpush.bf16.msra.mxu0 %v10205
    %10400 = vmatpush.bf16.msra.mxu0 %v10204
    %10401 = vmatpush.bf16.msra.mxu0 %v10203
    %10402 = vmatpush.bf16.msra.mxu0 %v10202
    %10403 = vmatpush.bf16.msra.mxu0 %v10201
    %10404 = vmatpush.bf16.msra.mxu0 %v10200
    %10405 = vmatpush.bf16.msra.mxu0 %v10199
    %10406 = vmatpush.bf16.msra.mxu0 %v10198
    %10407 = vmatmul.bf16.gmra.mxu0 %v9943
    %v10408 = vpop.f32.mrf.mxu0
    %v10409 = vadd.f32 %v10380, %v10408
    %v10410 = vpop.f32.mrf.mxu0
    %v10411 = vadd.f32 %v10382, %v10410
    %10412 = vmatmul.bf16.gmra.mxu0 %v9949
    %v10413 = vpop.f32.mrf.mxu0
    %v10414 = vadd.f32 %v10385, %v10413
    %v10415 = vpop.f32.mrf.mxu0
    %v10416 = vadd.f32 %v10387, %v10415
    %10417 = vmatmul.bf16.gmra.mxu0 %v9955
    %v10418 = vpop.f32.mrf.mxu0
    %v10419 = vadd.f32 %v10390, %v10418
    %v10420 = vpop.f32.mrf.mxu0
    %v10421 = vadd.f32 %v10392, %v10420
    %10422 = vmatmul.bf16.gmra.mxu0 %v9961
    %v10423 = vpop.f32.mrf.mxu0
    %v10424 = vadd.f32 %v10395, %v10423
    %v10425 = vpop.f32.mrf.mxu0
    %v10426 = vadd.f32 %v10397, %v10425
    %10427 = vdwg.mxu0
    %v10428 = vtanh.pop %v10409
    %v10429 = vtanh.pop %v10411
    %v10430 = vtanh.pop %v10414
    %v10431 = vtanh.pop %v10416
    %v10432 = vtanh.pop %v10419
    %v10433 = vtanh.pop %v10421
    %v10434 = vtanh.pop %v10424
    %v10435 = vtanh.pop %v10426
    %10436 = vst.msk [vmem:[%s117] sm:$0xff] %vm1011, %v10428
    %10437 = vst.msk [vmem:[%s117 + $0x8] sm:$0xff] %vm1011, %v10429
    %10438 = vst.msk [vmem:[%s117 + $0x10] sm:$0xff] %vm1011, %v10430
    %10439 = vst.msk [vmem:[%s117 + $0x18] sm:$0xff] %vm1011, %v10431
    %10440 = vst.msk [vmem:[%s117 + $0x20] sm:$0xff] %vm1011, %v10432
    %10441 = vst.msk [vmem:[%s117 + $0x28] sm:$0xff] %vm1011, %v10433
    %10442 = vst.msk [vmem:[%s117 + $0x30] sm:$0xff] %vm1011, %v10434
    %10443 = vst.msk [vmem:[%s117 + $0x38] sm:$0xff] %vm1011, %v10435
    // Predicated region
    $region386: #{forward.1} parent=1 // pred_check
      _
    $region387: #{forward.1} parent=1 // pred_check_branch
      %10445 = sbr.rel (0) target = $region389
    $region388: #{forward.1} parent=1 // pred_region
      _
    $region389: #{forward.1} parent=1 // pred_fallthru
      _
    // Predicated region
    $region390: #{forward.1} parent=1 // pred_check
      _
    $region391: #{forward.1} parent=1 // pred_check_branch
      %10447 = sbr.rel (0) target = $region393
    $region392: #{forward.1} parent=1 // pred_region
      _
    $region393: #{forward.1} parent=1 // pred_fallthru
      _
    %10448 = vsyncpa [#allocation3], 1
    %10449 = vsyncpa [#allocation5], 1
    %10450 = vsyncpa [#allocation8], 1
    %10451 = vsyncpa [#allocation11], 1
    %10452 = vsyncpa [#allocation14], 1
    %10453 = vsyncpa [#allocation17], 1
    %10454 = vsyncpa [#allocation20], 1
    %10455 = vsyncpa [#allocation23], 1
    %10456 = vsyncpa [#allocation26], 1
    %10457 = vsyncpa [#allocation29], 1
    %10458 = vsyncpa [#allocation32], 1
    %10459 = vsyncpa [#allocation35], 1
    %10460 = vsyncpa [#allocation38], 1
    %10461 = vsyncpa [#allocation41], 1
    %10462 = vsyncpa [#allocation44], 1
    %10463 = vsyncpa [#allocation47], 1
    %10464 = vsyncpa [#allocation50], 1
    %10465 = vsyncpa [#allocation53], 1
    %10466 = vsyncpa [#allocation56], 1
    %10467 = vsyncpa [#allocation59], 1

</llo_original>
